<compile_context>
chip_gen: v5e
topology: v5e:2x2
jax: 0.10.0
libtpu: 0.0.40
codegen_flags: <defaults>
</compile_context>

<pallas_src>
import functools
import math

import jax
import jax.numpy as jnp
from jax import lax
from jax.experimental import pallas as pl
from jax.experimental.pallas import tpu as pltpu


# ------------------------------ Pallas kernel -------------------------------


def _fused_forward_kernel(x_ref, *refs, conv_meta, dense_meta):
    """Whole forward pass on one batch tile.  refs = (*param_refs, out_ref)."""
    o_ref = refs[-1]
    prefs = refs[:-1]
    pi = 0

    h = x_ref[...]                                    # (bn, C0*L0), lane-dense

    # ----- convolution / pooling stack: one matmul per conv, one per pool tap -----
    for item in conv_meta:
        if item[0] == "conv":
            _, relu = item
            m = prefs[pi][...]                        # (Cin*Lin, Cout*Lout) folded weight
            b = prefs[pi + 1][...]                    # (1, Cout*Lout)
            pi += 2
            h = jnp.dot(h, m, preferred_element_type=jnp.float32) + b
            if relu:
                h = jnp.maximum(h, 0.0)
            # Dropout: identity at inference.
        else:                                         # ("pool", psize)
            _, psize = item
            acc = jnp.dot(h, prefs[pi][...], preferred_element_type=jnp.float32)
            for p in range(1, psize):
                acc = jnp.maximum(
                    acc, jnp.dot(h, prefs[pi + p][...],
                                 preferred_element_type=jnp.float32))
            pi += psize
            h = acc

    # ----- dense stack (flatten is free: h is already channel-major (bn, C*L)) -----
    for (relu,) in dense_meta:
        w = prefs[pi][...]                            # (Fin, Fout)
        b = prefs[pi + 1][...]                        # (1, Fout)
        pi += 2
        h = jnp.dot(h, w, preferred_element_type=jnp.float32) + b
        if relu:
            h = jnp.maximum(h, 0.0)
        # Dropout: identity at inference.

    o_ref[...] = h


def forward_pallas(x_ncl, packed):
    """Whole RawSpeechModel forward as one pallas_call (no inter-layer XLA glue)."""
    conv_meta, conv_mats, dense_meta, dense_mats = packed
    n, c0, l0 = x_ncl.shape
    x_flat = x_ncl.reshape(n, c0 * l0)                # channel-major flatten (c0 == 1)
    n_labels = dense_mats[-1].shape[-1]

    flat_params = list(conv_mats) + list(dense_mats)

    # Batch tiling: parallel grid axis (uses both TCs on v7x once N is big enough).
    if n >= 8 and n % 8 == 0:
        bn = 8
        while bn * 2 <= min(n, 128) and n % (bn * 2) == 0:
            bn *= 2
    else:
        bn = n
    grid = (n // bn,)

    in_specs = [pl.BlockSpec((bn, c0 * l0), lambda i: (i, 0))]
    for a in flat_params:
        # Weights / selection matrices: one full-size resident block for every step.
        in_specs.append(pl.BlockSpec(a.shape, lambda i: (0, 0)))
    out_specs = pl.BlockSpec((bn, n_labels), lambda i: (i, 0))

    kernel = functools.partial(_fused_forward_kernel,
                               conv_meta=conv_meta, dense_meta=dense_meta)
    return pl.pallas_call(
        kernel,
        out_shape=jax.ShapeDtypeStruct((n, n_labels), jnp.float32),
        grid=grid,
        in_specs=in_specs,
        out_specs=out_specs,
        compiler_params=pltpu.CompilerParams(
            dimension_semantics=("parallel",),
            vmem_limit_bytes=48 * 1024 * 1024,
        ),
    )(x_flat, *flat_params)


# ----------------------- host-side parameter packing ------------------------


def _fold_conv(w, b, lin, stride, dil, pad):
    """Fold Conv1d weights into a (Cin*Lin, Cout*Lout) Toeplitz matrix.

    M[ci*Lin + i, co*Lout + m] = sum_k w[co,ci,k] * [i == m*stride + k*dil - pad]
    Source indices outside [0, Lin) simply never match -> exact zero padding.
    """
    cout, cin, ks = w.shape
    lout = (lin + 2 * pad - dil * (ks - 1) - 1) // stride + 1
    i_idx = jnp.arange(lin).reshape(lin, 1, 1)
    m_idx = jnp.arange(lout).reshape(1, lout, 1)
    k_idx = jnp.arange(ks).reshape(1, 1, ks)
    sel = (i_idx == m_idx * stride + k_idx * dil - pad).astype(jnp.float32)  # (Lin,Lout,K)
    m4 = jnp.einsum("imk,ock->ciom", sel, w)          # (Cin, Lin, Cout, Lout)
    mflat = m4.reshape(cin * lin, cout * lout)
    bflat = jnp.repeat(b, lout).reshape(1, cout * lout)
    return mflat, bflat, lout


def _pool_sels(c, lin, psize, pstride):
    """Block-diagonal 0/1 gather matrices, one per pool offset p.

    S_p[c*Lin + i, c*Lout + m] = [i == m*pstride + p]   (VALID pooling, in-range taps)
    """
    lout = (lin - psize) // pstride + 1
    # Exactness guard: VALID pooling must never read out of range (otherwise the
    # implicit 0-fill of the selection matrix could silently win the max).
    assert (lout - 1) * pstride + psize <= lin
    i_idx = jnp.arange(lin).reshape(lin, 1)
    m_idx = jnp.arange(lout).reshape(1, lout)
    eye = jnp.eye(c, dtype=jnp.float32)
    sels = []
    for p in range(psize):
        s = (i_idx == m_idx * pstride + p).astype(jnp.float32)      # (Lin, Lout)
        sels.append(jnp.einsum("ab,lm->albm", eye, s).reshape(c * lin, c * lout))
    return sels, lout


def pack_params(model, input_length, in_channels=1):
    """One-time packing of PyTorch-layout params into kernel layouts."""
    conv_layers, dense_layers, (out_w, out_b) = model
    conv_meta, conv_mats = [], []
    c, l = in_channels, input_length
    for kind, p in conv_layers:
        if kind == "conv":
            w, b, st, dil, pad, relu = p
            mflat, bflat, l = _fold_conv(w, b, l, st, dil, pad)
            c = w.shape[0]
            conv_meta.append(("conv", relu))
            conv_mats += [mflat, bflat]
        else:
            ps, pst = p
            sels, l = _pool_sels(c, l, ps, pst)
            conv_meta.append(("pool", ps))
            conv_mats += sels
    dense_meta, dense_mats = [], []
    for w, b, relu in dense_layers:
        dense_meta.append((relu,))
        dense_mats += [w.T, b.reshape(1, -1)]         # (Fin, Fout), (1, Fout)
    dense_meta.append((False,))                        # final output layer (no relu)
    dense_mats += [out_w.T, out_b.reshape(1, -1)]
    return conv_meta, conv_mats, dense_meta, dense_mats


# --------------------------- model construction -----------------------------

CONFIG = {
    "n_labels": 10,
    "input_length": 128,
    "act": "relu",
    "dropout_prob": 0.5,
    "n_feature_maps_1": 1,
    "conv1_size": 3, "conv1_stride": 1,
    "pool1_size": 2, "pool1_stride": 2,
    "n_feature_maps_2": 8,
    "conv2_size": 3, "conv2_stride": 1,
    "pool2_size": 2, "pool2_stride": 2,
    "n_feature_maps_3": 16,
    "dnn1_size": 32,
}


def build_model(config, key):
    """Mirror RawSpeechModel.__init__ shape tracing; deterministic param init."""
    act_relu = config.get("act") == "relu"
    conv_layers = []
    c, l = 1, config["input_length"]
    count = 1
    while f"conv{count}_size" in config:
        cin = config[f"n_feature_maps_{count}"]
        cout = config[f"n_feature_maps_{count + 1}"]
        ks = config[f"conv{count}_size"]
        st = config[f"conv{count}_stride"]
        dil = config.get(f"conv{count}_dilation", 1)
        pad = ks * dil // 2
        key, kw, kb = jax.random.split(key, 3)
        bound = 1.0 / math.sqrt(cin * ks)
        w = jax.random.uniform(kw, (cout, cin, ks), jnp.float32, -bound, bound)
        b = jax.random.uniform(kb, (cout,), jnp.float32, -bound, bound)
        conv_layers.append(("conv", (w, b, st, dil, pad, act_relu)))
        l = (l + 2 * pad - dil * (ks - 1) - 1) // st + 1
        c = cout
        if f"pool{count}_size" in config:
            ps = config[f"pool{count}_size"]
            pst = config[f"pool{count}_stride"]
            conv_layers.append(("pool", (ps, pst)))
            l = (l - ps) // pst + 1
        count += 1

    last = c * l
    dense_layers = []
    count = 1
    while f"dnn{count}_size" in config:
        h = config[f"dnn{count}_size"]
        key, kw, kb = jax.random.split(key, 3)
        bound = 1.0 / math.sqrt(last)
        w = jax.random.uniform(kw, (h, last), jnp.float32, -bound, bound)
        b = jax.random.uniform(kb, (h,), jnp.float32, -bound, bound)
        dense_layers.append((w, b, act_relu))
        last = h
        count += 1

    key, kw, kb = jax.random.split(key, 3)
    bound = 1.0 / math.sqrt(last)
    out_w = jax.random.uniform(kw, (config["n_labels"], last), jnp.float32, -bound, bound)
    out_b = jax.random.uniform(kb, (config["n_labels"],), jnp.float32, -bound, bound)
    return conv_layers, dense_layers, (out_w, out_b)


# ------------------------------ pure-JAX reference ---------------------------


def forward_reference(x_ncl, model):
    """Pure-JAX reference in PyTorch-native NCL layout."""
    conv_layers, dense_layers, (out_w, out_b) = model
    x = x_ncl
    for kind, p in conv_layers:
        if kind == "conv":
            w, b, st, dil, pad, relu = p
            x = lax.conv_general_dilated(
                x, w, (st,), [(pad, pad)], rhs_dilation=(dil,),
                dimension_numbers=("NCH", "OIH", "NCH"),
            ) + b[None, :, None]
            if relu:
                x = jnp.maximum(x, 0.0)
        else:
            ps, pst = p
            x = lax.reduce_window(x, -jnp.inf, lax.max, (1, 1, ps), (1, 1, pst), "VALID")
    x = x.reshape(x.shape[0], -1)
    for w, b, relu in dense_layers:
        x = x @ w.T + b
        if relu:
            x = jnp.maximum(x, 0.0)
    return x @ out_w.T + out_b


# ------------------------------------ main -----------------------------------

if __name__ == "__main__":
    key = jax.random.PRNGKey(0)
    k_model, k_x = jax.random.split(key)
    model = build_model(CONFIG, k_model)
    packed = pack_params(model, CONFIG["input_length"], in_channels=1)

    # Input is PyTorch-style (N, C=1, L) raw waveform.
    x = jax.random.normal(k_x, (2, 1, CONFIG["input_length"]), jnp.float32)

    out = forward_pallas(x, packed)
    out = jax.block_until_ready(out)

    ref = forward_reference(x, model)
    assert out.shape == (2, CONFIG["n_labels"]), out.shape
    assert jnp.allclose(out, ref, rtol=1e-3, atol=1e-3), (
        f"max abs err {jnp.max(jnp.abs(out - ref))}"
    )
    print("KERNEL_OK")
</pallas_src>

<mosaic_0001>
module attributes {stable_mosaic.version = 11 : i64} {
  func.func @_fused_forward_kernel(%arg0: i32, %arg1: memref<2x128xf32, #tpu.memory_space<vmem>>, %arg2: memref<128x1024xf32, #tpu.memory_space<vmem>>, %arg3: memref<1x1024xf32, #tpu.memory_space<vmem>>, %arg4: memref<1024x512xf32, #tpu.memory_space<vmem>>, %arg5: memref<1024x512xf32, #tpu.memory_space<vmem>>, %arg6: memref<512x1024xf32, #tpu.memory_space<vmem>>, %arg7: memref<1x1024xf32, #tpu.memory_space<vmem>>, %arg8: memref<1024x512xf32, #tpu.memory_space<vmem>>, %arg9: memref<1024x512xf32, #tpu.memory_space<vmem>>, %arg10: memref<512x32xf32, #tpu.memory_space<vmem>>, %arg11: memref<1x32xf32, #tpu.memory_space<vmem>>, %arg12: memref<32x10xf32, #tpu.memory_space<vmem>>, %arg13: memref<1x10xf32, #tpu.memory_space<vmem>>, %arg14: memref<2x10xf32, #tpu.memory_space<vmem>>) attributes {dimension_semantics = [#tpu.dimension_semantics<parallel>], iteration_bounds = array<i64: 1>, scalar_prefetch = 0 : i64, scratch_operands = 0 : i64, tpu.core_type = #tpu.core_type<tc>, window_params = [{transform_indices = @transform_0, window_bounds = array<i64: 2, 128>}, {pipeline_mode = #tpu.pipeline_mode<synchronous>, transform_indices = @transform_1, window_bounds = array<i64: 128, 1024>}, {pipeline_mode = #tpu.pipeline_mode<synchronous>, transform_indices = @transform_2, window_bounds = array<i64: 1, 1024>}, {pipeline_mode = #tpu.pipeline_mode<synchronous>, transform_indices = @transform_3, window_bounds = array<i64: 1024, 512>}, {pipeline_mode = #tpu.pipeline_mode<synchronous>, transform_indices = @transform_4, window_bounds = array<i64: 1024, 512>}, {pipeline_mode = #tpu.pipeline_mode<synchronous>, transform_indices = @transform_5, window_bounds = array<i64: 512, 1024>}, {pipeline_mode = #tpu.pipeline_mode<synchronous>, transform_indices = @transform_6, window_bounds = array<i64: 1, 1024>}, {pipeline_mode = #tpu.pipeline_mode<synchronous>, transform_indices = @transform_7, window_bounds = array<i64: 1024, 512>}, {pipeline_mode = #tpu.pipeline_mode<synchronous>, transform_indices = @transform_8, window_bounds = array<i64: 1024, 512>}, {pipeline_mode = #tpu.pipeline_mode<synchronous>, transform_indices = @transform_9, window_bounds = array<i64: 512, 32>}, {pipeline_mode = #tpu.pipeline_mode<synchronous>, transform_indices = @transform_10, window_bounds = array<i64: 1, 32>}, {pipeline_mode = #tpu.pipeline_mode<synchronous>, transform_indices = @transform_11, window_bounds = array<i64: 32, 10>}, {pipeline_mode = #tpu.pipeline_mode<synchronous>, transform_indices = @transform_12, window_bounds = array<i64: 1, 10>}, {transform_indices = @transform_13, window_bounds = array<i64: 2, 10>}]} {
    %c0 = arith.constant 0 : index
    %c0_0 = arith.constant 0 : index
    %0 = vector.load %arg1[%c0, %c0_0] : memref<2x128xf32, #tpu.memory_space<vmem>>, vector<2x128xf32>
    %c0_1 = arith.constant 0 : index
    %c0_2 = arith.constant 0 : index
    %1 = vector.load %arg2[%c0_1, %c0_2] : memref<128x1024xf32, #tpu.memory_space<vmem>>, vector<128x1024xf32>
    %c0_3 = arith.constant 0 : index
    %c0_4 = arith.constant 0 : index
    %2 = vector.load %arg3[%c0_3, %c0_4] : memref<1x1024xf32, #tpu.memory_space<vmem>>, vector<1x1024xf32>
    %cst = arith.constant dense<0.000000e+00> : vector<2x1024xf32>
    %3 = tpu.matmul %0, %1, %cst {dimension_numbers = #tpu.dot_dimension_numbers<[1], [0], [0], [1], [0, 0, 1, 1], [], []>} : vector<2x128xf32>, vector<128x1024xf32>, vector<2x1024xf32> -> vector<2x1024xf32>
    %4 = vector.broadcast %2 : vector<1x1024xf32> to vector<2x1024xf32>
    %5 = arith.addf %3, %4 : vector<2x1024xf32>
    %cst_5 = arith.constant 0.000000e+00 : f32
    %6 = vector.broadcast %cst_5 : f32 to vector<2x1024xf32>
    %7 = arith.maximumf %5, %6 : vector<2x1024xf32>
    %c0_6 = arith.constant 0 : index
    %c0_7 = arith.constant 0 : index
    %8 = vector.load %arg4[%c0_6, %c0_7] : memref<1024x512xf32, #tpu.memory_space<vmem>>, vector<1024x512xf32>
    %cst_8 = arith.constant dense<0.000000e+00> : vector<2x512xf32>
    %9 = tpu.matmul %7, %8, %cst_8 {dimension_numbers = #tpu.dot_dimension_numbers<[1], [0], [0], [1], [0, 0, 1, 1], [], []>} : vector<2x1024xf32>, vector<1024x512xf32>, vector<2x512xf32> -> vector<2x512xf32>
    %c0_9 = arith.constant 0 : index
    %c0_10 = arith.constant 0 : index
    %10 = vector.load %arg5[%c0_9, %c0_10] : memref<1024x512xf32, #tpu.memory_space<vmem>>, vector<1024x512xf32>
    %cst_11 = arith.constant dense<0.000000e+00> : vector<2x512xf32>
    %11 = tpu.matmul %7, %10, %cst_11 {dimension_numbers = #tpu.dot_dimension_numbers<[1], [0], [0], [1], [0, 0, 1, 1], [], []>} : vector<2x1024xf32>, vector<1024x512xf32>, vector<2x512xf32> -> vector<2x512xf32>
    %12 = arith.maximumf %9, %11 : vector<2x512xf32>
    %c0_12 = arith.constant 0 : index
    %c0_13 = arith.constant 0 : index
    %13 = vector.load %arg6[%c0_12, %c0_13] : memref<512x1024xf32, #tpu.memory_space<vmem>>, vector<512x1024xf32>
    %c0_14 = arith.constant 0 : index
    %c0_15 = arith.constant 0 : index
    %14 = vector.load %arg7[%c0_14, %c0_15] : memref<1x1024xf32, #tpu.memory_space<vmem>>, vector<1x1024xf32>
    %cst_16 = arith.constant dense<0.000000e+00> : vector<2x1024xf32>
    %15 = tpu.matmul %12, %13, %cst_16 {dimension_numbers = #tpu.dot_dimension_numbers<[1], [0], [0], [1], [0, 0, 1, 1], [], []>} : vector<2x512xf32>, vector<512x1024xf32>, vector<2x1024xf32> -> vector<2x1024xf32>
    %16 = vector.broadcast %14 : vector<1x1024xf32> to vector<2x1024xf32>
    %17 = arith.addf %15, %16 : vector<2x1024xf32>
    %cst_17 = arith.constant 0.000000e+00 : f32
    %18 = vector.broadcast %cst_17 : f32 to vector<2x1024xf32>
    %19 = arith.maximumf %17, %18 : vector<2x1024xf32>
    %c0_18 = arith.constant 0 : index
    %c0_19 = arith.constant 0 : index
    %20 = vector.load %arg8[%c0_18, %c0_19] : memref<1024x512xf32, #tpu.memory_space<vmem>>, vector<1024x512xf32>
    %cst_20 = arith.constant dense<0.000000e+00> : vector<2x512xf32>
    %21 = tpu.matmul %19, %20, %cst_20 {dimension_numbers = #tpu.dot_dimension_numbers<[1], [0], [0], [1], [0, 0, 1, 1], [], []>} : vector<2x1024xf32>, vector<1024x512xf32>, vector<2x512xf32> -> vector<2x512xf32>
    %c0_21 = arith.constant 0 : index
    %c0_22 = arith.constant 0 : index
    %22 = vector.load %arg9[%c0_21, %c0_22] : memref<1024x512xf32, #tpu.memory_space<vmem>>, vector<1024x512xf32>
    %cst_23 = arith.constant dense<0.000000e+00> : vector<2x512xf32>
    %23 = tpu.matmul %19, %22, %cst_23 {dimension_numbers = #tpu.dot_dimension_numbers<[1], [0], [0], [1], [0, 0, 1, 1], [], []>} : vector<2x1024xf32>, vector<1024x512xf32>, vector<2x512xf32> -> vector<2x512xf32>
    %24 = arith.maximumf %21, %23 : vector<2x512xf32>
    %c0_24 = arith.constant 0 : index
    %c0_25 = arith.constant 0 : index
    %25 = vector.load %arg10[%c0_24, %c0_25] : memref<512x32xf32, #tpu.memory_space<vmem>>, vector<512x32xf32>
    %c0_26 = arith.constant 0 : index
    %c0_27 = arith.constant 0 : index
    %26 = vector.load %arg11[%c0_26, %c0_27] : memref<1x32xf32, #tpu.memory_space<vmem>>, vector<1x32xf32>
    %cst_28 = arith.constant dense<0.000000e+00> : vector<2x32xf32>
    %27 = tpu.matmul %24, %25, %cst_28 {dimension_numbers = #tpu.dot_dimension_numbers<[1], [0], [0], [1], [0, 0, 1, 1], [], []>} : vector<2x512xf32>, vector<512x32xf32>, vector<2x32xf32> -> vector<2x32xf32>
    %28 = vector.broadcast %26 : vector<1x32xf32> to vector<2x32xf32>
    %29 = arith.addf %27, %28 : vector<2x32xf32>
    %cst_29 = arith.constant 0.000000e+00 : f32
    %30 = vector.broadcast %cst_29 : f32 to vector<2x32xf32>
    %31 = arith.maximumf %29, %30 : vector<2x32xf32>
    %c0_30 = arith.constant 0 : index
    %c0_31 = arith.constant 0 : index
    %32 = vector.load %arg12[%c0_30, %c0_31] : memref<32x10xf32, #tpu.memory_space<vmem>>, vector<32x10xf32>
    %c0_32 = arith.constant 0 : index
    %c0_33 = arith.constant 0 : index
    %33 = vector.load %arg13[%c0_32, %c0_33] : memref<1x10xf32, #tpu.memory_space<vmem>>, vector<1x10xf32>
    %cst_34 = arith.constant dense<0.000000e+00> : vector<2x10xf32>
    %34 = tpu.matmul %31, %32, %cst_34 {dimension_numbers = #tpu.dot_dimension_numbers<[1], [0], [0], [1], [0, 0, 1, 1], [], []>} : vector<2x32xf32>, vector<32x10xf32>, vector<2x10xf32> -> vector<2x10xf32>
    %35 = vector.broadcast %33 : vector<1x10xf32> to vector<2x10xf32>
    %36 = arith.addf %34, %35 : vector<2x10xf32>
    %c0_35 = arith.constant 0 : index
    %c0_36 = arith.constant 0 : index
    %37 = vector.load %arg14[%c0_35, %c0_36] : memref<2x10xf32, #tpu.memory_space<vmem>>, vector<2x10xf32>
    tpu.vector_store %arg14[%c0_35, %c0_36], %36 {strides = array<i32>} : memref<2x10xf32, #tpu.memory_space<vmem>>, vector<2x10xf32>,
    return
  }
  func.func @transform_0(%arg0: i32) -> (i32, i32) {
    %c0_i32 = arith.constant 0 : i32
    %c0_i32_0 = arith.constant 0 : i32
    return %arg0, %c0_i32 : i32, i32
  }
  func.func @transform_1(%arg0: i32) -> (i32, i32) {
    %c0_i32 = arith.constant 0 : i32
    %c0_i32_0 = arith.constant 0 : i32
    %c0_i32_1 = arith.constant 0 : i32
    return %c0_i32, %c0_i32_0 : i32, i32
  }
  func.func @transform_2(%arg0: i32) -> (i32, i32) {
    %c0_i32 = arith.constant 0 : i32
    %c0_i32_0 = arith.constant 0 : i32
    %c0_i32_1 = arith.constant 0 : i32
    return %c0_i32, %c0_i32_0 : i32, i32
  }
  func.func @transform_3(%arg0: i32) -> (i32, i32) {
    %c0_i32 = arith.constant 0 : i32
    %c0_i32_0 = arith.constant 0 : i32
    %c0_i32_1 = arith.constant 0 : i32
    return %c0_i32, %c0_i32_0 : i32, i32
  }
  func.func @transform_4(%arg0: i32) -> (i32, i32) {
    %c0_i32 = arith.constant 0 : i32
    %c0_i32_0 = arith.constant 0 : i32
    %c0_i32_1 = arith.constant 0 : i32
    return %c0_i32, %c0_i32_0 : i32, i32
  }
  func.func @transform_5(%arg0: i32) -> (i32, i32) {
    %c0_i32 = arith.constant 0 : i32
    %c0_i32_0 = arith.constant 0 : i32
    %c0_i32_1 = arith.constant 0 : i32
    return %c0_i32, %c0_i32_0 : i32, i32
  }
  func.func @transform_6(%arg0: i32) -> (i32, i32) {
    %c0_i32 = arith.constant 0 : i32
    %c0_i32_0 = arith.constant 0 : i32
    %c0_i32_1 = arith.constant 0 : i32
    return %c0_i32, %c0_i32_0 : i32, i32
  }
  func.func @transform_7(%arg0: i32) -> (i32, i32) {
    %c0_i32 = arith.constant 0 : i32
    %c0_i32_0 = arith.constant 0 : i32
    %c0_i32_1 = arith.constant 0 : i32
    return %c0_i32, %c0_i32_0 : i32, i32
  }
  func.func @transform_8(%arg0: i32) -> (i32, i32) {
    %c0_i32 = arith.constant 0 : i32
    %c0_i32_0 = arith.constant 0 : i32
    %c0_i32_1 = arith.constant 0 : i32
    return %c0_i32, %c0_i32_0 : i32, i32
  }
  func.func @transform_9(%arg0: i32) -> (i32, i32) {
    %c0_i32 = arith.constant 0 : i32
    %c0_i32_0 = arith.constant 0 : i32
    %c0_i32_1 = arith.constant 0 : i32
    return %c0_i32, %c0_i32_0 : i32, i32
  }
  func.func @transform_10(%arg0: i32) -> (i32, i32) {
    %c0_i32 = arith.constant 0 : i32
    %c0_i32_0 = arith.constant 0 : i32
    %c0_i32_1 = arith.constant 0 : i32
    return %c0_i32, %c0_i32_0 : i32, i32
  }
  func.func @transform_11(%arg0: i32) -> (i32, i32) {
    %c0_i32 = arith.constant 0 : i32
    %c0_i32_0 = arith.constant 0 : i32
    %c0_i32_1 = arith.constant 0 : i32
    return %c0_i32, %c0_i32_0 : i32, i32
  }
  func.func @transform_12(%arg0: i32) -> (i32, i32) {
    %c0_i32 = arith.constant 0 : i32
    %c0_i32_0 = arith.constant 0 : i32
    %c0_i32_1 = arith.constant 0 : i32
    return %c0_i32, %c0_i32_0 : i32, i32
  }
  func.func @transform_13(%arg0: i32) -> (i32, i32) {
    %c0_i32 = arith.constant 0 : i32
    %c0_i32_0 = arith.constant 0 : i32
    return %arg0, %c0_i32 : i32, i32
  }
}

</mosaic_0001>

<llo_original>
// kernel: tpu_custom_call.1
$region0: #{tpu_custom_call.1}
  #allocation0 [shape = 'u32[]', space=smem, size = 0x4, offset = 0x4, fixed_abs, tag = 'smem constant byte address 0x4 - core index']
  #allocation1 [shape = 'u32[72,128]{1,0:T(1,128)}', space=vmem, size = 0x9000, scoped, tag = 'internal scratch']
  %s0 = inlined_call_operand.hbm [shape: f32[2,128], index: 0, kind: input, shape index: {}]
  %s1 = inlined_call_operand.hbm [shape: f32[128,1024], index: 1, kind: input, shape index: {}]
  %s2 = inlined_call_operand.hbm [shape: f32[1,1024], index: 2, kind: input, shape index: {}]
  %s3 = inlined_call_operand.hbm [shape: f32[1024,512], index: 3, kind: input, shape index: {}]
  %s4 = inlined_call_operand.hbm [shape: f32[1024,512], index: 4, kind: input, shape index: {}]
  %s5 = inlined_call_operand.hbm [shape: f32[512,1024], index: 5, kind: input, shape index: {}]
  %s6 = inlined_call_operand.hbm [shape: f32[1,1024], index: 6, kind: input, shape index: {}]
  %s7 = inlined_call_operand.hbm [shape: f32[1024,512], index: 7, kind: input, shape index: {}]
  %s8 = inlined_call_operand.hbm [shape: f32[1024,512], index: 8, kind: input, shape index: {}]
  %s9 = inlined_call_operand.vmem [shape: f32[512,32], index: 9, kind: input, shape index: {}]
  %s10 = inlined_call_operand.hbm [shape: f32[1,32], index: 10, kind: input, shape index: {}]
  %s11 = inlined_call_operand.vmem [shape: f32[32,10], index: 11, kind: input, shape index: {}]
  %s12 = inlined_call_operand.hbm [shape: f32[1,10], index: 12, kind: input, shape index: {}]
  %s13 = inlined_call_operand.hbm [shape: f32[2,10], index: 13, kind: output, shape index: {}]
  %s14 = sld [smem:[#allocation0]]
  $region106: #{tpu_custom_call.1} parent=0
    _
  %s16 = ssub.s32 1, %s14
  %s17 = scalar_select 0, %s16, %s14
  $region1: #{tpu_custom_call.1} parent=0
    #allocation2 [shape = 'u8[1024]{0}', space=vmem, size = 0x400, scoped, tag = 'input window, operand 0, single buffered']
    #allocation3 [shape = 's32[1]{0}', space=sflag, size = 0x4, scoped, tag = 'scoped memory for tpu_custom_call.1']
    #allocation4 [shape = 's32[1]{0}', space=sflag, size = 0x4, scoped, tag = 'scoped memory for tpu_custom_call.1']
    #allocation5 [shape = 'u8[524288]{0}', space=vmem, size = 0x80000, scoped, tag = 'input window, operand 1, single buffered']
    #allocation6 [shape = 's32[1]{0}', space=sflag, size = 0x4, scoped, tag = 'scoped memory for tpu_custom_call.1']
    #allocation7 [shape = 'u8[4096]{0}', space=vmem, size = 0x1000, scoped, tag = 'input window, operand 2, single buffered']
    #allocation8 [shape = 'u8[2097152]{0}', space=vmem, size = 0x200000, scoped, tag = 'input window, operand 3, single buffered']
    #allocation9 [shape = 's32[1]{0}', space=sflag, size = 0x4, scoped, tag = 'scoped memory for tpu_custom_call.1']
    #allocation10 [shape = 'u8[2097152]{0}', space=vmem, size = 0x200000, scoped, tag = 'input window, operand 4, single buffered']
    #allocation11 [shape = 'u8[2097152]{0}', space=vmem, size = 0x200000, scoped, tag = 'input window, operand 5, single buffered']
    #allocation12 [shape = 's32[1]{0}', space=sflag, size = 0x4, scoped, tag = 'scoped memory for tpu_custom_call.1']
    #allocation13 [shape = 'u8[4096]{0}', space=vmem, size = 0x1000, scoped, tag = 'input window, operand 6, single buffered']
    #allocation14 [shape = 'u8[2097152]{0}', space=vmem, size = 0x200000, scoped, tag = 'input window, operand 7, single buffered']
    #allocation15 [shape = 's32[1]{0}', space=sflag, size = 0x4, scoped, tag = 'scoped memory for tpu_custom_call.1']
    #allocation16 [shape = 'u8[2097152]{0}', space=vmem, size = 0x200000, scoped, tag = 'input window, operand 8, single buffered']
    #allocation17 [shape = 'u8[512]{0}', space=vmem, size = 0x400, scoped, tag = 'input window, operand 10, single buffered']
    #allocation18 [shape = 's32[1]{0}', space=sflag, size = 0x4, scoped, tag = 'scoped memory for tpu_custom_call.1']
    #allocation19 [shape = 'u8[512]{0}', space=vmem, size = 0x400, scoped, tag = 'input window, operand 12, single buffered']
    #allocation20 [shape = 'u8[1024]{0}', space=vmem, size = 0x400, scoped, tag = 'output window, operand 0, single buffered']
    %18 = vsyncpa [#allocation3], 0
    %19 = vsyncpa [#allocation6], 0
    %20 = vsyncpa [#allocation9], 0
    %21 = vsyncpa [#allocation12], 0
    %22 = vsyncpa [#allocation15], 0
    %23 = vsyncpa [#allocation18], 0
    %24 = vsyncpa [#allocation4], 0
    // Predicated region
    $region2: #{tpu_custom_call.1} parent=1 // pred_check
      _
    $region3: #{tpu_custom_call.1} parent=1 // pred_check_branch
      %26 = sbr.rel (0) target = $region5
    $region4: #{tpu_custom_call.1} parent=1 // pred_region
      %28 = vsyncadd [#allocation3], 0
      %s30 = sshll.u32 %s0, 4
      %s31 = int_to_ptr.hbm [resolvable:$true] %s30
      %s32 = sshll.u32 [#allocation2], 4
      %s33 = int_to_ptr.vmem [resolvable:$true] %s32
      %35 = dma.hbm_to_vmem [thread:$0]  %s31, 32, %s33, [#allocation3]
    $region5: #{tpu_custom_call.1} parent=1 // pred_fallthru
      _
    // Predicated region
    $region6: #{tpu_custom_call.1} parent=1 // pred_check
      _
    $region7: #{tpu_custom_call.1} parent=1 // pred_check_branch
      %37 = sbr.rel (0) target = $region9
    $region8: #{tpu_custom_call.1} parent=1 // pred_region
      %39 = vsyncadd [#allocation6], 0
      %s40 = sshll.u32 %s1, 4
      %s41 = int_to_ptr.hbm [resolvable:$true] %s40
      %s42 = sshll.u32 [#allocation5], 4
      %s43 = int_to_ptr.vmem [resolvable:$true] %s42
      %48 = dma.hbm_to_vmem [thread:$0]  %s41, 16384, %s43, [#allocation6], 1024, 1024, 64
    $region9: #{tpu_custom_call.1} parent=1 // pred_fallthru
      _
    // Predicated region
    $region10: #{tpu_custom_call.1} parent=1 // pred_check
      _
    $region11: #{tpu_custom_call.1} parent=1 // pred_check_branch
      %50 = sbr.rel (0) target = $region13
    $region12: #{tpu_custom_call.1} parent=1 // pred_region
      %52 = vsyncadd [#allocation6], 0
      %s54 = sshll.u32 %s2, 4
      %s55 = int_to_ptr.hbm [resolvable:$true] %s54
      %s56 = sshll.u32 [#allocation7], 4
      %s57 = int_to_ptr.vmem [resolvable:$true] %s56
      %59 = dma.hbm_to_vmem [thread:$0]  %s55, 128, %s57, [#allocation6]
    $region13: #{tpu_custom_call.1} parent=1 // pred_fallthru
      _
    // Predicated region
    $region14: #{tpu_custom_call.1} parent=1 // pred_check
      _
    $region15: #{tpu_custom_call.1} parent=1 // pred_check_branch
      %61 = sbr.rel (0) target = $region17
    $region16: #{tpu_custom_call.1} parent=1 // pred_region
      %63 = vsyncadd [#allocation9], 0
      %s64 = sshll.u32 %s3, 4
      %s65 = int_to_ptr.hbm [resolvable:$true] %s64
      %s66 = sshll.u32 [#allocation8], 4
      %s67 = int_to_ptr.vmem [resolvable:$true] %s66
      %72 = dma.hbm_to_vmem [thread:$0]  %s65, 65536, %s67, [#allocation9], 512, 512, 32
    $region17: #{tpu_custom_call.1} parent=1 // pred_fallthru
      _
    // Predicated region
    $region18: #{tpu_custom_call.1} parent=1 // pred_check
      _
    $region19: #{tpu_custom_call.1} parent=1 // pred_check_branch
      %74 = sbr.rel (0) target = $region21
    $region20: #{tpu_custom_call.1} parent=1 // pred_region
      %76 = vsyncadd [#allocation9], 0
      %s77 = sshll.u32 %s4, 4
      %s78 = int_to_ptr.hbm [resolvable:$true] %s77
      %s79 = sshll.u32 [#allocation10], 4
      %s80 = int_to_ptr.vmem [resolvable:$true] %s79
      %85 = dma.hbm_to_vmem [thread:$0]  %s78, 65536, %s80, [#allocation9], 512, 512, 32
    $region21: #{tpu_custom_call.1} parent=1 // pred_fallthru
      _
    // Predicated region
    $region22: #{tpu_custom_call.1} parent=1 // pred_check
      _
    $region23: #{tpu_custom_call.1} parent=1 // pred_check_branch
      %87 = sbr.rel (0) target = $region25
    $region24: #{tpu_custom_call.1} parent=1 // pred_region
      %89 = vsyncadd [#allocation12], 0
      %s90 = sshll.u32 %s5, 4
      %s91 = int_to_ptr.hbm [resolvable:$true] %s90
      %s92 = sshll.u32 [#allocation11], 4
      %s93 = int_to_ptr.vmem [resolvable:$true] %s92
      %98 = dma.hbm_to_vmem [thread:$0]  %s91, 65536, %s93, [#allocation12], 1024, 1024, 64
    $region25: #{tpu_custom_call.1} parent=1 // pred_fallthru
      _
    // Predicated region
    $region26: #{tpu_custom_call.1} parent=1 // pred_check
      _
    $region27: #{tpu_custom_call.1} parent=1 // pred_check_branch
      %100 = sbr.rel (0) target = $region29
    $region28: #{tpu_custom_call.1} parent=1 // pred_region
      %102 = vsyncadd [#allocation12], 0
      %s104 = sshll.u32 %s6, 4
      %s105 = int_to_ptr.hbm [resolvable:$true] %s104
      %s106 = sshll.u32 [#allocation13], 4
      %s107 = int_to_ptr.vmem [resolvable:$true] %s106
      %109 = dma.hbm_to_vmem [thread:$0]  %s105, 128, %s107, [#allocation12]
    $region29: #{tpu_custom_call.1} parent=1 // pred_fallthru
      _
    // Predicated region
    $region30: #{tpu_custom_call.1} parent=1 // pred_check
      _
    $region31: #{tpu_custom_call.1} parent=1 // pred_check_branch
      %111 = sbr.rel (0) target = $region33
    $region32: #{tpu_custom_call.1} parent=1 // pred_region
      %113 = vsyncadd [#allocation15], 0
      %s114 = sshll.u32 %s7, 4
      %s115 = int_to_ptr.hbm [resolvable:$true] %s114
      %s116 = sshll.u32 [#allocation14], 4
      %s117 = int_to_ptr.vmem [resolvable:$true] %s116
      %122 = dma.hbm_to_vmem [thread:$0]  %s115, 65536, %s117, [#allocation15], 512, 512, 32
    $region33: #{tpu_custom_call.1} parent=1 // pred_fallthru
      _
    // Predicated region
    $region34: #{tpu_custom_call.1} parent=1 // pred_check
      _
    $region35: #{tpu_custom_call.1} parent=1 // pred_check_branch
      %124 = sbr.rel (0) target = $region37
    $region36: #{tpu_custom_call.1} parent=1 // pred_region
      %126 = vsyncadd [#allocation15], 0
      %s127 = sshll.u32 %s8, 4
      %s128 = int_to_ptr.hbm [resolvable:$true] %s127
      %s129 = sshll.u32 [#allocation16], 4
      %s130 = int_to_ptr.vmem [resolvable:$true] %s129
      %135 = dma.hbm_to_vmem [thread:$0]  %s128, 65536, %s130, [#allocation15], 512, 512, 32
    $region37: #{tpu_custom_call.1} parent=1 // pred_fallthru
      _
    // Predicated region
    $region38: #{tpu_custom_call.1} parent=1 // pred_check
      _
    $region39: #{tpu_custom_call.1} parent=1 // pred_check_branch
      %137 = sbr.rel (0) target = $region41
    $region40: #{tpu_custom_call.1} parent=1 // pred_region
      _
    $region41: #{tpu_custom_call.1} parent=1 // pred_fallthru
      _
    // Predicated region
    $region42: #{tpu_custom_call.1} parent=1 // pred_check
      _
    $region43: #{tpu_custom_call.1} parent=1 // pred_check_branch
      %139 = sbr.rel (0) target = $region45
    $region44: #{tpu_custom_call.1} parent=1 // pred_region
      %141 = vsyncadd [#allocation18], 0
      %s143 = sshll.u32 %s10, 4
      %s144 = int_to_ptr.hbm [resolvable:$true] %s143
      %s145 = sshll.u32 [#allocation17], 4
      %s146 = int_to_ptr.vmem [resolvable:$true] %s145
      %148 = dma.hbm_to_vmem [thread:$0]  %s144, 16, %s146, [#allocation18]
    $region45: #{tpu_custom_call.1} parent=1 // pred_fallthru
      _
    // Predicated region
    $region46: #{tpu_custom_call.1} parent=1 // pred_check
      _
    $region47: #{tpu_custom_call.1} parent=1 // pred_check_branch
      %150 = sbr.rel (0) target = $region49
    $region48: #{tpu_custom_call.1} parent=1 // pred_region
      _
    $region49: #{tpu_custom_call.1} parent=1 // pred_fallthru
      _
    // Predicated region
    $region50: #{tpu_custom_call.1} parent=1 // pred_check
      _
    $region51: #{tpu_custom_call.1} parent=1 // pred_check_branch
      %152 = sbr.rel (0) target = $region53
    $region52: #{tpu_custom_call.1} parent=1 // pred_region
      %154 = vsyncadd [#allocation18], 0
      %s156 = sshll.u32 %s12, 4
      %s157 = int_to_ptr.hbm [resolvable:$true] %s156
      %s158 = sshll.u32 [#allocation19], 4
      %s159 = int_to_ptr.vmem [resolvable:$true] %s158
      %161 = dma.hbm_to_vmem [thread:$0]  %s157, 16, %s159, [#allocation18]
    $region53: #{tpu_custom_call.1} parent=1 // pred_fallthru
      _
    // Predicated region
    $region54: #{tpu_custom_call.1} parent=1 // pred_check
      _
    $region55: #{tpu_custom_call.1} parent=1 // pred_check_branch
      %163 = sbr.rel (0) target = $region57
    $region56: #{tpu_custom_call.1} parent=1 // pred_region
      %165 = dma.done [#allocation3], 32
    $region57: #{tpu_custom_call.1} parent=1 // pred_fallthru
      _
    // Predicated region
    $region58: #{tpu_custom_call.1} parent=1 // pred_check
      _
    $region59: #{tpu_custom_call.1} parent=1 // pred_check_branch
      %167 = sbr.rel (0) target = $region61
    $region60: #{tpu_custom_call.1} parent=1 // pred_region
      %169 = dma.done [#allocation6], 16384
    $region61: #{tpu_custom_call.1} parent=1 // pred_fallthru
      _
    // Predicated region
    $region62: #{tpu_custom_call.1} parent=1 // pred_check
      _
    $region63: #{tpu_custom_call.1} parent=1 // pred_check_branch
      %171 = sbr.rel (0) target = $region65
    $region64: #{tpu_custom_call.1} parent=1 // pred_region
      %173 = dma.done [#allocation6], 128
    $region65: #{tpu_custom_call.1} parent=1 // pred_fallthru
      _
    // Predicated region
    $region66: #{tpu_custom_call.1} parent=1 // pred_check
      _
    $region67: #{tpu_custom_call.1} parent=1 // pred_check_branch
      %175 = sbr.rel (0) target = $region69
    $region68: #{tpu_custom_call.1} parent=1 // pred_region
      %177 = dma.done [#allocation9], 65536
    $region69: #{tpu_custom_call.1} parent=1 // pred_fallthru
      _
    // Predicated region
    $region70: #{tpu_custom_call.1} parent=1 // pred_check
      _
    $region71: #{tpu_custom_call.1} parent=1 // pred_check_branch
      %179 = sbr.rel (0) target = $region73
    $region72: #{tpu_custom_call.1} parent=1 // pred_region
      %181 = dma.done [#allocation9], 65536
    $region73: #{tpu_custom_call.1} parent=1 // pred_fallthru
      _
    // Predicated region
    $region74: #{tpu_custom_call.1} parent=1 // pred_check
      _
    $region75: #{tpu_custom_call.1} parent=1 // pred_check_branch
      %183 = sbr.rel (0) target = $region77
    $region76: #{tpu_custom_call.1} parent=1 // pred_region
      %185 = dma.done [#allocation12], 65536
    $region77: #{tpu_custom_call.1} parent=1 // pred_fallthru
      _
    // Predicated region
    $region78: #{tpu_custom_call.1} parent=1 // pred_check
      _
    $region79: #{tpu_custom_call.1} parent=1 // pred_check_branch
      %187 = sbr.rel (0) target = $region81
    $region80: #{tpu_custom_call.1} parent=1 // pred_region
      %189 = dma.done [#allocation12], 128
    $region81: #{tpu_custom_call.1} parent=1 // pred_fallthru
      _
    // Predicated region
    $region82: #{tpu_custom_call.1} parent=1 // pred_check
      _
    $region83: #{tpu_custom_call.1} parent=1 // pred_check_branch
      %191 = sbr.rel (0) target = $region85
    $region84: #{tpu_custom_call.1} parent=1 // pred_region
      %193 = dma.done [#allocation15], 65536
    $region85: #{tpu_custom_call.1} parent=1 // pred_fallthru
      _
    // Predicated region
    $region86: #{tpu_custom_call.1} parent=1 // pred_check
      _
    $region87: #{tpu_custom_call.1} parent=1 // pred_check_branch
      %195 = sbr.rel (0) target = $region89
    $region88: #{tpu_custom_call.1} parent=1 // pred_region
      %197 = dma.done [#allocation15], 65536
    $region89: #{tpu_custom_call.1} parent=1 // pred_fallthru
      _
    // Predicated region
    $region90: #{tpu_custom_call.1} parent=1 // pred_check
      _
    $region91: #{tpu_custom_call.1} parent=1 // pred_check_branch
      %199 = sbr.rel (0) target = $region93
    $region92: #{tpu_custom_call.1} parent=1 // pred_region
      %201 = dma.done [#allocation18], 16
    $region93: #{tpu_custom_call.1} parent=1 // pred_fallthru
      _
    // Predicated region
    $region94: #{tpu_custom_call.1} parent=1 // pred_check
      _
    $region95: #{tpu_custom_call.1} parent=1 // pred_check_branch
      %203 = sbr.rel (0) target = $region97
    $region96: #{tpu_custom_call.1} parent=1 // pred_region
      %205 = dma.done [#allocation18], 16
    $region97: #{tpu_custom_call.1} parent=1 // pred_fallthru
      _
    %v206 = vld [vmem:[#allocation2] sm:$0x3]
    %v207 = vld [vmem:[#allocation5] sm:$0xff]
    %v208 = vld [vmem:[#allocation5 + $0x8] sm:$0xff]
    %v209 = vld [vmem:[#allocation5 + $0x10] sm:$0xff]
    %v210 = vld [vmem:[#allocation5 + $0x18] sm:$0xff]
    %v211 = vld [vmem:[#allocation5 + $0x20] sm:$0xff]
    %v212 = vld [vmem:[#allocation5 + $0x28] sm:$0xff]
    %v213 = vld [vmem:[#allocation5 + $0x30] sm:$0xff]
    %v214 = vld [vmem:[#allocation5 + $0x38] sm:$0xff]
    %v215 = vld [vmem:[#allocation5 + $0x40] sm:$0xff]
    %v216 = vld [vmem:[#allocation5 + $0x48] sm:$0xff]
    %v217 = vld [vmem:[#allocation5 + $0x50] sm:$0xff]
    %v218 = vld [vmem:[#allocation5 + $0x58] sm:$0xff]
    %v219 = vld [vmem:[#allocation5 + $0x60] sm:$0xff]
    %v220 = vld [vmem:[#allocation5 + $0x68] sm:$0xff]
    %v221 = vld [vmem:[#allocation5 + $0x70] sm:$0xff]
    %v222 = vld [vmem:[#allocation5 + $0x78] sm:$0xff]
    %v223 = vld [vmem:[#allocation5 + $0x80] sm:$0xff]
    %v224 = vld [vmem:[#allocation5 + $0x88] sm:$0xff]
    %v225 = vld [vmem:[#allocation5 + $0x90] sm:$0xff]
    %v226 = vld [vmem:[#allocation5 + $0x98] sm:$0xff]
    %v227 = vld [vmem:[#allocation5 + $0xa0] sm:$0xff]
    %v228 = vld [vmem:[#allocation5 + $0xa8] sm:$0xff]
    %v229 = vld [vmem:[#allocation5 + $0xb0] sm:$0xff]
    %v230 = vld [vmem:[#allocation5 + $0xb8] sm:$0xff]
    %v231 = vld [vmem:[#allocation5 + $0xc0] sm:$0xff]
    %v232 = vld [vmem:[#allocation5 + $0xc8] sm:$0xff]
    %v233 = vld [vmem:[#allocation5 + $0xd0] sm:$0xff]
    %v234 = vld [vmem:[#allocation5 + $0xd8] sm:$0xff]
    %v235 = vld [vmem:[#allocation5 + $0xe0] sm:$0xff]
    %v236 = vld [vmem:[#allocation5 + $0xe8] sm:$0xff]
    %v237 = vld [vmem:[#allocation5 + $0xf0] sm:$0xff]
    %v238 = vld [vmem:[#allocation5 + $0xf8] sm:$0xff]
    %v239 = vld [vmem:[#allocation5 + $0x100] sm:$0xff]
    %v240 = vld [vmem:[#allocation5 + $0x108] sm:$0xff]
    %v241 = vld [vmem:[#allocation5 + $0x110] sm:$0xff]
    %v242 = vld [vmem:[#allocation5 + $0x118] sm:$0xff]
    %v243 = vld [vmem:[#allocation5 + $0x120] sm:$0xff]
    %v244 = vld [vmem:[#allocation5 + $0x128] sm:$0xff]
    %v245 = vld [vmem:[#allocation5 + $0x130] sm:$0xff]
    %v246 = vld [vmem:[#allocation5 + $0x138] sm:$0xff]
    %v247 = vld [vmem:[#allocation5 + $0x140] sm:$0xff]
    %v248 = vld [vmem:[#allocation5 + $0x148] sm:$0xff]
    %v249 = vld [vmem:[#allocation5 + $0x150] sm:$0xff]
    %v250 = vld [vmem:[#allocation5 + $0x158] sm:$0xff]
    %v251 = vld [vmem:[#allocation5 + $0x160] sm:$0xff]
    %v252 = vld [vmem:[#allocation5 + $0x168] sm:$0xff]
    %v253 = vld [vmem:[#allocation5 + $0x170] sm:$0xff]
    %v254 = vld [vmem:[#allocation5 + $0x178] sm:$0xff]
    %v255 = vld [vmem:[#allocation5 + $0x180] sm:$0xff]
    %v256 = vld [vmem:[#allocation5 + $0x188] sm:$0xff]
    %v257 = vld [vmem:[#allocation5 + $0x190] sm:$0xff]
    %v258 = vld [vmem:[#allocation5 + $0x198] sm:$0xff]
    %v259 = vld [vmem:[#allocation5 + $0x1a0] sm:$0xff]
    %v260 = vld [vmem:[#allocation5 + $0x1a8] sm:$0xff]
    %v261 = vld [vmem:[#allocation5 + $0x1b0] sm:$0xff]
    %v262 = vld [vmem:[#allocation5 + $0x1b8] sm:$0xff]
    %v263 = vld [vmem:[#allocation5 + $0x1c0] sm:$0xff]
    %v264 = vld [vmem:[#allocation5 + $0x1c8] sm:$0xff]
    %v265 = vld [vmem:[#allocation5 + $0x1d0] sm:$0xff]
    %v266 = vld [vmem:[#allocation5 + $0x1d8] sm:$0xff]
    %v267 = vld [vmem:[#allocation5 + $0x1e0] sm:$0xff]
    %v268 = vld [vmem:[#allocation5 + $0x1e8] sm:$0xff]
    %v269 = vld [vmem:[#allocation5 + $0x1f0] sm:$0xff]
    %v270 = vld [vmem:[#allocation5 + $0x1f8] sm:$0xff]
    %v271 = vld [vmem:[#allocation5 + $0x200] sm:$0xff]
    %v272 = vld [vmem:[#allocation5 + $0x208] sm:$0xff]
    %v273 = vld [vmem:[#allocation5 + $0x210] sm:$0xff]
    %v274 = vld [vmem:[#allocation5 + $0x218] sm:$0xff]
    %v275 = vld [vmem:[#allocation5 + $0x220] sm:$0xff]
    %v276 = vld [vmem:[#allocation5 + $0x228] sm:$0xff]
    %v277 = vld [vmem:[#allocation5 + $0x230] sm:$0xff]
    %v278 = vld [vmem:[#allocation5 + $0x238] sm:$0xff]
    %v279 = vld [vmem:[#allocation5 + $0x240] sm:$0xff]
    %v280 = vld [vmem:[#allocation5 + $0x248] sm:$0xff]
    %v281 = vld [vmem:[#allocation5 + $0x250] sm:$0xff]
    %v282 = vld [vmem:[#allocation5 + $0x258] sm:$0xff]
    %v283 = vld [vmem:[#allocation5 + $0x260] sm:$0xff]
    %v284 = vld [vmem:[#allocation5 + $0x268] sm:$0xff]
    %v285 = vld [vmem:[#allocation5 + $0x270] sm:$0xff]
    %v286 = vld [vmem:[#allocation5 + $0x278] sm:$0xff]
    %v287 = vld [vmem:[#allocation5 + $0x280] sm:$0xff]
    %v288 = vld [vmem:[#allocation5 + $0x288] sm:$0xff]
    %v289 = vld [vmem:[#allocation5 + $0x290] sm:$0xff]
    %v290 = vld [vmem:[#allocation5 + $0x298] sm:$0xff]
    %v291 = vld [vmem:[#allocation5 + $0x2a0] sm:$0xff]
    %v292 = vld [vmem:[#allocation5 + $0x2a8] sm:$0xff]
    %v293 = vld [vmem:[#allocation5 + $0x2b0] sm:$0xff]
    %v294 = vld [vmem:[#allocation5 + $0x2b8] sm:$0xff]
    %v295 = vld [vmem:[#allocation5 + $0x2c0] sm:$0xff]
    %v296 = vld [vmem:[#allocation5 + $0x2c8] sm:$0xff]
    %v297 = vld [vmem:[#allocation5 + $0x2d0] sm:$0xff]
    %v298 = vld [vmem:[#allocation5 + $0x2d8] sm:$0xff]
    %v299 = vld [vmem:[#allocation5 + $0x2e0] sm:$0xff]
    %v300 = vld [vmem:[#allocation5 + $0x2e8] sm:$0xff]
    %v301 = vld [vmem:[#allocation5 + $0x2f0] sm:$0xff]
    %v302 = vld [vmem:[#allocation5 + $0x2f8] sm:$0xff]
    %v303 = vld [vmem:[#allocation5 + $0x300] sm:$0xff]
    %v304 = vld [vmem:[#allocation5 + $0x308] sm:$0xff]
    %v305 = vld [vmem:[#allocation5 + $0x310] sm:$0xff]
    %v306 = vld [vmem:[#allocation5 + $0x318] sm:$0xff]
    %v307 = vld [vmem:[#allocation5 + $0x320] sm:$0xff]
    %v308 = vld [vmem:[#allocation5 + $0x328] sm:$0xff]
    %v309 = vld [vmem:[#allocation5 + $0x330] sm:$0xff]
    %v310 = vld [vmem:[#allocation5 + $0x338] sm:$0xff]
    %v311 = vld [vmem:[#allocation5 + $0x340] sm:$0xff]
    %v312 = vld [vmem:[#allocation5 + $0x348] sm:$0xff]
    %v313 = vld [vmem:[#allocation5 + $0x350] sm:$0xff]
    %v314 = vld [vmem:[#allocation5 + $0x358] sm:$0xff]
    %v315 = vld [vmem:[#allocation5 + $0x360] sm:$0xff]
    %v316 = vld [vmem:[#allocation5 + $0x368] sm:$0xff]
    %v317 = vld [vmem:[#allocation5 + $0x370] sm:$0xff]
    %v318 = vld [vmem:[#allocation5 + $0x378] sm:$0xff]
    %v319 = vld [vmem:[#allocation5 + $0x380] sm:$0xff]
    %v320 = vld [vmem:[#allocation5 + $0x388] sm:$0xff]
    %v321 = vld [vmem:[#allocation5 + $0x390] sm:$0xff]
    %v322 = vld [vmem:[#allocation5 + $0x398] sm:$0xff]
    %v323 = vld [vmem:[#allocation5 + $0x3a0] sm:$0xff]
    %v324 = vld [vmem:[#allocation5 + $0x3a8] sm:$0xff]
    %v325 = vld [vmem:[#allocation5 + $0x3b0] sm:$0xff]
    %v326 = vld [vmem:[#allocation5 + $0x3b8] sm:$0xff]
    %v327 = vld [vmem:[#allocation5 + $0x3c0] sm:$0xff]
    %v328 = vld [vmem:[#allocation5 + $0x3c8] sm:$0xff]
    %v329 = vld [vmem:[#allocation5 + $0x3d0] sm:$0xff]
    %v330 = vld [vmem:[#allocation5 + $0x3d8] sm:$0xff]
    %v331 = vld [vmem:[#allocation5 + $0x3e0] sm:$0xff]
    %v332 = vld [vmem:[#allocation5 + $0x3e8] sm:$0xff]
    %v333 = vld [vmem:[#allocation5 + $0x3f0] sm:$0xff]
    %v334 = vld [vmem:[#allocation5 + $0x3f8] sm:$0xff]
    %v335 = vld [vmem:[#allocation7] sm:$0xff]
    %v337 = vperm.slane %v335, 0
    %v338 = vperm.slane %v335, 1
    %v339 = vperm.slane %v335, 2
    %v340 = vperm.slane %v335, 3
    %v341 = vperm.slane %v335, 4
    %v342 = vperm.slane %v335, 5
    %v343 = vperm.slane %v335, 6
    %v344 = vperm.slane %v335, 7
    %353 = vmatpush.msra.mxu0 %v327
    %354 = vmatpush.msra.mxu0 %v319
    %355 = vmatpush.msra.mxu0 %v311
    %356 = vmatpush.msra.mxu0 %v303
    %357 = vmatpush.msra.mxu0 %v295
    %358 = vmatpush.msra.mxu0 %v287
    %359 = vmatpush.msra.mxu0 %v279
    %360 = vmatpush.msra.mxu0 %v271
    %361 = vmatpush.msra.mxu0 %v263
    %362 = vmatpush.msra.mxu0 %v255
    %363 = vmatpush.msra.mxu0 %v247
    %364 = vmatpush.msra.mxu0 %v239
    %365 = vmatpush.msra.mxu0 %v231
    %366 = vmatpush.msra.mxu0 %v223
    %367 = vmatpush.msra.mxu0 %v215
    %368 = vmatpush.msra.mxu0 %v207
    %369 = vmatmul.f32.gmra.mxu0 %v206
    %v370 = vpop.f32.mrf.mxu0
    %v371 = vadd.f32 %v337, %v370
    %372 = vdwg.mxu0
    %373 = vmatpush.msra.mxu0 %v328
    %374 = vmatpush.msra.mxu0 %v320
    %375 = vmatpush.msra.mxu0 %v312
    %376 = vmatpush.msra.mxu0 %v304
    %377 = vmatpush.msra.mxu0 %v296
    %378 = vmatpush.msra.mxu0 %v288
    %379 = vmatpush.msra.mxu0 %v280
    %380 = vmatpush.msra.mxu0 %v272
    %381 = vmatpush.msra.mxu0 %v264
    %382 = vmatpush.msra.mxu0 %v256
    %383 = vmatpush.msra.mxu0 %v248
    %384 = vmatpush.msra.mxu0 %v240
    %385 = vmatpush.msra.mxu0 %v232
    %386 = vmatpush.msra.mxu0 %v224
    %387 = vmatpush.msra.mxu0 %v216
    %388 = vmatpush.msra.mxu0 %v208
    %389 = vmatmul.f32.gmra.mxu0 %v206
    %v390 = vpop.f32.mrf.mxu0
    %v391 = vadd.f32 %v338, %v390
    %392 = vdwg.mxu0
    %393 = vmatpush.msra.mxu0 %v329
    %394 = vmatpush.msra.mxu0 %v321
    %395 = vmatpush.msra.mxu0 %v313
    %396 = vmatpush.msra.mxu0 %v305
    %397 = vmatpush.msra.mxu0 %v297
    %398 = vmatpush.msra.mxu0 %v289
    %399 = vmatpush.msra.mxu0 %v281
    %400 = vmatpush.msra.mxu0 %v273
    %401 = vmatpush.msra.mxu0 %v265
    %402 = vmatpush.msra.mxu0 %v257
    %403 = vmatpush.msra.mxu0 %v249
    %404 = vmatpush.msra.mxu0 %v241
    %405 = vmatpush.msra.mxu0 %v233
    %406 = vmatpush.msra.mxu0 %v225
    %407 = vmatpush.msra.mxu0 %v217
    %408 = vmatpush.msra.mxu0 %v209
    %409 = vmatmul.f32.gmra.mxu0 %v206
    %v410 = vpop.f32.mrf.mxu0
    %v411 = vadd.f32 %v339, %v410
    %412 = vdwg.mxu0
    %413 = vmatpush.msra.mxu0 %v330
    %414 = vmatpush.msra.mxu0 %v322
    %415 = vmatpush.msra.mxu0 %v314
    %416 = vmatpush.msra.mxu0 %v306
    %417 = vmatpush.msra.mxu0 %v298
    %418 = vmatpush.msra.mxu0 %v290
    %419 = vmatpush.msra.mxu0 %v282
    %420 = vmatpush.msra.mxu0 %v274
    %421 = vmatpush.msra.mxu0 %v266
    %422 = vmatpush.msra.mxu0 %v258
    %423 = vmatpush.msra.mxu0 %v250
    %424 = vmatpush.msra.mxu0 %v242
    %425 = vmatpush.msra.mxu0 %v234
    %426 = vmatpush.msra.mxu0 %v226
    %427 = vmatpush.msra.mxu0 %v218
    %428 = vmatpush.msra.mxu0 %v210
    %429 = vmatmul.f32.gmra.mxu0 %v206
    %v430 = vpop.f32.mrf.mxu0
    %v431 = vadd.f32 %v340, %v430
    %432 = vdwg.mxu0
    %433 = vmatpush.msra.mxu0 %v331
    %434 = vmatpush.msra.mxu0 %v323
    %435 = vmatpush.msra.mxu0 %v315
    %436 = vmatpush.msra.mxu0 %v307
    %437 = vmatpush.msra.mxu0 %v299
    %438 = vmatpush.msra.mxu0 %v291
    %439 = vmatpush.msra.mxu0 %v283
    %440 = vmatpush.msra.mxu0 %v275
    %441 = vmatpush.msra.mxu0 %v267
    %442 = vmatpush.msra.mxu0 %v259
    %443 = vmatpush.msra.mxu0 %v251
    %444 = vmatpush.msra.mxu0 %v243
    %445 = vmatpush.msra.mxu0 %v235
    %446 = vmatpush.msra.mxu0 %v227
    %447 = vmatpush.msra.mxu0 %v219
    %448 = vmatpush.msra.mxu0 %v211
    %449 = vmatmul.f32.gmra.mxu0 %v206
    %v450 = vpop.f32.mrf.mxu0
    %v451 = vadd.f32 %v341, %v450
    %452 = vdwg.mxu0
    %453 = vmatpush.msra.mxu0 %v332
    %454 = vmatpush.msra.mxu0 %v324
    %455 = vmatpush.msra.mxu0 %v316
    %456 = vmatpush.msra.mxu0 %v308
    %457 = vmatpush.msra.mxu0 %v300
    %458 = vmatpush.msra.mxu0 %v292
    %459 = vmatpush.msra.mxu0 %v284
    %460 = vmatpush.msra.mxu0 %v276
    %461 = vmatpush.msra.mxu0 %v268
    %462 = vmatpush.msra.mxu0 %v260
    %463 = vmatpush.msra.mxu0 %v252
    %464 = vmatpush.msra.mxu0 %v244
    %465 = vmatpush.msra.mxu0 %v236
    %466 = vmatpush.msra.mxu0 %v228
    %467 = vmatpush.msra.mxu0 %v220
    %468 = vmatpush.msra.mxu0 %v212
    %469 = vmatmul.f32.gmra.mxu0 %v206
    %v470 = vpop.f32.mrf.mxu0
    %v471 = vadd.f32 %v342, %v470
    %472 = vdwg.mxu0
    %473 = vmatpush.msra.mxu0 %v333
    %474 = vmatpush.msra.mxu0 %v325
    %475 = vmatpush.msra.mxu0 %v317
    %476 = vmatpush.msra.mxu0 %v309
    %477 = vmatpush.msra.mxu0 %v301
    %478 = vmatpush.msra.mxu0 %v293
    %479 = vmatpush.msra.mxu0 %v285
    %480 = vmatpush.msra.mxu0 %v277
    %481 = vmatpush.msra.mxu0 %v269
    %482 = vmatpush.msra.mxu0 %v261
    %483 = vmatpush.msra.mxu0 %v253
    %484 = vmatpush.msra.mxu0 %v245
    %485 = vmatpush.msra.mxu0 %v237
    %486 = vmatpush.msra.mxu0 %v229
    %487 = vmatpush.msra.mxu0 %v221
    %488 = vmatpush.msra.mxu0 %v213
    %489 = vmatmul.f32.gmra.mxu0 %v206
    %v490 = vpop.f32.mrf.mxu0
    %v491 = vadd.f32 %v343, %v490
    %492 = vdwg.mxu0
    %493 = vmatpush.msra.mxu0 %v334
    %494 = vmatpush.msra.mxu0 %v326
    %495 = vmatpush.msra.mxu0 %v318
    %496 = vmatpush.msra.mxu0 %v310
    %497 = vmatpush.msra.mxu0 %v302
    %498 = vmatpush.msra.mxu0 %v294
    %499 = vmatpush.msra.mxu0 %v286
    %500 = vmatpush.msra.mxu0 %v278
    %501 = vmatpush.msra.mxu0 %v270
    %502 = vmatpush.msra.mxu0 %v262
    %503 = vmatpush.msra.mxu0 %v254
    %504 = vmatpush.msra.mxu0 %v246
    %505 = vmatpush.msra.mxu0 %v238
    %506 = vmatpush.msra.mxu0 %v230
    %507 = vmatpush.msra.mxu0 %v222
    %508 = vmatpush.msra.mxu0 %v214
    %509 = vmatmul.f32.gmra.mxu0 %v206
    %v510 = vpop.f32.mrf.mxu0
    %v511 = vadd.f32 %v344, %v510
    %512 = vdwg.mxu0
    %v513 = vmax.f32 %v371, 0.0
    %v514 = vmax.f32 %v391, 0.0
    %v515 = vmax.f32 %v411, 0.0
    %v516 = vmax.f32 %v431, 0.0
    %v517 = vmax.f32 %v451, 0.0
    %v518 = vmax.f32 %v471, 0.0
    %v519 = vmax.f32 %v491, 0.0
    %v520 = vmax.f32 %v511, 0.0
    %v521 = vld [vmem:[#allocation8] sm:$0xff]
    %v522 = vld [vmem:[#allocation8 + $0x8] sm:$0xff]
    %v523 = vld [vmem:[#allocation8 + $0x10] sm:$0xff]
    %v524 = vld [vmem:[#allocation8 + $0x18] sm:$0xff]
    %v525 = vld [vmem:[#allocation8 + $0x20] sm:$0xff]
    %v526 = vld [vmem:[#allocation8 + $0x28] sm:$0xff]
    %v527 = vld [vmem:[#allocation8 + $0x30] sm:$0xff]
    %v528 = vld [vmem:[#allocation8 + $0x38] sm:$0xff]
    %v529 = vld [vmem:[#allocation8 + $0x40] sm:$0xff]
    %v530 = vld [vmem:[#allocation8 + $0x48] sm:$0xff]
    %v531 = vld [vmem:[#allocation8 + $0x50] sm:$0xff]
    %v532 = vld [vmem:[#allocation8 + $0x58] sm:$0xff]
    %v533 = vld [vmem:[#allocation8 + $0x60] sm:$0xff]
    %v534 = vld [vmem:[#allocation8 + $0x68] sm:$0xff]
    %v535 = vld [vmem:[#allocation8 + $0x70] sm:$0xff]
    %v536 = vld [vmem:[#allocation8 + $0x78] sm:$0xff]
    %v537 = vld [vmem:[#allocation8 + $0x80] sm:$0xff]
    %v538 = vld [vmem:[#allocation8 + $0x88] sm:$0xff]
    %v539 = vld [vmem:[#allocation8 + $0x90] sm:$0xff]
    %v540 = vld [vmem:[#allocation8 + $0x98] sm:$0xff]
    %v541 = vld [vmem:[#allocation8 + $0xa0] sm:$0xff]
    %v542 = vld [vmem:[#allocation8 + $0xa8] sm:$0xff]
    %v543 = vld [vmem:[#allocation8 + $0xb0] sm:$0xff]
    %v544 = vld [vmem:[#allocation8 + $0xb8] sm:$0xff]
    %v545 = vld [vmem:[#allocation8 + $0xc0] sm:$0xff]
    %v546 = vld [vmem:[#allocation8 + $0xc8] sm:$0xff]
    %v547 = vld [vmem:[#allocation8 + $0xd0] sm:$0xff]
    %v548 = vld [vmem:[#allocation8 + $0xd8] sm:$0xff]
    %v549 = vld [vmem:[#allocation8 + $0xe0] sm:$0xff]
    %v550 = vld [vmem:[#allocation8 + $0xe8] sm:$0xff]
    %v551 = vld [vmem:[#allocation8 + $0xf0] sm:$0xff]
    %v552 = vld [vmem:[#allocation8 + $0xf8] sm:$0xff]
    %v553 = vld [vmem:[#allocation8 + $0x100] sm:$0xff]
    %v554 = vld [vmem:[#allocation8 + $0x108] sm:$0xff]
    %v555 = vld [vmem:[#allocation8 + $0x110] sm:$0xff]
    %v556 = vld [vmem:[#allocation8 + $0x118] sm:$0xff]
    %v557 = vld [vmem:[#allocation8 + $0x120] sm:$0xff]
    %v558 = vld [vmem:[#allocation8 + $0x128] sm:$0xff]
    %v559 = vld [vmem:[#allocation8 + $0x130] sm:$0xff]
    %v560 = vld [vmem:[#allocation8 + $0x138] sm:$0xff]
    %v561 = vld [vmem:[#allocation8 + $0x140] sm:$0xff]
    %v562 = vld [vmem:[#allocation8 + $0x148] sm:$0xff]
    %v563 = vld [vmem:[#allocation8 + $0x150] sm:$0xff]
    %v564 = vld [vmem:[#allocation8 + $0x158] sm:$0xff]
    %v565 = vld [vmem:[#allocation8 + $0x160] sm:$0xff]
    %v566 = vld [vmem:[#allocation8 + $0x168] sm:$0xff]
    %v567 = vld [vmem:[#allocation8 + $0x170] sm:$0xff]
    %v568 = vld [vmem:[#allocation8 + $0x178] sm:$0xff]
    %v569 = vld [vmem:[#allocation8 + $0x180] sm:$0xff]
    %v570 = vld [vmem:[#allocation8 + $0x188] sm:$0xff]
    %v571 = vld [vmem:[#allocation8 + $0x190] sm:$0xff]
    %v572 = vld [vmem:[#allocation8 + $0x198] sm:$0xff]
    %v573 = vld [vmem:[#allocation8 + $0x1a0] sm:$0xff]
    %v574 = vld [vmem:[#allocation8 + $0x1a8] sm:$0xff]
    %v575 = vld [vmem:[#allocation8 + $0x1b0] sm:$0xff]
    %v576 = vld [vmem:[#allocation8 + $0x1b8] sm:$0xff]
    %v577 = vld [vmem:[#allocation8 + $0x1c0] sm:$0xff]
    %v578 = vld [vmem:[#allocation8 + $0x1c8] sm:$0xff]
    %v579 = vld [vmem:[#allocation8 + $0x1d0] sm:$0xff]
    %v580 = vld [vmem:[#allocation8 + $0x1d8] sm:$0xff]
    %v581 = vld [vmem:[#allocation8 + $0x1e0] sm:$0xff]
    %v582 = vld [vmem:[#allocation8 + $0x1e8] sm:$0xff]
    %v583 = vld [vmem:[#allocation8 + $0x1f0] sm:$0xff]
    %v584 = vld [vmem:[#allocation8 + $0x1f8] sm:$0xff]
    %v585 = vld [vmem:[#allocation8 + $0x200] sm:$0xff]
    %v586 = vld [vmem:[#allocation8 + $0x208] sm:$0xff]
    %v587 = vld [vmem:[#allocation8 + $0x210] sm:$0xff]
    %v588 = vld [vmem:[#allocation8 + $0x218] sm:$0xff]
    %v589 = vld [vmem:[#allocation8 + $0x220] sm:$0xff]
    %v590 = vld [vmem:[#allocation8 + $0x228] sm:$0xff]
    %v591 = vld [vmem:[#allocation8 + $0x230] sm:$0xff]
    %v592 = vld [vmem:[#allocation8 + $0x238] sm:$0xff]
    %v593 = vld [vmem:[#allocation8 + $0x240] sm:$0xff]
    %v594 = vld [vmem:[#allocation8 + $0x248] sm:$0xff]
    %v595 = vld [vmem:[#allocation8 + $0x250] sm:$0xff]
    %v596 = vld [vmem:[#allocation8 + $0x258] sm:$0xff]
    %v597 = vld [vmem:[#allocation8 + $0x260] sm:$0xff]
    %v598 = vld [vmem:[#allocation8 + $0x268] sm:$0xff]
    %v599 = vld [vmem:[#allocation8 + $0x270] sm:$0xff]
    %v600 = vld [vmem:[#allocation8 + $0x278] sm:$0xff]
    %v601 = vld [vmem:[#allocation8 + $0x280] sm:$0xff]
    %v602 = vld [vmem:[#allocation8 + $0x288] sm:$0xff]
    %v603 = vld [vmem:[#allocation8 + $0x290] sm:$0xff]
    %v604 = vld [vmem:[#allocation8 + $0x298] sm:$0xff]
    %v605 = vld [vmem:[#allocation8 + $0x2a0] sm:$0xff]
    %v606 = vld [vmem:[#allocation8 + $0x2a8] sm:$0xff]
    %v607 = vld [vmem:[#allocation8 + $0x2b0] sm:$0xff]
    %v608 = vld [vmem:[#allocation8 + $0x2b8] sm:$0xff]
    %v609 = vld [vmem:[#allocation8 + $0x2c0] sm:$0xff]
    %v610 = vld [vmem:[#allocation8 + $0x2c8] sm:$0xff]
    %v611 = vld [vmem:[#allocation8 + $0x2d0] sm:$0xff]
    %v612 = vld [vmem:[#allocation8 + $0x2d8] sm:$0xff]
    %v613 = vld [vmem:[#allocation8 + $0x2e0] sm:$0xff]
    %v614 = vld [vmem:[#allocation8 + $0x2e8] sm:$0xff]
    %v615 = vld [vmem:[#allocation8 + $0x2f0] sm:$0xff]
    %v616 = vld [vmem:[#allocation8 + $0x2f8] sm:$0xff]
    %v617 = vld [vmem:[#allocation8 + $0x300] sm:$0xff]
    %v618 = vld [vmem:[#allocation8 + $0x308] sm:$0xff]
    %v619 = vld [vmem:[#allocation8 + $0x310] sm:$0xff]
    %v620 = vld [vmem:[#allocation8 + $0x318] sm:$0xff]
    %v621 = vld [vmem:[#allocation8 + $0x320] sm:$0xff]
    %v622 = vld [vmem:[#allocation8 + $0x328] sm:$0xff]
    %v623 = vld [vmem:[#allocation8 + $0x330] sm:$0xff]
    %v624 = vld [vmem:[#allocation8 + $0x338] sm:$0xff]
    %v625 = vld [vmem:[#allocation8 + $0x340] sm:$0xff]
    %v626 = vld [vmem:[#allocation8 + $0x348] sm:$0xff]
    %v627 = vld [vmem:[#allocation8 + $0x350] sm:$0xff]
    %v628 = vld [vmem:[#allocation8 + $0x358] sm:$0xff]
    %v629 = vld [vmem:[#allocation8 + $0x360] sm:$0xff]
    %v630 = vld [vmem:[#allocation8 + $0x368] sm:$0xff]
    %v631 = vld [vmem:[#allocation8 + $0x370] sm:$0xff]
    %v632 = vld [vmem:[#allocation8 + $0x378] sm:$0xff]
    %v633 = vld [vmem:[#allocation8 + $0x380] sm:$0xff]
    %v634 = vld [vmem:[#allocation8 + $0x388] sm:$0xff]
    %v635 = vld [vmem:[#allocation8 + $0x390] sm:$0xff]
    %v636 = vld [vmem:[#allocation8 + $0x398] sm:$0xff]
    %v637 = vld [vmem:[#allocation8 + $0x3a0] sm:$0xff]
    %v638 = vld [vmem:[#allocation8 + $0x3a8] sm:$0xff]
    %v639 = vld [vmem:[#allocation8 + $0x3b0] sm:$0xff]
    %v640 = vld [vmem:[#allocation8 + $0x3b8] sm:$0xff]
    %v641 = vld [vmem:[#allocation8 + $0x3c0] sm:$0xff]
    %v642 = vld [vmem:[#allocation8 + $0x3c8] sm:$0xff]
    %v643 = vld [vmem:[#allocation8 + $0x3d0] sm:$0xff]
    %v644 = vld [vmem:[#allocation8 + $0x3d8] sm:$0xff]
    %v645 = vld [vmem:[#allocation8 + $0x3e0] sm:$0xff]
    %v646 = vld [vmem:[#allocation8 + $0x3e8] sm:$0xff]
    %v647 = vld [vmem:[#allocation8 + $0x3f0] sm:$0xff]
    %v648 = vld [vmem:[#allocation8 + $0x3f8] sm:$0xff]
    %v649 = vld [vmem:[#allocation8 + $0x400] sm:$0xff]
    %v650 = vld [vmem:[#allocation8 + $0x408] sm:$0xff]
    %v651 = vld [vmem:[#allocation8 + $0x410] sm:$0xff]
    %v652 = vld [vmem:[#allocation8 + $0x418] sm:$0xff]
    %v653 = vld [vmem:[#allocation8 + $0x420] sm:$0xff]
    %v654 = vld [vmem:[#allocation8 + $0x428] sm:$0xff]
    %v655 = vld [vmem:[#allocation8 + $0x430] sm:$0xff]
    %v656 = vld [vmem:[#allocation8 + $0x438] sm:$0xff]
    %v657 = vld [vmem:[#allocation8 + $0x440] sm:$0xff]
    %v658 = vld [vmem:[#allocation8 + $0x448] sm:$0xff]
    %v659 = vld [vmem:[#allocation8 + $0x450] sm:$0xff]
    %v660 = vld [vmem:[#allocation8 + $0x458] sm:$0xff]
    %v661 = vld [vmem:[#allocation8 + $0x460] sm:$0xff]
    %v662 = vld [vmem:[#allocation8 + $0x468] sm:$0xff]
    %v663 = vld [vmem:[#allocation8 + $0x470] sm:$0xff]
    %v664 = vld [vmem:[#allocation8 + $0x478] sm:$0xff]
    %v665 = vld [vmem:[#allocation8 + $0x480] sm:$0xff]
    %v666 = vld [vmem:[#allocation8 + $0x488] sm:$0xff]
    %v667 = vld [vmem:[#allocation8 + $0x490] sm:$0xff]
    %v668 = vld [vmem:[#allocation8 + $0x498] sm:$0xff]
    %v669 = vld [vmem:[#allocation8 + $0x4a0] sm:$0xff]
    %v670 = vld [vmem:[#allocation8 + $0x4a8] sm:$0xff]
    %v671 = vld [vmem:[#allocation8 + $0x4b0] sm:$0xff]
    %v672 = vld [vmem:[#allocation8 + $0x4b8] sm:$0xff]
    %v673 = vld [vmem:[#allocation8 + $0x4c0] sm:$0xff]
    %v674 = vld [vmem:[#allocation8 + $0x4c8] sm:$0xff]
    %v675 = vld [vmem:[#allocation8 + $0x4d0] sm:$0xff]
    %v676 = vld [vmem:[#allocation8 + $0x4d8] sm:$0xff]
    %v677 = vld [vmem:[#allocation8 + $0x4e0] sm:$0xff]
    %v678 = vld [vmem:[#allocation8 + $0x4e8] sm:$0xff]
    %v679 = vld [vmem:[#allocation8 + $0x4f0] sm:$0xff]
    %v680 = vld [vmem:[#allocation8 + $0x4f8] sm:$0xff]
    %v681 = vld [vmem:[#allocation8 + $0x500] sm:$0xff]
    %v682 = vld [vmem:[#allocation8 + $0x508] sm:$0xff]
    %v683 = vld [vmem:[#allocation8 + $0x510] sm:$0xff]
    %v684 = vld [vmem:[#allocation8 + $0x518] sm:$0xff]
    %v685 = vld [vmem:[#allocation8 + $0x520] sm:$0xff]
    %v686 = vld [vmem:[#allocation8 + $0x528] sm:$0xff]
    %v687 = vld [vmem:[#allocation8 + $0x530] sm:$0xff]
    %v688 = vld [vmem:[#allocation8 + $0x538] sm:$0xff]
    %v689 = vld [vmem:[#allocation8 + $0x540] sm:$0xff]
    %v690 = vld [vmem:[#allocation8 + $0x548] sm:$0xff]
    %v691 = vld [vmem:[#allocation8 + $0x550] sm:$0xff]
    %v692 = vld [vmem:[#allocation8 + $0x558] sm:$0xff]
    %v693 = vld [vmem:[#allocation8 + $0x560] sm:$0xff]
    %v694 = vld [vmem:[#allocation8 + $0x568] sm:$0xff]
    %v695 = vld [vmem:[#allocation8 + $0x570] sm:$0xff]
    %v696 = vld [vmem:[#allocation8 + $0x578] sm:$0xff]
    %v697 = vld [vmem:[#allocation8 + $0x580] sm:$0xff]
    %v698 = vld [vmem:[#allocation8 + $0x588] sm:$0xff]
    %v699 = vld [vmem:[#allocation8 + $0x590] sm:$0xff]
    %v700 = vld [vmem:[#allocation8 + $0x598] sm:$0xff]
    %v701 = vld [vmem:[#allocation8 + $0x5a0] sm:$0xff]
    %v702 = vld [vmem:[#allocation8 + $0x5a8] sm:$0xff]
    %v703 = vld [vmem:[#allocation8 + $0x5b0] sm:$0xff]
    %v704 = vld [vmem:[#allocation8 + $0x5b8] sm:$0xff]
    %v705 = vld [vmem:[#allocation8 + $0x5c0] sm:$0xff]
    %v706 = vld [vmem:[#allocation8 + $0x5c8] sm:$0xff]
    %v707 = vld [vmem:[#allocation8 + $0x5d0] sm:$0xff]
    %v708 = vld [vmem:[#allocation8 + $0x5d8] sm:$0xff]
    %v709 = vld [vmem:[#allocation8 + $0x5e0] sm:$0xff]
    %v710 = vld [vmem:[#allocation8 + $0x5e8] sm:$0xff]
    %v711 = vld [vmem:[#allocation8 + $0x5f0] sm:$0xff]
    %v712 = vld [vmem:[#allocation8 + $0x5f8] sm:$0xff]
    %v713 = vld [vmem:[#allocation8 + $0x600] sm:$0xff]
    %v714 = vld [vmem:[#allocation8 + $0x608] sm:$0xff]
    %v715 = vld [vmem:[#allocation8 + $0x610] sm:$0xff]
    %v716 = vld [vmem:[#allocation8 + $0x618] sm:$0xff]
    %v717 = vld [vmem:[#allocation8 + $0x620] sm:$0xff]
    %v718 = vld [vmem:[#allocation8 + $0x628] sm:$0xff]
    %v719 = vld [vmem:[#allocation8 + $0x630] sm:$0xff]
    %v720 = vld [vmem:[#allocation8 + $0x638] sm:$0xff]
    %v721 = vld [vmem:[#allocation8 + $0x640] sm:$0xff]
    %v722 = vld [vmem:[#allocation8 + $0x648] sm:$0xff]
    %v723 = vld [vmem:[#allocation8 + $0x650] sm:$0xff]
    %v724 = vld [vmem:[#allocation8 + $0x658] sm:$0xff]
    %v725 = vld [vmem:[#allocation8 + $0x660] sm:$0xff]
    %v726 = vld [vmem:[#allocation8 + $0x668] sm:$0xff]
    %v727 = vld [vmem:[#allocation8 + $0x670] sm:$0xff]
    %v728 = vld [vmem:[#allocation8 + $0x678] sm:$0xff]
    %v729 = vld [vmem:[#allocation8 + $0x680] sm:$0xff]
    %v730 = vld [vmem:[#allocation8 + $0x688] sm:$0xff]
    %v731 = vld [vmem:[#allocation8 + $0x690] sm:$0xff]
    %v732 = vld [vmem:[#allocation8 + $0x698] sm:$0xff]
    %v733 = vld [vmem:[#allocation8 + $0x6a0] sm:$0xff]
    %v734 = vld [vmem:[#allocation8 + $0x6a8] sm:$0xff]
    %v735 = vld [vmem:[#allocation8 + $0x6b0] sm:$0xff]
    %v736 = vld [vmem:[#allocation8 + $0x6b8] sm:$0xff]
    %v737 = vld [vmem:[#allocation8 + $0x6c0] sm:$0xff]
    %v738 = vld [vmem:[#allocation8 + $0x6c8] sm:$0xff]
    %v739 = vld [vmem:[#allocation8 + $0x6d0] sm:$0xff]
    %v740 = vld [vmem:[#allocation8 + $0x6d8] sm:$0xff]
    %v741 = vld [vmem:[#allocation8 + $0x6e0] sm:$0xff]
    %v742 = vld [vmem:[#allocation8 + $0x6e8] sm:$0xff]
    %v743 = vld [vmem:[#allocation8 + $0x6f0] sm:$0xff]
    %v744 = vld [vmem:[#allocation8 + $0x6f8] sm:$0xff]
    %v745 = vld [vmem:[#allocation8 + $0x700] sm:$0xff]
    %v746 = vld [vmem:[#allocation8 + $0x708] sm:$0xff]
    %v747 = vld [vmem:[#allocation8 + $0x710] sm:$0xff]
    %v748 = vld [vmem:[#allocation8 + $0x718] sm:$0xff]
    %v749 = vld [vmem:[#allocation8 + $0x720] sm:$0xff]
    %v750 = vld [vmem:[#allocation8 + $0x728] sm:$0xff]
    %v751 = vld [vmem:[#allocation8 + $0x730] sm:$0xff]
    %v752 = vld [vmem:[#allocation8 + $0x738] sm:$0xff]
    %v753 = vld [vmem:[#allocation8 + $0x740] sm:$0xff]
    %v754 = vld [vmem:[#allocation8 + $0x748] sm:$0xff]
    %v755 = vld [vmem:[#allocation8 + $0x750] sm:$0xff]
    %v756 = vld [vmem:[#allocation8 + $0x758] sm:$0xff]
    %v757 = vld [vmem:[#allocation8 + $0x760] sm:$0xff]
    %v758 = vld [vmem:[#allocation8 + $0x768] sm:$0xff]
    %v759 = vld [vmem:[#allocation8 + $0x770] sm:$0xff]
    %v760 = vld [vmem:[#allocation8 + $0x778] sm:$0xff]
    %v761 = vld [vmem:[#allocation8 + $0x780] sm:$0xff]
    %v762 = vld [vmem:[#allocation8 + $0x788] sm:$0xff]
    %v763 = vld [vmem:[#allocation8 + $0x790] sm:$0xff]
    %v764 = vld [vmem:[#allocation8 + $0x798] sm:$0xff]
    %v765 = vld [vmem:[#allocation8 + $0x7a0] sm:$0xff]
    %v766 = vld [vmem:[#allocation8 + $0x7a8] sm:$0xff]
    %v767 = vld [vmem:[#allocation8 + $0x7b0] sm:$0xff]
    %v768 = vld [vmem:[#allocation8 + $0x7b8] sm:$0xff]
    %v769 = vld [vmem:[#allocation8 + $0x7c0] sm:$0xff]
    %v770 = vld [vmem:[#allocation8 + $0x7c8] sm:$0xff]
    %v771 = vld [vmem:[#allocation8 + $0x7d0] sm:$0xff]
    %v772 = vld [vmem:[#allocation8 + $0x7d8] sm:$0xff]
    %v773 = vld [vmem:[#allocation8 + $0x7e0] sm:$0xff]
    %v774 = vld [vmem:[#allocation8 + $0x7e8] sm:$0xff]
    %v775 = vld [vmem:[#allocation8 + $0x7f0] sm:$0xff]
    %v776 = vld [vmem:[#allocation8 + $0x7f8] sm:$0xff]
    %v777 = vld [vmem:[#allocation8 + $0x800] sm:$0xff]
    %v778 = vld [vmem:[#allocation8 + $0x808] sm:$0xff]
    %v779 = vld [vmem:[#allocation8 + $0x810] sm:$0xff]
    %v780 = vld [vmem:[#allocation8 + $0x818] sm:$0xff]
    %v781 = vld [vmem:[#allocation8 + $0x820] sm:$0xff]
    %v782 = vld [vmem:[#allocation8 + $0x828] sm:$0xff]
    %v783 = vld [vmem:[#allocation8 + $0x830] sm:$0xff]
    %v784 = vld [vmem:[#allocation8 + $0x838] sm:$0xff]
    %v785 = vld [vmem:[#allocation8 + $0x840] sm:$0xff]
    %v786 = vld [vmem:[#allocation8 + $0x848] sm:$0xff]
    %v787 = vld [vmem:[#allocation8 + $0x850] sm:$0xff]
    %v788 = vld [vmem:[#allocation8 + $0x858] sm:$0xff]
    %v789 = vld [vmem:[#allocation8 + $0x860] sm:$0xff]
    %v790 = vld [vmem:[#allocation8 + $0x868] sm:$0xff]
    %v791 = vld [vmem:[#allocation8 + $0x870] sm:$0xff]
    %v792 = vld [vmem:[#allocation8 + $0x878] sm:$0xff]
    %v793 = vld [vmem:[#allocation8 + $0x880] sm:$0xff]
    %v794 = vld [vmem:[#allocation8 + $0x888] sm:$0xff]
    %v795 = vld [vmem:[#allocation8 + $0x890] sm:$0xff]
    %v796 = vld [vmem:[#allocation8 + $0x898] sm:$0xff]
    %v797 = vld [vmem:[#allocation8 + $0x8a0] sm:$0xff]
    %v798 = vld [vmem:[#allocation8 + $0x8a8] sm:$0xff]
    %v799 = vld [vmem:[#allocation8 + $0x8b0] sm:$0xff]
    %v800 = vld [vmem:[#allocation8 + $0x8b8] sm:$0xff]
    %v801 = vld [vmem:[#allocation8 + $0x8c0] sm:$0xff]
    %v802 = vld [vmem:[#allocation8 + $0x8c8] sm:$0xff]
    %v803 = vld [vmem:[#allocation8 + $0x8d0] sm:$0xff]
    %v804 = vld [vmem:[#allocation8 + $0x8d8] sm:$0xff]
    %v805 = vld [vmem:[#allocation8 + $0x8e0] sm:$0xff]
    %v806 = vld [vmem:[#allocation8 + $0x8e8] sm:$0xff]
    %v807 = vld [vmem:[#allocation8 + $0x8f0] sm:$0xff]
    %v808 = vld [vmem:[#allocation8 + $0x8f8] sm:$0xff]
    %v809 = vld [vmem:[#allocation8 + $0x900] sm:$0xff]
    %v810 = vld [vmem:[#allocation8 + $0x908] sm:$0xff]
    %v811 = vld [vmem:[#allocation8 + $0x910] sm:$0xff]
    %v812 = vld [vmem:[#allocation8 + $0x918] sm:$0xff]
    %v813 = vld [vmem:[#allocation8 + $0x920] sm:$0xff]
    %v814 = vld [vmem:[#allocation8 + $0x928] sm:$0xff]
    %v815 = vld [vmem:[#allocation8 + $0x930] sm:$0xff]
    %v816 = vld [vmem:[#allocation8 + $0x938] sm:$0xff]
    %v817 = vld [vmem:[#allocation8 + $0x940] sm:$0xff]
    %v818 = vld [vmem:[#allocation8 + $0x948] sm:$0xff]
    %v819 = vld [vmem:[#allocation8 + $0x950] sm:$0xff]
    %v820 = vld [vmem:[#allocation8 + $0x958] sm:$0xff]
    %v821 = vld [vmem:[#allocation8 + $0x960] sm:$0xff]
    %v822 = vld [vmem:[#allocation8 + $0x968] sm:$0xff]
    %v823 = vld [vmem:[#allocation8 + $0x970] sm:$0xff]
    %v824 = vld [vmem:[#allocation8 + $0x978] sm:$0xff]
    %v825 = vld [vmem:[#allocation8 + $0x980] sm:$0xff]
    %v826 = vld [vmem:[#allocation8 + $0x988] sm:$0xff]
    %v827 = vld [vmem:[#allocation8 + $0x990] sm:$0xff]
    %v828 = vld [vmem:[#allocation8 + $0x998] sm:$0xff]
    %v829 = vld [vmem:[#allocation8 + $0x9a0] sm:$0xff]
    %v830 = vld [vmem:[#allocation8 + $0x9a8] sm:$0xff]
    %v831 = vld [vmem:[#allocation8 + $0x9b0] sm:$0xff]
    %v832 = vld [vmem:[#allocation8 + $0x9b8] sm:$0xff]
    %v833 = vld [vmem:[#allocation8 + $0x9c0] sm:$0xff]
    %v834 = vld [vmem:[#allocation8 + $0x9c8] sm:$0xff]
    %v835 = vld [vmem:[#allocation8 + $0x9d0] sm:$0xff]
    %v836 = vld [vmem:[#allocation8 + $0x9d8] sm:$0xff]
    %v837 = vld [vmem:[#allocation8 + $0x9e0] sm:$0xff]
    %v838 = vld [vmem:[#allocation8 + $0x9e8] sm:$0xff]
    %v839 = vld [vmem:[#allocation8 + $0x9f0] sm:$0xff]
    %v840 = vld [vmem:[#allocation8 + $0x9f8] sm:$0xff]
    %v841 = vld [vmem:[#allocation8 + $0xa00] sm:$0xff]
    %v842 = vld [vmem:[#allocation8 + $0xa08] sm:$0xff]
    %v843 = vld [vmem:[#allocation8 + $0xa10] sm:$0xff]
    %v844 = vld [vmem:[#allocation8 + $0xa18] sm:$0xff]
    %v845 = vld [vmem:[#allocation8 + $0xa20] sm:$0xff]
    %v846 = vld [vmem:[#allocation8 + $0xa28] sm:$0xff]
    %v847 = vld [vmem:[#allocation8 + $0xa30] sm:$0xff]
    %v848 = vld [vmem:[#allocation8 + $0xa38] sm:$0xff]
    %v849 = vld [vmem:[#allocation8 + $0xa40] sm:$0xff]
    %v850 = vld [vmem:[#allocation8 + $0xa48] sm:$0xff]
    %v851 = vld [vmem:[#allocation8 + $0xa50] sm:$0xff]
    %v852 = vld [vmem:[#allocation8 + $0xa58] sm:$0xff]
    %v853 = vld [vmem:[#allocation8 + $0xa60] sm:$0xff]
    %v854 = vld [vmem:[#allocation8 + $0xa68] sm:$0xff]
    %v855 = vld [vmem:[#allocation8 + $0xa70] sm:$0xff]
    %v856 = vld [vmem:[#allocation8 + $0xa78] sm:$0xff]
    %v857 = vld [vmem:[#allocation8 + $0xa80] sm:$0xff]
    %v858 = vld [vmem:[#allocation8 + $0xa88] sm:$0xff]
    %v859 = vld [vmem:[#allocation8 + $0xa90] sm:$0xff]
    %v860 = vld [vmem:[#allocation8 + $0xa98] sm:$0xff]
    %v861 = vld [vmem:[#allocation8 + $0xaa0] sm:$0xff]
    %v862 = vld [vmem:[#allocation8 + $0xaa8] sm:$0xff]
    %v863 = vld [vmem:[#allocation8 + $0xab0] sm:$0xff]
    %v864 = vld [vmem:[#allocation8 + $0xab8] sm:$0xff]
    %v865 = vld [vmem:[#allocation8 + $0xac0] sm:$0xff]
    %v866 = vld [vmem:[#allocation8 + $0xac8] sm:$0xff]
    %v867 = vld [vmem:[#allocation8 + $0xad0] sm:$0xff]
    %v868 = vld [vmem:[#allocation8 + $0xad8] sm:$0xff]
    %v869 = vld [vmem:[#allocation8 + $0xae0] sm:$0xff]
    %v870 = vld [vmem:[#allocation8 + $0xae8] sm:$0xff]
    %v871 = vld [vmem:[#allocation8 + $0xaf0] sm:$0xff]
    %v872 = vld [vmem:[#allocation8 + $0xaf8] sm:$0xff]
    %v873 = vld [vmem:[#allocation8 + $0xb00] sm:$0xff]
    %v874 = vld [vmem:[#allocation8 + $0xb08] sm:$0xff]
    %v875 = vld [vmem:[#allocation8 + $0xb10] sm:$0xff]
    %v876 = vld [vmem:[#allocation8 + $0xb18] sm:$0xff]
    %v877 = vld [vmem:[#allocation8 + $0xb20] sm:$0xff]
    %v878 = vld [vmem:[#allocation8 + $0xb28] sm:$0xff]
    %v879 = vld [vmem:[#allocation8 + $0xb30] sm:$0xff]
    %v880 = vld [vmem:[#allocation8 + $0xb38] sm:$0xff]
    %v881 = vld [vmem:[#allocation8 + $0xb40] sm:$0xff]
    %v882 = vld [vmem:[#allocation8 + $0xb48] sm:$0xff]
    %v883 = vld [vmem:[#allocation8 + $0xb50] sm:$0xff]
    %v884 = vld [vmem:[#allocation8 + $0xb58] sm:$0xff]
    %v885 = vld [vmem:[#allocation8 + $0xb60] sm:$0xff]
    %v886 = vld [vmem:[#allocation8 + $0xb68] sm:$0xff]
    %v887 = vld [vmem:[#allocation8 + $0xb70] sm:$0xff]
    %v888 = vld [vmem:[#allocation8 + $0xb78] sm:$0xff]
    %v889 = vld [vmem:[#allocation8 + $0xb80] sm:$0xff]
    %v890 = vld [vmem:[#allocation8 + $0xb88] sm:$0xff]
    %v891 = vld [vmem:[#allocation8 + $0xb90] sm:$0xff]
    %v892 = vld [vmem:[#allocation8 + $0xb98] sm:$0xff]
    %v893 = vld [vmem:[#allocation8 + $0xba0] sm:$0xff]
    %v894 = vld [vmem:[#allocation8 + $0xba8] sm:$0xff]
    %v895 = vld [vmem:[#allocation8 + $0xbb0] sm:$0xff]
    %v896 = vld [vmem:[#allocation8 + $0xbb8] sm:$0xff]
    %v897 = vld [vmem:[#allocation8 + $0xbc0] sm:$0xff]
    %v898 = vld [vmem:[#allocation8 + $0xbc8] sm:$0xff]
    %v899 = vld [vmem:[#allocation8 + $0xbd0] sm:$0xff]
    %v900 = vld [vmem:[#allocation8 + $0xbd8] sm:$0xff]
    %v901 = vld [vmem:[#allocation8 + $0xbe0] sm:$0xff]
    %v902 = vld [vmem:[#allocation8 + $0xbe8] sm:$0xff]
    %v903 = vld [vmem:[#allocation8 + $0xbf0] sm:$0xff]
    %v904 = vld [vmem:[#allocation8 + $0xbf8] sm:$0xff]
    %v905 = vld [vmem:[#allocation8 + $0xc00] sm:$0xff]
    %v906 = vld [vmem:[#allocation8 + $0xc08] sm:$0xff]
    %v907 = vld [vmem:[#allocation8 + $0xc10] sm:$0xff]
    %v908 = vld [vmem:[#allocation8 + $0xc18] sm:$0xff]
    %v909 = vld [vmem:[#allocation8 + $0xc20] sm:$0xff]
    %v910 = vld [vmem:[#allocation8 + $0xc28] sm:$0xff]
    %v911 = vld [vmem:[#allocation8 + $0xc30] sm:$0xff]
    %v912 = vld [vmem:[#allocation8 + $0xc38] sm:$0xff]
    %v913 = vld [vmem:[#allocation8 + $0xc40] sm:$0xff]
    %v914 = vld [vmem:[#allocation8 + $0xc48] sm:$0xff]
    %v915 = vld [vmem:[#allocation8 + $0xc50] sm:$0xff]
    %v916 = vld [vmem:[#allocation8 + $0xc58] sm:$0xff]
    %v917 = vld [vmem:[#allocation8 + $0xc60] sm:$0xff]
    %v918 = vld [vmem:[#allocation8 + $0xc68] sm:$0xff]
    %v919 = vld [vmem:[#allocation8 + $0xc70] sm:$0xff]
    %v920 = vld [vmem:[#allocation8 + $0xc78] sm:$0xff]
    %v921 = vld [vmem:[#allocation8 + $0xc80] sm:$0xff]
    %v922 = vld [vmem:[#allocation8 + $0xc88] sm:$0xff]
    %v923 = vld [vmem:[#allocation8 + $0xc90] sm:$0xff]
    %v924 = vld [vmem:[#allocation8 + $0xc98] sm:$0xff]
    %v925 = vld [vmem:[#allocation8 + $0xca0] sm:$0xff]
    %v926 = vld [vmem:[#allocation8 + $0xca8] sm:$0xff]
    %v927 = vld [vmem:[#allocation8 + $0xcb0] sm:$0xff]
    %v928 = vld [vmem:[#allocation8 + $0xcb8] sm:$0xff]
    %v929 = vld [vmem:[#allocation8 + $0xcc0] sm:$0xff]
    %v930 = vld [vmem:[#allocation8 + $0xcc8] sm:$0xff]
    %v931 = vld [vmem:[#allocation8 + $0xcd0] sm:$0xff]
    %v932 = vld [vmem:[#allocation8 + $0xcd8] sm:$0xff]
    %v933 = vld [vmem:[#allocation8 + $0xce0] sm:$0xff]
    %v934 = vld [vmem:[#allocation8 + $0xce8] sm:$0xff]
    %v935 = vld [vmem:[#allocation8 + $0xcf0] sm:$0xff]
    %v936 = vld [vmem:[#allocation8 + $0xcf8] sm:$0xff]
    %v937 = vld [vmem:[#allocation8 + $0xd00] sm:$0xff]
    %v938 = vld [vmem:[#allocation8 + $0xd08] sm:$0xff]
    %v939 = vld [vmem:[#allocation8 + $0xd10] sm:$0xff]
    %v940 = vld [vmem:[#allocation8 + $0xd18] sm:$0xff]
    %v941 = vld [vmem:[#allocation8 + $0xd20] sm:$0xff]
    %v942 = vld [vmem:[#allocation8 + $0xd28] sm:$0xff]
    %v943 = vld [vmem:[#allocation8 + $0xd30] sm:$0xff]
    %v944 = vld [vmem:[#allocation8 + $0xd38] sm:$0xff]
    %v945 = vld [vmem:[#allocation8 + $0xd40] sm:$0xff]
    %v946 = vld [vmem:[#allocation8 + $0xd48] sm:$0xff]
    %v947 = vld [vmem:[#allocation8 + $0xd50] sm:$0xff]
    %v948 = vld [vmem:[#allocation8 + $0xd58] sm:$0xff]
    %v949 = vld [vmem:[#allocation8 + $0xd60] sm:$0xff]
    %v950 = vld [vmem:[#allocation8 + $0xd68] sm:$0xff]
    %v951 = vld [vmem:[#allocation8 + $0xd70] sm:$0xff]
    %v952 = vld [vmem:[#allocation8 + $0xd78] sm:$0xff]
    %v953 = vld [vmem:[#allocation8 + $0xd80] sm:$0xff]
    %v954 = vld [vmem:[#allocation8 + $0xd88] sm:$0xff]
    %v955 = vld [vmem:[#allocation8 + $0xd90] sm:$0xff]
    %v956 = vld [vmem:[#allocation8 + $0xd98] sm:$0xff]
    %v957 = vld [vmem:[#allocation8 + $0xda0] sm:$0xff]
    %v958 = vld [vmem:[#allocation8 + $0xda8] sm:$0xff]
    %v959 = vld [vmem:[#allocation8 + $0xdb0] sm:$0xff]
    %v960 = vld [vmem:[#allocation8 + $0xdb8] sm:$0xff]
    %v961 = vld [vmem:[#allocation8 + $0xdc0] sm:$0xff]
    %v962 = vld [vmem:[#allocation8 + $0xdc8] sm:$0xff]
    %v963 = vld [vmem:[#allocation8 + $0xdd0] sm:$0xff]
    %v964 = vld [vmem:[#allocation8 + $0xdd8] sm:$0xff]
    %v965 = vld [vmem:[#allocation8 + $0xde0] sm:$0xff]
    %v966 = vld [vmem:[#allocation8 + $0xde8] sm:$0xff]
    %v967 = vld [vmem:[#allocation8 + $0xdf0] sm:$0xff]
    %v968 = vld [vmem:[#allocation8 + $0xdf8] sm:$0xff]
    %v969 = vld [vmem:[#allocation8 + $0xe00] sm:$0xff]
    %v970 = vld [vmem:[#allocation8 + $0xe08] sm:$0xff]
    %v971 = vld [vmem:[#allocation8 + $0xe10] sm:$0xff]
    %v972 = vld [vmem:[#allocation8 + $0xe18] sm:$0xff]
    %v973 = vld [vmem:[#allocation8 + $0xe20] sm:$0xff]
    %v974 = vld [vmem:[#allocation8 + $0xe28] sm:$0xff]
    %v975 = vld [vmem:[#allocation8 + $0xe30] sm:$0xff]
    %v976 = vld [vmem:[#allocation8 + $0xe38] sm:$0xff]
    %v977 = vld [vmem:[#allocation8 + $0xe40] sm:$0xff]
    %v978 = vld [vmem:[#allocation8 + $0xe48] sm:$0xff]
    %v979 = vld [vmem:[#allocation8 + $0xe50] sm:$0xff]
    %v980 = vld [vmem:[#allocation8 + $0xe58] sm:$0xff]
    %v981 = vld [vmem:[#allocation8 + $0xe60] sm:$0xff]
    %v982 = vld [vmem:[#allocation8 + $0xe68] sm:$0xff]
    %v983 = vld [vmem:[#allocation8 + $0xe70] sm:$0xff]
    %v984 = vld [vmem:[#allocation8 + $0xe78] sm:$0xff]
    %v985 = vld [vmem:[#allocation8 + $0xe80] sm:$0xff]
    %v986 = vld [vmem:[#allocation8 + $0xe88] sm:$0xff]
    %v987 = vld [vmem:[#allocation8 + $0xe90] sm:$0xff]
    %v988 = vld [vmem:[#allocation8 + $0xe98] sm:$0xff]
    %v989 = vld [vmem:[#allocation8 + $0xea0] sm:$0xff]
    %v990 = vld [vmem:[#allocation8 + $0xea8] sm:$0xff]
    %v991 = vld [vmem:[#allocation8 + $0xeb0] sm:$0xff]
    %v992 = vld [vmem:[#allocation8 + $0xeb8] sm:$0xff]
    %v993 = vld [vmem:[#allocation8 + $0xec0] sm:$0xff]
    %v994 = vld [vmem:[#allocation8 + $0xec8] sm:$0xff]
    %v995 = vld [vmem:[#allocation8 + $0xed0] sm:$0xff]
    %v996 = vld [vmem:[#allocation8 + $0xed8] sm:$0xff]
    %v997 = vld [vmem:[#allocation8 + $0xee0] sm:$0xff]
    %v998 = vld [vmem:[#allocation8 + $0xee8] sm:$0xff]
    %v999 = vld [vmem:[#allocation8 + $0xef0] sm:$0xff]
    %v1000 = vld [vmem:[#allocation8 + $0xef8] sm:$0xff]
    %v1001 = vld [vmem:[#allocation8 + $0xf00] sm:$0xff]
    %v1002 = vld [vmem:[#allocation8 + $0xf08] sm:$0xff]
    %v1003 = vld [vmem:[#allocation8 + $0xf10] sm:$0xff]
    %v1004 = vld [vmem:[#allocation8 + $0xf18] sm:$0xff]
    %v1005 = vld [vmem:[#allocation8 + $0xf20] sm:$0xff]
    %v1006 = vld [vmem:[#allocation8 + $0xf28] sm:$0xff]
    %v1007 = vld [vmem:[#allocation8 + $0xf30] sm:$0xff]
    %v1008 = vld [vmem:[#allocation8 + $0xf38] sm:$0xff]
    %v1009 = vld [vmem:[#allocation8 + $0xf40] sm:$0xff]
    %v1010 = vld [vmem:[#allocation8 + $0xf48] sm:$0xff]
    %v1011 = vld [vmem:[#allocation8 + $0xf50] sm:$0xff]
    %v1012 = vld [vmem:[#allocation8 + $0xf58] sm:$0xff]
    %v1013 = vld [vmem:[#allocation8 + $0xf60] sm:$0xff]
    %v1014 = vld [vmem:[#allocation8 + $0xf68] sm:$0xff]
    %v1015 = vld [vmem:[#allocation8 + $0xf70] sm:$0xff]
    %v1016 = vld [vmem:[#allocation8 + $0xf78] sm:$0xff]
    %v1017 = vld [vmem:[#allocation8 + $0xf80] sm:$0xff]
    %v1018 = vld [vmem:[#allocation8 + $0xf88] sm:$0xff]
    %v1019 = vld [vmem:[#allocation8 + $0xf90] sm:$0xff]
    %v1020 = vld [vmem:[#allocation8 + $0xf98] sm:$0xff]
    %v1021 = vld [vmem:[#allocation8 + $0xfa0] sm:$0xff]
    %v1022 = vld [vmem:[#allocation8 + $0xfa8] sm:$0xff]
    %v1023 = vld [vmem:[#allocation8 + $0xfb0] sm:$0xff]
    %v1024 = vld [vmem:[#allocation8 + $0xfb8] sm:$0xff]
    %v1025 = vld [vmem:[#allocation8 + $0xfc0] sm:$0xff]
    %v1026 = vld [vmem:[#allocation8 + $0xfc8] sm:$0xff]
    %v1027 = vld [vmem:[#allocation8 + $0xfd0] sm:$0xff]
    %v1028 = vld [vmem:[#allocation8 + $0xfd8] sm:$0xff]
    %v1029 = vld [vmem:[#allocation8 + $0xfe0] sm:$0xff]
    %v1030 = vld [vmem:[#allocation8 + $0xfe8] sm:$0xff]
    %v1031 = vld [vmem:[#allocation8 + $0xff0] sm:$0xff]
    %v1032 = vld [vmem:[#allocation8 + $0xff8] sm:$0xff]
    %1033 = vmatpush.msra.mxu0 %v581
    %1034 = vmatpush.msra.mxu0 %v577
    %1035 = vmatpush.msra.mxu0 %v573
    %1036 = vmatpush.msra.mxu0 %v569
    %1037 = vmatpush.msra.mxu0 %v565
    %1038 = vmatpush.msra.mxu0 %v561
    %1039 = vmatpush.msra.mxu0 %v557
    %1040 = vmatpush.msra.mxu0 %v553
    %1041 = vmatpush.msra.mxu0 %v549
    %1042 = vmatpush.msra.mxu0 %v545
    %1043 = vmatpush.msra.mxu0 %v541
    %1044 = vmatpush.msra.mxu0 %v537
    %1045 = vmatpush.msra.mxu0 %v533
    %1046 = vmatpush.msra.mxu0 %v529
    %1047 = vmatpush.msra.mxu0 %v525
    %1048 = vmatpush.msra.mxu0 %v521
    %1049 = vmatmul.f32.gmra.mxu0 %v513
    %v1050 = vpop.f32.mrf.mxu0
    %v1051 = vadd.f32 0.0, %v1050
    %1052 = vdwg.mxu0
    %1053 = vmatpush.msra.mxu0 %v645
    %1054 = vmatpush.msra.mxu0 %v641
    %1055 = vmatpush.msra.mxu0 %v637
    %1056 = vmatpush.msra.mxu0 %v633
    %1057 = vmatpush.msra.mxu0 %v629
    %1058 = vmatpush.msra.mxu0 %v625
    %1059 = vmatpush.msra.mxu0 %v621
    %1060 = vmatpush.msra.mxu0 %v617
    %1061 = vmatpush.msra.mxu0 %v613
    %1062 = vmatpush.msra.mxu0 %v609
    %1063 = vmatpush.msra.mxu0 %v605
    %1064 = vmatpush.msra.mxu0 %v601
    %1065 = vmatpush.msra.mxu0 %v597
    %1066 = vmatpush.msra.mxu0 %v593
    %1067 = vmatpush.msra.mxu0 %v589
    %1068 = vmatpush.msra.mxu0 %v585
    %1069 = vmatmul.f32.gmra.mxu0 %v514
    %v1070 = vpop.f32.mrf.mxu0
    %v1071 = vadd.f32 %v1051, %v1070
    %1072 = vdwg.mxu0
    %1073 = vmatpush.msra.mxu0 %v709
    %1074 = vmatpush.msra.mxu0 %v705
    %1075 = vmatpush.msra.mxu0 %v701
    %1076 = vmatpush.msra.mxu0 %v697
    %1077 = vmatpush.msra.mxu0 %v693
    %1078 = vmatpush.msra.mxu0 %v689
    %1079 = vmatpush.msra.mxu0 %v685
    %1080 = vmatpush.msra.mxu0 %v681
    %1081 = vmatpush.msra.mxu0 %v677
    %1082 = vmatpush.msra.mxu0 %v673
    %1083 = vmatpush.msra.mxu0 %v669
    %1084 = vmatpush.msra.mxu0 %v665
    %1085 = vmatpush.msra.mxu0 %v661
    %1086 = vmatpush.msra.mxu0 %v657
    %1087 = vmatpush.msra.mxu0 %v653
    %1088 = vmatpush.msra.mxu0 %v649
    %1089 = vmatmul.f32.gmra.mxu0 %v515
    %v1090 = vpop.f32.mrf.mxu0
    %v1091 = vadd.f32 %v1071, %v1090
    %1092 = vdwg.mxu0
    %1093 = vmatpush.msra.mxu0 %v773
    %1094 = vmatpush.msra.mxu0 %v769
    %1095 = vmatpush.msra.mxu0 %v765
    %1096 = vmatpush.msra.mxu0 %v761
    %1097 = vmatpush.msra.mxu0 %v757
    %1098 = vmatpush.msra.mxu0 %v753
    %1099 = vmatpush.msra.mxu0 %v749
    %1100 = vmatpush.msra.mxu0 %v745
    %1101 = vmatpush.msra.mxu0 %v741
    %1102 = vmatpush.msra.mxu0 %v737
    %1103 = vmatpush.msra.mxu0 %v733
    %1104 = vmatpush.msra.mxu0 %v729
    %1105 = vmatpush.msra.mxu0 %v725
    %1106 = vmatpush.msra.mxu0 %v721
    %1107 = vmatpush.msra.mxu0 %v717
    %1108 = vmatpush.msra.mxu0 %v713
    %1109 = vmatmul.f32.gmra.mxu0 %v516
    %v1110 = vpop.f32.mrf.mxu0
    %v1111 = vadd.f32 %v1091, %v1110
    %1112 = vdwg.mxu0
    %1113 = vmatpush.msra.mxu0 %v837
    %1114 = vmatpush.msra.mxu0 %v833
    %1115 = vmatpush.msra.mxu0 %v829
    %1116 = vmatpush.msra.mxu0 %v825
    %1117 = vmatpush.msra.mxu0 %v821
    %1118 = vmatpush.msra.mxu0 %v817
    %1119 = vmatpush.msra.mxu0 %v813
    %1120 = vmatpush.msra.mxu0 %v809
    %1121 = vmatpush.msra.mxu0 %v805
    %1122 = vmatpush.msra.mxu0 %v801
    %1123 = vmatpush.msra.mxu0 %v797
    %1124 = vmatpush.msra.mxu0 %v793
    %1125 = vmatpush.msra.mxu0 %v789
    %1126 = vmatpush.msra.mxu0 %v785
    %1127 = vmatpush.msra.mxu0 %v781
    %1128 = vmatpush.msra.mxu0 %v777
    %1129 = vmatmul.f32.gmra.mxu0 %v517
    %v1130 = vpop.f32.mrf.mxu0
    %v1131 = vadd.f32 %v1111, %v1130
    %1132 = vdwg.mxu0
    %1133 = vmatpush.msra.mxu0 %v901
    %1134 = vmatpush.msra.mxu0 %v897
    %1135 = vmatpush.msra.mxu0 %v893
    %1136 = vmatpush.msra.mxu0 %v889
    %1137 = vmatpush.msra.mxu0 %v885
    %1138 = vmatpush.msra.mxu0 %v881
    %1139 = vmatpush.msra.mxu0 %v877
    %1140 = vmatpush.msra.mxu0 %v873
    %1141 = vmatpush.msra.mxu0 %v869
    %1142 = vmatpush.msra.mxu0 %v865
    %1143 = vmatpush.msra.mxu0 %v861
    %1144 = vmatpush.msra.mxu0 %v857
    %1145 = vmatpush.msra.mxu0 %v853
    %1146 = vmatpush.msra.mxu0 %v849
    %1147 = vmatpush.msra.mxu0 %v845
    %1148 = vmatpush.msra.mxu0 %v841
    %1149 = vmatmul.f32.gmra.mxu0 %v518
    %v1150 = vpop.f32.mrf.mxu0
    %v1151 = vadd.f32 %v1131, %v1150
    %1152 = vdwg.mxu0
    %1153 = vmatpush.msra.mxu0 %v965
    %1154 = vmatpush.msra.mxu0 %v961
    %1155 = vmatpush.msra.mxu0 %v957
    %1156 = vmatpush.msra.mxu0 %v953
    %1157 = vmatpush.msra.mxu0 %v949
    %1158 = vmatpush.msra.mxu0 %v945
    %1159 = vmatpush.msra.mxu0 %v941
    %1160 = vmatpush.msra.mxu0 %v937
    %1161 = vmatpush.msra.mxu0 %v933
    %1162 = vmatpush.msra.mxu0 %v929
    %1163 = vmatpush.msra.mxu0 %v925
    %1164 = vmatpush.msra.mxu0 %v921
    %1165 = vmatpush.msra.mxu0 %v917
    %1166 = vmatpush.msra.mxu0 %v913
    %1167 = vmatpush.msra.mxu0 %v909
    %1168 = vmatpush.msra.mxu0 %v905
    %1169 = vmatmul.f32.gmra.mxu0 %v519
    %v1170 = vpop.f32.mrf.mxu0
    %v1171 = vadd.f32 %v1151, %v1170
    %1172 = vdwg.mxu0
    %1173 = vmatpush.msra.mxu0 %v1029
    %1174 = vmatpush.msra.mxu0 %v1025
    %1175 = vmatpush.msra.mxu0 %v1021
    %1176 = vmatpush.msra.mxu0 %v1017
    %1177 = vmatpush.msra.mxu0 %v1013
    %1178 = vmatpush.msra.mxu0 %v1009
    %1179 = vmatpush.msra.mxu0 %v1005
    %1180 = vmatpush.msra.mxu0 %v1001
    %1181 = vmatpush.msra.mxu0 %v997
    %1182 = vmatpush.msra.mxu0 %v993
    %1183 = vmatpush.msra.mxu0 %v989
    %1184 = vmatpush.msra.mxu0 %v985
    %1185 = vmatpush.msra.mxu0 %v981
    %1186 = vmatpush.msra.mxu0 %v977
    %1187 = vmatpush.msra.mxu0 %v973
    %1188 = vmatpush.msra.mxu0 %v969
    %1189 = vmatmul.f32.gmra.mxu0 %v520
    %v1190 = vpop.f32.mrf.mxu0
    %v1191 = vadd.f32 %v1171, %v1190
    %1192 = vdwg.mxu0
    %1193 = vmatpush.msra.mxu0 %v582
    %1194 = vmatpush.msra.mxu0 %v578
    %1195 = vmatpush.msra.mxu0 %v574
    %1196 = vmatpush.msra.mxu0 %v570
    %1197 = vmatpush.msra.mxu0 %v566
    %1198 = vmatpush.msra.mxu0 %v562
    %1199 = vmatpush.msra.mxu0 %v558
    %1200 = vmatpush.msra.mxu0 %v554
    %1201 = vmatpush.msra.mxu0 %v550
    %1202 = vmatpush.msra.mxu0 %v546
    %1203 = vmatpush.msra.mxu0 %v542
    %1204 = vmatpush.msra.mxu0 %v538
    %1205 = vmatpush.msra.mxu0 %v534
    %1206 = vmatpush.msra.mxu0 %v530
    %1207 = vmatpush.msra.mxu0 %v526
    %1208 = vmatpush.msra.mxu0 %v522
    %1209 = vmatmul.f32.gmra.mxu0 %v513
    %v1210 = vpop.f32.mrf.mxu0
    %v1211 = vadd.f32 0.0, %v1210
    %1212 = vdwg.mxu0
    %1213 = vmatpush.msra.mxu0 %v646
    %1214 = vmatpush.msra.mxu0 %v642
    %1215 = vmatpush.msra.mxu0 %v638
    %1216 = vmatpush.msra.mxu0 %v634
    %1217 = vmatpush.msra.mxu0 %v630
    %1218 = vmatpush.msra.mxu0 %v626
    %1219 = vmatpush.msra.mxu0 %v622
    %1220 = vmatpush.msra.mxu0 %v618
    %1221 = vmatpush.msra.mxu0 %v614
    %1222 = vmatpush.msra.mxu0 %v610
    %1223 = vmatpush.msra.mxu0 %v606
    %1224 = vmatpush.msra.mxu0 %v602
    %1225 = vmatpush.msra.mxu0 %v598
    %1226 = vmatpush.msra.mxu0 %v594
    %1227 = vmatpush.msra.mxu0 %v590
    %1228 = vmatpush.msra.mxu0 %v586
    %1229 = vmatmul.f32.gmra.mxu0 %v514
    %v1230 = vpop.f32.mrf.mxu0
    %v1231 = vadd.f32 %v1211, %v1230
    %1232 = vdwg.mxu0
    %1233 = vmatpush.msra.mxu0 %v710
    %1234 = vmatpush.msra.mxu0 %v706
    %1235 = vmatpush.msra.mxu0 %v702
    %1236 = vmatpush.msra.mxu0 %v698
    %1237 = vmatpush.msra.mxu0 %v694
    %1238 = vmatpush.msra.mxu0 %v690
    %1239 = vmatpush.msra.mxu0 %v686
    %1240 = vmatpush.msra.mxu0 %v682
    %1241 = vmatpush.msra.mxu0 %v678
    %1242 = vmatpush.msra.mxu0 %v674
    %1243 = vmatpush.msra.mxu0 %v670
    %1244 = vmatpush.msra.mxu0 %v666
    %1245 = vmatpush.msra.mxu0 %v662
    %1246 = vmatpush.msra.mxu0 %v658
    %1247 = vmatpush.msra.mxu0 %v654
    %1248 = vmatpush.msra.mxu0 %v650
    %1249 = vmatmul.f32.gmra.mxu0 %v515
    %v1250 = vpop.f32.mrf.mxu0
    %v1251 = vadd.f32 %v1231, %v1250
    %1252 = vdwg.mxu0
    %1253 = vmatpush.msra.mxu0 %v774
    %1254 = vmatpush.msra.mxu0 %v770
    %1255 = vmatpush.msra.mxu0 %v766
    %1256 = vmatpush.msra.mxu0 %v762
    %1257 = vmatpush.msra.mxu0 %v758
    %1258 = vmatpush.msra.mxu0 %v754
    %1259 = vmatpush.msra.mxu0 %v750
    %1260 = vmatpush.msra.mxu0 %v746
    %1261 = vmatpush.msra.mxu0 %v742
    %1262 = vmatpush.msra.mxu0 %v738
    %1263 = vmatpush.msra.mxu0 %v734
    %1264 = vmatpush.msra.mxu0 %v730
    %1265 = vmatpush.msra.mxu0 %v726
    %1266 = vmatpush.msra.mxu0 %v722
    %1267 = vmatpush.msra.mxu0 %v718
    %1268 = vmatpush.msra.mxu0 %v714
    %1269 = vmatmul.f32.gmra.mxu0 %v516
    %v1270 = vpop.f32.mrf.mxu0
    %v1271 = vadd.f32 %v1251, %v1270
    %1272 = vdwg.mxu0
    %1273 = vmatpush.msra.mxu0 %v838
    %1274 = vmatpush.msra.mxu0 %v834
    %1275 = vmatpush.msra.mxu0 %v830
    %1276 = vmatpush.msra.mxu0 %v826
    %1277 = vmatpush.msra.mxu0 %v822
    %1278 = vmatpush.msra.mxu0 %v818
    %1279 = vmatpush.msra.mxu0 %v814
    %1280 = vmatpush.msra.mxu0 %v810
    %1281 = vmatpush.msra.mxu0 %v806
    %1282 = vmatpush.msra.mxu0 %v802
    %1283 = vmatpush.msra.mxu0 %v798
    %1284 = vmatpush.msra.mxu0 %v794
    %1285 = vmatpush.msra.mxu0 %v790
    %1286 = vmatpush.msra.mxu0 %v786
    %1287 = vmatpush.msra.mxu0 %v782
    %1288 = vmatpush.msra.mxu0 %v778
    %1289 = vmatmul.f32.gmra.mxu0 %v517
    %v1290 = vpop.f32.mrf.mxu0
    %v1291 = vadd.f32 %v1271, %v1290
    %1292 = vdwg.mxu0
    %1293 = vmatpush.msra.mxu0 %v902
    %1294 = vmatpush.msra.mxu0 %v898
    %1295 = vmatpush.msra.mxu0 %v894
    %1296 = vmatpush.msra.mxu0 %v890
    %1297 = vmatpush.msra.mxu0 %v886
    %1298 = vmatpush.msra.mxu0 %v882
    %1299 = vmatpush.msra.mxu0 %v878
    %1300 = vmatpush.msra.mxu0 %v874
    %1301 = vmatpush.msra.mxu0 %v870
    %1302 = vmatpush.msra.mxu0 %v866
    %1303 = vmatpush.msra.mxu0 %v862
    %1304 = vmatpush.msra.mxu0 %v858
    %1305 = vmatpush.msra.mxu0 %v854
    %1306 = vmatpush.msra.mxu0 %v850
    %1307 = vmatpush.msra.mxu0 %v846
    %1308 = vmatpush.msra.mxu0 %v842
    %1309 = vmatmul.f32.gmra.mxu0 %v518
    %v1310 = vpop.f32.mrf.mxu0
    %v1311 = vadd.f32 %v1291, %v1310
    %1312 = vdwg.mxu0
    %1313 = vmatpush.msra.mxu0 %v966
    %1314 = vmatpush.msra.mxu0 %v962
    %1315 = vmatpush.msra.mxu0 %v958
    %1316 = vmatpush.msra.mxu0 %v954
    %1317 = vmatpush.msra.mxu0 %v950
    %1318 = vmatpush.msra.mxu0 %v946
    %1319 = vmatpush.msra.mxu0 %v942
    %1320 = vmatpush.msra.mxu0 %v938
    %1321 = vmatpush.msra.mxu0 %v934
    %1322 = vmatpush.msra.mxu0 %v930
    %1323 = vmatpush.msra.mxu0 %v926
    %1324 = vmatpush.msra.mxu0 %v922
    %1325 = vmatpush.msra.mxu0 %v918
    %1326 = vmatpush.msra.mxu0 %v914
    %1327 = vmatpush.msra.mxu0 %v910
    %1328 = vmatpush.msra.mxu0 %v906
    %1329 = vmatmul.f32.gmra.mxu0 %v519
    %v1330 = vpop.f32.mrf.mxu0
    %v1331 = vadd.f32 %v1311, %v1330
    %1332 = vdwg.mxu0
    %1333 = vmatpush.msra.mxu0 %v1030
    %1334 = vmatpush.msra.mxu0 %v1026
    %1335 = vmatpush.msra.mxu0 %v1022
    %1336 = vmatpush.msra.mxu0 %v1018
    %1337 = vmatpush.msra.mxu0 %v1014
    %1338 = vmatpush.msra.mxu0 %v1010
    %1339 = vmatpush.msra.mxu0 %v1006
    %1340 = vmatpush.msra.mxu0 %v1002
    %1341 = vmatpush.msra.mxu0 %v998
    %1342 = vmatpush.msra.mxu0 %v994
    %1343 = vmatpush.msra.mxu0 %v990
    %1344 = vmatpush.msra.mxu0 %v986
    %1345 = vmatpush.msra.mxu0 %v982
    %1346 = vmatpush.msra.mxu0 %v978
    %1347 = vmatpush.msra.mxu0 %v974
    %1348 = vmatpush.msra.mxu0 %v970
    %1349 = vmatmul.f32.gmra.mxu0 %v520
    %v1350 = vpop.f32.mrf.mxu0
    %v1351 = vadd.f32 %v1331, %v1350
    %1352 = vdwg.mxu0
    %1353 = vmatpush.msra.mxu0 %v583
    %1354 = vmatpush.msra.mxu0 %v579
    %1355 = vmatpush.msra.mxu0 %v575
    %1356 = vmatpush.msra.mxu0 %v571
    %1357 = vmatpush.msra.mxu0 %v567
    %1358 = vmatpush.msra.mxu0 %v563
    %1359 = vmatpush.msra.mxu0 %v559
    %1360 = vmatpush.msra.mxu0 %v555
    %1361 = vmatpush.msra.mxu0 %v551
    %1362 = vmatpush.msra.mxu0 %v547
    %1363 = vmatpush.msra.mxu0 %v543
    %1364 = vmatpush.msra.mxu0 %v539
    %1365 = vmatpush.msra.mxu0 %v535
    %1366 = vmatpush.msra.mxu0 %v531
    %1367 = vmatpush.msra.mxu0 %v527
    %1368 = vmatpush.msra.mxu0 %v523
    %1369 = vmatmul.f32.gmra.mxu0 %v513
    %v1370 = vpop.f32.mrf.mxu0
    %v1371 = vadd.f32 0.0, %v1370
    %1372 = vdwg.mxu0
    %1373 = vmatpush.msra.mxu0 %v647
    %1374 = vmatpush.msra.mxu0 %v643
    %1375 = vmatpush.msra.mxu0 %v639
    %1376 = vmatpush.msra.mxu0 %v635
    %1377 = vmatpush.msra.mxu0 %v631
    %1378 = vmatpush.msra.mxu0 %v627
    %1379 = vmatpush.msra.mxu0 %v623
    %1380 = vmatpush.msra.mxu0 %v619
    %1381 = vmatpush.msra.mxu0 %v615
    %1382 = vmatpush.msra.mxu0 %v611
    %1383 = vmatpush.msra.mxu0 %v607
    %1384 = vmatpush.msra.mxu0 %v603
    %1385 = vmatpush.msra.mxu0 %v599
    %1386 = vmatpush.msra.mxu0 %v595
    %1387 = vmatpush.msra.mxu0 %v591
    %1388 = vmatpush.msra.mxu0 %v587
    %1389 = vmatmul.f32.gmra.mxu0 %v514
    %v1390 = vpop.f32.mrf.mxu0
    %v1391 = vadd.f32 %v1371, %v1390
    %1392 = vdwg.mxu0
    %1393 = vmatpush.msra.mxu0 %v711
    %1394 = vmatpush.msra.mxu0 %v707
    %1395 = vmatpush.msra.mxu0 %v703
    %1396 = vmatpush.msra.mxu0 %v699
    %1397 = vmatpush.msra.mxu0 %v695
    %1398 = vmatpush.msra.mxu0 %v691
    %1399 = vmatpush.msra.mxu0 %v687
    %1400 = vmatpush.msra.mxu0 %v683
    %1401 = vmatpush.msra.mxu0 %v679
    %1402 = vmatpush.msra.mxu0 %v675
    %1403 = vmatpush.msra.mxu0 %v671
    %1404 = vmatpush.msra.mxu0 %v667
    %1405 = vmatpush.msra.mxu0 %v663
    %1406 = vmatpush.msra.mxu0 %v659
    %1407 = vmatpush.msra.mxu0 %v655
    %1408 = vmatpush.msra.mxu0 %v651
    %1409 = vmatmul.f32.gmra.mxu0 %v515
    %v1410 = vpop.f32.mrf.mxu0
    %v1411 = vadd.f32 %v1391, %v1410
    %1412 = vdwg.mxu0
    %1413 = vmatpush.msra.mxu0 %v775
    %1414 = vmatpush.msra.mxu0 %v771
    %1415 = vmatpush.msra.mxu0 %v767
    %1416 = vmatpush.msra.mxu0 %v763
    %1417 = vmatpush.msra.mxu0 %v759
    %1418 = vmatpush.msra.mxu0 %v755
    %1419 = vmatpush.msra.mxu0 %v751
    %1420 = vmatpush.msra.mxu0 %v747
    %1421 = vmatpush.msra.mxu0 %v743
    %1422 = vmatpush.msra.mxu0 %v739
    %1423 = vmatpush.msra.mxu0 %v735
    %1424 = vmatpush.msra.mxu0 %v731
    %1425 = vmatpush.msra.mxu0 %v727
    %1426 = vmatpush.msra.mxu0 %v723
    %1427 = vmatpush.msra.mxu0 %v719
    %1428 = vmatpush.msra.mxu0 %v715
    %1429 = vmatmul.f32.gmra.mxu0 %v516
    %v1430 = vpop.f32.mrf.mxu0
    %v1431 = vadd.f32 %v1411, %v1430
    %1432 = vdwg.mxu0
    %1433 = vmatpush.msra.mxu0 %v839
    %1434 = vmatpush.msra.mxu0 %v835
    %1435 = vmatpush.msra.mxu0 %v831
    %1436 = vmatpush.msra.mxu0 %v827
    %1437 = vmatpush.msra.mxu0 %v823
    %1438 = vmatpush.msra.mxu0 %v819
    %1439 = vmatpush.msra.mxu0 %v815
    %1440 = vmatpush.msra.mxu0 %v811
    %1441 = vmatpush.msra.mxu0 %v807
    %1442 = vmatpush.msra.mxu0 %v803
    %1443 = vmatpush.msra.mxu0 %v799
    %1444 = vmatpush.msra.mxu0 %v795
    %1445 = vmatpush.msra.mxu0 %v791
    %1446 = vmatpush.msra.mxu0 %v787
    %1447 = vmatpush.msra.mxu0 %v783
    %1448 = vmatpush.msra.mxu0 %v779
    %1449 = vmatmul.f32.gmra.mxu0 %v517
    %v1450 = vpop.f32.mrf.mxu0
    %v1451 = vadd.f32 %v1431, %v1450
    %1452 = vdwg.mxu0
    %1453 = vmatpush.msra.mxu0 %v903
    %1454 = vmatpush.msra.mxu0 %v899
    %1455 = vmatpush.msra.mxu0 %v895
    %1456 = vmatpush.msra.mxu0 %v891
    %1457 = vmatpush.msra.mxu0 %v887
    %1458 = vmatpush.msra.mxu0 %v883
    %1459 = vmatpush.msra.mxu0 %v879
    %1460 = vmatpush.msra.mxu0 %v875
    %1461 = vmatpush.msra.mxu0 %v871
    %1462 = vmatpush.msra.mxu0 %v867
    %1463 = vmatpush.msra.mxu0 %v863
    %1464 = vmatpush.msra.mxu0 %v859
    %1465 = vmatpush.msra.mxu0 %v855
    %1466 = vmatpush.msra.mxu0 %v851
    %1467 = vmatpush.msra.mxu0 %v847
    %1468 = vmatpush.msra.mxu0 %v843
    %1469 = vmatmul.f32.gmra.mxu0 %v518
    %v1470 = vpop.f32.mrf.mxu0
    %v1471 = vadd.f32 %v1451, %v1470
    %1472 = vdwg.mxu0
    %1473 = vmatpush.msra.mxu0 %v967
    %1474 = vmatpush.msra.mxu0 %v963
    %1475 = vmatpush.msra.mxu0 %v959
    %1476 = vmatpush.msra.mxu0 %v955
    %1477 = vmatpush.msra.mxu0 %v951
    %1478 = vmatpush.msra.mxu0 %v947
    %1479 = vmatpush.msra.mxu0 %v943
    %1480 = vmatpush.msra.mxu0 %v939
    %1481 = vmatpush.msra.mxu0 %v935
    %1482 = vmatpush.msra.mxu0 %v931
    %1483 = vmatpush.msra.mxu0 %v927
    %1484 = vmatpush.msra.mxu0 %v923
    %1485 = vmatpush.msra.mxu0 %v919
    %1486 = vmatpush.msra.mxu0 %v915
    %1487 = vmatpush.msra.mxu0 %v911
    %1488 = vmatpush.msra.mxu0 %v907
    %1489 = vmatmul.f32.gmra.mxu0 %v519
    %v1490 = vpop.f32.mrf.mxu0
    %v1491 = vadd.f32 %v1471, %v1490
    %1492 = vdwg.mxu0
    %1493 = vmatpush.msra.mxu0 %v1031
    %1494 = vmatpush.msra.mxu0 %v1027
    %1495 = vmatpush.msra.mxu0 %v1023
    %1496 = vmatpush.msra.mxu0 %v1019
    %1497 = vmatpush.msra.mxu0 %v1015
    %1498 = vmatpush.msra.mxu0 %v1011
    %1499 = vmatpush.msra.mxu0 %v1007
    %1500 = vmatpush.msra.mxu0 %v1003
    %1501 = vmatpush.msra.mxu0 %v999
    %1502 = vmatpush.msra.mxu0 %v995
    %1503 = vmatpush.msra.mxu0 %v991
    %1504 = vmatpush.msra.mxu0 %v987
    %1505 = vmatpush.msra.mxu0 %v983
    %1506 = vmatpush.msra.mxu0 %v979
    %1507 = vmatpush.msra.mxu0 %v975
    %1508 = vmatpush.msra.mxu0 %v971
    %1509 = vmatmul.f32.gmra.mxu0 %v520
    %v1510 = vpop.f32.mrf.mxu0
    %v1511 = vadd.f32 %v1491, %v1510
    %1512 = vdwg.mxu0
    %1513 = vmatpush.msra.mxu0 %v584
    %1514 = vmatpush.msra.mxu0 %v580
    %1515 = vmatpush.msra.mxu0 %v576
    %1516 = vmatpush.msra.mxu0 %v572
    %1517 = vmatpush.msra.mxu0 %v568
    %1518 = vmatpush.msra.mxu0 %v564
    %1519 = vmatpush.msra.mxu0 %v560
    %1520 = vmatpush.msra.mxu0 %v556
    %1521 = vmatpush.msra.mxu0 %v552
    %1522 = vmatpush.msra.mxu0 %v548
    %1523 = vmatpush.msra.mxu0 %v544
    %1524 = vmatpush.msra.mxu0 %v540
    %1525 = vmatpush.msra.mxu0 %v536
    %1526 = vmatpush.msra.mxu0 %v532
    %1527 = vmatpush.msra.mxu0 %v528
    %1528 = vmatpush.msra.mxu0 %v524
    %1529 = vmatmul.f32.gmra.mxu0 %v513
    %v1530 = vpop.f32.mrf.mxu0
    %v1531 = vadd.f32 0.0, %v1530
    %1532 = vdwg.mxu0
    %1533 = vmatpush.msra.mxu0 %v648
    %1534 = vmatpush.msra.mxu0 %v644
    %1535 = vmatpush.msra.mxu0 %v640
    %1536 = vmatpush.msra.mxu0 %v636
    %1537 = vmatpush.msra.mxu0 %v632
    %1538 = vmatpush.msra.mxu0 %v628
    %1539 = vmatpush.msra.mxu0 %v624
    %1540 = vmatpush.msra.mxu0 %v620
    %1541 = vmatpush.msra.mxu0 %v616
    %1542 = vmatpush.msra.mxu0 %v612
    %1543 = vmatpush.msra.mxu0 %v608
    %1544 = vmatpush.msra.mxu0 %v604
    %1545 = vmatpush.msra.mxu0 %v600
    %1546 = vmatpush.msra.mxu0 %v596
    %1547 = vmatpush.msra.mxu0 %v592
    %1548 = vmatpush.msra.mxu0 %v588
    %1549 = vmatmul.f32.gmra.mxu0 %v514
    %v1550 = vpop.f32.mrf.mxu0
    %v1551 = vadd.f32 %v1531, %v1550
    %1552 = vdwg.mxu0
    %1553 = vmatpush.msra.mxu0 %v712
    %1554 = vmatpush.msra.mxu0 %v708
    %1555 = vmatpush.msra.mxu0 %v704
    %1556 = vmatpush.msra.mxu0 %v700
    %1557 = vmatpush.msra.mxu0 %v696
    %1558 = vmatpush.msra.mxu0 %v692
    %1559 = vmatpush.msra.mxu0 %v688
    %1560 = vmatpush.msra.mxu0 %v684
    %1561 = vmatpush.msra.mxu0 %v680
    %1562 = vmatpush.msra.mxu0 %v676
    %1563 = vmatpush.msra.mxu0 %v672
    %1564 = vmatpush.msra.mxu0 %v668
    %1565 = vmatpush.msra.mxu0 %v664
    %1566 = vmatpush.msra.mxu0 %v660
    %1567 = vmatpush.msra.mxu0 %v656
    %1568 = vmatpush.msra.mxu0 %v652
    %1569 = vmatmul.f32.gmra.mxu0 %v515
    %v1570 = vpop.f32.mrf.mxu0
    %v1571 = vadd.f32 %v1551, %v1570
    %1572 = vdwg.mxu0
    %1573 = vmatpush.msra.mxu0 %v776
    %1574 = vmatpush.msra.mxu0 %v772
    %1575 = vmatpush.msra.mxu0 %v768
    %1576 = vmatpush.msra.mxu0 %v764
    %1577 = vmatpush.msra.mxu0 %v760
    %1578 = vmatpush.msra.mxu0 %v756
    %1579 = vmatpush.msra.mxu0 %v752
    %1580 = vmatpush.msra.mxu0 %v748
    %1581 = vmatpush.msra.mxu0 %v744
    %1582 = vmatpush.msra.mxu0 %v740
    %1583 = vmatpush.msra.mxu0 %v736
    %1584 = vmatpush.msra.mxu0 %v732
    %1585 = vmatpush.msra.mxu0 %v728
    %1586 = vmatpush.msra.mxu0 %v724
    %1587 = vmatpush.msra.mxu0 %v720
    %1588 = vmatpush.msra.mxu0 %v716
    %1589 = vmatmul.f32.gmra.mxu0 %v516
    %v1590 = vpop.f32.mrf.mxu0
    %v1591 = vadd.f32 %v1571, %v1590
    %1592 = vdwg.mxu0
    %1593 = vmatpush.msra.mxu0 %v840
    %1594 = vmatpush.msra.mxu0 %v836
    %1595 = vmatpush.msra.mxu0 %v832
    %1596 = vmatpush.msra.mxu0 %v828
    %1597 = vmatpush.msra.mxu0 %v824
    %1598 = vmatpush.msra.mxu0 %v820
    %1599 = vmatpush.msra.mxu0 %v816
    %1600 = vmatpush.msra.mxu0 %v812
    %1601 = vmatpush.msra.mxu0 %v808
    %1602 = vmatpush.msra.mxu0 %v804
    %1603 = vmatpush.msra.mxu0 %v800
    %1604 = vmatpush.msra.mxu0 %v796
    %1605 = vmatpush.msra.mxu0 %v792
    %1606 = vmatpush.msra.mxu0 %v788
    %1607 = vmatpush.msra.mxu0 %v784
    %1608 = vmatpush.msra.mxu0 %v780
    %1609 = vmatmul.f32.gmra.mxu0 %v517
    %v1610 = vpop.f32.mrf.mxu0
    %v1611 = vadd.f32 %v1591, %v1610
    %1612 = vdwg.mxu0
    %1613 = vmatpush.msra.mxu0 %v904
    %1614 = vmatpush.msra.mxu0 %v900
    %1615 = vmatpush.msra.mxu0 %v896
    %1616 = vmatpush.msra.mxu0 %v892
    %1617 = vmatpush.msra.mxu0 %v888
    %1618 = vmatpush.msra.mxu0 %v884
    %1619 = vmatpush.msra.mxu0 %v880
    %1620 = vmatpush.msra.mxu0 %v876
    %1621 = vmatpush.msra.mxu0 %v872
    %1622 = vmatpush.msra.mxu0 %v868
    %1623 = vmatpush.msra.mxu0 %v864
    %1624 = vmatpush.msra.mxu0 %v860
    %1625 = vmatpush.msra.mxu0 %v856
    %1626 = vmatpush.msra.mxu0 %v852
    %1627 = vmatpush.msra.mxu0 %v848
    %1628 = vmatpush.msra.mxu0 %v844
    %1629 = vmatmul.f32.gmra.mxu0 %v518
    %v1630 = vpop.f32.mrf.mxu0
    %v1631 = vadd.f32 %v1611, %v1630
    %1632 = vdwg.mxu0
    %1633 = vmatpush.msra.mxu0 %v968
    %1634 = vmatpush.msra.mxu0 %v964
    %1635 = vmatpush.msra.mxu0 %v960
    %1636 = vmatpush.msra.mxu0 %v956
    %1637 = vmatpush.msra.mxu0 %v952
    %1638 = vmatpush.msra.mxu0 %v948
    %1639 = vmatpush.msra.mxu0 %v944
    %1640 = vmatpush.msra.mxu0 %v940
    %1641 = vmatpush.msra.mxu0 %v936
    %1642 = vmatpush.msra.mxu0 %v932
    %1643 = vmatpush.msra.mxu0 %v928
    %1644 = vmatpush.msra.mxu0 %v924
    %1645 = vmatpush.msra.mxu0 %v920
    %1646 = vmatpush.msra.mxu0 %v916
    %1647 = vmatpush.msra.mxu0 %v912
    %1648 = vmatpush.msra.mxu0 %v908
    %1649 = vmatmul.f32.gmra.mxu0 %v519
    %v1650 = vpop.f32.mrf.mxu0
    %v1651 = vadd.f32 %v1631, %v1650
    %1652 = vdwg.mxu0
    %1653 = vmatpush.msra.mxu0 %v1032
    %1654 = vmatpush.msra.mxu0 %v1028
    %1655 = vmatpush.msra.mxu0 %v1024
    %1656 = vmatpush.msra.mxu0 %v1020
    %1657 = vmatpush.msra.mxu0 %v1016
    %1658 = vmatpush.msra.mxu0 %v1012
    %1659 = vmatpush.msra.mxu0 %v1008
    %1660 = vmatpush.msra.mxu0 %v1004
    %1661 = vmatpush.msra.mxu0 %v1000
    %1662 = vmatpush.msra.mxu0 %v996
    %1663 = vmatpush.msra.mxu0 %v992
    %1664 = vmatpush.msra.mxu0 %v988
    %1665 = vmatpush.msra.mxu0 %v984
    %1666 = vmatpush.msra.mxu0 %v980
    %1667 = vmatpush.msra.mxu0 %v976
    %1668 = vmatpush.msra.mxu0 %v972
    %1669 = vmatmul.f32.gmra.mxu0 %v520
    %v1670 = vpop.f32.mrf.mxu0
    %v1671 = vadd.f32 %v1651, %v1670
    %1672 = vdwg.mxu0
    %v1673 = vld [vmem:[#allocation10] sm:$0xff]
    %v1674 = vld [vmem:[#allocation10 + $0x8] sm:$0xff]
    %v1675 = vld [vmem:[#allocation10 + $0x10] sm:$0xff]
    %v1676 = vld [vmem:[#allocation10 + $0x18] sm:$0xff]
    %v1677 = vld [vmem:[#allocation10 + $0x20] sm:$0xff]
    %v1678 = vld [vmem:[#allocation10 + $0x28] sm:$0xff]
    %v1679 = vld [vmem:[#allocation10 + $0x30] sm:$0xff]
    %v1680 = vld [vmem:[#allocation10 + $0x38] sm:$0xff]
    %v1681 = vld [vmem:[#allocation10 + $0x40] sm:$0xff]
    %v1682 = vld [vmem:[#allocation10 + $0x48] sm:$0xff]
    %v1683 = vld [vmem:[#allocation10 + $0x50] sm:$0xff]
    %v1684 = vld [vmem:[#allocation10 + $0x58] sm:$0xff]
    %v1685 = vld [vmem:[#allocation10 + $0x60] sm:$0xff]
    %v1686 = vld [vmem:[#allocation10 + $0x68] sm:$0xff]
    %v1687 = vld [vmem:[#allocation10 + $0x70] sm:$0xff]
    %v1688 = vld [vmem:[#allocation10 + $0x78] sm:$0xff]
    %v1689 = vld [vmem:[#allocation10 + $0x80] sm:$0xff]
    %v1690 = vld [vmem:[#allocation10 + $0x88] sm:$0xff]
    %v1691 = vld [vmem:[#allocation10 + $0x90] sm:$0xff]
    %v1692 = vld [vmem:[#allocation10 + $0x98] sm:$0xff]
    %v1693 = vld [vmem:[#allocation10 + $0xa0] sm:$0xff]
    %v1694 = vld [vmem:[#allocation10 + $0xa8] sm:$0xff]
    %v1695 = vld [vmem:[#allocation10 + $0xb0] sm:$0xff]
    %v1696 = vld [vmem:[#allocation10 + $0xb8] sm:$0xff]
    %v1697 = vld [vmem:[#allocation10 + $0xc0] sm:$0xff]
    %v1698 = vld [vmem:[#allocation10 + $0xc8] sm:$0xff]
    %v1699 = vld [vmem:[#allocation10 + $0xd0] sm:$0xff]
    %v1700 = vld [vmem:[#allocation10 + $0xd8] sm:$0xff]
    %v1701 = vld [vmem:[#allocation10 + $0xe0] sm:$0xff]
    %v1702 = vld [vmem:[#allocation10 + $0xe8] sm:$0xff]
    %v1703 = vld [vmem:[#allocation10 + $0xf0] sm:$0xff]
    %v1704 = vld [vmem:[#allocation10 + $0xf8] sm:$0xff]
    %v1705 = vld [vmem:[#allocation10 + $0x100] sm:$0xff]
    %v1706 = vld [vmem:[#allocation10 + $0x108] sm:$0xff]
    %v1707 = vld [vmem:[#allocation10 + $0x110] sm:$0xff]
    %v1708 = vld [vmem:[#allocation10 + $0x118] sm:$0xff]
    %v1709 = vld [vmem:[#allocation10 + $0x120] sm:$0xff]
    %v1710 = vld [vmem:[#allocation10 + $0x128] sm:$0xff]
    %v1711 = vld [vmem:[#allocation10 + $0x130] sm:$0xff]
    %v1712 = vld [vmem:[#allocation10 + $0x138] sm:$0xff]
    %v1713 = vld [vmem:[#allocation10 + $0x140] sm:$0xff]
    %v1714 = vld [vmem:[#allocation10 + $0x148] sm:$0xff]
    %v1715 = vld [vmem:[#allocation10 + $0x150] sm:$0xff]
    %v1716 = vld [vmem:[#allocation10 + $0x158] sm:$0xff]
    %v1717 = vld [vmem:[#allocation10 + $0x160] sm:$0xff]
    %v1718 = vld [vmem:[#allocation10 + $0x168] sm:$0xff]
    %v1719 = vld [vmem:[#allocation10 + $0x170] sm:$0xff]
    %v1720 = vld [vmem:[#allocation10 + $0x178] sm:$0xff]
    %v1721 = vld [vmem:[#allocation10 + $0x180] sm:$0xff]
    %v1722 = vld [vmem:[#allocation10 + $0x188] sm:$0xff]
    %v1723 = vld [vmem:[#allocation10 + $0x190] sm:$0xff]
    %v1724 = vld [vmem:[#allocation10 + $0x198] sm:$0xff]
    %v1725 = vld [vmem:[#allocation10 + $0x1a0] sm:$0xff]
    %v1726 = vld [vmem:[#allocation10 + $0x1a8] sm:$0xff]
    %v1727 = vld [vmem:[#allocation10 + $0x1b0] sm:$0xff]
    %v1728 = vld [vmem:[#allocation10 + $0x1b8] sm:$0xff]
    %v1729 = vld [vmem:[#allocation10 + $0x1c0] sm:$0xff]
    %v1730 = vld [vmem:[#allocation10 + $0x1c8] sm:$0xff]
    %v1731 = vld [vmem:[#allocation10 + $0x1d0] sm:$0xff]
    %v1732 = vld [vmem:[#allocation10 + $0x1d8] sm:$0xff]
    %v1733 = vld [vmem:[#allocation10 + $0x1e0] sm:$0xff]
    %v1734 = vld [vmem:[#allocation10 + $0x1e8] sm:$0xff]
    %v1735 = vld [vmem:[#allocation10 + $0x1f0] sm:$0xff]
    %v1736 = vld [vmem:[#allocation10 + $0x1f8] sm:$0xff]
    %v1737 = vld [vmem:[#allocation10 + $0x200] sm:$0xff]
    %v1738 = vld [vmem:[#allocation10 + $0x208] sm:$0xff]
    %v1739 = vld [vmem:[#allocation10 + $0x210] sm:$0xff]
    %v1740 = vld [vmem:[#allocation10 + $0x218] sm:$0xff]
    %v1741 = vld [vmem:[#allocation10 + $0x220] sm:$0xff]
    %v1742 = vld [vmem:[#allocation10 + $0x228] sm:$0xff]
    %v1743 = vld [vmem:[#allocation10 + $0x230] sm:$0xff]
    %v1744 = vld [vmem:[#allocation10 + $0x238] sm:$0xff]
    %v1745 = vld [vmem:[#allocation10 + $0x240] sm:$0xff]
    %v1746 = vld [vmem:[#allocation10 + $0x248] sm:$0xff]
    %v1747 = vld [vmem:[#allocation10 + $0x250] sm:$0xff]
    %v1748 = vld [vmem:[#allocation10 + $0x258] sm:$0xff]
    %v1749 = vld [vmem:[#allocation10 + $0x260] sm:$0xff]
    %v1750 = vld [vmem:[#allocation10 + $0x268] sm:$0xff]
    %v1751 = vld [vmem:[#allocation10 + $0x270] sm:$0xff]
    %v1752 = vld [vmem:[#allocation10 + $0x278] sm:$0xff]
    %v1753 = vld [vmem:[#allocation10 + $0x280] sm:$0xff]
    %v1754 = vld [vmem:[#allocation10 + $0x288] sm:$0xff]
    %v1755 = vld [vmem:[#allocation10 + $0x290] sm:$0xff]
    %v1756 = vld [vmem:[#allocation10 + $0x298] sm:$0xff]
    %v1757 = vld [vmem:[#allocation10 + $0x2a0] sm:$0xff]
    %v1758 = vld [vmem:[#allocation10 + $0x2a8] sm:$0xff]
    %v1759 = vld [vmem:[#allocation10 + $0x2b0] sm:$0xff]
    %v1760 = vld [vmem:[#allocation10 + $0x2b8] sm:$0xff]
    %v1761 = vld [vmem:[#allocation10 + $0x2c0] sm:$0xff]
    %v1762 = vld [vmem:[#allocation10 + $0x2c8] sm:$0xff]
    %v1763 = vld [vmem:[#allocation10 + $0x2d0] sm:$0xff]
    %v1764 = vld [vmem:[#allocation10 + $0x2d8] sm:$0xff]
    %v1765 = vld [vmem:[#allocation10 + $0x2e0] sm:$0xff]
    %v1766 = vld [vmem:[#allocation10 + $0x2e8] sm:$0xff]
    %v1767 = vld [vmem:[#allocation10 + $0x2f0] sm:$0xff]
    %v1768 = vld [vmem:[#allocation10 + $0x2f8] sm:$0xff]
    %v1769 = vld [vmem:[#allocation10 + $0x300] sm:$0xff]
    %v1770 = vld [vmem:[#allocation10 + $0x308] sm:$0xff]
    %v1771 = vld [vmem:[#allocation10 + $0x310] sm:$0xff]
    %v1772 = vld [vmem:[#allocation10 + $0x318] sm:$0xff]
    %v1773 = vld [vmem:[#allocation10 + $0x320] sm:$0xff]
    %v1774 = vld [vmem:[#allocation10 + $0x328] sm:$0xff]
    %v1775 = vld [vmem:[#allocation10 + $0x330] sm:$0xff]
    %v1776 = vld [vmem:[#allocation10 + $0x338] sm:$0xff]
    %v1777 = vld [vmem:[#allocation10 + $0x340] sm:$0xff]
    %v1778 = vld [vmem:[#allocation10 + $0x348] sm:$0xff]
    %v1779 = vld [vmem:[#allocation10 + $0x350] sm:$0xff]
    %v1780 = vld [vmem:[#allocation10 + $0x358] sm:$0xff]
    %v1781 = vld [vmem:[#allocation10 + $0x360] sm:$0xff]
    %v1782 = vld [vmem:[#allocation10 + $0x368] sm:$0xff]
    %v1783 = vld [vmem:[#allocation10 + $0x370] sm:$0xff]
    %v1784 = vld [vmem:[#allocation10 + $0x378] sm:$0xff]
    %v1785 = vld [vmem:[#allocation10 + $0x380] sm:$0xff]
    %v1786 = vld [vmem:[#allocation10 + $0x388] sm:$0xff]
    %v1787 = vld [vmem:[#allocation10 + $0x390] sm:$0xff]
    %v1788 = vld [vmem:[#allocation10 + $0x398] sm:$0xff]
    %v1789 = vld [vmem:[#allocation10 + $0x3a0] sm:$0xff]
    %v1790 = vld [vmem:[#allocation10 + $0x3a8] sm:$0xff]
    %v1791 = vld [vmem:[#allocation10 + $0x3b0] sm:$0xff]
    %v1792 = vld [vmem:[#allocation10 + $0x3b8] sm:$0xff]
    %v1793 = vld [vmem:[#allocation10 + $0x3c0] sm:$0xff]
    %v1794 = vld [vmem:[#allocation10 + $0x3c8] sm:$0xff]
    %v1795 = vld [vmem:[#allocation10 + $0x3d0] sm:$0xff]
    %v1796 = vld [vmem:[#allocation10 + $0x3d8] sm:$0xff]
    %v1797 = vld [vmem:[#allocation10 + $0x3e0] sm:$0xff]
    %v1798 = vld [vmem:[#allocation10 + $0x3e8] sm:$0xff]
    %v1799 = vld [vmem:[#allocation10 + $0x3f0] sm:$0xff]
    %v1800 = vld [vmem:[#allocation10 + $0x3f8] sm:$0xff]
    %v1801 = vld [vmem:[#allocation10 + $0x400] sm:$0xff]
    %v1802 = vld [vmem:[#allocation10 + $0x408] sm:$0xff]
    %v1803 = vld [vmem:[#allocation10 + $0x410] sm:$0xff]
    %v1804 = vld [vmem:[#allocation10 + $0x418] sm:$0xff]
    %v1805 = vld [vmem:[#allocation10 + $0x420] sm:$0xff]
    %v1806 = vld [vmem:[#allocation10 + $0x428] sm:$0xff]
    %v1807 = vld [vmem:[#allocation10 + $0x430] sm:$0xff]
    %v1808 = vld [vmem:[#allocation10 + $0x438] sm:$0xff]
    %v1809 = vld [vmem:[#allocation10 + $0x440] sm:$0xff]
    %v1810 = vld [vmem:[#allocation10 + $0x448] sm:$0xff]
    %v1811 = vld [vmem:[#allocation10 + $0x450] sm:$0xff]
    %v1812 = vld [vmem:[#allocation10 + $0x458] sm:$0xff]
    %v1813 = vld [vmem:[#allocation10 + $0x460] sm:$0xff]
    %v1814 = vld [vmem:[#allocation10 + $0x468] sm:$0xff]
    %v1815 = vld [vmem:[#allocation10 + $0x470] sm:$0xff]
    %v1816 = vld [vmem:[#allocation10 + $0x478] sm:$0xff]
    %v1817 = vld [vmem:[#allocation10 + $0x480] sm:$0xff]
    %v1818 = vld [vmem:[#allocation10 + $0x488] sm:$0xff]
    %v1819 = vld [vmem:[#allocation10 + $0x490] sm:$0xff]
    %v1820 = vld [vmem:[#allocation10 + $0x498] sm:$0xff]
    %v1821 = vld [vmem:[#allocation10 + $0x4a0] sm:$0xff]
    %v1822 = vld [vmem:[#allocation10 + $0x4a8] sm:$0xff]
    %v1823 = vld [vmem:[#allocation10 + $0x4b0] sm:$0xff]
    %v1824 = vld [vmem:[#allocation10 + $0x4b8] sm:$0xff]
    %v1825 = vld [vmem:[#allocation10 + $0x4c0] sm:$0xff]
    %v1826 = vld [vmem:[#allocation10 + $0x4c8] sm:$0xff]
    %v1827 = vld [vmem:[#allocation10 + $0x4d0] sm:$0xff]
    %v1828 = vld [vmem:[#allocation10 + $0x4d8] sm:$0xff]
    %v1829 = vld [vmem:[#allocation10 + $0x4e0] sm:$0xff]
    %v1830 = vld [vmem:[#allocation10 + $0x4e8] sm:$0xff]
    %v1831 = vld [vmem:[#allocation10 + $0x4f0] sm:$0xff]
    %v1832 = vld [vmem:[#allocation10 + $0x4f8] sm:$0xff]
    %v1833 = vld [vmem:[#allocation10 + $0x500] sm:$0xff]
    %v1834 = vld [vmem:[#allocation10 + $0x508] sm:$0xff]
    %v1835 = vld [vmem:[#allocation10 + $0x510] sm:$0xff]
    %v1836 = vld [vmem:[#allocation10 + $0x518] sm:$0xff]
    %v1837 = vld [vmem:[#allocation10 + $0x520] sm:$0xff]
    %v1838 = vld [vmem:[#allocation10 + $0x528] sm:$0xff]
    %v1839 = vld [vmem:[#allocation10 + $0x530] sm:$0xff]
    %v1840 = vld [vmem:[#allocation10 + $0x538] sm:$0xff]
    %v1841 = vld [vmem:[#allocation10 + $0x540] sm:$0xff]
    %v1842 = vld [vmem:[#allocation10 + $0x548] sm:$0xff]
    %v1843 = vld [vmem:[#allocation10 + $0x550] sm:$0xff]
    %v1844 = vld [vmem:[#allocation10 + $0x558] sm:$0xff]
    %v1845 = vld [vmem:[#allocation10 + $0x560] sm:$0xff]
    %v1846 = vld [vmem:[#allocation10 + $0x568] sm:$0xff]
    %v1847 = vld [vmem:[#allocation10 + $0x570] sm:$0xff]
    %v1848 = vld [vmem:[#allocation10 + $0x578] sm:$0xff]
    %v1849 = vld [vmem:[#allocation10 + $0x580] sm:$0xff]
    %v1850 = vld [vmem:[#allocation10 + $0x588] sm:$0xff]
    %v1851 = vld [vmem:[#allocation10 + $0x590] sm:$0xff]
    %v1852 = vld [vmem:[#allocation10 + $0x598] sm:$0xff]
    %v1853 = vld [vmem:[#allocation10 + $0x5a0] sm:$0xff]
    %v1854 = vld [vmem:[#allocation10 + $0x5a8] sm:$0xff]
    %v1855 = vld [vmem:[#allocation10 + $0x5b0] sm:$0xff]
    %v1856 = vld [vmem:[#allocation10 + $0x5b8] sm:$0xff]
    %v1857 = vld [vmem:[#allocation10 + $0x5c0] sm:$0xff]
    %v1858 = vld [vmem:[#allocation10 + $0x5c8] sm:$0xff]
    %v1859 = vld [vmem:[#allocation10 + $0x5d0] sm:$0xff]
    %v1860 = vld [vmem:[#allocation10 + $0x5d8] sm:$0xff]
    %v1861 = vld [vmem:[#allocation10 + $0x5e0] sm:$0xff]
    %v1862 = vld [vmem:[#allocation10 + $0x5e8] sm:$0xff]
    %v1863 = vld [vmem:[#allocation10 + $0x5f0] sm:$0xff]
    %v1864 = vld [vmem:[#allocation10 + $0x5f8] sm:$0xff]
    %v1865 = vld [vmem:[#allocation10 + $0x600] sm:$0xff]
    %v1866 = vld [vmem:[#allocation10 + $0x608] sm:$0xff]
    %v1867 = vld [vmem:[#allocation10 + $0x610] sm:$0xff]
    %v1868 = vld [vmem:[#allocation10 + $0x618] sm:$0xff]
    %v1869 = vld [vmem:[#allocation10 + $0x620] sm:$0xff]
    %v1870 = vld [vmem:[#allocation10 + $0x628] sm:$0xff]
    %v1871 = vld [vmem:[#allocation10 + $0x630] sm:$0xff]
    %v1872 = vld [vmem:[#allocation10 + $0x638] sm:$0xff]
    %v1873 = vld [vmem:[#allocation10 + $0x640] sm:$0xff]
    %v1874 = vld [vmem:[#allocation10 + $0x648] sm:$0xff]
    %v1875 = vld [vmem:[#allocation10 + $0x650] sm:$0xff]
    %v1876 = vld [vmem:[#allocation10 + $0x658] sm:$0xff]
    %v1877 = vld [vmem:[#allocation10 + $0x660] sm:$0xff]
    %v1878 = vld [vmem:[#allocation10 + $0x668] sm:$0xff]
    %v1879 = vld [vmem:[#allocation10 + $0x670] sm:$0xff]
    %v1880 = vld [vmem:[#allocation10 + $0x678] sm:$0xff]
    %v1881 = vld [vmem:[#allocation10 + $0x680] sm:$0xff]
    %v1882 = vld [vmem:[#allocation10 + $0x688] sm:$0xff]
    %v1883 = vld [vmem:[#allocation10 + $0x690] sm:$0xff]
    %v1884 = vld [vmem:[#allocation10 + $0x698] sm:$0xff]
    %v1885 = vld [vmem:[#allocation10 + $0x6a0] sm:$0xff]
    %v1886 = vld [vmem:[#allocation10 + $0x6a8] sm:$0xff]
    %v1887 = vld [vmem:[#allocation10 + $0x6b0] sm:$0xff]
    %v1888 = vld [vmem:[#allocation10 + $0x6b8] sm:$0xff]
    %v1889 = vld [vmem:[#allocation10 + $0x6c0] sm:$0xff]
    %v1890 = vld [vmem:[#allocation10 + $0x6c8] sm:$0xff]
    %v1891 = vld [vmem:[#allocation10 + $0x6d0] sm:$0xff]
    %v1892 = vld [vmem:[#allocation10 + $0x6d8] sm:$0xff]
    %v1893 = vld [vmem:[#allocation10 + $0x6e0] sm:$0xff]
    %v1894 = vld [vmem:[#allocation10 + $0x6e8] sm:$0xff]
    %v1895 = vld [vmem:[#allocation10 + $0x6f0] sm:$0xff]
    %v1896 = vld [vmem:[#allocation10 + $0x6f8] sm:$0xff]
    %v1897 = vld [vmem:[#allocation10 + $0x700] sm:$0xff]
    %v1898 = vld [vmem:[#allocation10 + $0x708] sm:$0xff]
    %v1899 = vld [vmem:[#allocation10 + $0x710] sm:$0xff]
    %v1900 = vld [vmem:[#allocation10 + $0x718] sm:$0xff]
    %v1901 = vld [vmem:[#allocation10 + $0x720] sm:$0xff]
    %v1902 = vld [vmem:[#allocation10 + $0x728] sm:$0xff]
    %v1903 = vld [vmem:[#allocation10 + $0x730] sm:$0xff]
    %v1904 = vld [vmem:[#allocation10 + $0x738] sm:$0xff]
    %v1905 = vld [vmem:[#allocation10 + $0x740] sm:$0xff]
    %v1906 = vld [vmem:[#allocation10 + $0x748] sm:$0xff]
    %v1907 = vld [vmem:[#allocation10 + $0x750] sm:$0xff]
    %v1908 = vld [vmem:[#allocation10 + $0x758] sm:$0xff]
    %v1909 = vld [vmem:[#allocation10 + $0x760] sm:$0xff]
    %v1910 = vld [vmem:[#allocation10 + $0x768] sm:$0xff]
    %v1911 = vld [vmem:[#allocation10 + $0x770] sm:$0xff]
    %v1912 = vld [vmem:[#allocation10 + $0x778] sm:$0xff]
    %v1913 = vld [vmem:[#allocation10 + $0x780] sm:$0xff]
    %v1914 = vld [vmem:[#allocation10 + $0x788] sm:$0xff]
    %v1915 = vld [vmem:[#allocation10 + $0x790] sm:$0xff]
    %v1916 = vld [vmem:[#allocation10 + $0x798] sm:$0xff]
    %v1917 = vld [vmem:[#allocation10 + $0x7a0] sm:$0xff]
    %v1918 = vld [vmem:[#allocation10 + $0x7a8] sm:$0xff]
    %v1919 = vld [vmem:[#allocation10 + $0x7b0] sm:$0xff]
    %v1920 = vld [vmem:[#allocation10 + $0x7b8] sm:$0xff]
    %v1921 = vld [vmem:[#allocation10 + $0x7c0] sm:$0xff]
    %v1922 = vld [vmem:[#allocation10 + $0x7c8] sm:$0xff]
    %v1923 = vld [vmem:[#allocation10 + $0x7d0] sm:$0xff]
    %v1924 = vld [vmem:[#allocation10 + $0x7d8] sm:$0xff]
    %v1925 = vld [vmem:[#allocation10 + $0x7e0] sm:$0xff]
    %v1926 = vld [vmem:[#allocation10 + $0x7e8] sm:$0xff]
    %v1927 = vld [vmem:[#allocation10 + $0x7f0] sm:$0xff]
    %v1928 = vld [vmem:[#allocation10 + $0x7f8] sm:$0xff]
    %v1929 = vld [vmem:[#allocation10 + $0x800] sm:$0xff]
    %v1930 = vld [vmem:[#allocation10 + $0x808] sm:$0xff]
    %v1931 = vld [vmem:[#allocation10 + $0x810] sm:$0xff]
    %v1932 = vld [vmem:[#allocation10 + $0x818] sm:$0xff]
    %v1933 = vld [vmem:[#allocation10 + $0x820] sm:$0xff]
    %v1934 = vld [vmem:[#allocation10 + $0x828] sm:$0xff]
    %v1935 = vld [vmem:[#allocation10 + $0x830] sm:$0xff]
    %v1936 = vld [vmem:[#allocation10 + $0x838] sm:$0xff]
    %v1937 = vld [vmem:[#allocation10 + $0x840] sm:$0xff]
    %v1938 = vld [vmem:[#allocation10 + $0x848] sm:$0xff]
    %v1939 = vld [vmem:[#allocation10 + $0x850] sm:$0xff]
    %v1940 = vld [vmem:[#allocation10 + $0x858] sm:$0xff]
    %v1941 = vld [vmem:[#allocation10 + $0x860] sm:$0xff]
    %v1942 = vld [vmem:[#allocation10 + $0x868] sm:$0xff]
    %v1943 = vld [vmem:[#allocation10 + $0x870] sm:$0xff]
    %v1944 = vld [vmem:[#allocation10 + $0x878] sm:$0xff]
    %v1945 = vld [vmem:[#allocation10 + $0x880] sm:$0xff]
    %v1946 = vld [vmem:[#allocation10 + $0x888] sm:$0xff]
    %v1947 = vld [vmem:[#allocation10 + $0x890] sm:$0xff]
    %v1948 = vld [vmem:[#allocation10 + $0x898] sm:$0xff]
    %v1949 = vld [vmem:[#allocation10 + $0x8a0] sm:$0xff]
    %v1950 = vld [vmem:[#allocation10 + $0x8a8] sm:$0xff]
    %v1951 = vld [vmem:[#allocation10 + $0x8b0] sm:$0xff]
    %v1952 = vld [vmem:[#allocation10 + $0x8b8] sm:$0xff]
    %v1953 = vld [vmem:[#allocation10 + $0x8c0] sm:$0xff]
    %v1954 = vld [vmem:[#allocation10 + $0x8c8] sm:$0xff]
    %v1955 = vld [vmem:[#allocation10 + $0x8d0] sm:$0xff]
    %v1956 = vld [vmem:[#allocation10 + $0x8d8] sm:$0xff]
    %v1957 = vld [vmem:[#allocation10 + $0x8e0] sm:$0xff]
    %v1958 = vld [vmem:[#allocation10 + $0x8e8] sm:$0xff]
    %v1959 = vld [vmem:[#allocation10 + $0x8f0] sm:$0xff]
    %v1960 = vld [vmem:[#allocation10 + $0x8f8] sm:$0xff]
    %v1961 = vld [vmem:[#allocation10 + $0x900] sm:$0xff]
    %v1962 = vld [vmem:[#allocation10 + $0x908] sm:$0xff]
    %v1963 = vld [vmem:[#allocation10 + $0x910] sm:$0xff]
    %v1964 = vld [vmem:[#allocation10 + $0x918] sm:$0xff]
    %v1965 = vld [vmem:[#allocation10 + $0x920] sm:$0xff]
    %v1966 = vld [vmem:[#allocation10 + $0x928] sm:$0xff]
    %v1967 = vld [vmem:[#allocation10 + $0x930] sm:$0xff]
    %v1968 = vld [vmem:[#allocation10 + $0x938] sm:$0xff]
    %v1969 = vld [vmem:[#allocation10 + $0x940] sm:$0xff]
    %v1970 = vld [vmem:[#allocation10 + $0x948] sm:$0xff]
    %v1971 = vld [vmem:[#allocation10 + $0x950] sm:$0xff]
    %v1972 = vld [vmem:[#allocation10 + $0x958] sm:$0xff]
    %v1973 = vld [vmem:[#allocation10 + $0x960] sm:$0xff]
    %v1974 = vld [vmem:[#allocation10 + $0x968] sm:$0xff]
    %v1975 = vld [vmem:[#allocation10 + $0x970] sm:$0xff]
    %v1976 = vld [vmem:[#allocation10 + $0x978] sm:$0xff]
    %v1977 = vld [vmem:[#allocation10 + $0x980] sm:$0xff]
    %v1978 = vld [vmem:[#allocation10 + $0x988] sm:$0xff]
    %v1979 = vld [vmem:[#allocation10 + $0x990] sm:$0xff]
    %v1980 = vld [vmem:[#allocation10 + $0x998] sm:$0xff]
    %v1981 = vld [vmem:[#allocation10 + $0x9a0] sm:$0xff]
    %v1982 = vld [vmem:[#allocation10 + $0x9a8] sm:$0xff]
    %v1983 = vld [vmem:[#allocation10 + $0x9b0] sm:$0xff]
    %v1984 = vld [vmem:[#allocation10 + $0x9b8] sm:$0xff]
    %v1985 = vld [vmem:[#allocation10 + $0x9c0] sm:$0xff]
    %v1986 = vld [vmem:[#allocation10 + $0x9c8] sm:$0xff]
    %v1987 = vld [vmem:[#allocation10 + $0x9d0] sm:$0xff]
    %v1988 = vld [vmem:[#allocation10 + $0x9d8] sm:$0xff]
    %v1989 = vld [vmem:[#allocation10 + $0x9e0] sm:$0xff]
    %v1990 = vld [vmem:[#allocation10 + $0x9e8] sm:$0xff]
    %v1991 = vld [vmem:[#allocation10 + $0x9f0] sm:$0xff]
    %v1992 = vld [vmem:[#allocation10 + $0x9f8] sm:$0xff]
    %v1993 = vld [vmem:[#allocation10 + $0xa00] sm:$0xff]
    %v1994 = vld [vmem:[#allocation10 + $0xa08] sm:$0xff]
    %v1995 = vld [vmem:[#allocation10 + $0xa10] sm:$0xff]
    %v1996 = vld [vmem:[#allocation10 + $0xa18] sm:$0xff]
    %v1997 = vld [vmem:[#allocation10 + $0xa20] sm:$0xff]
    %v1998 = vld [vmem:[#allocation10 + $0xa28] sm:$0xff]
    %v1999 = vld [vmem:[#allocation10 + $0xa30] sm:$0xff]
    %v2000 = vld [vmem:[#allocation10 + $0xa38] sm:$0xff]
    %v2001 = vld [vmem:[#allocation10 + $0xa40] sm:$0xff]
    %v2002 = vld [vmem:[#allocation10 + $0xa48] sm:$0xff]
    %v2003 = vld [vmem:[#allocation10 + $0xa50] sm:$0xff]
    %v2004 = vld [vmem:[#allocation10 + $0xa58] sm:$0xff]
    %v2005 = vld [vmem:[#allocation10 + $0xa60] sm:$0xff]
    %v2006 = vld [vmem:[#allocation10 + $0xa68] sm:$0xff]
    %v2007 = vld [vmem:[#allocation10 + $0xa70] sm:$0xff]
    %v2008 = vld [vmem:[#allocation10 + $0xa78] sm:$0xff]
    %v2009 = vld [vmem:[#allocation10 + $0xa80] sm:$0xff]
    %v2010 = vld [vmem:[#allocation10 + $0xa88] sm:$0xff]
    %v2011 = vld [vmem:[#allocation10 + $0xa90] sm:$0xff]
    %v2012 = vld [vmem:[#allocation10 + $0xa98] sm:$0xff]
    %v2013 = vld [vmem:[#allocation10 + $0xaa0] sm:$0xff]
    %v2014 = vld [vmem:[#allocation10 + $0xaa8] sm:$0xff]
    %v2015 = vld [vmem:[#allocation10 + $0xab0] sm:$0xff]
    %v2016 = vld [vmem:[#allocation10 + $0xab8] sm:$0xff]
    %v2017 = vld [vmem:[#allocation10 + $0xac0] sm:$0xff]
    %v2018 = vld [vmem:[#allocation10 + $0xac8] sm:$0xff]
    %v2019 = vld [vmem:[#allocation10 + $0xad0] sm:$0xff]
    %v2020 = vld [vmem:[#allocation10 + $0xad8] sm:$0xff]
    %v2021 = vld [vmem:[#allocation10 + $0xae0] sm:$0xff]
    %v2022 = vld [vmem:[#allocation10 + $0xae8] sm:$0xff]
    %v2023 = vld [vmem:[#allocation10 + $0xaf0] sm:$0xff]
    %v2024 = vld [vmem:[#allocation10 + $0xaf8] sm:$0xff]
    %v2025 = vld [vmem:[#allocation10 + $0xb00] sm:$0xff]
    %v2026 = vld [vmem:[#allocation10 + $0xb08] sm:$0xff]
    %v2027 = vld [vmem:[#allocation10 + $0xb10] sm:$0xff]
    %v2028 = vld [vmem:[#allocation10 + $0xb18] sm:$0xff]
    %v2029 = vld [vmem:[#allocation10 + $0xb20] sm:$0xff]
    %v2030 = vld [vmem:[#allocation10 + $0xb28] sm:$0xff]
    %v2031 = vld [vmem:[#allocation10 + $0xb30] sm:$0xff]
    %v2032 = vld [vmem:[#allocation10 + $0xb38] sm:$0xff]
    %v2033 = vld [vmem:[#allocation10 + $0xb40] sm:$0xff]
    %v2034 = vld [vmem:[#allocation10 + $0xb48] sm:$0xff]
    %v2035 = vld [vmem:[#allocation10 + $0xb50] sm:$0xff]
    %v2036 = vld [vmem:[#allocation10 + $0xb58] sm:$0xff]
    %v2037 = vld [vmem:[#allocation10 + $0xb60] sm:$0xff]
    %v2038 = vld [vmem:[#allocation10 + $0xb68] sm:$0xff]
    %v2039 = vld [vmem:[#allocation10 + $0xb70] sm:$0xff]
    %v2040 = vld [vmem:[#allocation10 + $0xb78] sm:$0xff]
    %v2041 = vld [vmem:[#allocation10 + $0xb80] sm:$0xff]
    %v2042 = vld [vmem:[#allocation10 + $0xb88] sm:$0xff]
    %v2043 = vld [vmem:[#allocation10 + $0xb90] sm:$0xff]
    %v2044 = vld [vmem:[#allocation10 + $0xb98] sm:$0xff]
    %v2045 = vld [vmem:[#allocation10 + $0xba0] sm:$0xff]
    %v2046 = vld [vmem:[#allocation10 + $0xba8] sm:$0xff]
    %v2047 = vld [vmem:[#allocation10 + $0xbb0] sm:$0xff]
    %v2048 = vld [vmem:[#allocation10 + $0xbb8] sm:$0xff]
    %v2049 = vld [vmem:[#allocation10 + $0xbc0] sm:$0xff]
    %v2050 = vld [vmem:[#allocation10 + $0xbc8] sm:$0xff]
    %v2051 = vld [vmem:[#allocation10 + $0xbd0] sm:$0xff]
    %v2052 = vld [vmem:[#allocation10 + $0xbd8] sm:$0xff]
    %v2053 = vld [vmem:[#allocation10 + $0xbe0] sm:$0xff]
    %v2054 = vld [vmem:[#allocation10 + $0xbe8] sm:$0xff]
    %v2055 = vld [vmem:[#allocation10 + $0xbf0] sm:$0xff]
    %v2056 = vld [vmem:[#allocation10 + $0xbf8] sm:$0xff]
    %v2057 = vld [vmem:[#allocation10 + $0xc00] sm:$0xff]
    %v2058 = vld [vmem:[#allocation10 + $0xc08] sm:$0xff]
    %v2059 = vld [vmem:[#allocation10 + $0xc10] sm:$0xff]
    %v2060 = vld [vmem:[#allocation10 + $0xc18] sm:$0xff]
    %v2061 = vld [vmem:[#allocation10 + $0xc20] sm:$0xff]
    %v2062 = vld [vmem:[#allocation10 + $0xc28] sm:$0xff]
    %v2063 = vld [vmem:[#allocation10 + $0xc30] sm:$0xff]
    %v2064 = vld [vmem:[#allocation10 + $0xc38] sm:$0xff]
    %v2065 = vld [vmem:[#allocation10 + $0xc40] sm:$0xff]
    %v2066 = vld [vmem:[#allocation10 + $0xc48] sm:$0xff]
    %v2067 = vld [vmem:[#allocation10 + $0xc50] sm:$0xff]
    %v2068 = vld [vmem:[#allocation10 + $0xc58] sm:$0xff]
    %v2069 = vld [vmem:[#allocation10 + $0xc60] sm:$0xff]
    %v2070 = vld [vmem:[#allocation10 + $0xc68] sm:$0xff]
    %v2071 = vld [vmem:[#allocation10 + $0xc70] sm:$0xff]
    %v2072 = vld [vmem:[#allocation10 + $0xc78] sm:$0xff]
    %v2073 = vld [vmem:[#allocation10 + $0xc80] sm:$0xff]
    %v2074 = vld [vmem:[#allocation10 + $0xc88] sm:$0xff]
    %v2075 = vld [vmem:[#allocation10 + $0xc90] sm:$0xff]
    %v2076 = vld [vmem:[#allocation10 + $0xc98] sm:$0xff]
    %v2077 = vld [vmem:[#allocation10 + $0xca0] sm:$0xff]
    %v2078 = vld [vmem:[#allocation10 + $0xca8] sm:$0xff]
    %v2079 = vld [vmem:[#allocation10 + $0xcb0] sm:$0xff]
    %v2080 = vld [vmem:[#allocation10 + $0xcb8] sm:$0xff]
    %v2081 = vld [vmem:[#allocation10 + $0xcc0] sm:$0xff]
    %v2082 = vld [vmem:[#allocation10 + $0xcc8] sm:$0xff]
    %v2083 = vld [vmem:[#allocation10 + $0xcd0] sm:$0xff]
    %v2084 = vld [vmem:[#allocation10 + $0xcd8] sm:$0xff]
    %v2085 = vld [vmem:[#allocation10 + $0xce0] sm:$0xff]
    %v2086 = vld [vmem:[#allocation10 + $0xce8] sm:$0xff]
    %v2087 = vld [vmem:[#allocation10 + $0xcf0] sm:$0xff]
    %v2088 = vld [vmem:[#allocation10 + $0xcf8] sm:$0xff]
    %v2089 = vld [vmem:[#allocation10 + $0xd00] sm:$0xff]
    %v2090 = vld [vmem:[#allocation10 + $0xd08] sm:$0xff]
    %v2091 = vld [vmem:[#allocation10 + $0xd10] sm:$0xff]
    %v2092 = vld [vmem:[#allocation10 + $0xd18] sm:$0xff]
    %v2093 = vld [vmem:[#allocation10 + $0xd20] sm:$0xff]
    %v2094 = vld [vmem:[#allocation10 + $0xd28] sm:$0xff]
    %v2095 = vld [vmem:[#allocation10 + $0xd30] sm:$0xff]
    %v2096 = vld [vmem:[#allocation10 + $0xd38] sm:$0xff]
    %v2097 = vld [vmem:[#allocation10 + $0xd40] sm:$0xff]
    %v2098 = vld [vmem:[#allocation10 + $0xd48] sm:$0xff]
    %v2099 = vld [vmem:[#allocation10 + $0xd50] sm:$0xff]
    %v2100 = vld [vmem:[#allocation10 + $0xd58] sm:$0xff]
    %v2101 = vld [vmem:[#allocation10 + $0xd60] sm:$0xff]
    %v2102 = vld [vmem:[#allocation10 + $0xd68] sm:$0xff]
    %v2103 = vld [vmem:[#allocation10 + $0xd70] sm:$0xff]
    %v2104 = vld [vmem:[#allocation10 + $0xd78] sm:$0xff]
    %v2105 = vld [vmem:[#allocation10 + $0xd80] sm:$0xff]
    %v2106 = vld [vmem:[#allocation10 + $0xd88] sm:$0xff]
    %v2107 = vld [vmem:[#allocation10 + $0xd90] sm:$0xff]
    %v2108 = vld [vmem:[#allocation10 + $0xd98] sm:$0xff]
    %v2109 = vld [vmem:[#allocation10 + $0xda0] sm:$0xff]
    %v2110 = vld [vmem:[#allocation10 + $0xda8] sm:$0xff]
    %v2111 = vld [vmem:[#allocation10 + $0xdb0] sm:$0xff]
    %v2112 = vld [vmem:[#allocation10 + $0xdb8] sm:$0xff]
    %v2113 = vld [vmem:[#allocation10 + $0xdc0] sm:$0xff]
    %v2114 = vld [vmem:[#allocation10 + $0xdc8] sm:$0xff]
    %v2115 = vld [vmem:[#allocation10 + $0xdd0] sm:$0xff]
    %v2116 = vld [vmem:[#allocation10 + $0xdd8] sm:$0xff]
    %v2117 = vld [vmem:[#allocation10 + $0xde0] sm:$0xff]
    %v2118 = vld [vmem:[#allocation10 + $0xde8] sm:$0xff]
    %v2119 = vld [vmem:[#allocation10 + $0xdf0] sm:$0xff]
    %v2120 = vld [vmem:[#allocation10 + $0xdf8] sm:$0xff]
    %v2121 = vld [vmem:[#allocation10 + $0xe00] sm:$0xff]
    %v2122 = vld [vmem:[#allocation10 + $0xe08] sm:$0xff]
    %v2123 = vld [vmem:[#allocation10 + $0xe10] sm:$0xff]
    %v2124 = vld [vmem:[#allocation10 + $0xe18] sm:$0xff]
    %v2125 = vld [vmem:[#allocation10 + $0xe20] sm:$0xff]
    %v2126 = vld [vmem:[#allocation10 + $0xe28] sm:$0xff]
    %v2127 = vld [vmem:[#allocation10 + $0xe30] sm:$0xff]
    %v2128 = vld [vmem:[#allocation10 + $0xe38] sm:$0xff]
    %v2129 = vld [vmem:[#allocation10 + $0xe40] sm:$0xff]
    %v2130 = vld [vmem:[#allocation10 + $0xe48] sm:$0xff]
    %v2131 = vld [vmem:[#allocation10 + $0xe50] sm:$0xff]
    %v2132 = vld [vmem:[#allocation10 + $0xe58] sm:$0xff]
    %v2133 = vld [vmem:[#allocation10 + $0xe60] sm:$0xff]
    %v2134 = vld [vmem:[#allocation10 + $0xe68] sm:$0xff]
    %v2135 = vld [vmem:[#allocation10 + $0xe70] sm:$0xff]
    %v2136 = vld [vmem:[#allocation10 + $0xe78] sm:$0xff]
    %v2137 = vld [vmem:[#allocation10 + $0xe80] sm:$0xff]
    %v2138 = vld [vmem:[#allocation10 + $0xe88] sm:$0xff]
    %v2139 = vld [vmem:[#allocation10 + $0xe90] sm:$0xff]
    %v2140 = vld [vmem:[#allocation10 + $0xe98] sm:$0xff]
    %v2141 = vld [vmem:[#allocation10 + $0xea0] sm:$0xff]
    %v2142 = vld [vmem:[#allocation10 + $0xea8] sm:$0xff]
    %v2143 = vld [vmem:[#allocation10 + $0xeb0] sm:$0xff]
    %v2144 = vld [vmem:[#allocation10 + $0xeb8] sm:$0xff]
    %v2145 = vld [vmem:[#allocation10 + $0xec0] sm:$0xff]
    %v2146 = vld [vmem:[#allocation10 + $0xec8] sm:$0xff]
    %v2147 = vld [vmem:[#allocation10 + $0xed0] sm:$0xff]
    %v2148 = vld [vmem:[#allocation10 + $0xed8] sm:$0xff]
    %v2149 = vld [vmem:[#allocation10 + $0xee0] sm:$0xff]
    %v2150 = vld [vmem:[#allocation10 + $0xee8] sm:$0xff]
    %v2151 = vld [vmem:[#allocation10 + $0xef0] sm:$0xff]
    %v2152 = vld [vmem:[#allocation10 + $0xef8] sm:$0xff]
    %v2153 = vld [vmem:[#allocation10 + $0xf00] sm:$0xff]
    %v2154 = vld [vmem:[#allocation10 + $0xf08] sm:$0xff]
    %v2155 = vld [vmem:[#allocation10 + $0xf10] sm:$0xff]
    %v2156 = vld [vmem:[#allocation10 + $0xf18] sm:$0xff]
    %v2157 = vld [vmem:[#allocation10 + $0xf20] sm:$0xff]
    %v2158 = vld [vmem:[#allocation10 + $0xf28] sm:$0xff]
    %v2159 = vld [vmem:[#allocation10 + $0xf30] sm:$0xff]
    %v2160 = vld [vmem:[#allocation10 + $0xf38] sm:$0xff]
    %v2161 = vld [vmem:[#allocation10 + $0xf40] sm:$0xff]
    %v2162 = vld [vmem:[#allocation10 + $0xf48] sm:$0xff]
    %v2163 = vld [vmem:[#allocation10 + $0xf50] sm:$0xff]
    %v2164 = vld [vmem:[#allocation10 + $0xf58] sm:$0xff]
    %v2165 = vld [vmem:[#allocation10 + $0xf60] sm:$0xff]
    %v2166 = vld [vmem:[#allocation10 + $0xf68] sm:$0xff]
    %v2167 = vld [vmem:[#allocation10 + $0xf70] sm:$0xff]
    %v2168 = vld [vmem:[#allocation10 + $0xf78] sm:$0xff]
    %v2169 = vld [vmem:[#allocation10 + $0xf80] sm:$0xff]
    %v2170 = vld [vmem:[#allocation10 + $0xf88] sm:$0xff]
    %v2171 = vld [vmem:[#allocation10 + $0xf90] sm:$0xff]
    %v2172 = vld [vmem:[#allocation10 + $0xf98] sm:$0xff]
    %v2173 = vld [vmem:[#allocation10 + $0xfa0] sm:$0xff]
    %v2174 = vld [vmem:[#allocation10 + $0xfa8] sm:$0xff]
    %v2175 = vld [vmem:[#allocation10 + $0xfb0] sm:$0xff]
    %v2176 = vld [vmem:[#allocation10 + $0xfb8] sm:$0xff]
    %v2177 = vld [vmem:[#allocation10 + $0xfc0] sm:$0xff]
    %v2178 = vld [vmem:[#allocation10 + $0xfc8] sm:$0xff]
    %v2179 = vld [vmem:[#allocation10 + $0xfd0] sm:$0xff]
    %v2180 = vld [vmem:[#allocation10 + $0xfd8] sm:$0xff]
    %v2181 = vld [vmem:[#allocation10 + $0xfe0] sm:$0xff]
    %v2182 = vld [vmem:[#allocation10 + $0xfe8] sm:$0xff]
    %v2183 = vld [vmem:[#allocation10 + $0xff0] sm:$0xff]
    %v2184 = vld [vmem:[#allocation10 + $0xff8] sm:$0xff]
    %2185 = vmatpush.msra.mxu0 %v1733
    %2186 = vmatpush.msra.mxu0 %v1729
    %2187 = vmatpush.msra.mxu0 %v1725
    %2188 = vmatpush.msra.mxu0 %v1721
    %2189 = vmatpush.msra.mxu0 %v1717
    %2190 = vmatpush.msra.mxu0 %v1713
    %2191 = vmatpush.msra.mxu0 %v1709
    %2192 = vmatpush.msra.mxu0 %v1705
    %2193 = vmatpush.msra.mxu0 %v1701
    %2194 = vmatpush.msra.mxu0 %v1697
    %2195 = vmatpush.msra.mxu0 %v1693
    %2196 = vmatpush.msra.mxu0 %v1689
    %2197 = vmatpush.msra.mxu0 %v1685
    %2198 = vmatpush.msra.mxu0 %v1681
    %2199 = vmatpush.msra.mxu0 %v1677
    %2200 = vmatpush.msra.mxu0 %v1673
    %2201 = vmatmul.f32.gmra.mxu0 %v513
    %v2202 = vpop.f32.mrf.mxu0
    %v2203 = vadd.f32 0.0, %v2202
    %2204 = vdwg.mxu0
    %2205 = vmatpush.msra.mxu0 %v1797
    %2206 = vmatpush.msra.mxu0 %v1793
    %2207 = vmatpush.msra.mxu0 %v1789
    %2208 = vmatpush.msra.mxu0 %v1785
    %2209 = vmatpush.msra.mxu0 %v1781
    %2210 = vmatpush.msra.mxu0 %v1777
    %2211 = vmatpush.msra.mxu0 %v1773
    %2212 = vmatpush.msra.mxu0 %v1769
    %2213 = vmatpush.msra.mxu0 %v1765
    %2214 = vmatpush.msra.mxu0 %v1761
    %2215 = vmatpush.msra.mxu0 %v1757
    %2216 = vmatpush.msra.mxu0 %v1753
    %2217 = vmatpush.msra.mxu0 %v1749
    %2218 = vmatpush.msra.mxu0 %v1745
    %2219 = vmatpush.msra.mxu0 %v1741
    %2220 = vmatpush.msra.mxu0 %v1737
    %2221 = vmatmul.f32.gmra.mxu0 %v514
    %v2222 = vpop.f32.mrf.mxu0
    %v2223 = vadd.f32 %v2203, %v2222
    %2224 = vdwg.mxu0
    %2225 = vmatpush.msra.mxu0 %v1861
    %2226 = vmatpush.msra.mxu0 %v1857
    %2227 = vmatpush.msra.mxu0 %v1853
    %2228 = vmatpush.msra.mxu0 %v1849
    %2229 = vmatpush.msra.mxu0 %v1845
    %2230 = vmatpush.msra.mxu0 %v1841
    %2231 = vmatpush.msra.mxu0 %v1837
    %2232 = vmatpush.msra.mxu0 %v1833
    %2233 = vmatpush.msra.mxu0 %v1829
    %2234 = vmatpush.msra.mxu0 %v1825
    %2235 = vmatpush.msra.mxu0 %v1821
    %2236 = vmatpush.msra.mxu0 %v1817
    %2237 = vmatpush.msra.mxu0 %v1813
    %2238 = vmatpush.msra.mxu0 %v1809
    %2239 = vmatpush.msra.mxu0 %v1805
    %2240 = vmatpush.msra.mxu0 %v1801
    %2241 = vmatmul.f32.gmra.mxu0 %v515
    %v2242 = vpop.f32.mrf.mxu0
    %v2243 = vadd.f32 %v2223, %v2242
    %2244 = vdwg.mxu0
    %2245 = vmatpush.msra.mxu0 %v1925
    %2246 = vmatpush.msra.mxu0 %v1921
    %2247 = vmatpush.msra.mxu0 %v1917
    %2248 = vmatpush.msra.mxu0 %v1913
    %2249 = vmatpush.msra.mxu0 %v1909
    %2250 = vmatpush.msra.mxu0 %v1905
    %2251 = vmatpush.msra.mxu0 %v1901
    %2252 = vmatpush.msra.mxu0 %v1897
    %2253 = vmatpush.msra.mxu0 %v1893
    %2254 = vmatpush.msra.mxu0 %v1889
    %2255 = vmatpush.msra.mxu0 %v1885
    %2256 = vmatpush.msra.mxu0 %v1881
    %2257 = vmatpush.msra.mxu0 %v1877
    %2258 = vmatpush.msra.mxu0 %v1873
    %2259 = vmatpush.msra.mxu0 %v1869
    %2260 = vmatpush.msra.mxu0 %v1865
    %2261 = vmatmul.f32.gmra.mxu0 %v516
    %v2262 = vpop.f32.mrf.mxu0
    %v2263 = vadd.f32 %v2243, %v2262
    %2264 = vdwg.mxu0
    %2265 = vmatpush.msra.mxu0 %v1989
    %2266 = vmatpush.msra.mxu0 %v1985
    %2267 = vmatpush.msra.mxu0 %v1981
    %2268 = vmatpush.msra.mxu0 %v1977
    %2269 = vmatpush.msra.mxu0 %v1973
    %2270 = vmatpush.msra.mxu0 %v1969
    %2271 = vmatpush.msra.mxu0 %v1965
    %2272 = vmatpush.msra.mxu0 %v1961
    %2273 = vmatpush.msra.mxu0 %v1957
    %2274 = vmatpush.msra.mxu0 %v1953
    %2275 = vmatpush.msra.mxu0 %v1949
    %2276 = vmatpush.msra.mxu0 %v1945
    %2277 = vmatpush.msra.mxu0 %v1941
    %2278 = vmatpush.msra.mxu0 %v1937
    %2279 = vmatpush.msra.mxu0 %v1933
    %2280 = vmatpush.msra.mxu0 %v1929
    %2281 = vmatmul.f32.gmra.mxu0 %v517
    %v2282 = vpop.f32.mrf.mxu0
    %v2283 = vadd.f32 %v2263, %v2282
    %2284 = vdwg.mxu0
    %2285 = vmatpush.msra.mxu0 %v2053
    %2286 = vmatpush.msra.mxu0 %v2049
    %2287 = vmatpush.msra.mxu0 %v2045
    %2288 = vmatpush.msra.mxu0 %v2041
    %2289 = vmatpush.msra.mxu0 %v2037
    %2290 = vmatpush.msra.mxu0 %v2033
    %2291 = vmatpush.msra.mxu0 %v2029
    %2292 = vmatpush.msra.mxu0 %v2025
    %2293 = vmatpush.msra.mxu0 %v2021
    %2294 = vmatpush.msra.mxu0 %v2017
    %2295 = vmatpush.msra.mxu0 %v2013
    %2296 = vmatpush.msra.mxu0 %v2009
    %2297 = vmatpush.msra.mxu0 %v2005
    %2298 = vmatpush.msra.mxu0 %v2001
    %2299 = vmatpush.msra.mxu0 %v1997
    %2300 = vmatpush.msra.mxu0 %v1993
    %2301 = vmatmul.f32.gmra.mxu0 %v518
    %v2302 = vpop.f32.mrf.mxu0
    %v2303 = vadd.f32 %v2283, %v2302
    %2304 = vdwg.mxu0
    %2305 = vmatpush.msra.mxu0 %v2117
    %2306 = vmatpush.msra.mxu0 %v2113
    %2307 = vmatpush.msra.mxu0 %v2109
    %2308 = vmatpush.msra.mxu0 %v2105
    %2309 = vmatpush.msra.mxu0 %v2101
    %2310 = vmatpush.msra.mxu0 %v2097
    %2311 = vmatpush.msra.mxu0 %v2093
    %2312 = vmatpush.msra.mxu0 %v2089
    %2313 = vmatpush.msra.mxu0 %v2085
    %2314 = vmatpush.msra.mxu0 %v2081
    %2315 = vmatpush.msra.mxu0 %v2077
    %2316 = vmatpush.msra.mxu0 %v2073
    %2317 = vmatpush.msra.mxu0 %v2069
    %2318 = vmatpush.msra.mxu0 %v2065
    %2319 = vmatpush.msra.mxu0 %v2061
    %2320 = vmatpush.msra.mxu0 %v2057
    %2321 = vmatmul.f32.gmra.mxu0 %v519
    %v2322 = vpop.f32.mrf.mxu0
    %v2323 = vadd.f32 %v2303, %v2322
    %2324 = vdwg.mxu0
    %2325 = vmatpush.msra.mxu0 %v2181
    %2326 = vmatpush.msra.mxu0 %v2177
    %2327 = vmatpush.msra.mxu0 %v2173
    %2328 = vmatpush.msra.mxu0 %v2169
    %2329 = vmatpush.msra.mxu0 %v2165
    %2330 = vmatpush.msra.mxu0 %v2161
    %2331 = vmatpush.msra.mxu0 %v2157
    %2332 = vmatpush.msra.mxu0 %v2153
    %2333 = vmatpush.msra.mxu0 %v2149
    %2334 = vmatpush.msra.mxu0 %v2145
    %2335 = vmatpush.msra.mxu0 %v2141
    %2336 = vmatpush.msra.mxu0 %v2137
    %2337 = vmatpush.msra.mxu0 %v2133
    %2338 = vmatpush.msra.mxu0 %v2129
    %2339 = vmatpush.msra.mxu0 %v2125
    %2340 = vmatpush.msra.mxu0 %v2121
    %2341 = vmatmul.f32.gmra.mxu0 %v520
    %v2342 = vpop.f32.mrf.mxu0
    %v2343 = vadd.f32 %v2323, %v2342
    %2344 = vdwg.mxu0
    %2345 = vmatpush.msra.mxu0 %v1734
    %2346 = vmatpush.msra.mxu0 %v1730
    %2347 = vmatpush.msra.mxu0 %v1726
    %2348 = vmatpush.msra.mxu0 %v1722
    %2349 = vmatpush.msra.mxu0 %v1718
    %2350 = vmatpush.msra.mxu0 %v1714
    %2351 = vmatpush.msra.mxu0 %v1710
    %2352 = vmatpush.msra.mxu0 %v1706
    %2353 = vmatpush.msra.mxu0 %v1702
    %2354 = vmatpush.msra.mxu0 %v1698
    %2355 = vmatpush.msra.mxu0 %v1694
    %2356 = vmatpush.msra.mxu0 %v1690
    %2357 = vmatpush.msra.mxu0 %v1686
    %2358 = vmatpush.msra.mxu0 %v1682
    %2359 = vmatpush.msra.mxu0 %v1678
    %2360 = vmatpush.msra.mxu0 %v1674
    %2361 = vmatmul.f32.gmra.mxu0 %v513
    %v2362 = vpop.f32.mrf.mxu0
    %v2363 = vadd.f32 0.0, %v2362
    %2364 = vdwg.mxu0
    %2365 = vmatpush.msra.mxu0 %v1798
    %2366 = vmatpush.msra.mxu0 %v1794
    %2367 = vmatpush.msra.mxu0 %v1790
    %2368 = vmatpush.msra.mxu0 %v1786
    %2369 = vmatpush.msra.mxu0 %v1782
    %2370 = vmatpush.msra.mxu0 %v1778
    %2371 = vmatpush.msra.mxu0 %v1774
    %2372 = vmatpush.msra.mxu0 %v1770
    %2373 = vmatpush.msra.mxu0 %v1766
    %2374 = vmatpush.msra.mxu0 %v1762
    %2375 = vmatpush.msra.mxu0 %v1758
    %2376 = vmatpush.msra.mxu0 %v1754
    %2377 = vmatpush.msra.mxu0 %v1750
    %2378 = vmatpush.msra.mxu0 %v1746
    %2379 = vmatpush.msra.mxu0 %v1742
    %2380 = vmatpush.msra.mxu0 %v1738
    %2381 = vmatmul.f32.gmra.mxu0 %v514
    %v2382 = vpop.f32.mrf.mxu0
    %v2383 = vadd.f32 %v2363, %v2382
    %2384 = vdwg.mxu0
    %2385 = vmatpush.msra.mxu0 %v1862
    %2386 = vmatpush.msra.mxu0 %v1858
    %2387 = vmatpush.msra.mxu0 %v1854
    %2388 = vmatpush.msra.mxu0 %v1850
    %2389 = vmatpush.msra.mxu0 %v1846
    %2390 = vmatpush.msra.mxu0 %v1842
    %2391 = vmatpush.msra.mxu0 %v1838
    %2392 = vmatpush.msra.mxu0 %v1834
    %2393 = vmatpush.msra.mxu0 %v1830
    %2394 = vmatpush.msra.mxu0 %v1826
    %2395 = vmatpush.msra.mxu0 %v1822
    %2396 = vmatpush.msra.mxu0 %v1818
    %2397 = vmatpush.msra.mxu0 %v1814
    %2398 = vmatpush.msra.mxu0 %v1810
    %2399 = vmatpush.msra.mxu0 %v1806
    %2400 = vmatpush.msra.mxu0 %v1802
    %2401 = vmatmul.f32.gmra.mxu0 %v515
    %v2402 = vpop.f32.mrf.mxu0
    %v2403 = vadd.f32 %v2383, %v2402
    %2404 = vdwg.mxu0
    %2405 = vmatpush.msra.mxu0 %v1926
    %2406 = vmatpush.msra.mxu0 %v1922
    %2407 = vmatpush.msra.mxu0 %v1918
    %2408 = vmatpush.msra.mxu0 %v1914
    %2409 = vmatpush.msra.mxu0 %v1910
    %2410 = vmatpush.msra.mxu0 %v1906
    %2411 = vmatpush.msra.mxu0 %v1902
    %2412 = vmatpush.msra.mxu0 %v1898
    %2413 = vmatpush.msra.mxu0 %v1894
    %2414 = vmatpush.msra.mxu0 %v1890
    %2415 = vmatpush.msra.mxu0 %v1886
    %2416 = vmatpush.msra.mxu0 %v1882
    %2417 = vmatpush.msra.mxu0 %v1878
    %2418 = vmatpush.msra.mxu0 %v1874
    %2419 = vmatpush.msra.mxu0 %v1870
    %2420 = vmatpush.msra.mxu0 %v1866
    %2421 = vmatmul.f32.gmra.mxu0 %v516
    %v2422 = vpop.f32.mrf.mxu0
    %v2423 = vadd.f32 %v2403, %v2422
    %2424 = vdwg.mxu0
    %2425 = vmatpush.msra.mxu0 %v1990
    %2426 = vmatpush.msra.mxu0 %v1986
    %2427 = vmatpush.msra.mxu0 %v1982
    %2428 = vmatpush.msra.mxu0 %v1978
    %2429 = vmatpush.msra.mxu0 %v1974
    %2430 = vmatpush.msra.mxu0 %v1970
    %2431 = vmatpush.msra.mxu0 %v1966
    %2432 = vmatpush.msra.mxu0 %v1962
    %2433 = vmatpush.msra.mxu0 %v1958
    %2434 = vmatpush.msra.mxu0 %v1954
    %2435 = vmatpush.msra.mxu0 %v1950
    %2436 = vmatpush.msra.mxu0 %v1946
    %2437 = vmatpush.msra.mxu0 %v1942
    %2438 = vmatpush.msra.mxu0 %v1938
    %2439 = vmatpush.msra.mxu0 %v1934
    %2440 = vmatpush.msra.mxu0 %v1930
    %2441 = vmatmul.f32.gmra.mxu0 %v517
    %v2442 = vpop.f32.mrf.mxu0
    %v2443 = vadd.f32 %v2423, %v2442
    %2444 = vdwg.mxu0
    %2445 = vmatpush.msra.mxu0 %v2054
    %2446 = vmatpush.msra.mxu0 %v2050
    %2447 = vmatpush.msra.mxu0 %v2046
    %2448 = vmatpush.msra.mxu0 %v2042
    %2449 = vmatpush.msra.mxu0 %v2038
    %2450 = vmatpush.msra.mxu0 %v2034
    %2451 = vmatpush.msra.mxu0 %v2030
    %2452 = vmatpush.msra.mxu0 %v2026
    %2453 = vmatpush.msra.mxu0 %v2022
    %2454 = vmatpush.msra.mxu0 %v2018
    %2455 = vmatpush.msra.mxu0 %v2014
    %2456 = vmatpush.msra.mxu0 %v2010
    %2457 = vmatpush.msra.mxu0 %v2006
    %2458 = vmatpush.msra.mxu0 %v2002
    %2459 = vmatpush.msra.mxu0 %v1998
    %2460 = vmatpush.msra.mxu0 %v1994
    %2461 = vmatmul.f32.gmra.mxu0 %v518
    %v2462 = vpop.f32.mrf.mxu0
    %v2463 = vadd.f32 %v2443, %v2462
    %2464 = vdwg.mxu0
    %2465 = vmatpush.msra.mxu0 %v2118
    %2466 = vmatpush.msra.mxu0 %v2114
    %2467 = vmatpush.msra.mxu0 %v2110
    %2468 = vmatpush.msra.mxu0 %v2106
    %2469 = vmatpush.msra.mxu0 %v2102
    %2470 = vmatpush.msra.mxu0 %v2098
    %2471 = vmatpush.msra.mxu0 %v2094
    %2472 = vmatpush.msra.mxu0 %v2090
    %2473 = vmatpush.msra.mxu0 %v2086
    %2474 = vmatpush.msra.mxu0 %v2082
    %2475 = vmatpush.msra.mxu0 %v2078
    %2476 = vmatpush.msra.mxu0 %v2074
    %2477 = vmatpush.msra.mxu0 %v2070
    %2478 = vmatpush.msra.mxu0 %v2066
    %2479 = vmatpush.msra.mxu0 %v2062
    %2480 = vmatpush.msra.mxu0 %v2058
    %2481 = vmatmul.f32.gmra.mxu0 %v519
    %v2482 = vpop.f32.mrf.mxu0
    %v2483 = vadd.f32 %v2463, %v2482
    %2484 = vdwg.mxu0
    %2485 = vmatpush.msra.mxu0 %v2182
    %2486 = vmatpush.msra.mxu0 %v2178
    %2487 = vmatpush.msra.mxu0 %v2174
    %2488 = vmatpush.msra.mxu0 %v2170
    %2489 = vmatpush.msra.mxu0 %v2166
    %2490 = vmatpush.msra.mxu0 %v2162
    %2491 = vmatpush.msra.mxu0 %v2158
    %2492 = vmatpush.msra.mxu0 %v2154
    %2493 = vmatpush.msra.mxu0 %v2150
    %2494 = vmatpush.msra.mxu0 %v2146
    %2495 = vmatpush.msra.mxu0 %v2142
    %2496 = vmatpush.msra.mxu0 %v2138
    %2497 = vmatpush.msra.mxu0 %v2134
    %2498 = vmatpush.msra.mxu0 %v2130
    %2499 = vmatpush.msra.mxu0 %v2126
    %2500 = vmatpush.msra.mxu0 %v2122
    %2501 = vmatmul.f32.gmra.mxu0 %v520
    %v2502 = vpop.f32.mrf.mxu0
    %v2503 = vadd.f32 %v2483, %v2502
    %2504 = vdwg.mxu0
    %2505 = vmatpush.msra.mxu0 %v1735
    %2506 = vmatpush.msra.mxu0 %v1731
    %2507 = vmatpush.msra.mxu0 %v1727
    %2508 = vmatpush.msra.mxu0 %v1723
    %2509 = vmatpush.msra.mxu0 %v1719
    %2510 = vmatpush.msra.mxu0 %v1715
    %2511 = vmatpush.msra.mxu0 %v1711
    %2512 = vmatpush.msra.mxu0 %v1707
    %2513 = vmatpush.msra.mxu0 %v1703
    %2514 = vmatpush.msra.mxu0 %v1699
    %2515 = vmatpush.msra.mxu0 %v1695
    %2516 = vmatpush.msra.mxu0 %v1691
    %2517 = vmatpush.msra.mxu0 %v1687
    %2518 = vmatpush.msra.mxu0 %v1683
    %2519 = vmatpush.msra.mxu0 %v1679
    %2520 = vmatpush.msra.mxu0 %v1675
    %2521 = vmatmul.f32.gmra.mxu0 %v513
    %v2522 = vpop.f32.mrf.mxu0
    %v2523 = vadd.f32 0.0, %v2522
    %2524 = vdwg.mxu0
    %2525 = vmatpush.msra.mxu0 %v1799
    %2526 = vmatpush.msra.mxu0 %v1795
    %2527 = vmatpush.msra.mxu0 %v1791
    %2528 = vmatpush.msra.mxu0 %v1787
    %2529 = vmatpush.msra.mxu0 %v1783
    %2530 = vmatpush.msra.mxu0 %v1779
    %2531 = vmatpush.msra.mxu0 %v1775
    %2532 = vmatpush.msra.mxu0 %v1771
    %2533 = vmatpush.msra.mxu0 %v1767
    %2534 = vmatpush.msra.mxu0 %v1763
    %2535 = vmatpush.msra.mxu0 %v1759
    %2536 = vmatpush.msra.mxu0 %v1755
    %2537 = vmatpush.msra.mxu0 %v1751
    %2538 = vmatpush.msra.mxu0 %v1747
    %2539 = vmatpush.msra.mxu0 %v1743
    %2540 = vmatpush.msra.mxu0 %v1739
    %2541 = vmatmul.f32.gmra.mxu0 %v514
    %v2542 = vpop.f32.mrf.mxu0
    %v2543 = vadd.f32 %v2523, %v2542
    %2544 = vdwg.mxu0
    %2545 = vmatpush.msra.mxu0 %v1863
    %2546 = vmatpush.msra.mxu0 %v1859
    %2547 = vmatpush.msra.mxu0 %v1855
    %2548 = vmatpush.msra.mxu0 %v1851
    %2549 = vmatpush.msra.mxu0 %v1847
    %2550 = vmatpush.msra.mxu0 %v1843
    %2551 = vmatpush.msra.mxu0 %v1839
    %2552 = vmatpush.msra.mxu0 %v1835
    %2553 = vmatpush.msra.mxu0 %v1831
    %2554 = vmatpush.msra.mxu0 %v1827
    %2555 = vmatpush.msra.mxu0 %v1823
    %2556 = vmatpush.msra.mxu0 %v1819
    %2557 = vmatpush.msra.mxu0 %v1815
    %2558 = vmatpush.msra.mxu0 %v1811
    %2559 = vmatpush.msra.mxu0 %v1807
    %2560 = vmatpush.msra.mxu0 %v1803
    %2561 = vmatmul.f32.gmra.mxu0 %v515
    %v2562 = vpop.f32.mrf.mxu0
    %v2563 = vadd.f32 %v2543, %v2562
    %2564 = vdwg.mxu0
    %2565 = vmatpush.msra.mxu0 %v1927
    %2566 = vmatpush.msra.mxu0 %v1923
    %2567 = vmatpush.msra.mxu0 %v1919
    %2568 = vmatpush.msra.mxu0 %v1915
    %2569 = vmatpush.msra.mxu0 %v1911
    %2570 = vmatpush.msra.mxu0 %v1907
    %2571 = vmatpush.msra.mxu0 %v1903
    %2572 = vmatpush.msra.mxu0 %v1899
    %2573 = vmatpush.msra.mxu0 %v1895
    %2574 = vmatpush.msra.mxu0 %v1891
    %2575 = vmatpush.msra.mxu0 %v1887
    %2576 = vmatpush.msra.mxu0 %v1883
    %2577 = vmatpush.msra.mxu0 %v1879
    %2578 = vmatpush.msra.mxu0 %v1875
    %2579 = vmatpush.msra.mxu0 %v1871
    %2580 = vmatpush.msra.mxu0 %v1867
    %2581 = vmatmul.f32.gmra.mxu0 %v516
    %v2582 = vpop.f32.mrf.mxu0
    %v2583 = vadd.f32 %v2563, %v2582
    %2584 = vdwg.mxu0
    %2585 = vmatpush.msra.mxu0 %v1991
    %2586 = vmatpush.msra.mxu0 %v1987
    %2587 = vmatpush.msra.mxu0 %v1983
    %2588 = vmatpush.msra.mxu0 %v1979
    %2589 = vmatpush.msra.mxu0 %v1975
    %2590 = vmatpush.msra.mxu0 %v1971
    %2591 = vmatpush.msra.mxu0 %v1967
    %2592 = vmatpush.msra.mxu0 %v1963
    %2593 = vmatpush.msra.mxu0 %v1959
    %2594 = vmatpush.msra.mxu0 %v1955
    %2595 = vmatpush.msra.mxu0 %v1951
    %2596 = vmatpush.msra.mxu0 %v1947
    %2597 = vmatpush.msra.mxu0 %v1943
    %2598 = vmatpush.msra.mxu0 %v1939
    %2599 = vmatpush.msra.mxu0 %v1935
    %2600 = vmatpush.msra.mxu0 %v1931
    %2601 = vmatmul.f32.gmra.mxu0 %v517
    %v2602 = vpop.f32.mrf.mxu0
    %v2603 = vadd.f32 %v2583, %v2602
    %2604 = vdwg.mxu0
    %2605 = vmatpush.msra.mxu0 %v2055
    %2606 = vmatpush.msra.mxu0 %v2051
    %2607 = vmatpush.msra.mxu0 %v2047
    %2608 = vmatpush.msra.mxu0 %v2043
    %2609 = vmatpush.msra.mxu0 %v2039
    %2610 = vmatpush.msra.mxu0 %v2035
    %2611 = vmatpush.msra.mxu0 %v2031
    %2612 = vmatpush.msra.mxu0 %v2027
    %2613 = vmatpush.msra.mxu0 %v2023
    %2614 = vmatpush.msra.mxu0 %v2019
    %2615 = vmatpush.msra.mxu0 %v2015
    %2616 = vmatpush.msra.mxu0 %v2011
    %2617 = vmatpush.msra.mxu0 %v2007
    %2618 = vmatpush.msra.mxu0 %v2003
    %2619 = vmatpush.msra.mxu0 %v1999
    %2620 = vmatpush.msra.mxu0 %v1995
    %2621 = vmatmul.f32.gmra.mxu0 %v518
    %v2622 = vpop.f32.mrf.mxu0
    %v2623 = vadd.f32 %v2603, %v2622
    %2624 = vdwg.mxu0
    %2625 = vmatpush.msra.mxu0 %v2119
    %2626 = vmatpush.msra.mxu0 %v2115
    %2627 = vmatpush.msra.mxu0 %v2111
    %2628 = vmatpush.msra.mxu0 %v2107
    %2629 = vmatpush.msra.mxu0 %v2103
    %2630 = vmatpush.msra.mxu0 %v2099
    %2631 = vmatpush.msra.mxu0 %v2095
    %2632 = vmatpush.msra.mxu0 %v2091
    %2633 = vmatpush.msra.mxu0 %v2087
    %2634 = vmatpush.msra.mxu0 %v2083
    %2635 = vmatpush.msra.mxu0 %v2079
    %2636 = vmatpush.msra.mxu0 %v2075
    %2637 = vmatpush.msra.mxu0 %v2071
    %2638 = vmatpush.msra.mxu0 %v2067
    %2639 = vmatpush.msra.mxu0 %v2063
    %2640 = vmatpush.msra.mxu0 %v2059
    %2641 = vmatmul.f32.gmra.mxu0 %v519
    %v2642 = vpop.f32.mrf.mxu0
    %v2643 = vadd.f32 %v2623, %v2642
    %2644 = vdwg.mxu0
    %2645 = vmatpush.msra.mxu0 %v2183
    %2646 = vmatpush.msra.mxu0 %v2179
    %2647 = vmatpush.msra.mxu0 %v2175
    %2648 = vmatpush.msra.mxu0 %v2171
    %2649 = vmatpush.msra.mxu0 %v2167
    %2650 = vmatpush.msra.mxu0 %v2163
    %2651 = vmatpush.msra.mxu0 %v2159
    %2652 = vmatpush.msra.mxu0 %v2155
    %2653 = vmatpush.msra.mxu0 %v2151
    %2654 = vmatpush.msra.mxu0 %v2147
    %2655 = vmatpush.msra.mxu0 %v2143
    %2656 = vmatpush.msra.mxu0 %v2139
    %2657 = vmatpush.msra.mxu0 %v2135
    %2658 = vmatpush.msra.mxu0 %v2131
    %2659 = vmatpush.msra.mxu0 %v2127
    %2660 = vmatpush.msra.mxu0 %v2123
    %2661 = vmatmul.f32.gmra.mxu0 %v520
    %v2662 = vpop.f32.mrf.mxu0
    %v2663 = vadd.f32 %v2643, %v2662
    %2664 = vdwg.mxu0
    %2665 = vmatpush.msra.mxu0 %v1736
    %2666 = vmatpush.msra.mxu0 %v1732
    %2667 = vmatpush.msra.mxu0 %v1728
    %2668 = vmatpush.msra.mxu0 %v1724
    %2669 = vmatpush.msra.mxu0 %v1720
    %2670 = vmatpush.msra.mxu0 %v1716
    %2671 = vmatpush.msra.mxu0 %v1712
    %2672 = vmatpush.msra.mxu0 %v1708
    %2673 = vmatpush.msra.mxu0 %v1704
    %2674 = vmatpush.msra.mxu0 %v1700
    %2675 = vmatpush.msra.mxu0 %v1696
    %2676 = vmatpush.msra.mxu0 %v1692
    %2677 = vmatpush.msra.mxu0 %v1688
    %2678 = vmatpush.msra.mxu0 %v1684
    %2679 = vmatpush.msra.mxu0 %v1680
    %2680 = vmatpush.msra.mxu0 %v1676
    %2681 = vmatmul.f32.gmra.mxu0 %v513
    %v2682 = vpop.f32.mrf.mxu0
    %v2683 = vadd.f32 0.0, %v2682
    %2684 = vdwg.mxu0
    %2685 = vmatpush.msra.mxu0 %v1800
    %2686 = vmatpush.msra.mxu0 %v1796
    %2687 = vmatpush.msra.mxu0 %v1792
    %2688 = vmatpush.msra.mxu0 %v1788
    %2689 = vmatpush.msra.mxu0 %v1784
    %2690 = vmatpush.msra.mxu0 %v1780
    %2691 = vmatpush.msra.mxu0 %v1776
    %2692 = vmatpush.msra.mxu0 %v1772
    %2693 = vmatpush.msra.mxu0 %v1768
    %2694 = vmatpush.msra.mxu0 %v1764
    %2695 = vmatpush.msra.mxu0 %v1760
    %2696 = vmatpush.msra.mxu0 %v1756
    %2697 = vmatpush.msra.mxu0 %v1752
    %2698 = vmatpush.msra.mxu0 %v1748
    %2699 = vmatpush.msra.mxu0 %v1744
    %2700 = vmatpush.msra.mxu0 %v1740
    %2701 = vmatmul.f32.gmra.mxu0 %v514
    %v2702 = vpop.f32.mrf.mxu0
    %v2703 = vadd.f32 %v2683, %v2702
    %2704 = vdwg.mxu0
    %2705 = vmatpush.msra.mxu0 %v1864
    %2706 = vmatpush.msra.mxu0 %v1860
    %2707 = vmatpush.msra.mxu0 %v1856
    %2708 = vmatpush.msra.mxu0 %v1852
    %2709 = vmatpush.msra.mxu0 %v1848
    %2710 = vmatpush.msra.mxu0 %v1844
    %2711 = vmatpush.msra.mxu0 %v1840
    %2712 = vmatpush.msra.mxu0 %v1836
    %2713 = vmatpush.msra.mxu0 %v1832
    %2714 = vmatpush.msra.mxu0 %v1828
    %2715 = vmatpush.msra.mxu0 %v1824
    %2716 = vmatpush.msra.mxu0 %v1820
    %2717 = vmatpush.msra.mxu0 %v1816
    %2718 = vmatpush.msra.mxu0 %v1812
    %2719 = vmatpush.msra.mxu0 %v1808
    %2720 = vmatpush.msra.mxu0 %v1804
    %2721 = vmatmul.f32.gmra.mxu0 %v515
    %v2722 = vpop.f32.mrf.mxu0
    %v2723 = vadd.f32 %v2703, %v2722
    %2724 = vdwg.mxu0
    %2725 = vmatpush.msra.mxu0 %v1928
    %2726 = vmatpush.msra.mxu0 %v1924
    %2727 = vmatpush.msra.mxu0 %v1920
    %2728 = vmatpush.msra.mxu0 %v1916
    %2729 = vmatpush.msra.mxu0 %v1912
    %2730 = vmatpush.msra.mxu0 %v1908
    %2731 = vmatpush.msra.mxu0 %v1904
    %2732 = vmatpush.msra.mxu0 %v1900
    %2733 = vmatpush.msra.mxu0 %v1896
    %2734 = vmatpush.msra.mxu0 %v1892
    %2735 = vmatpush.msra.mxu0 %v1888
    %2736 = vmatpush.msra.mxu0 %v1884
    %2737 = vmatpush.msra.mxu0 %v1880
    %2738 = vmatpush.msra.mxu0 %v1876
    %2739 = vmatpush.msra.mxu0 %v1872
    %2740 = vmatpush.msra.mxu0 %v1868
    %2741 = vmatmul.f32.gmra.mxu0 %v516
    %v2742 = vpop.f32.mrf.mxu0
    %v2743 = vadd.f32 %v2723, %v2742
    %2744 = vdwg.mxu0
    %2745 = vmatpush.msra.mxu0 %v1992
    %2746 = vmatpush.msra.mxu0 %v1988
    %2747 = vmatpush.msra.mxu0 %v1984
    %2748 = vmatpush.msra.mxu0 %v1980
    %2749 = vmatpush.msra.mxu0 %v1976
    %2750 = vmatpush.msra.mxu0 %v1972
    %2751 = vmatpush.msra.mxu0 %v1968
    %2752 = vmatpush.msra.mxu0 %v1964
    %2753 = vmatpush.msra.mxu0 %v1960
    %2754 = vmatpush.msra.mxu0 %v1956
    %2755 = vmatpush.msra.mxu0 %v1952
    %2756 = vmatpush.msra.mxu0 %v1948
    %2757 = vmatpush.msra.mxu0 %v1944
    %2758 = vmatpush.msra.mxu0 %v1940
    %2759 = vmatpush.msra.mxu0 %v1936
    %2760 = vmatpush.msra.mxu0 %v1932
    %2761 = vmatmul.f32.gmra.mxu0 %v517
    %v2762 = vpop.f32.mrf.mxu0
    %v2763 = vadd.f32 %v2743, %v2762
    %2764 = vdwg.mxu0
    %2765 = vmatpush.msra.mxu0 %v2056
    %2766 = vmatpush.msra.mxu0 %v2052
    %2767 = vmatpush.msra.mxu0 %v2048
    %2768 = vmatpush.msra.mxu0 %v2044
    %2769 = vmatpush.msra.mxu0 %v2040
    %2770 = vmatpush.msra.mxu0 %v2036
    %2771 = vmatpush.msra.mxu0 %v2032
    %2772 = vmatpush.msra.mxu0 %v2028
    %2773 = vmatpush.msra.mxu0 %v2024
    %2774 = vmatpush.msra.mxu0 %v2020
    %2775 = vmatpush.msra.mxu0 %v2016
    %2776 = vmatpush.msra.mxu0 %v2012
    %2777 = vmatpush.msra.mxu0 %v2008
    %2778 = vmatpush.msra.mxu0 %v2004
    %2779 = vmatpush.msra.mxu0 %v2000
    %2780 = vmatpush.msra.mxu0 %v1996
    %2781 = vmatmul.f32.gmra.mxu0 %v518
    %v2782 = vpop.f32.mrf.mxu0
    %v2783 = vadd.f32 %v2763, %v2782
    %2784 = vdwg.mxu0
    %2785 = vmatpush.msra.mxu0 %v2120
    %2786 = vmatpush.msra.mxu0 %v2116
    %2787 = vmatpush.msra.mxu0 %v2112
    %2788 = vmatpush.msra.mxu0 %v2108
    %2789 = vmatpush.msra.mxu0 %v2104
    %2790 = vmatpush.msra.mxu0 %v2100
    %2791 = vmatpush.msra.mxu0 %v2096
    %2792 = vmatpush.msra.mxu0 %v2092
    %2793 = vmatpush.msra.mxu0 %v2088
    %2794 = vmatpush.msra.mxu0 %v2084
    %2795 = vmatpush.msra.mxu0 %v2080
    %2796 = vmatpush.msra.mxu0 %v2076
    %2797 = vmatpush.msra.mxu0 %v2072
    %2798 = vmatpush.msra.mxu0 %v2068
    %2799 = vmatpush.msra.mxu0 %v2064
    %2800 = vmatpush.msra.mxu0 %v2060
    %2801 = vmatmul.f32.gmra.mxu0 %v519
    %v2802 = vpop.f32.mrf.mxu0
    %v2803 = vadd.f32 %v2783, %v2802
    %2804 = vdwg.mxu0
    %2805 = vmatpush.msra.mxu0 %v2184
    %2806 = vmatpush.msra.mxu0 %v2180
    %2807 = vmatpush.msra.mxu0 %v2176
    %2808 = vmatpush.msra.mxu0 %v2172
    %2809 = vmatpush.msra.mxu0 %v2168
    %2810 = vmatpush.msra.mxu0 %v2164
    %2811 = vmatpush.msra.mxu0 %v2160
    %2812 = vmatpush.msra.mxu0 %v2156
    %2813 = vmatpush.msra.mxu0 %v2152
    %2814 = vmatpush.msra.mxu0 %v2148
    %2815 = vmatpush.msra.mxu0 %v2144
    %2816 = vmatpush.msra.mxu0 %v2140
    %2817 = vmatpush.msra.mxu0 %v2136
    %2818 = vmatpush.msra.mxu0 %v2132
    %2819 = vmatpush.msra.mxu0 %v2128
    %2820 = vmatpush.msra.mxu0 %v2124
    %2821 = vmatmul.f32.gmra.mxu0 %v520
    %v2822 = vpop.f32.mrf.mxu0
    %v2823 = vadd.f32 %v2803, %v2822
    %2824 = vdwg.mxu0
    %v2825 = vmax.f32 %v1191, %v2343
    %v2826 = vmax.f32 %v1351, %v2503
    %v2827 = vmax.f32 %v1511, %v2663
    %v2828 = vmax.f32 %v1671, %v2823
    %v2829 = vld [vmem:[#allocation11] sm:$0xff]
    %v2830 = vld [vmem:[#allocation11 + $0x8] sm:$0xff]
    %v2831 = vld [vmem:[#allocation11 + $0x10] sm:$0xff]
    %v2832 = vld [vmem:[#allocation11 + $0x18] sm:$0xff]
    %v2833 = vld [vmem:[#allocation11 + $0x20] sm:$0xff]
    %v2834 = vld [vmem:[#allocation11 + $0x28] sm:$0xff]
    %v2835 = vld [vmem:[#allocation11 + $0x30] sm:$0xff]
    %v2836 = vld [vmem:[#allocation11 + $0x38] sm:$0xff]
    %v2837 = vld [vmem:[#allocation11 + $0x40] sm:$0xff]
    %v2838 = vld [vmem:[#allocation11 + $0x48] sm:$0xff]
    %v2839 = vld [vmem:[#allocation11 + $0x50] sm:$0xff]
    %v2840 = vld [vmem:[#allocation11 + $0x58] sm:$0xff]
    %v2841 = vld [vmem:[#allocation11 + $0x60] sm:$0xff]
    %v2842 = vld [vmem:[#allocation11 + $0x68] sm:$0xff]
    %v2843 = vld [vmem:[#allocation11 + $0x70] sm:$0xff]
    %v2844 = vld [vmem:[#allocation11 + $0x78] sm:$0xff]
    %v2845 = vld [vmem:[#allocation11 + $0x80] sm:$0xff]
    %v2846 = vld [vmem:[#allocation11 + $0x88] sm:$0xff]
    %v2847 = vld [vmem:[#allocation11 + $0x90] sm:$0xff]
    %v2848 = vld [vmem:[#allocation11 + $0x98] sm:$0xff]
    %v2849 = vld [vmem:[#allocation11 + $0xa0] sm:$0xff]
    %v2850 = vld [vmem:[#allocation11 + $0xa8] sm:$0xff]
    %v2851 = vld [vmem:[#allocation11 + $0xb0] sm:$0xff]
    %v2852 = vld [vmem:[#allocation11 + $0xb8] sm:$0xff]
    %v2853 = vld [vmem:[#allocation11 + $0xc0] sm:$0xff]
    %v2854 = vld [vmem:[#allocation11 + $0xc8] sm:$0xff]
    %v2855 = vld [vmem:[#allocation11 + $0xd0] sm:$0xff]
    %v2856 = vld [vmem:[#allocation11 + $0xd8] sm:$0xff]
    %v2857 = vld [vmem:[#allocation11 + $0xe0] sm:$0xff]
    %v2858 = vld [vmem:[#allocation11 + $0xe8] sm:$0xff]
    %v2859 = vld [vmem:[#allocation11 + $0xf0] sm:$0xff]
    %v2860 = vld [vmem:[#allocation11 + $0xf8] sm:$0xff]
    %v2861 = vld [vmem:[#allocation11 + $0x100] sm:$0xff]
    %v2862 = vld [vmem:[#allocation11 + $0x108] sm:$0xff]
    %v2863 = vld [vmem:[#allocation11 + $0x110] sm:$0xff]
    %v2864 = vld [vmem:[#allocation11 + $0x118] sm:$0xff]
    %v2865 = vld [vmem:[#allocation11 + $0x120] sm:$0xff]
    %v2866 = vld [vmem:[#allocation11 + $0x128] sm:$0xff]
    %v2867 = vld [vmem:[#allocation11 + $0x130] sm:$0xff]
    %v2868 = vld [vmem:[#allocation11 + $0x138] sm:$0xff]
    %v2869 = vld [vmem:[#allocation11 + $0x140] sm:$0xff]
    %v2870 = vld [vmem:[#allocation11 + $0x148] sm:$0xff]
    %v2871 = vld [vmem:[#allocation11 + $0x150] sm:$0xff]
    %v2872 = vld [vmem:[#allocation11 + $0x158] sm:$0xff]
    %v2873 = vld [vmem:[#allocation11 + $0x160] sm:$0xff]
    %v2874 = vld [vmem:[#allocation11 + $0x168] sm:$0xff]
    %v2875 = vld [vmem:[#allocation11 + $0x170] sm:$0xff]
    %v2876 = vld [vmem:[#allocation11 + $0x178] sm:$0xff]
    %v2877 = vld [vmem:[#allocation11 + $0x180] sm:$0xff]
    %v2878 = vld [vmem:[#allocation11 + $0x188] sm:$0xff]
    %v2879 = vld [vmem:[#allocation11 + $0x190] sm:$0xff]
    %v2880 = vld [vmem:[#allocation11 + $0x198] sm:$0xff]
    %v2881 = vld [vmem:[#allocation11 + $0x1a0] sm:$0xff]
    %v2882 = vld [vmem:[#allocation11 + $0x1a8] sm:$0xff]
    %v2883 = vld [vmem:[#allocation11 + $0x1b0] sm:$0xff]
    %v2884 = vld [vmem:[#allocation11 + $0x1b8] sm:$0xff]
    %v2885 = vld [vmem:[#allocation11 + $0x1c0] sm:$0xff]
    %v2886 = vld [vmem:[#allocation11 + $0x1c8] sm:$0xff]
    %v2887 = vld [vmem:[#allocation11 + $0x1d0] sm:$0xff]
    %v2888 = vld [vmem:[#allocation11 + $0x1d8] sm:$0xff]
    %v2889 = vld [vmem:[#allocation11 + $0x1e0] sm:$0xff]
    %v2890 = vld [vmem:[#allocation11 + $0x1e8] sm:$0xff]
    %v2891 = vld [vmem:[#allocation11 + $0x1f0] sm:$0xff]
    %v2892 = vld [vmem:[#allocation11 + $0x1f8] sm:$0xff]
    %v2893 = vld [vmem:[#allocation11 + $0x200] sm:$0xff]
    %v2894 = vld [vmem:[#allocation11 + $0x208] sm:$0xff]
    %v2895 = vld [vmem:[#allocation11 + $0x210] sm:$0xff]
    %v2896 = vld [vmem:[#allocation11 + $0x218] sm:$0xff]
    %v2897 = vld [vmem:[#allocation11 + $0x220] sm:$0xff]
    %v2898 = vld [vmem:[#allocation11 + $0x228] sm:$0xff]
    %v2899 = vld [vmem:[#allocation11 + $0x230] sm:$0xff]
    %v2900 = vld [vmem:[#allocation11 + $0x238] sm:$0xff]
    %v2901 = vld [vmem:[#allocation11 + $0x240] sm:$0xff]
    %v2902 = vld [vmem:[#allocation11 + $0x248] sm:$0xff]
    %v2903 = vld [vmem:[#allocation11 + $0x250] sm:$0xff]
    %v2904 = vld [vmem:[#allocation11 + $0x258] sm:$0xff]
    %v2905 = vld [vmem:[#allocation11 + $0x260] sm:$0xff]
    %v2906 = vld [vmem:[#allocation11 + $0x268] sm:$0xff]
    %v2907 = vld [vmem:[#allocation11 + $0x270] sm:$0xff]
    %v2908 = vld [vmem:[#allocation11 + $0x278] sm:$0xff]
    %v2909 = vld [vmem:[#allocation11 + $0x280] sm:$0xff]
    %v2910 = vld [vmem:[#allocation11 + $0x288] sm:$0xff]
    %v2911 = vld [vmem:[#allocation11 + $0x290] sm:$0xff]
    %v2912 = vld [vmem:[#allocation11 + $0x298] sm:$0xff]
    %v2913 = vld [vmem:[#allocation11 + $0x2a0] sm:$0xff]
    %v2914 = vld [vmem:[#allocation11 + $0x2a8] sm:$0xff]
    %v2915 = vld [vmem:[#allocation11 + $0x2b0] sm:$0xff]
    %v2916 = vld [vmem:[#allocation11 + $0x2b8] sm:$0xff]
    %v2917 = vld [vmem:[#allocation11 + $0x2c0] sm:$0xff]
    %v2918 = vld [vmem:[#allocation11 + $0x2c8] sm:$0xff]
    %v2919 = vld [vmem:[#allocation11 + $0x2d0] sm:$0xff]
    %v2920 = vld [vmem:[#allocation11 + $0x2d8] sm:$0xff]
    %v2921 = vld [vmem:[#allocation11 + $0x2e0] sm:$0xff]
    %v2922 = vld [vmem:[#allocation11 + $0x2e8] sm:$0xff]
    %v2923 = vld [vmem:[#allocation11 + $0x2f0] sm:$0xff]
    %v2924 = vld [vmem:[#allocation11 + $0x2f8] sm:$0xff]
    %v2925 = vld [vmem:[#allocation11 + $0x300] sm:$0xff]
    %v2926 = vld [vmem:[#allocation11 + $0x308] sm:$0xff]
    %v2927 = vld [vmem:[#allocation11 + $0x310] sm:$0xff]
    %v2928 = vld [vmem:[#allocation11 + $0x318] sm:$0xff]
    %v2929 = vld [vmem:[#allocation11 + $0x320] sm:$0xff]
    %v2930 = vld [vmem:[#allocation11 + $0x328] sm:$0xff]
    %v2931 = vld [vmem:[#allocation11 + $0x330] sm:$0xff]
    %v2932 = vld [vmem:[#allocation11 + $0x338] sm:$0xff]
    %v2933 = vld [vmem:[#allocation11 + $0x340] sm:$0xff]
    %v2934 = vld [vmem:[#allocation11 + $0x348] sm:$0xff]
    %v2935 = vld [vmem:[#allocation11 + $0x350] sm:$0xff]
    %v2936 = vld [vmem:[#allocation11 + $0x358] sm:$0xff]
    %v2937 = vld [vmem:[#allocation11 + $0x360] sm:$0xff]
    %v2938 = vld [vmem:[#allocation11 + $0x368] sm:$0xff]
    %v2939 = vld [vmem:[#allocation11 + $0x370] sm:$0xff]
    %v2940 = vld [vmem:[#allocation11 + $0x378] sm:$0xff]
    %v2941 = vld [vmem:[#allocation11 + $0x380] sm:$0xff]
    %v2942 = vld [vmem:[#allocation11 + $0x388] sm:$0xff]
    %v2943 = vld [vmem:[#allocation11 + $0x390] sm:$0xff]
    %v2944 = vld [vmem:[#allocation11 + $0x398] sm:$0xff]
    %v2945 = vld [vmem:[#allocation11 + $0x3a0] sm:$0xff]
    %v2946 = vld [vmem:[#allocation11 + $0x3a8] sm:$0xff]
    %v2947 = vld [vmem:[#allocation11 + $0x3b0] sm:$0xff]
    %v2948 = vld [vmem:[#allocation11 + $0x3b8] sm:$0xff]
    %v2949 = vld [vmem:[#allocation11 + $0x3c0] sm:$0xff]
    %v2950 = vld [vmem:[#allocation11 + $0x3c8] sm:$0xff]
    %v2951 = vld [vmem:[#allocation11 + $0x3d0] sm:$0xff]
    %v2952 = vld [vmem:[#allocation11 + $0x3d8] sm:$0xff]
    %v2953 = vld [vmem:[#allocation11 + $0x3e0] sm:$0xff]
    %v2954 = vld [vmem:[#allocation11 + $0x3e8] sm:$0xff]
    %v2955 = vld [vmem:[#allocation11 + $0x3f0] sm:$0xff]
    %v2956 = vld [vmem:[#allocation11 + $0x3f8] sm:$0xff]
    %v2957 = vld [vmem:[#allocation11 + $0x400] sm:$0xff]
    %v2958 = vld [vmem:[#allocation11 + $0x408] sm:$0xff]
    %v2959 = vld [vmem:[#allocation11 + $0x410] sm:$0xff]
    %v2960 = vld [vmem:[#allocation11 + $0x418] sm:$0xff]
    %v2961 = vld [vmem:[#allocation11 + $0x420] sm:$0xff]
    %v2962 = vld [vmem:[#allocation11 + $0x428] sm:$0xff]
    %v2963 = vld [vmem:[#allocation11 + $0x430] sm:$0xff]
    %v2964 = vld [vmem:[#allocation11 + $0x438] sm:$0xff]
    %v2965 = vld [vmem:[#allocation11 + $0x440] sm:$0xff]
    %v2966 = vld [vmem:[#allocation11 + $0x448] sm:$0xff]
    %v2967 = vld [vmem:[#allocation11 + $0x450] sm:$0xff]
    %v2968 = vld [vmem:[#allocation11 + $0x458] sm:$0xff]
    %v2969 = vld [vmem:[#allocation11 + $0x460] sm:$0xff]
    %v2970 = vld [vmem:[#allocation11 + $0x468] sm:$0xff]
    %v2971 = vld [vmem:[#allocation11 + $0x470] sm:$0xff]
    %v2972 = vld [vmem:[#allocation11 + $0x478] sm:$0xff]
    %v2973 = vld [vmem:[#allocation11 + $0x480] sm:$0xff]
    %v2974 = vld [vmem:[#allocation11 + $0x488] sm:$0xff]
    %v2975 = vld [vmem:[#allocation11 + $0x490] sm:$0xff]
    %v2976 = vld [vmem:[#allocation11 + $0x498] sm:$0xff]
    %v2977 = vld [vmem:[#allocation11 + $0x4a0] sm:$0xff]
    %v2978 = vld [vmem:[#allocation11 + $0x4a8] sm:$0xff]
    %v2979 = vld [vmem:[#allocation11 + $0x4b0] sm:$0xff]
    %v2980 = vld [vmem:[#allocation11 + $0x4b8] sm:$0xff]
    %v2981 = vld [vmem:[#allocation11 + $0x4c0] sm:$0xff]
    %v2982 = vld [vmem:[#allocation11 + $0x4c8] sm:$0xff]
    %v2983 = vld [vmem:[#allocation11 + $0x4d0] sm:$0xff]
    %v2984 = vld [vmem:[#allocation11 + $0x4d8] sm:$0xff]
    %v2985 = vld [vmem:[#allocation11 + $0x4e0] sm:$0xff]
    %v2986 = vld [vmem:[#allocation11 + $0x4e8] sm:$0xff]
    %v2987 = vld [vmem:[#allocation11 + $0x4f0] sm:$0xff]
    %v2988 = vld [vmem:[#allocation11 + $0x4f8] sm:$0xff]
    %v2989 = vld [vmem:[#allocation11 + $0x500] sm:$0xff]
    %v2990 = vld [vmem:[#allocation11 + $0x508] sm:$0xff]
    %v2991 = vld [vmem:[#allocation11 + $0x510] sm:$0xff]
    %v2992 = vld [vmem:[#allocation11 + $0x518] sm:$0xff]
    %v2993 = vld [vmem:[#allocation11 + $0x520] sm:$0xff]
    %v2994 = vld [vmem:[#allocation11 + $0x528] sm:$0xff]
    %v2995 = vld [vmem:[#allocation11 + $0x530] sm:$0xff]
    %v2996 = vld [vmem:[#allocation11 + $0x538] sm:$0xff]
    %v2997 = vld [vmem:[#allocation11 + $0x540] sm:$0xff]
    %v2998 = vld [vmem:[#allocation11 + $0x548] sm:$0xff]
    %v2999 = vld [vmem:[#allocation11 + $0x550] sm:$0xff]
    %v3000 = vld [vmem:[#allocation11 + $0x558] sm:$0xff]
    %v3001 = vld [vmem:[#allocation11 + $0x560] sm:$0xff]
    %v3002 = vld [vmem:[#allocation11 + $0x568] sm:$0xff]
    %v3003 = vld [vmem:[#allocation11 + $0x570] sm:$0xff]
    %v3004 = vld [vmem:[#allocation11 + $0x578] sm:$0xff]
    %v3005 = vld [vmem:[#allocation11 + $0x580] sm:$0xff]
    %v3006 = vld [vmem:[#allocation11 + $0x588] sm:$0xff]
    %v3007 = vld [vmem:[#allocation11 + $0x590] sm:$0xff]
    %v3008 = vld [vmem:[#allocation11 + $0x598] sm:$0xff]
    %v3009 = vld [vmem:[#allocation11 + $0x5a0] sm:$0xff]
    %v3010 = vld [vmem:[#allocation11 + $0x5a8] sm:$0xff]
    %v3011 = vld [vmem:[#allocation11 + $0x5b0] sm:$0xff]
    %v3012 = vld [vmem:[#allocation11 + $0x5b8] sm:$0xff]
    %v3013 = vld [vmem:[#allocation11 + $0x5c0] sm:$0xff]
    %v3014 = vld [vmem:[#allocation11 + $0x5c8] sm:$0xff]
    %v3015 = vld [vmem:[#allocation11 + $0x5d0] sm:$0xff]
    %v3016 = vld [vmem:[#allocation11 + $0x5d8] sm:$0xff]
    %v3017 = vld [vmem:[#allocation11 + $0x5e0] sm:$0xff]
    %v3018 = vld [vmem:[#allocation11 + $0x5e8] sm:$0xff]
    %v3019 = vld [vmem:[#allocation11 + $0x5f0] sm:$0xff]
    %v3020 = vld [vmem:[#allocation11 + $0x5f8] sm:$0xff]
    %v3021 = vld [vmem:[#allocation11 + $0x600] sm:$0xff]
    %v3022 = vld [vmem:[#allocation11 + $0x608] sm:$0xff]
    %v3023 = vld [vmem:[#allocation11 + $0x610] sm:$0xff]
    %v3024 = vld [vmem:[#allocation11 + $0x618] sm:$0xff]
    %v3025 = vld [vmem:[#allocation11 + $0x620] sm:$0xff]
    %v3026 = vld [vmem:[#allocation11 + $0x628] sm:$0xff]
    %v3027 = vld [vmem:[#allocation11 + $0x630] sm:$0xff]
    %v3028 = vld [vmem:[#allocation11 + $0x638] sm:$0xff]
    %v3029 = vld [vmem:[#allocation11 + $0x640] sm:$0xff]
    %v3030 = vld [vmem:[#allocation11 + $0x648] sm:$0xff]
    %v3031 = vld [vmem:[#allocation11 + $0x650] sm:$0xff]
    %v3032 = vld [vmem:[#allocation11 + $0x658] sm:$0xff]
    %v3033 = vld [vmem:[#allocation11 + $0x660] sm:$0xff]
    %v3034 = vld [vmem:[#allocation11 + $0x668] sm:$0xff]
    %v3035 = vld [vmem:[#allocation11 + $0x670] sm:$0xff]
    %v3036 = vld [vmem:[#allocation11 + $0x678] sm:$0xff]
    %v3037 = vld [vmem:[#allocation11 + $0x680] sm:$0xff]
    %v3038 = vld [vmem:[#allocation11 + $0x688] sm:$0xff]
    %v3039 = vld [vmem:[#allocation11 + $0x690] sm:$0xff]
    %v3040 = vld [vmem:[#allocation11 + $0x698] sm:$0xff]
    %v3041 = vld [vmem:[#allocation11 + $0x6a0] sm:$0xff]
    %v3042 = vld [vmem:[#allocation11 + $0x6a8] sm:$0xff]
    %v3043 = vld [vmem:[#allocation11 + $0x6b0] sm:$0xff]
    %v3044 = vld [vmem:[#allocation11 + $0x6b8] sm:$0xff]
    %v3045 = vld [vmem:[#allocation11 + $0x6c0] sm:$0xff]
    %v3046 = vld [vmem:[#allocation11 + $0x6c8] sm:$0xff]
    %v3047 = vld [vmem:[#allocation11 + $0x6d0] sm:$0xff]
    %v3048 = vld [vmem:[#allocation11 + $0x6d8] sm:$0xff]
    %v3049 = vld [vmem:[#allocation11 + $0x6e0] sm:$0xff]
    %v3050 = vld [vmem:[#allocation11 + $0x6e8] sm:$0xff]
    %v3051 = vld [vmem:[#allocation11 + $0x6f0] sm:$0xff]
    %v3052 = vld [vmem:[#allocation11 + $0x6f8] sm:$0xff]
    %v3053 = vld [vmem:[#allocation11 + $0x700] sm:$0xff]
    %v3054 = vld [vmem:[#allocation11 + $0x708] sm:$0xff]
    %v3055 = vld [vmem:[#allocation11 + $0x710] sm:$0xff]
    %v3056 = vld [vmem:[#allocation11 + $0x718] sm:$0xff]
    %v3057 = vld [vmem:[#allocation11 + $0x720] sm:$0xff]
    %v3058 = vld [vmem:[#allocation11 + $0x728] sm:$0xff]
    %v3059 = vld [vmem:[#allocation11 + $0x730] sm:$0xff]
    %v3060 = vld [vmem:[#allocation11 + $0x738] sm:$0xff]
    %v3061 = vld [vmem:[#allocation11 + $0x740] sm:$0xff]
    %v3062 = vld [vmem:[#allocation11 + $0x748] sm:$0xff]
    %v3063 = vld [vmem:[#allocation11 + $0x750] sm:$0xff]
    %v3064 = vld [vmem:[#allocation11 + $0x758] sm:$0xff]
    %v3065 = vld [vmem:[#allocation11 + $0x760] sm:$0xff]
    %v3066 = vld [vmem:[#allocation11 + $0x768] sm:$0xff]
    %v3067 = vld [vmem:[#allocation11 + $0x770] sm:$0xff]
    %v3068 = vld [vmem:[#allocation11 + $0x778] sm:$0xff]
    %v3069 = vld [vmem:[#allocation11 + $0x780] sm:$0xff]
    %v3070 = vld [vmem:[#allocation11 + $0x788] sm:$0xff]
    %v3071 = vld [vmem:[#allocation11 + $0x790] sm:$0xff]
    %v3072 = vld [vmem:[#allocation11 + $0x798] sm:$0xff]
    %v3073 = vld [vmem:[#allocation11 + $0x7a0] sm:$0xff]
    %v3074 = vld [vmem:[#allocation11 + $0x7a8] sm:$0xff]
    %v3075 = vld [vmem:[#allocation11 + $0x7b0] sm:$0xff]
    %v3076 = vld [vmem:[#allocation11 + $0x7b8] sm:$0xff]
    %v3077 = vld [vmem:[#allocation11 + $0x7c0] sm:$0xff]
    %v3078 = vld [vmem:[#allocation11 + $0x7c8] sm:$0xff]
    %v3079 = vld [vmem:[#allocation11 + $0x7d0] sm:$0xff]
    %v3080 = vld [vmem:[#allocation11 + $0x7d8] sm:$0xff]
    %v3081 = vld [vmem:[#allocation11 + $0x7e0] sm:$0xff]
    %v3082 = vld [vmem:[#allocation11 + $0x7e8] sm:$0xff]
    %v3083 = vld [vmem:[#allocation11 + $0x7f0] sm:$0xff]
    %v3084 = vld [vmem:[#allocation11 + $0x7f8] sm:$0xff]
    %v3085 = vld [vmem:[#allocation11 + $0x800] sm:$0xff]
    %v3086 = vld [vmem:[#allocation11 + $0x808] sm:$0xff]
    %v3087 = vld [vmem:[#allocation11 + $0x810] sm:$0xff]
    %v3088 = vld [vmem:[#allocation11 + $0x818] sm:$0xff]
    %v3089 = vld [vmem:[#allocation11 + $0x820] sm:$0xff]
    %v3090 = vld [vmem:[#allocation11 + $0x828] sm:$0xff]
    %v3091 = vld [vmem:[#allocation11 + $0x830] sm:$0xff]
    %v3092 = vld [vmem:[#allocation11 + $0x838] sm:$0xff]
    %v3093 = vld [vmem:[#allocation11 + $0x840] sm:$0xff]
    %v3094 = vld [vmem:[#allocation11 + $0x848] sm:$0xff]
    %v3095 = vld [vmem:[#allocation11 + $0x850] sm:$0xff]
    %v3096 = vld [vmem:[#allocation11 + $0x858] sm:$0xff]
    %v3097 = vld [vmem:[#allocation11 + $0x860] sm:$0xff]
    %v3098 = vld [vmem:[#allocation11 + $0x868] sm:$0xff]
    %v3099 = vld [vmem:[#allocation11 + $0x870] sm:$0xff]
    %v3100 = vld [vmem:[#allocation11 + $0x878] sm:$0xff]
    %v3101 = vld [vmem:[#allocation11 + $0x880] sm:$0xff]
    %v3102 = vld [vmem:[#allocation11 + $0x888] sm:$0xff]
    %v3103 = vld [vmem:[#allocation11 + $0x890] sm:$0xff]
    %v3104 = vld [vmem:[#allocation11 + $0x898] sm:$0xff]
    %v3105 = vld [vmem:[#allocation11 + $0x8a0] sm:$0xff]
    %v3106 = vld [vmem:[#allocation11 + $0x8a8] sm:$0xff]
    %v3107 = vld [vmem:[#allocation11 + $0x8b0] sm:$0xff]
    %v3108 = vld [vmem:[#allocation11 + $0x8b8] sm:$0xff]
    %v3109 = vld [vmem:[#allocation11 + $0x8c0] sm:$0xff]
    %v3110 = vld [vmem:[#allocation11 + $0x8c8] sm:$0xff]
    %v3111 = vld [vmem:[#allocation11 + $0x8d0] sm:$0xff]
    %v3112 = vld [vmem:[#allocation11 + $0x8d8] sm:$0xff]
    %v3113 = vld [vmem:[#allocation11 + $0x8e0] sm:$0xff]
    %v3114 = vld [vmem:[#allocation11 + $0x8e8] sm:$0xff]
    %v3115 = vld [vmem:[#allocation11 + $0x8f0] sm:$0xff]
    %v3116 = vld [vmem:[#allocation11 + $0x8f8] sm:$0xff]
    %v3117 = vld [vmem:[#allocation11 + $0x900] sm:$0xff]
    %v3118 = vld [vmem:[#allocation11 + $0x908] sm:$0xff]
    %v3119 = vld [vmem:[#allocation11 + $0x910] sm:$0xff]
    %v3120 = vld [vmem:[#allocation11 + $0x918] sm:$0xff]
    %v3121 = vld [vmem:[#allocation11 + $0x920] sm:$0xff]
    %v3122 = vld [vmem:[#allocation11 + $0x928] sm:$0xff]
    %v3123 = vld [vmem:[#allocation11 + $0x930] sm:$0xff]
    %v3124 = vld [vmem:[#allocation11 + $0x938] sm:$0xff]
    %v3125 = vld [vmem:[#allocation11 + $0x940] sm:$0xff]
    %v3126 = vld [vmem:[#allocation11 + $0x948] sm:$0xff]
    %v3127 = vld [vmem:[#allocation11 + $0x950] sm:$0xff]
    %v3128 = vld [vmem:[#allocation11 + $0x958] sm:$0xff]
    %v3129 = vld [vmem:[#allocation11 + $0x960] sm:$0xff]
    %v3130 = vld [vmem:[#allocation11 + $0x968] sm:$0xff]
    %v3131 = vld [vmem:[#allocation11 + $0x970] sm:$0xff]
    %v3132 = vld [vmem:[#allocation11 + $0x978] sm:$0xff]
    %v3133 = vld [vmem:[#allocation11 + $0x980] sm:$0xff]
    %v3134 = vld [vmem:[#allocation11 + $0x988] sm:$0xff]
    %v3135 = vld [vmem:[#allocation11 + $0x990] sm:$0xff]
    %v3136 = vld [vmem:[#allocation11 + $0x998] sm:$0xff]
    %v3137 = vld [vmem:[#allocation11 + $0x9a0] sm:$0xff]
    %v3138 = vld [vmem:[#allocation11 + $0x9a8] sm:$0xff]
    %v3139 = vld [vmem:[#allocation11 + $0x9b0] sm:$0xff]
    %v3140 = vld [vmem:[#allocation11 + $0x9b8] sm:$0xff]
    %v3141 = vld [vmem:[#allocation11 + $0x9c0] sm:$0xff]
    %v3142 = vld [vmem:[#allocation11 + $0x9c8] sm:$0xff]
    %v3143 = vld [vmem:[#allocation11 + $0x9d0] sm:$0xff]
    %v3144 = vld [vmem:[#allocation11 + $0x9d8] sm:$0xff]
    %v3145 = vld [vmem:[#allocation11 + $0x9e0] sm:$0xff]
    %v3146 = vld [vmem:[#allocation11 + $0x9e8] sm:$0xff]
    %v3147 = vld [vmem:[#allocation11 + $0x9f0] sm:$0xff]
    %v3148 = vld [vmem:[#allocation11 + $0x9f8] sm:$0xff]
    %v3149 = vld [vmem:[#allocation11 + $0xa00] sm:$0xff]
    %v3150 = vld [vmem:[#allocation11 + $0xa08] sm:$0xff]
    %v3151 = vld [vmem:[#allocation11 + $0xa10] sm:$0xff]
    %v3152 = vld [vmem:[#allocation11 + $0xa18] sm:$0xff]
    %v3153 = vld [vmem:[#allocation11 + $0xa20] sm:$0xff]
    %v3154 = vld [vmem:[#allocation11 + $0xa28] sm:$0xff]
    %v3155 = vld [vmem:[#allocation11 + $0xa30] sm:$0xff]
    %v3156 = vld [vmem:[#allocation11 + $0xa38] sm:$0xff]
    %v3157 = vld [vmem:[#allocation11 + $0xa40] sm:$0xff]
    %v3158 = vld [vmem:[#allocation11 + $0xa48] sm:$0xff]
    %v3159 = vld [vmem:[#allocation11 + $0xa50] sm:$0xff]
    %v3160 = vld [vmem:[#allocation11 + $0xa58] sm:$0xff]
    %v3161 = vld [vmem:[#allocation11 + $0xa60] sm:$0xff]
    %v3162 = vld [vmem:[#allocation11 + $0xa68] sm:$0xff]
    %v3163 = vld [vmem:[#allocation11 + $0xa70] sm:$0xff]
    %v3164 = vld [vmem:[#allocation11 + $0xa78] sm:$0xff]
    %v3165 = vld [vmem:[#allocation11 + $0xa80] sm:$0xff]
    %v3166 = vld [vmem:[#allocation11 + $0xa88] sm:$0xff]
    %v3167 = vld [vmem:[#allocation11 + $0xa90] sm:$0xff]
    %v3168 = vld [vmem:[#allocation11 + $0xa98] sm:$0xff]
    %v3169 = vld [vmem:[#allocation11 + $0xaa0] sm:$0xff]
    %v3170 = vld [vmem:[#allocation11 + $0xaa8] sm:$0xff]
    %v3171 = vld [vmem:[#allocation11 + $0xab0] sm:$0xff]
    %v3172 = vld [vmem:[#allocation11 + $0xab8] sm:$0xff]
    %v3173 = vld [vmem:[#allocation11 + $0xac0] sm:$0xff]
    %v3174 = vld [vmem:[#allocation11 + $0xac8] sm:$0xff]
    %v3175 = vld [vmem:[#allocation11 + $0xad0] sm:$0xff]
    %v3176 = vld [vmem:[#allocation11 + $0xad8] sm:$0xff]
    %v3177 = vld [vmem:[#allocation11 + $0xae0] sm:$0xff]
    %v3178 = vld [vmem:[#allocation11 + $0xae8] sm:$0xff]
    %v3179 = vld [vmem:[#allocation11 + $0xaf0] sm:$0xff]
    %v3180 = vld [vmem:[#allocation11 + $0xaf8] sm:$0xff]
    %v3181 = vld [vmem:[#allocation11 + $0xb00] sm:$0xff]
    %v3182 = vld [vmem:[#allocation11 + $0xb08] sm:$0xff]
    %v3183 = vld [vmem:[#allocation11 + $0xb10] sm:$0xff]
    %v3184 = vld [vmem:[#allocation11 + $0xb18] sm:$0xff]
    %v3185 = vld [vmem:[#allocation11 + $0xb20] sm:$0xff]
    %v3186 = vld [vmem:[#allocation11 + $0xb28] sm:$0xff]
    %v3187 = vld [vmem:[#allocation11 + $0xb30] sm:$0xff]
    %v3188 = vld [vmem:[#allocation11 + $0xb38] sm:$0xff]
    %v3189 = vld [vmem:[#allocation11 + $0xb40] sm:$0xff]
    %v3190 = vld [vmem:[#allocation11 + $0xb48] sm:$0xff]
    %v3191 = vld [vmem:[#allocation11 + $0xb50] sm:$0xff]
    %v3192 = vld [vmem:[#allocation11 + $0xb58] sm:$0xff]
    %v3193 = vld [vmem:[#allocation11 + $0xb60] sm:$0xff]
    %v3194 = vld [vmem:[#allocation11 + $0xb68] sm:$0xff]
    %v3195 = vld [vmem:[#allocation11 + $0xb70] sm:$0xff]
    %v3196 = vld [vmem:[#allocation11 + $0xb78] sm:$0xff]
    %v3197 = vld [vmem:[#allocation11 + $0xb80] sm:$0xff]
    %v3198 = vld [vmem:[#allocation11 + $0xb88] sm:$0xff]
    %v3199 = vld [vmem:[#allocation11 + $0xb90] sm:$0xff]
    %v3200 = vld [vmem:[#allocation11 + $0xb98] sm:$0xff]
    %v3201 = vld [vmem:[#allocation11 + $0xba0] sm:$0xff]
    %v3202 = vld [vmem:[#allocation11 + $0xba8] sm:$0xff]
    %v3203 = vld [vmem:[#allocation11 + $0xbb0] sm:$0xff]
    %v3204 = vld [vmem:[#allocation11 + $0xbb8] sm:$0xff]
    %v3205 = vld [vmem:[#allocation11 + $0xbc0] sm:$0xff]
    %v3206 = vld [vmem:[#allocation11 + $0xbc8] sm:$0xff]
    %v3207 = vld [vmem:[#allocation11 + $0xbd0] sm:$0xff]
    %v3208 = vld [vmem:[#allocation11 + $0xbd8] sm:$0xff]
    %v3209 = vld [vmem:[#allocation11 + $0xbe0] sm:$0xff]
    %v3210 = vld [vmem:[#allocation11 + $0xbe8] sm:$0xff]
    %v3211 = vld [vmem:[#allocation11 + $0xbf0] sm:$0xff]
    %v3212 = vld [vmem:[#allocation11 + $0xbf8] sm:$0xff]
    %v3213 = vld [vmem:[#allocation11 + $0xc00] sm:$0xff]
    %v3214 = vld [vmem:[#allocation11 + $0xc08] sm:$0xff]
    %v3215 = vld [vmem:[#allocation11 + $0xc10] sm:$0xff]
    %v3216 = vld [vmem:[#allocation11 + $0xc18] sm:$0xff]
    %v3217 = vld [vmem:[#allocation11 + $0xc20] sm:$0xff]
    %v3218 = vld [vmem:[#allocation11 + $0xc28] sm:$0xff]
    %v3219 = vld [vmem:[#allocation11 + $0xc30] sm:$0xff]
    %v3220 = vld [vmem:[#allocation11 + $0xc38] sm:$0xff]
    %v3221 = vld [vmem:[#allocation11 + $0xc40] sm:$0xff]
    %v3222 = vld [vmem:[#allocation11 + $0xc48] sm:$0xff]
    %v3223 = vld [vmem:[#allocation11 + $0xc50] sm:$0xff]
    %v3224 = vld [vmem:[#allocation11 + $0xc58] sm:$0xff]
    %v3225 = vld [vmem:[#allocation11 + $0xc60] sm:$0xff]
    %v3226 = vld [vmem:[#allocation11 + $0xc68] sm:$0xff]
    %v3227 = vld [vmem:[#allocation11 + $0xc70] sm:$0xff]
    %v3228 = vld [vmem:[#allocation11 + $0xc78] sm:$0xff]
    %v3229 = vld [vmem:[#allocation11 + $0xc80] sm:$0xff]
    %v3230 = vld [vmem:[#allocation11 + $0xc88] sm:$0xff]
    %v3231 = vld [vmem:[#allocation11 + $0xc90] sm:$0xff]
    %v3232 = vld [vmem:[#allocation11 + $0xc98] sm:$0xff]
    %v3233 = vld [vmem:[#allocation11 + $0xca0] sm:$0xff]
    %v3234 = vld [vmem:[#allocation11 + $0xca8] sm:$0xff]
    %v3235 = vld [vmem:[#allocation11 + $0xcb0] sm:$0xff]
    %v3236 = vld [vmem:[#allocation11 + $0xcb8] sm:$0xff]
    %v3237 = vld [vmem:[#allocation11 + $0xcc0] sm:$0xff]
    %v3238 = vld [vmem:[#allocation11 + $0xcc8] sm:$0xff]
    %v3239 = vld [vmem:[#allocation11 + $0xcd0] sm:$0xff]
    %v3240 = vld [vmem:[#allocation11 + $0xcd8] sm:$0xff]
    %v3241 = vld [vmem:[#allocation11 + $0xce0] sm:$0xff]
    %v3242 = vld [vmem:[#allocation11 + $0xce8] sm:$0xff]
    %v3243 = vld [vmem:[#allocation11 + $0xcf0] sm:$0xff]
    %v3244 = vld [vmem:[#allocation11 + $0xcf8] sm:$0xff]
    %v3245 = vld [vmem:[#allocation11 + $0xd00] sm:$0xff]
    %v3246 = vld [vmem:[#allocation11 + $0xd08] sm:$0xff]
    %v3247 = vld [vmem:[#allocation11 + $0xd10] sm:$0xff]
    %v3248 = vld [vmem:[#allocation11 + $0xd18] sm:$0xff]
    %v3249 = vld [vmem:[#allocation11 + $0xd20] sm:$0xff]
    %v3250 = vld [vmem:[#allocation11 + $0xd28] sm:$0xff]
    %v3251 = vld [vmem:[#allocation11 + $0xd30] sm:$0xff]
    %v3252 = vld [vmem:[#allocation11 + $0xd38] sm:$0xff]
    %v3253 = vld [vmem:[#allocation11 + $0xd40] sm:$0xff]
    %v3254 = vld [vmem:[#allocation11 + $0xd48] sm:$0xff]
    %v3255 = vld [vmem:[#allocation11 + $0xd50] sm:$0xff]
    %v3256 = vld [vmem:[#allocation11 + $0xd58] sm:$0xff]
    %v3257 = vld [vmem:[#allocation11 + $0xd60] sm:$0xff]
    %v3258 = vld [vmem:[#allocation11 + $0xd68] sm:$0xff]
    %v3259 = vld [vmem:[#allocation11 + $0xd70] sm:$0xff]
    %v3260 = vld [vmem:[#allocation11 + $0xd78] sm:$0xff]
    %v3261 = vld [vmem:[#allocation11 + $0xd80] sm:$0xff]
    %v3262 = vld [vmem:[#allocation11 + $0xd88] sm:$0xff]
    %v3263 = vld [vmem:[#allocation11 + $0xd90] sm:$0xff]
    %v3264 = vld [vmem:[#allocation11 + $0xd98] sm:$0xff]
    %v3265 = vld [vmem:[#allocation11 + $0xda0] sm:$0xff]
    %v3266 = vld [vmem:[#allocation11 + $0xda8] sm:$0xff]
    %v3267 = vld [vmem:[#allocation11 + $0xdb0] sm:$0xff]
    %v3268 = vld [vmem:[#allocation11 + $0xdb8] sm:$0xff]
    %v3269 = vld [vmem:[#allocation11 + $0xdc0] sm:$0xff]
    %v3270 = vld [vmem:[#allocation11 + $0xdc8] sm:$0xff]
    %v3271 = vld [vmem:[#allocation11 + $0xdd0] sm:$0xff]
    %v3272 = vld [vmem:[#allocation11 + $0xdd8] sm:$0xff]
    %v3273 = vld [vmem:[#allocation11 + $0xde0] sm:$0xff]
    %v3274 = vld [vmem:[#allocation11 + $0xde8] sm:$0xff]
    %v3275 = vld [vmem:[#allocation11 + $0xdf0] sm:$0xff]
    %v3276 = vld [vmem:[#allocation11 + $0xdf8] sm:$0xff]
    %v3277 = vld [vmem:[#allocation11 + $0xe00] sm:$0xff]
    %v3278 = vld [vmem:[#allocation11 + $0xe08] sm:$0xff]
    %v3279 = vld [vmem:[#allocation11 + $0xe10] sm:$0xff]
    %v3280 = vld [vmem:[#allocation11 + $0xe18] sm:$0xff]
    %v3281 = vld [vmem:[#allocation11 + $0xe20] sm:$0xff]
    %v3282 = vld [vmem:[#allocation11 + $0xe28] sm:$0xff]
    %v3283 = vld [vmem:[#allocation11 + $0xe30] sm:$0xff]
    %v3284 = vld [vmem:[#allocation11 + $0xe38] sm:$0xff]
    %v3285 = vld [vmem:[#allocation11 + $0xe40] sm:$0xff]
    %v3286 = vld [vmem:[#allocation11 + $0xe48] sm:$0xff]
    %v3287 = vld [vmem:[#allocation11 + $0xe50] sm:$0xff]
    %v3288 = vld [vmem:[#allocation11 + $0xe58] sm:$0xff]
    %v3289 = vld [vmem:[#allocation11 + $0xe60] sm:$0xff]
    %v3290 = vld [vmem:[#allocation11 + $0xe68] sm:$0xff]
    %v3291 = vld [vmem:[#allocation11 + $0xe70] sm:$0xff]
    %v3292 = vld [vmem:[#allocation11 + $0xe78] sm:$0xff]
    %v3293 = vld [vmem:[#allocation11 + $0xe80] sm:$0xff]
    %v3294 = vld [vmem:[#allocation11 + $0xe88] sm:$0xff]
    %v3295 = vld [vmem:[#allocation11 + $0xe90] sm:$0xff]
    %v3296 = vld [vmem:[#allocation11 + $0xe98] sm:$0xff]
    %v3297 = vld [vmem:[#allocation11 + $0xea0] sm:$0xff]
    %v3298 = vld [vmem:[#allocation11 + $0xea8] sm:$0xff]
    %v3299 = vld [vmem:[#allocation11 + $0xeb0] sm:$0xff]
    %v3300 = vld [vmem:[#allocation11 + $0xeb8] sm:$0xff]
    %v3301 = vld [vmem:[#allocation11 + $0xec0] sm:$0xff]
    %v3302 = vld [vmem:[#allocation11 + $0xec8] sm:$0xff]
    %v3303 = vld [vmem:[#allocation11 + $0xed0] sm:$0xff]
    %v3304 = vld [vmem:[#allocation11 + $0xed8] sm:$0xff]
    %v3305 = vld [vmem:[#allocation11 + $0xee0] sm:$0xff]
    %v3306 = vld [vmem:[#allocation11 + $0xee8] sm:$0xff]
    %v3307 = vld [vmem:[#allocation11 + $0xef0] sm:$0xff]
    %v3308 = vld [vmem:[#allocation11 + $0xef8] sm:$0xff]
    %v3309 = vld [vmem:[#allocation11 + $0xf00] sm:$0xff]
    %v3310 = vld [vmem:[#allocation11 + $0xf08] sm:$0xff]
    %v3311 = vld [vmem:[#allocation11 + $0xf10] sm:$0xff]
    %v3312 = vld [vmem:[#allocation11 + $0xf18] sm:$0xff]
    %v3313 = vld [vmem:[#allocation11 + $0xf20] sm:$0xff]
    %v3314 = vld [vmem:[#allocation11 + $0xf28] sm:$0xff]
    %v3315 = vld [vmem:[#allocation11 + $0xf30] sm:$0xff]
    %v3316 = vld [vmem:[#allocation11 + $0xf38] sm:$0xff]
    %v3317 = vld [vmem:[#allocation11 + $0xf40] sm:$0xff]
    %v3318 = vld [vmem:[#allocation11 + $0xf48] sm:$0xff]
    %v3319 = vld [vmem:[#allocation11 + $0xf50] sm:$0xff]
    %v3320 = vld [vmem:[#allocation11 + $0xf58] sm:$0xff]
    %v3321 = vld [vmem:[#allocation11 + $0xf60] sm:$0xff]
    %v3322 = vld [vmem:[#allocation11 + $0xf68] sm:$0xff]
    %v3323 = vld [vmem:[#allocation11 + $0xf70] sm:$0xff]
    %v3324 = vld [vmem:[#allocation11 + $0xf78] sm:$0xff]
    %v3325 = vld [vmem:[#allocation11 + $0xf80] sm:$0xff]
    %v3326 = vld [vmem:[#allocation11 + $0xf88] sm:$0xff]
    %v3327 = vld [vmem:[#allocation11 + $0xf90] sm:$0xff]
    %v3328 = vld [vmem:[#allocation11 + $0xf98] sm:$0xff]
    %v3329 = vld [vmem:[#allocation11 + $0xfa0] sm:$0xff]
    %v3330 = vld [vmem:[#allocation11 + $0xfa8] sm:$0xff]
    %v3331 = vld [vmem:[#allocation11 + $0xfb0] sm:$0xff]
    %v3332 = vld [vmem:[#allocation11 + $0xfb8] sm:$0xff]
    %v3333 = vld [vmem:[#allocation11 + $0xfc0] sm:$0xff]
    %v3334 = vld [vmem:[#allocation11 + $0xfc8] sm:$0xff]
    %v3335 = vld [vmem:[#allocation11 + $0xfd0] sm:$0xff]
    %v3336 = vld [vmem:[#allocation11 + $0xfd8] sm:$0xff]
    %v3337 = vld [vmem:[#allocation11 + $0xfe0] sm:$0xff]
    %v3338 = vld [vmem:[#allocation11 + $0xfe8] sm:$0xff]
    %v3339 = vld [vmem:[#allocation11 + $0xff0] sm:$0xff]
    %v3340 = vld [vmem:[#allocation11 + $0xff8] sm:$0xff]
    %v3341 = vld [vmem:[#allocation13] sm:$0xff]
    %v3343 = vperm.slane %v3341, 0
    %v3344 = vperm.slane %v3341, 1
    %v3345 = vperm.slane %v3341, 2
    %v3346 = vperm.slane %v3341, 3
    %v3347 = vperm.slane %v3341, 4
    %v3348 = vperm.slane %v3341, 5
    %v3349 = vperm.slane %v3341, 6
    %v3350 = vperm.slane %v3341, 7
    %3359 = vmatpush.msra.mxu0 %v2949
    %3360 = vmatpush.msra.mxu0 %v2941
    %3361 = vmatpush.msra.mxu0 %v2933
    %3362 = vmatpush.msra.mxu0 %v2925
    %3363 = vmatpush.msra.mxu0 %v2917
    %3364 = vmatpush.msra.mxu0 %v2909
    %3365 = vmatpush.msra.mxu0 %v2901
    %3366 = vmatpush.msra.mxu0 %v2893
    %3367 = vmatpush.msra.mxu0 %v2885
    %3368 = vmatpush.msra.mxu0 %v2877
    %3369 = vmatpush.msra.mxu0 %v2869
    %3370 = vmatpush.msra.mxu0 %v2861
    %3371 = vmatpush.msra.mxu0 %v2853
    %3372 = vmatpush.msra.mxu0 %v2845
    %3373 = vmatpush.msra.mxu0 %v2837
    %3374 = vmatpush.msra.mxu0 %v2829
    %3375 = vmatmul.f32.gmra.mxu0 %v2825
    %v3376 = vpop.f32.mrf.mxu0
    %v3377 = vadd.f32 %v3343, %v3376
    %3378 = vdwg.mxu0
    %3379 = vmatpush.msra.mxu0 %v3077
    %3380 = vmatpush.msra.mxu0 %v3069
    %3381 = vmatpush.msra.mxu0 %v3061
    %3382 = vmatpush.msra.mxu0 %v3053
    %3383 = vmatpush.msra.mxu0 %v3045
    %3384 = vmatpush.msra.mxu0 %v3037
    %3385 = vmatpush.msra.mxu0 %v3029
    %3386 = vmatpush.msra.mxu0 %v3021
    %3387 = vmatpush.msra.mxu0 %v3013
    %3388 = vmatpush.msra.mxu0 %v3005
    %3389 = vmatpush.msra.mxu0 %v2997
    %3390 = vmatpush.msra.mxu0 %v2989
    %3391 = vmatpush.msra.mxu0 %v2981
    %3392 = vmatpush.msra.mxu0 %v2973
    %3393 = vmatpush.msra.mxu0 %v2965
    %3394 = vmatpush.msra.mxu0 %v2957
    %3395 = vmatmul.f32.gmra.mxu0 %v2826
    %v3396 = vpop.f32.mrf.mxu0
    %v3397 = vadd.f32 %v3377, %v3396
    %3398 = vdwg.mxu0
    %3399 = vmatpush.msra.mxu0 %v3205
    %3400 = vmatpush.msra.mxu0 %v3197
    %3401 = vmatpush.msra.mxu0 %v3189
    %3402 = vmatpush.msra.mxu0 %v3181
    %3403 = vmatpush.msra.mxu0 %v3173
    %3404 = vmatpush.msra.mxu0 %v3165
    %3405 = vmatpush.msra.mxu0 %v3157
    %3406 = vmatpush.msra.mxu0 %v3149
    %3407 = vmatpush.msra.mxu0 %v3141
    %3408 = vmatpush.msra.mxu0 %v3133
    %3409 = vmatpush.msra.mxu0 %v3125
    %3410 = vmatpush.msra.mxu0 %v3117
    %3411 = vmatpush.msra.mxu0 %v3109
    %3412 = vmatpush.msra.mxu0 %v3101
    %3413 = vmatpush.msra.mxu0 %v3093
    %3414 = vmatpush.msra.mxu0 %v3085
    %3415 = vmatmul.f32.gmra.mxu0 %v2827
    %v3416 = vpop.f32.mrf.mxu0
    %v3417 = vadd.f32 %v3397, %v3416
    %3418 = vdwg.mxu0
    %3419 = vmatpush.msra.mxu0 %v3333
    %3420 = vmatpush.msra.mxu0 %v3325
    %3421 = vmatpush.msra.mxu0 %v3317
    %3422 = vmatpush.msra.mxu0 %v3309
    %3423 = vmatpush.msra.mxu0 %v3301
    %3424 = vmatpush.msra.mxu0 %v3293
    %3425 = vmatpush.msra.mxu0 %v3285
    %3426 = vmatpush.msra.mxu0 %v3277
    %3427 = vmatpush.msra.mxu0 %v3269
    %3428 = vmatpush.msra.mxu0 %v3261
    %3429 = vmatpush.msra.mxu0 %v3253
    %3430 = vmatpush.msra.mxu0 %v3245
    %3431 = vmatpush.msra.mxu0 %v3237
    %3432 = vmatpush.msra.mxu0 %v3229
    %3433 = vmatpush.msra.mxu0 %v3221
    %3434 = vmatpush.msra.mxu0 %v3213
    %3435 = vmatmul.f32.gmra.mxu0 %v2828
    %v3436 = vpop.f32.mrf.mxu0
    %v3437 = vadd.f32 %v3417, %v3436
    %3438 = vdwg.mxu0
    %3439 = vmatpush.msra.mxu0 %v2950
    %3440 = vmatpush.msra.mxu0 %v2942
    %3441 = vmatpush.msra.mxu0 %v2934
    %3442 = vmatpush.msra.mxu0 %v2926
    %3443 = vmatpush.msra.mxu0 %v2918
    %3444 = vmatpush.msra.mxu0 %v2910
    %3445 = vmatpush.msra.mxu0 %v2902
    %3446 = vmatpush.msra.mxu0 %v2894
    %3447 = vmatpush.msra.mxu0 %v2886
    %3448 = vmatpush.msra.mxu0 %v2878
    %3449 = vmatpush.msra.mxu0 %v2870
    %3450 = vmatpush.msra.mxu0 %v2862
    %3451 = vmatpush.msra.mxu0 %v2854
    %3452 = vmatpush.msra.mxu0 %v2846
    %3453 = vmatpush.msra.mxu0 %v2838
    %3454 = vmatpush.msra.mxu0 %v2830
    %3455 = vmatmul.f32.gmra.mxu0 %v2825
    %v3456 = vpop.f32.mrf.mxu0
    %v3457 = vadd.f32 %v3344, %v3456
    %3458 = vdwg.mxu0
    %3459 = vmatpush.msra.mxu0 %v3078
    %3460 = vmatpush.msra.mxu0 %v3070
    %3461 = vmatpush.msra.mxu0 %v3062
    %3462 = vmatpush.msra.mxu0 %v3054
    %3463 = vmatpush.msra.mxu0 %v3046
    %3464 = vmatpush.msra.mxu0 %v3038
    %3465 = vmatpush.msra.mxu0 %v3030
    %3466 = vmatpush.msra.mxu0 %v3022
    %3467 = vmatpush.msra.mxu0 %v3014
    %3468 = vmatpush.msra.mxu0 %v3006
    %3469 = vmatpush.msra.mxu0 %v2998
    %3470 = vmatpush.msra.mxu0 %v2990
    %3471 = vmatpush.msra.mxu0 %v2982
    %3472 = vmatpush.msra.mxu0 %v2974
    %3473 = vmatpush.msra.mxu0 %v2966
    %3474 = vmatpush.msra.mxu0 %v2958
    %3475 = vmatmul.f32.gmra.mxu0 %v2826
    %v3476 = vpop.f32.mrf.mxu0
    %v3477 = vadd.f32 %v3457, %v3476
    %3478 = vdwg.mxu0
    %3479 = vmatpush.msra.mxu0 %v3206
    %3480 = vmatpush.msra.mxu0 %v3198
    %3481 = vmatpush.msra.mxu0 %v3190
    %3482 = vmatpush.msra.mxu0 %v3182
    %3483 = vmatpush.msra.mxu0 %v3174
    %3484 = vmatpush.msra.mxu0 %v3166
    %3485 = vmatpush.msra.mxu0 %v3158
    %3486 = vmatpush.msra.mxu0 %v3150
    %3487 = vmatpush.msra.mxu0 %v3142
    %3488 = vmatpush.msra.mxu0 %v3134
    %3489 = vmatpush.msra.mxu0 %v3126
    %3490 = vmatpush.msra.mxu0 %v3118
    %3491 = vmatpush.msra.mxu0 %v3110
    %3492 = vmatpush.msra.mxu0 %v3102
    %3493 = vmatpush.msra.mxu0 %v3094
    %3494 = vmatpush.msra.mxu0 %v3086
    %3495 = vmatmul.f32.gmra.mxu0 %v2827
    %v3496 = vpop.f32.mrf.mxu0
    %v3497 = vadd.f32 %v3477, %v3496
    %3498 = vdwg.mxu0
    %3499 = vmatpush.msra.mxu0 %v3334
    %3500 = vmatpush.msra.mxu0 %v3326
    %3501 = vmatpush.msra.mxu0 %v3318
    %3502 = vmatpush.msra.mxu0 %v3310
    %3503 = vmatpush.msra.mxu0 %v3302
    %3504 = vmatpush.msra.mxu0 %v3294
    %3505 = vmatpush.msra.mxu0 %v3286
    %3506 = vmatpush.msra.mxu0 %v3278
    %3507 = vmatpush.msra.mxu0 %v3270
    %3508 = vmatpush.msra.mxu0 %v3262
    %3509 = vmatpush.msra.mxu0 %v3254
    %3510 = vmatpush.msra.mxu0 %v3246
    %3511 = vmatpush.msra.mxu0 %v3238
    %3512 = vmatpush.msra.mxu0 %v3230
    %3513 = vmatpush.msra.mxu0 %v3222
    %3514 = vmatpush.msra.mxu0 %v3214
    %3515 = vmatmul.f32.gmra.mxu0 %v2828
    %v3516 = vpop.f32.mrf.mxu0
    %v3517 = vadd.f32 %v3497, %v3516
    %3518 = vdwg.mxu0
    %3519 = vmatpush.msra.mxu0 %v2951
    %3520 = vmatpush.msra.mxu0 %v2943
    %3521 = vmatpush.msra.mxu0 %v2935
    %3522 = vmatpush.msra.mxu0 %v2927
    %3523 = vmatpush.msra.mxu0 %v2919
    %3524 = vmatpush.msra.mxu0 %v2911
    %3525 = vmatpush.msra.mxu0 %v2903
    %3526 = vmatpush.msra.mxu0 %v2895
    %3527 = vmatpush.msra.mxu0 %v2887
    %3528 = vmatpush.msra.mxu0 %v2879
    %3529 = vmatpush.msra.mxu0 %v2871
    %3530 = vmatpush.msra.mxu0 %v2863
    %3531 = vmatpush.msra.mxu0 %v2855
    %3532 = vmatpush.msra.mxu0 %v2847
    %3533 = vmatpush.msra.mxu0 %v2839
    %3534 = vmatpush.msra.mxu0 %v2831
    %3535 = vmatmul.f32.gmra.mxu0 %v2825
    %v3536 = vpop.f32.mrf.mxu0
    %v3537 = vadd.f32 %v3345, %v3536
    %3538 = vdwg.mxu0
    %3539 = vmatpush.msra.mxu0 %v3079
    %3540 = vmatpush.msra.mxu0 %v3071
    %3541 = vmatpush.msra.mxu0 %v3063
    %3542 = vmatpush.msra.mxu0 %v3055
    %3543 = vmatpush.msra.mxu0 %v3047
    %3544 = vmatpush.msra.mxu0 %v3039
    %3545 = vmatpush.msra.mxu0 %v3031
    %3546 = vmatpush.msra.mxu0 %v3023
    %3547 = vmatpush.msra.mxu0 %v3015
    %3548 = vmatpush.msra.mxu0 %v3007
    %3549 = vmatpush.msra.mxu0 %v2999
    %3550 = vmatpush.msra.mxu0 %v2991
    %3551 = vmatpush.msra.mxu0 %v2983
    %3552 = vmatpush.msra.mxu0 %v2975
    %3553 = vmatpush.msra.mxu0 %v2967
    %3554 = vmatpush.msra.mxu0 %v2959
    %3555 = vmatmul.f32.gmra.mxu0 %v2826
    %v3556 = vpop.f32.mrf.mxu0
    %v3557 = vadd.f32 %v3537, %v3556
    %3558 = vdwg.mxu0
    %3559 = vmatpush.msra.mxu0 %v3207
    %3560 = vmatpush.msra.mxu0 %v3199
    %3561 = vmatpush.msra.mxu0 %v3191
    %3562 = vmatpush.msra.mxu0 %v3183
    %3563 = vmatpush.msra.mxu0 %v3175
    %3564 = vmatpush.msra.mxu0 %v3167
    %3565 = vmatpush.msra.mxu0 %v3159
    %3566 = vmatpush.msra.mxu0 %v3151
    %3567 = vmatpush.msra.mxu0 %v3143
    %3568 = vmatpush.msra.mxu0 %v3135
    %3569 = vmatpush.msra.mxu0 %v3127
    %3570 = vmatpush.msra.mxu0 %v3119
    %3571 = vmatpush.msra.mxu0 %v3111
    %3572 = vmatpush.msra.mxu0 %v3103
    %3573 = vmatpush.msra.mxu0 %v3095
    %3574 = vmatpush.msra.mxu0 %v3087
    %3575 = vmatmul.f32.gmra.mxu0 %v2827
    %v3576 = vpop.f32.mrf.mxu0
    %v3577 = vadd.f32 %v3557, %v3576
    %3578 = vdwg.mxu0
    %3579 = vmatpush.msra.mxu0 %v3335
    %3580 = vmatpush.msra.mxu0 %v3327
    %3581 = vmatpush.msra.mxu0 %v3319
    %3582 = vmatpush.msra.mxu0 %v3311
    %3583 = vmatpush.msra.mxu0 %v3303
    %3584 = vmatpush.msra.mxu0 %v3295
    %3585 = vmatpush.msra.mxu0 %v3287
    %3586 = vmatpush.msra.mxu0 %v3279
    %3587 = vmatpush.msra.mxu0 %v3271
    %3588 = vmatpush.msra.mxu0 %v3263
    %3589 = vmatpush.msra.mxu0 %v3255
    %3590 = vmatpush.msra.mxu0 %v3247
    %3591 = vmatpush.msra.mxu0 %v3239
    %3592 = vmatpush.msra.mxu0 %v3231
    %3593 = vmatpush.msra.mxu0 %v3223
    %3594 = vmatpush.msra.mxu0 %v3215
    %3595 = vmatmul.f32.gmra.mxu0 %v2828
    %v3596 = vpop.f32.mrf.mxu0
    %v3597 = vadd.f32 %v3577, %v3596
    %3598 = vdwg.mxu0
    %3599 = vmatpush.msra.mxu0 %v2952
    %3600 = vmatpush.msra.mxu0 %v2944
    %3601 = vmatpush.msra.mxu0 %v2936
    %3602 = vmatpush.msra.mxu0 %v2928
    %3603 = vmatpush.msra.mxu0 %v2920
    %3604 = vmatpush.msra.mxu0 %v2912
    %3605 = vmatpush.msra.mxu0 %v2904
    %3606 = vmatpush.msra.mxu0 %v2896
    %3607 = vmatpush.msra.mxu0 %v2888
    %3608 = vmatpush.msra.mxu0 %v2880
    %3609 = vmatpush.msra.mxu0 %v2872
    %3610 = vmatpush.msra.mxu0 %v2864
    %3611 = vmatpush.msra.mxu0 %v2856
    %3612 = vmatpush.msra.mxu0 %v2848
    %3613 = vmatpush.msra.mxu0 %v2840
    %3614 = vmatpush.msra.mxu0 %v2832
    %3615 = vmatmul.f32.gmra.mxu0 %v2825
    %v3616 = vpop.f32.mrf.mxu0
    %v3617 = vadd.f32 %v3346, %v3616
    %3618 = vdwg.mxu0
    %3619 = vmatpush.msra.mxu0 %v3080
    %3620 = vmatpush.msra.mxu0 %v3072
    %3621 = vmatpush.msra.mxu0 %v3064
    %3622 = vmatpush.msra.mxu0 %v3056
    %3623 = vmatpush.msra.mxu0 %v3048
    %3624 = vmatpush.msra.mxu0 %v3040
    %3625 = vmatpush.msra.mxu0 %v3032
    %3626 = vmatpush.msra.mxu0 %v3024
    %3627 = vmatpush.msra.mxu0 %v3016
    %3628 = vmatpush.msra.mxu0 %v3008
    %3629 = vmatpush.msra.mxu0 %v3000
    %3630 = vmatpush.msra.mxu0 %v2992
    %3631 = vmatpush.msra.mxu0 %v2984
    %3632 = vmatpush.msra.mxu0 %v2976
    %3633 = vmatpush.msra.mxu0 %v2968
    %3634 = vmatpush.msra.mxu0 %v2960
    %3635 = vmatmul.f32.gmra.mxu0 %v2826
    %v3636 = vpop.f32.mrf.mxu0
    %v3637 = vadd.f32 %v3617, %v3636
    %3638 = vdwg.mxu0
    %3639 = vmatpush.msra.mxu0 %v3208
    %3640 = vmatpush.msra.mxu0 %v3200
    %3641 = vmatpush.msra.mxu0 %v3192
    %3642 = vmatpush.msra.mxu0 %v3184
    %3643 = vmatpush.msra.mxu0 %v3176
    %3644 = vmatpush.msra.mxu0 %v3168
    %3645 = vmatpush.msra.mxu0 %v3160
    %3646 = vmatpush.msra.mxu0 %v3152
    %3647 = vmatpush.msra.mxu0 %v3144
    %3648 = vmatpush.msra.mxu0 %v3136
    %3649 = vmatpush.msra.mxu0 %v3128
    %3650 = vmatpush.msra.mxu0 %v3120
    %3651 = vmatpush.msra.mxu0 %v3112
    %3652 = vmatpush.msra.mxu0 %v3104
    %3653 = vmatpush.msra.mxu0 %v3096
    %3654 = vmatpush.msra.mxu0 %v3088
    %3655 = vmatmul.f32.gmra.mxu0 %v2827
    %v3656 = vpop.f32.mrf.mxu0
    %v3657 = vadd.f32 %v3637, %v3656
    %3658 = vdwg.mxu0
    %3659 = vmatpush.msra.mxu0 %v3336
    %3660 = vmatpush.msra.mxu0 %v3328
    %3661 = vmatpush.msra.mxu0 %v3320
    %3662 = vmatpush.msra.mxu0 %v3312
    %3663 = vmatpush.msra.mxu0 %v3304
    %3664 = vmatpush.msra.mxu0 %v3296
    %3665 = vmatpush.msra.mxu0 %v3288
    %3666 = vmatpush.msra.mxu0 %v3280
    %3667 = vmatpush.msra.mxu0 %v3272
    %3668 = vmatpush.msra.mxu0 %v3264
    %3669 = vmatpush.msra.mxu0 %v3256
    %3670 = vmatpush.msra.mxu0 %v3248
    %3671 = vmatpush.msra.mxu0 %v3240
    %3672 = vmatpush.msra.mxu0 %v3232
    %3673 = vmatpush.msra.mxu0 %v3224
    %3674 = vmatpush.msra.mxu0 %v3216
    %3675 = vmatmul.f32.gmra.mxu0 %v2828
    %v3676 = vpop.f32.mrf.mxu0
    %v3677 = vadd.f32 %v3657, %v3676
    %3678 = vdwg.mxu0
    %3679 = vmatpush.msra.mxu0 %v2953
    %3680 = vmatpush.msra.mxu0 %v2945
    %3681 = vmatpush.msra.mxu0 %v2937
    %3682 = vmatpush.msra.mxu0 %v2929
    %3683 = vmatpush.msra.mxu0 %v2921
    %3684 = vmatpush.msra.mxu0 %v2913
    %3685 = vmatpush.msra.mxu0 %v2905
    %3686 = vmatpush.msra.mxu0 %v2897
    %3687 = vmatpush.msra.mxu0 %v2889
    %3688 = vmatpush.msra.mxu0 %v2881
    %3689 = vmatpush.msra.mxu0 %v2873
    %3690 = vmatpush.msra.mxu0 %v2865
    %3691 = vmatpush.msra.mxu0 %v2857
    %3692 = vmatpush.msra.mxu0 %v2849
    %3693 = vmatpush.msra.mxu0 %v2841
    %3694 = vmatpush.msra.mxu0 %v2833
    %3695 = vmatmul.f32.gmra.mxu0 %v2825
    %v3696 = vpop.f32.mrf.mxu0
    %v3697 = vadd.f32 %v3347, %v3696
    %3698 = vdwg.mxu0
    %3699 = vmatpush.msra.mxu0 %v3081
    %3700 = vmatpush.msra.mxu0 %v3073
    %3701 = vmatpush.msra.mxu0 %v3065
    %3702 = vmatpush.msra.mxu0 %v3057
    %3703 = vmatpush.msra.mxu0 %v3049
    %3704 = vmatpush.msra.mxu0 %v3041
    %3705 = vmatpush.msra.mxu0 %v3033
    %3706 = vmatpush.msra.mxu0 %v3025
    %3707 = vmatpush.msra.mxu0 %v3017
    %3708 = vmatpush.msra.mxu0 %v3009
    %3709 = vmatpush.msra.mxu0 %v3001
    %3710 = vmatpush.msra.mxu0 %v2993
    %3711 = vmatpush.msra.mxu0 %v2985
    %3712 = vmatpush.msra.mxu0 %v2977
    %3713 = vmatpush.msra.mxu0 %v2969
    %3714 = vmatpush.msra.mxu0 %v2961
    %3715 = vmatmul.f32.gmra.mxu0 %v2826
    %v3716 = vpop.f32.mrf.mxu0
    %v3717 = vadd.f32 %v3697, %v3716
    %3718 = vdwg.mxu0
    %3719 = vmatpush.msra.mxu0 %v3209
    %3720 = vmatpush.msra.mxu0 %v3201
    %3721 = vmatpush.msra.mxu0 %v3193
    %3722 = vmatpush.msra.mxu0 %v3185
    %3723 = vmatpush.msra.mxu0 %v3177
    %3724 = vmatpush.msra.mxu0 %v3169
    %3725 = vmatpush.msra.mxu0 %v3161
    %3726 = vmatpush.msra.mxu0 %v3153
    %3727 = vmatpush.msra.mxu0 %v3145
    %3728 = vmatpush.msra.mxu0 %v3137
    %3729 = vmatpush.msra.mxu0 %v3129
    %3730 = vmatpush.msra.mxu0 %v3121
    %3731 = vmatpush.msra.mxu0 %v3113
    %3732 = vmatpush.msra.mxu0 %v3105
    %3733 = vmatpush.msra.mxu0 %v3097
    %3734 = vmatpush.msra.mxu0 %v3089
    %3735 = vmatmul.f32.gmra.mxu0 %v2827
    %v3736 = vpop.f32.mrf.mxu0
    %v3737 = vadd.f32 %v3717, %v3736
    %3738 = vdwg.mxu0
    %3739 = vmatpush.msra.mxu0 %v3337
    %3740 = vmatpush.msra.mxu0 %v3329
    %3741 = vmatpush.msra.mxu0 %v3321
    %3742 = vmatpush.msra.mxu0 %v3313
    %3743 = vmatpush.msra.mxu0 %v3305
    %3744 = vmatpush.msra.mxu0 %v3297
    %3745 = vmatpush.msra.mxu0 %v3289
    %3746 = vmatpush.msra.mxu0 %v3281
    %3747 = vmatpush.msra.mxu0 %v3273
    %3748 = vmatpush.msra.mxu0 %v3265
    %3749 = vmatpush.msra.mxu0 %v3257
    %3750 = vmatpush.msra.mxu0 %v3249
    %3751 = vmatpush.msra.mxu0 %v3241
    %3752 = vmatpush.msra.mxu0 %v3233
    %3753 = vmatpush.msra.mxu0 %v3225
    %3754 = vmatpush.msra.mxu0 %v3217
    %3755 = vmatmul.f32.gmra.mxu0 %v2828
    %v3756 = vpop.f32.mrf.mxu0
    %v3757 = vadd.f32 %v3737, %v3756
    %3758 = vdwg.mxu0
    %3759 = vmatpush.msra.mxu0 %v2954
    %3760 = vmatpush.msra.mxu0 %v2946
    %3761 = vmatpush.msra.mxu0 %v2938
    %3762 = vmatpush.msra.mxu0 %v2930
    %3763 = vmatpush.msra.mxu0 %v2922
    %3764 = vmatpush.msra.mxu0 %v2914
    %3765 = vmatpush.msra.mxu0 %v2906
    %3766 = vmatpush.msra.mxu0 %v2898
    %3767 = vmatpush.msra.mxu0 %v2890
    %3768 = vmatpush.msra.mxu0 %v2882
    %3769 = vmatpush.msra.mxu0 %v2874
    %3770 = vmatpush.msra.mxu0 %v2866
    %3771 = vmatpush.msra.mxu0 %v2858
    %3772 = vmatpush.msra.mxu0 %v2850
    %3773 = vmatpush.msra.mxu0 %v2842
    %3774 = vmatpush.msra.mxu0 %v2834
    %3775 = vmatmul.f32.gmra.mxu0 %v2825
    %v3776 = vpop.f32.mrf.mxu0
    %v3777 = vadd.f32 %v3348, %v3776
    %3778 = vdwg.mxu0
    %3779 = vmatpush.msra.mxu0 %v3082
    %3780 = vmatpush.msra.mxu0 %v3074
    %3781 = vmatpush.msra.mxu0 %v3066
    %3782 = vmatpush.msra.mxu0 %v3058
    %3783 = vmatpush.msra.mxu0 %v3050
    %3784 = vmatpush.msra.mxu0 %v3042
    %3785 = vmatpush.msra.mxu0 %v3034
    %3786 = vmatpush.msra.mxu0 %v3026
    %3787 = vmatpush.msra.mxu0 %v3018
    %3788 = vmatpush.msra.mxu0 %v3010
    %3789 = vmatpush.msra.mxu0 %v3002
    %3790 = vmatpush.msra.mxu0 %v2994
    %3791 = vmatpush.msra.mxu0 %v2986
    %3792 = vmatpush.msra.mxu0 %v2978
    %3793 = vmatpush.msra.mxu0 %v2970
    %3794 = vmatpush.msra.mxu0 %v2962
    %3795 = vmatmul.f32.gmra.mxu0 %v2826
    %v3796 = vpop.f32.mrf.mxu0
    %v3797 = vadd.f32 %v3777, %v3796
    %3798 = vdwg.mxu0
    %3799 = vmatpush.msra.mxu0 %v3210
    %3800 = vmatpush.msra.mxu0 %v3202
    %3801 = vmatpush.msra.mxu0 %v3194
    %3802 = vmatpush.msra.mxu0 %v3186
    %3803 = vmatpush.msra.mxu0 %v3178
    %3804 = vmatpush.msra.mxu0 %v3170
    %3805 = vmatpush.msra.mxu0 %v3162
    %3806 = vmatpush.msra.mxu0 %v3154
    %3807 = vmatpush.msra.mxu0 %v3146
    %3808 = vmatpush.msra.mxu0 %v3138
    %3809 = vmatpush.msra.mxu0 %v3130
    %3810 = vmatpush.msra.mxu0 %v3122
    %3811 = vmatpush.msra.mxu0 %v3114
    %3812 = vmatpush.msra.mxu0 %v3106
    %3813 = vmatpush.msra.mxu0 %v3098
    %3814 = vmatpush.msra.mxu0 %v3090
    %3815 = vmatmul.f32.gmra.mxu0 %v2827
    %v3816 = vpop.f32.mrf.mxu0
    %v3817 = vadd.f32 %v3797, %v3816
    %3818 = vdwg.mxu0
    %3819 = vmatpush.msra.mxu0 %v3338
    %3820 = vmatpush.msra.mxu0 %v3330
    %3821 = vmatpush.msra.mxu0 %v3322
    %3822 = vmatpush.msra.mxu0 %v3314
    %3823 = vmatpush.msra.mxu0 %v3306
    %3824 = vmatpush.msra.mxu0 %v3298
    %3825 = vmatpush.msra.mxu0 %v3290
    %3826 = vmatpush.msra.mxu0 %v3282
    %3827 = vmatpush.msra.mxu0 %v3274
    %3828 = vmatpush.msra.mxu0 %v3266
    %3829 = vmatpush.msra.mxu0 %v3258
    %3830 = vmatpush.msra.mxu0 %v3250
    %3831 = vmatpush.msra.mxu0 %v3242
    %3832 = vmatpush.msra.mxu0 %v3234
    %3833 = vmatpush.msra.mxu0 %v3226
    %3834 = vmatpush.msra.mxu0 %v3218
    %3835 = vmatmul.f32.gmra.mxu0 %v2828
    %v3836 = vpop.f32.mrf.mxu0
    %v3837 = vadd.f32 %v3817, %v3836
    %3838 = vdwg.mxu0
    %3839 = vmatpush.msra.mxu0 %v2955
    %3840 = vmatpush.msra.mxu0 %v2947
    %3841 = vmatpush.msra.mxu0 %v2939
    %3842 = vmatpush.msra.mxu0 %v2931
    %3843 = vmatpush.msra.mxu0 %v2923
    %3844 = vmatpush.msra.mxu0 %v2915
    %3845 = vmatpush.msra.mxu0 %v2907
    %3846 = vmatpush.msra.mxu0 %v2899
    %3847 = vmatpush.msra.mxu0 %v2891
    %3848 = vmatpush.msra.mxu0 %v2883
    %3849 = vmatpush.msra.mxu0 %v2875
    %3850 = vmatpush.msra.mxu0 %v2867
    %3851 = vmatpush.msra.mxu0 %v2859
    %3852 = vmatpush.msra.mxu0 %v2851
    %3853 = vmatpush.msra.mxu0 %v2843
    %3854 = vmatpush.msra.mxu0 %v2835
    %3855 = vmatmul.f32.gmra.mxu0 %v2825
    %v3856 = vpop.f32.mrf.mxu0
    %v3857 = vadd.f32 %v3349, %v3856
    %3858 = vdwg.mxu0
    %3859 = vmatpush.msra.mxu0 %v3083
    %3860 = vmatpush.msra.mxu0 %v3075
    %3861 = vmatpush.msra.mxu0 %v3067
    %3862 = vmatpush.msra.mxu0 %v3059
    %3863 = vmatpush.msra.mxu0 %v3051
    %3864 = vmatpush.msra.mxu0 %v3043
    %3865 = vmatpush.msra.mxu0 %v3035
    %3866 = vmatpush.msra.mxu0 %v3027
    %3867 = vmatpush.msra.mxu0 %v3019
    %3868 = vmatpush.msra.mxu0 %v3011
    %3869 = vmatpush.msra.mxu0 %v3003
    %3870 = vmatpush.msra.mxu0 %v2995
    %3871 = vmatpush.msra.mxu0 %v2987
    %3872 = vmatpush.msra.mxu0 %v2979
    %3873 = vmatpush.msra.mxu0 %v2971
    %3874 = vmatpush.msra.mxu0 %v2963
    %3875 = vmatmul.f32.gmra.mxu0 %v2826
    %v3876 = vpop.f32.mrf.mxu0
    %v3877 = vadd.f32 %v3857, %v3876
    %3878 = vdwg.mxu0
    %3879 = vmatpush.msra.mxu0 %v3211
    %3880 = vmatpush.msra.mxu0 %v3203
    %3881 = vmatpush.msra.mxu0 %v3195
    %3882 = vmatpush.msra.mxu0 %v3187
    %3883 = vmatpush.msra.mxu0 %v3179
    %3884 = vmatpush.msra.mxu0 %v3171
    %3885 = vmatpush.msra.mxu0 %v3163
    %3886 = vmatpush.msra.mxu0 %v3155
    %3887 = vmatpush.msra.mxu0 %v3147
    %3888 = vmatpush.msra.mxu0 %v3139
    %3889 = vmatpush.msra.mxu0 %v3131
    %3890 = vmatpush.msra.mxu0 %v3123
    %3891 = vmatpush.msra.mxu0 %v3115
    %3892 = vmatpush.msra.mxu0 %v3107
    %3893 = vmatpush.msra.mxu0 %v3099
    %3894 = vmatpush.msra.mxu0 %v3091
    %3895 = vmatmul.f32.gmra.mxu0 %v2827
    %v3896 = vpop.f32.mrf.mxu0
    %v3897 = vadd.f32 %v3877, %v3896
    %3898 = vdwg.mxu0
    %3899 = vmatpush.msra.mxu0 %v3339
    %3900 = vmatpush.msra.mxu0 %v3331
    %3901 = vmatpush.msra.mxu0 %v3323
    %3902 = vmatpush.msra.mxu0 %v3315
    %3903 = vmatpush.msra.mxu0 %v3307
    %3904 = vmatpush.msra.mxu0 %v3299
    %3905 = vmatpush.msra.mxu0 %v3291
    %3906 = vmatpush.msra.mxu0 %v3283
    %3907 = vmatpush.msra.mxu0 %v3275
    %3908 = vmatpush.msra.mxu0 %v3267
    %3909 = vmatpush.msra.mxu0 %v3259
    %3910 = vmatpush.msra.mxu0 %v3251
    %3911 = vmatpush.msra.mxu0 %v3243
    %3912 = vmatpush.msra.mxu0 %v3235
    %3913 = vmatpush.msra.mxu0 %v3227
    %3914 = vmatpush.msra.mxu0 %v3219
    %3915 = vmatmul.f32.gmra.mxu0 %v2828
    %v3916 = vpop.f32.mrf.mxu0
    %v3917 = vadd.f32 %v3897, %v3916
    %3918 = vdwg.mxu0
    %3919 = vmatpush.msra.mxu0 %v2956
    %3920 = vmatpush.msra.mxu0 %v2948
    %3921 = vmatpush.msra.mxu0 %v2940
    %3922 = vmatpush.msra.mxu0 %v2932
    %3923 = vmatpush.msra.mxu0 %v2924
    %3924 = vmatpush.msra.mxu0 %v2916
    %3925 = vmatpush.msra.mxu0 %v2908
    %3926 = vmatpush.msra.mxu0 %v2900
    %3927 = vmatpush.msra.mxu0 %v2892
    %3928 = vmatpush.msra.mxu0 %v2884
    %3929 = vmatpush.msra.mxu0 %v2876
    %3930 = vmatpush.msra.mxu0 %v2868
    %3931 = vmatpush.msra.mxu0 %v2860
    %3932 = vmatpush.msra.mxu0 %v2852
    %3933 = vmatpush.msra.mxu0 %v2844
    %3934 = vmatpush.msra.mxu0 %v2836
    %3935 = vmatmul.f32.gmra.mxu0 %v2825
    %v3936 = vpop.f32.mrf.mxu0
    %v3937 = vadd.f32 %v3350, %v3936
    %3938 = vdwg.mxu0
    %3939 = vmatpush.msra.mxu0 %v3084
    %3940 = vmatpush.msra.mxu0 %v3076
    %3941 = vmatpush.msra.mxu0 %v3068
    %3942 = vmatpush.msra.mxu0 %v3060
    %3943 = vmatpush.msra.mxu0 %v3052
    %3944 = vmatpush.msra.mxu0 %v3044
    %3945 = vmatpush.msra.mxu0 %v3036
    %3946 = vmatpush.msra.mxu0 %v3028
    %3947 = vmatpush.msra.mxu0 %v3020
    %3948 = vmatpush.msra.mxu0 %v3012
    %3949 = vmatpush.msra.mxu0 %v3004
    %3950 = vmatpush.msra.mxu0 %v2996
    %3951 = vmatpush.msra.mxu0 %v2988
    %3952 = vmatpush.msra.mxu0 %v2980
    %3953 = vmatpush.msra.mxu0 %v2972
    %3954 = vmatpush.msra.mxu0 %v2964
    %3955 = vmatmul.f32.gmra.mxu0 %v2826
    %v3956 = vpop.f32.mrf.mxu0
    %v3957 = vadd.f32 %v3937, %v3956
    %3958 = vdwg.mxu0
    %3959 = vmatpush.msra.mxu0 %v3212
    %3960 = vmatpush.msra.mxu0 %v3204
    %3961 = vmatpush.msra.mxu0 %v3196
    %3962 = vmatpush.msra.mxu0 %v3188
    %3963 = vmatpush.msra.mxu0 %v3180
    %3964 = vmatpush.msra.mxu0 %v3172
    %3965 = vmatpush.msra.mxu0 %v3164
    %3966 = vmatpush.msra.mxu0 %v3156
    %3967 = vmatpush.msra.mxu0 %v3148
    %3968 = vmatpush.msra.mxu0 %v3140
    %3969 = vmatpush.msra.mxu0 %v3132
    %3970 = vmatpush.msra.mxu0 %v3124
    %3971 = vmatpush.msra.mxu0 %v3116
    %3972 = vmatpush.msra.mxu0 %v3108
    %3973 = vmatpush.msra.mxu0 %v3100
    %3974 = vmatpush.msra.mxu0 %v3092
    %3975 = vmatmul.f32.gmra.mxu0 %v2827
    %v3976 = vpop.f32.mrf.mxu0
    %v3977 = vadd.f32 %v3957, %v3976
    %3978 = vdwg.mxu0
    %3979 = vmatpush.msra.mxu0 %v3340
    %3980 = vmatpush.msra.mxu0 %v3332
    %3981 = vmatpush.msra.mxu0 %v3324
    %3982 = vmatpush.msra.mxu0 %v3316
    %3983 = vmatpush.msra.mxu0 %v3308
    %3984 = vmatpush.msra.mxu0 %v3300
    %3985 = vmatpush.msra.mxu0 %v3292
    %3986 = vmatpush.msra.mxu0 %v3284
    %3987 = vmatpush.msra.mxu0 %v3276
    %3988 = vmatpush.msra.mxu0 %v3268
    %3989 = vmatpush.msra.mxu0 %v3260
    %3990 = vmatpush.msra.mxu0 %v3252
    %3991 = vmatpush.msra.mxu0 %v3244
    %3992 = vmatpush.msra.mxu0 %v3236
    %3993 = vmatpush.msra.mxu0 %v3228
    %3994 = vmatpush.msra.mxu0 %v3220
    %3995 = vmatmul.f32.gmra.mxu0 %v2828
    %v3996 = vpop.f32.mrf.mxu0
    %v3997 = vadd.f32 %v3977, %v3996
    %3998 = vdwg.mxu0
    %v3999 = vmax.f32 %v3437, 0.0
    %v4000 = vmax.f32 %v3517, 0.0
    %v4001 = vmax.f32 %v3597, 0.0
    %v4002 = vmax.f32 %v3677, 0.0
    %v4003 = vmax.f32 %v3757, 0.0
    %v4004 = vmax.f32 %v3837, 0.0
    %v4005 = vmax.f32 %v3917, 0.0
    %v4006 = vmax.f32 %v3997, 0.0
    %v4007 = vld [vmem:[#allocation14] sm:$0xff]
    %v4008 = vld [vmem:[#allocation14 + $0x8] sm:$0xff]
    %v4009 = vld [vmem:[#allocation14 + $0x10] sm:$0xff]
    %v4010 = vld [vmem:[#allocation14 + $0x18] sm:$0xff]
    %v4011 = vld [vmem:[#allocation14 + $0x20] sm:$0xff]
    %v4012 = vld [vmem:[#allocation14 + $0x28] sm:$0xff]
    %v4013 = vld [vmem:[#allocation14 + $0x30] sm:$0xff]
    %v4014 = vld [vmem:[#allocation14 + $0x38] sm:$0xff]
    %v4015 = vld [vmem:[#allocation14 + $0x40] sm:$0xff]
    %v4016 = vld [vmem:[#allocation14 + $0x48] sm:$0xff]
    %v4017 = vld [vmem:[#allocation14 + $0x50] sm:$0xff]
    %v4018 = vld [vmem:[#allocation14 + $0x58] sm:$0xff]
    %v4019 = vld [vmem:[#allocation14 + $0x60] sm:$0xff]
    %v4020 = vld [vmem:[#allocation14 + $0x68] sm:$0xff]
    %v4021 = vld [vmem:[#allocation14 + $0x70] sm:$0xff]
    %v4022 = vld [vmem:[#allocation14 + $0x78] sm:$0xff]
    %v4023 = vld [vmem:[#allocation14 + $0x80] sm:$0xff]
    %v4024 = vld [vmem:[#allocation14 + $0x88] sm:$0xff]
    %v4025 = vld [vmem:[#allocation14 + $0x90] sm:$0xff]
    %v4026 = vld [vmem:[#allocation14 + $0x98] sm:$0xff]
    %v4027 = vld [vmem:[#allocation14 + $0xa0] sm:$0xff]
    %v4028 = vld [vmem:[#allocation14 + $0xa8] sm:$0xff]
    %v4029 = vld [vmem:[#allocation14 + $0xb0] sm:$0xff]
    %v4030 = vld [vmem:[#allocation14 + $0xb8] sm:$0xff]
    %v4031 = vld [vmem:[#allocation14 + $0xc0] sm:$0xff]
    %v4032 = vld [vmem:[#allocation14 + $0xc8] sm:$0xff]
    %v4033 = vld [vmem:[#allocation14 + $0xd0] sm:$0xff]
    %v4034 = vld [vmem:[#allocation14 + $0xd8] sm:$0xff]
    %v4035 = vld [vmem:[#allocation14 + $0xe0] sm:$0xff]
    %v4036 = vld [vmem:[#allocation14 + $0xe8] sm:$0xff]
    %v4037 = vld [vmem:[#allocation14 + $0xf0] sm:$0xff]
    %v4038 = vld [vmem:[#allocation14 + $0xf8] sm:$0xff]
    %v4039 = vld [vmem:[#allocation14 + $0x100] sm:$0xff]
    %v4040 = vld [vmem:[#allocation14 + $0x108] sm:$0xff]
    %v4041 = vld [vmem:[#allocation14 + $0x110] sm:$0xff]
    %v4042 = vld [vmem:[#allocation14 + $0x118] sm:$0xff]
    %v4043 = vld [vmem:[#allocation14 + $0x120] sm:$0xff]
    %v4044 = vld [vmem:[#allocation14 + $0x128] sm:$0xff]
    %v4045 = vld [vmem:[#allocation14 + $0x130] sm:$0xff]
    %v4046 = vld [vmem:[#allocation14 + $0x138] sm:$0xff]
    %v4047 = vld [vmem:[#allocation14 + $0x140] sm:$0xff]
    %v4048 = vld [vmem:[#allocation14 + $0x148] sm:$0xff]
    %v4049 = vld [vmem:[#allocation14 + $0x150] sm:$0xff]
    %v4050 = vld [vmem:[#allocation14 + $0x158] sm:$0xff]
    %v4051 = vld [vmem:[#allocation14 + $0x160] sm:$0xff]
    %v4052 = vld [vmem:[#allocation14 + $0x168] sm:$0xff]
    %v4053 = vld [vmem:[#allocation14 + $0x170] sm:$0xff]
    %v4054 = vld [vmem:[#allocation14 + $0x178] sm:$0xff]
    %v4055 = vld [vmem:[#allocation14 + $0x180] sm:$0xff]
    %v4056 = vld [vmem:[#allocation14 + $0x188] sm:$0xff]
    %v4057 = vld [vmem:[#allocation14 + $0x190] sm:$0xff]
    %v4058 = vld [vmem:[#allocation14 + $0x198] sm:$0xff]
    %v4059 = vld [vmem:[#allocation14 + $0x1a0] sm:$0xff]
    %v4060 = vld [vmem:[#allocation14 + $0x1a8] sm:$0xff]
    %v4061 = vld [vmem:[#allocation14 + $0x1b0] sm:$0xff]
    %v4062 = vld [vmem:[#allocation14 + $0x1b8] sm:$0xff]
    %v4063 = vld [vmem:[#allocation14 + $0x1c0] sm:$0xff]
    %v4064 = vld [vmem:[#allocation14 + $0x1c8] sm:$0xff]
    %v4065 = vld [vmem:[#allocation14 + $0x1d0] sm:$0xff]
    %v4066 = vld [vmem:[#allocation14 + $0x1d8] sm:$0xff]
    %v4067 = vld [vmem:[#allocation14 + $0x1e0] sm:$0xff]
    %v4068 = vld [vmem:[#allocation14 + $0x1e8] sm:$0xff]
    %v4069 = vld [vmem:[#allocation14 + $0x1f0] sm:$0xff]
    %v4070 = vld [vmem:[#allocation14 + $0x1f8] sm:$0xff]
    %v4071 = vld [vmem:[#allocation14 + $0x200] sm:$0xff]
    %v4072 = vld [vmem:[#allocation14 + $0x208] sm:$0xff]
    %v4073 = vld [vmem:[#allocation14 + $0x210] sm:$0xff]
    %v4074 = vld [vmem:[#allocation14 + $0x218] sm:$0xff]
    %v4075 = vld [vmem:[#allocation14 + $0x220] sm:$0xff]
    %v4076 = vld [vmem:[#allocation14 + $0x228] sm:$0xff]
    %v4077 = vld [vmem:[#allocation14 + $0x230] sm:$0xff]
    %v4078 = vld [vmem:[#allocation14 + $0x238] sm:$0xff]
    %v4079 = vld [vmem:[#allocation14 + $0x240] sm:$0xff]
    %v4080 = vld [vmem:[#allocation14 + $0x248] sm:$0xff]
    %v4081 = vld [vmem:[#allocation14 + $0x250] sm:$0xff]
    %v4082 = vld [vmem:[#allocation14 + $0x258] sm:$0xff]
    %v4083 = vld [vmem:[#allocation14 + $0x260] sm:$0xff]
    %v4084 = vld [vmem:[#allocation14 + $0x268] sm:$0xff]
    %v4085 = vld [vmem:[#allocation14 + $0x270] sm:$0xff]
    %v4086 = vld [vmem:[#allocation14 + $0x278] sm:$0xff]
    %v4087 = vld [vmem:[#allocation14 + $0x280] sm:$0xff]
    %v4088 = vld [vmem:[#allocation14 + $0x288] sm:$0xff]
    %v4089 = vld [vmem:[#allocation14 + $0x290] sm:$0xff]
    %v4090 = vld [vmem:[#allocation14 + $0x298] sm:$0xff]
    %v4091 = vld [vmem:[#allocation14 + $0x2a0] sm:$0xff]
    %v4092 = vld [vmem:[#allocation14 + $0x2a8] sm:$0xff]
    %v4093 = vld [vmem:[#allocation14 + $0x2b0] sm:$0xff]
    %v4094 = vld [vmem:[#allocation14 + $0x2b8] sm:$0xff]
    %v4095 = vld [vmem:[#allocation14 + $0x2c0] sm:$0xff]
    %v4096 = vld [vmem:[#allocation14 + $0x2c8] sm:$0xff]
    %v4097 = vld [vmem:[#allocation14 + $0x2d0] sm:$0xff]
    %v4098 = vld [vmem:[#allocation14 + $0x2d8] sm:$0xff]
    %v4099 = vld [vmem:[#allocation14 + $0x2e0] sm:$0xff]
    %v4100 = vld [vmem:[#allocation14 + $0x2e8] sm:$0xff]
    %v4101 = vld [vmem:[#allocation14 + $0x2f0] sm:$0xff]
    %v4102 = vld [vmem:[#allocation14 + $0x2f8] sm:$0xff]
    %v4103 = vld [vmem:[#allocation14 + $0x300] sm:$0xff]
    %v4104 = vld [vmem:[#allocation14 + $0x308] sm:$0xff]
    %v4105 = vld [vmem:[#allocation14 + $0x310] sm:$0xff]
    %v4106 = vld [vmem:[#allocation14 + $0x318] sm:$0xff]
    %v4107 = vld [vmem:[#allocation14 + $0x320] sm:$0xff]
    %v4108 = vld [vmem:[#allocation14 + $0x328] sm:$0xff]
    %v4109 = vld [vmem:[#allocation14 + $0x330] sm:$0xff]
    %v4110 = vld [vmem:[#allocation14 + $0x338] sm:$0xff]
    %v4111 = vld [vmem:[#allocation14 + $0x340] sm:$0xff]
    %v4112 = vld [vmem:[#allocation14 + $0x348] sm:$0xff]
    %v4113 = vld [vmem:[#allocation14 + $0x350] sm:$0xff]
    %v4114 = vld [vmem:[#allocation14 + $0x358] sm:$0xff]
    %v4115 = vld [vmem:[#allocation14 + $0x360] sm:$0xff]
    %v4116 = vld [vmem:[#allocation14 + $0x368] sm:$0xff]
    %v4117 = vld [vmem:[#allocation14 + $0x370] sm:$0xff]
    %v4118 = vld [vmem:[#allocation14 + $0x378] sm:$0xff]
    %v4119 = vld [vmem:[#allocation14 + $0x380] sm:$0xff]
    %v4120 = vld [vmem:[#allocation14 + $0x388] sm:$0xff]
    %v4121 = vld [vmem:[#allocation14 + $0x390] sm:$0xff]
    %v4122 = vld [vmem:[#allocation14 + $0x398] sm:$0xff]
    %v4123 = vld [vmem:[#allocation14 + $0x3a0] sm:$0xff]
    %v4124 = vld [vmem:[#allocation14 + $0x3a8] sm:$0xff]
    %v4125 = vld [vmem:[#allocation14 + $0x3b0] sm:$0xff]
    %v4126 = vld [vmem:[#allocation14 + $0x3b8] sm:$0xff]
    %v4127 = vld [vmem:[#allocation14 + $0x3c0] sm:$0xff]
    %v4128 = vld [vmem:[#allocation14 + $0x3c8] sm:$0xff]
    %v4129 = vld [vmem:[#allocation14 + $0x3d0] sm:$0xff]
    %v4130 = vld [vmem:[#allocation14 + $0x3d8] sm:$0xff]
    %v4131 = vld [vmem:[#allocation14 + $0x3e0] sm:$0xff]
    %v4132 = vld [vmem:[#allocation14 + $0x3e8] sm:$0xff]
    %v4133 = vld [vmem:[#allocation14 + $0x3f0] sm:$0xff]
    %v4134 = vld [vmem:[#allocation14 + $0x3f8] sm:$0xff]
    %v4135 = vld [vmem:[#allocation14 + $0x400] sm:$0xff]
    %v4136 = vld [vmem:[#allocation14 + $0x408] sm:$0xff]
    %v4137 = vld [vmem:[#allocation14 + $0x410] sm:$0xff]
    %v4138 = vld [vmem:[#allocation14 + $0x418] sm:$0xff]
    %v4139 = vld [vmem:[#allocation14 + $0x420] sm:$0xff]
    %v4140 = vld [vmem:[#allocation14 + $0x428] sm:$0xff]
    %v4141 = vld [vmem:[#allocation14 + $0x430] sm:$0xff]
    %v4142 = vld [vmem:[#allocation14 + $0x438] sm:$0xff]
    %v4143 = vld [vmem:[#allocation14 + $0x440] sm:$0xff]
    %v4144 = vld [vmem:[#allocation14 + $0x448] sm:$0xff]
    %v4145 = vld [vmem:[#allocation14 + $0x450] sm:$0xff]
    %v4146 = vld [vmem:[#allocation14 + $0x458] sm:$0xff]
    %v4147 = vld [vmem:[#allocation14 + $0x460] sm:$0xff]
    %v4148 = vld [vmem:[#allocation14 + $0x468] sm:$0xff]
    %v4149 = vld [vmem:[#allocation14 + $0x470] sm:$0xff]
    %v4150 = vld [vmem:[#allocation14 + $0x478] sm:$0xff]
    %v4151 = vld [vmem:[#allocation14 + $0x480] sm:$0xff]
    %v4152 = vld [vmem:[#allocation14 + $0x488] sm:$0xff]
    %v4153 = vld [vmem:[#allocation14 + $0x490] sm:$0xff]
    %v4154 = vld [vmem:[#allocation14 + $0x498] sm:$0xff]
    %v4155 = vld [vmem:[#allocation14 + $0x4a0] sm:$0xff]
    %v4156 = vld [vmem:[#allocation14 + $0x4a8] sm:$0xff]
    %v4157 = vld [vmem:[#allocation14 + $0x4b0] sm:$0xff]
    %v4158 = vld [vmem:[#allocation14 + $0x4b8] sm:$0xff]
    %v4159 = vld [vmem:[#allocation14 + $0x4c0] sm:$0xff]
    %v4160 = vld [vmem:[#allocation14 + $0x4c8] sm:$0xff]
    %v4161 = vld [vmem:[#allocation14 + $0x4d0] sm:$0xff]
    %v4162 = vld [vmem:[#allocation14 + $0x4d8] sm:$0xff]
    %v4163 = vld [vmem:[#allocation14 + $0x4e0] sm:$0xff]
    %v4164 = vld [vmem:[#allocation14 + $0x4e8] sm:$0xff]
    %v4165 = vld [vmem:[#allocation14 + $0x4f0] sm:$0xff]
    %v4166 = vld [vmem:[#allocation14 + $0x4f8] sm:$0xff]
    %v4167 = vld [vmem:[#allocation14 + $0x500] sm:$0xff]
    %v4168 = vld [vmem:[#allocation14 + $0x508] sm:$0xff]
    %v4169 = vld [vmem:[#allocation14 + $0x510] sm:$0xff]
    %v4170 = vld [vmem:[#allocation14 + $0x518] sm:$0xff]
    %v4171 = vld [vmem:[#allocation14 + $0x520] sm:$0xff]
    %v4172 = vld [vmem:[#allocation14 + $0x528] sm:$0xff]
    %v4173 = vld [vmem:[#allocation14 + $0x530] sm:$0xff]
    %v4174 = vld [vmem:[#allocation14 + $0x538] sm:$0xff]
    %v4175 = vld [vmem:[#allocation14 + $0x540] sm:$0xff]
    %v4176 = vld [vmem:[#allocation14 + $0x548] sm:$0xff]
    %v4177 = vld [vmem:[#allocation14 + $0x550] sm:$0xff]
    %v4178 = vld [vmem:[#allocation14 + $0x558] sm:$0xff]
    %v4179 = vld [vmem:[#allocation14 + $0x560] sm:$0xff]
    %v4180 = vld [vmem:[#allocation14 + $0x568] sm:$0xff]
    %v4181 = vld [vmem:[#allocation14 + $0x570] sm:$0xff]
    %v4182 = vld [vmem:[#allocation14 + $0x578] sm:$0xff]
    %v4183 = vld [vmem:[#allocation14 + $0x580] sm:$0xff]
    %v4184 = vld [vmem:[#allocation14 + $0x588] sm:$0xff]
    %v4185 = vld [vmem:[#allocation14 + $0x590] sm:$0xff]
    %v4186 = vld [vmem:[#allocation14 + $0x598] sm:$0xff]
    %v4187 = vld [vmem:[#allocation14 + $0x5a0] sm:$0xff]
    %v4188 = vld [vmem:[#allocation14 + $0x5a8] sm:$0xff]
    %v4189 = vld [vmem:[#allocation14 + $0x5b0] sm:$0xff]
    %v4190 = vld [vmem:[#allocation14 + $0x5b8] sm:$0xff]
    %v4191 = vld [vmem:[#allocation14 + $0x5c0] sm:$0xff]
    %v4192 = vld [vmem:[#allocation14 + $0x5c8] sm:$0xff]
    %v4193 = vld [vmem:[#allocation14 + $0x5d0] sm:$0xff]
    %v4194 = vld [vmem:[#allocation14 + $0x5d8] sm:$0xff]
    %v4195 = vld [vmem:[#allocation14 + $0x5e0] sm:$0xff]
    %v4196 = vld [vmem:[#allocation14 + $0x5e8] sm:$0xff]
    %v4197 = vld [vmem:[#allocation14 + $0x5f0] sm:$0xff]
    %v4198 = vld [vmem:[#allocation14 + $0x5f8] sm:$0xff]
    %v4199 = vld [vmem:[#allocation14 + $0x600] sm:$0xff]
    %v4200 = vld [vmem:[#allocation14 + $0x608] sm:$0xff]
    %v4201 = vld [vmem:[#allocation14 + $0x610] sm:$0xff]
    %v4202 = vld [vmem:[#allocation14 + $0x618] sm:$0xff]
    %v4203 = vld [vmem:[#allocation14 + $0x620] sm:$0xff]
    %v4204 = vld [vmem:[#allocation14 + $0x628] sm:$0xff]
    %v4205 = vld [vmem:[#allocation14 + $0x630] sm:$0xff]
    %v4206 = vld [vmem:[#allocation14 + $0x638] sm:$0xff]
    %v4207 = vld [vmem:[#allocation14 + $0x640] sm:$0xff]
    %v4208 = vld [vmem:[#allocation14 + $0x648] sm:$0xff]
    %v4209 = vld [vmem:[#allocation14 + $0x650] sm:$0xff]
    %v4210 = vld [vmem:[#allocation14 + $0x658] sm:$0xff]
    %v4211 = vld [vmem:[#allocation14 + $0x660] sm:$0xff]
    %v4212 = vld [vmem:[#allocation14 + $0x668] sm:$0xff]
    %v4213 = vld [vmem:[#allocation14 + $0x670] sm:$0xff]
    %v4214 = vld [vmem:[#allocation14 + $0x678] sm:$0xff]
    %v4215 = vld [vmem:[#allocation14 + $0x680] sm:$0xff]
    %v4216 = vld [vmem:[#allocation14 + $0x688] sm:$0xff]
    %v4217 = vld [vmem:[#allocation14 + $0x690] sm:$0xff]
    %v4218 = vld [vmem:[#allocation14 + $0x698] sm:$0xff]
    %v4219 = vld [vmem:[#allocation14 + $0x6a0] sm:$0xff]
    %v4220 = vld [vmem:[#allocation14 + $0x6a8] sm:$0xff]
    %v4221 = vld [vmem:[#allocation14 + $0x6b0] sm:$0xff]
    %v4222 = vld [vmem:[#allocation14 + $0x6b8] sm:$0xff]
    %v4223 = vld [vmem:[#allocation14 + $0x6c0] sm:$0xff]
    %v4224 = vld [vmem:[#allocation14 + $0x6c8] sm:$0xff]
    %v4225 = vld [vmem:[#allocation14 + $0x6d0] sm:$0xff]
    %v4226 = vld [vmem:[#allocation14 + $0x6d8] sm:$0xff]
    %v4227 = vld [vmem:[#allocation14 + $0x6e0] sm:$0xff]
    %v4228 = vld [vmem:[#allocation14 + $0x6e8] sm:$0xff]
    %v4229 = vld [vmem:[#allocation14 + $0x6f0] sm:$0xff]
    %v4230 = vld [vmem:[#allocation14 + $0x6f8] sm:$0xff]
    %v4231 = vld [vmem:[#allocation14 + $0x700] sm:$0xff]
    %v4232 = vld [vmem:[#allocation14 + $0x708] sm:$0xff]
    %v4233 = vld [vmem:[#allocation14 + $0x710] sm:$0xff]
    %v4234 = vld [vmem:[#allocation14 + $0x718] sm:$0xff]
    %v4235 = vld [vmem:[#allocation14 + $0x720] sm:$0xff]
    %v4236 = vld [vmem:[#allocation14 + $0x728] sm:$0xff]
    %v4237 = vld [vmem:[#allocation14 + $0x730] sm:$0xff]
    %v4238 = vld [vmem:[#allocation14 + $0x738] sm:$0xff]
    %v4239 = vld [vmem:[#allocation14 + $0x740] sm:$0xff]
    %v4240 = vld [vmem:[#allocation14 + $0x748] sm:$0xff]
    %v4241 = vld [vmem:[#allocation14 + $0x750] sm:$0xff]
    %v4242 = vld [vmem:[#allocation14 + $0x758] sm:$0xff]
    %v4243 = vld [vmem:[#allocation14 + $0x760] sm:$0xff]
    %v4244 = vld [vmem:[#allocation14 + $0x768] sm:$0xff]
    %v4245 = vld [vmem:[#allocation14 + $0x770] sm:$0xff]
    %v4246 = vld [vmem:[#allocation14 + $0x778] sm:$0xff]
    %v4247 = vld [vmem:[#allocation14 + $0x780] sm:$0xff]
    %v4248 = vld [vmem:[#allocation14 + $0x788] sm:$0xff]
    %v4249 = vld [vmem:[#allocation14 + $0x790] sm:$0xff]
    %v4250 = vld [vmem:[#allocation14 + $0x798] sm:$0xff]
    %v4251 = vld [vmem:[#allocation14 + $0x7a0] sm:$0xff]
    %v4252 = vld [vmem:[#allocation14 + $0x7a8] sm:$0xff]
    %v4253 = vld [vmem:[#allocation14 + $0x7b0] sm:$0xff]
    %v4254 = vld [vmem:[#allocation14 + $0x7b8] sm:$0xff]
    %v4255 = vld [vmem:[#allocation14 + $0x7c0] sm:$0xff]
    %v4256 = vld [vmem:[#allocation14 + $0x7c8] sm:$0xff]
    %v4257 = vld [vmem:[#allocation14 + $0x7d0] sm:$0xff]
    %v4258 = vld [vmem:[#allocation14 + $0x7d8] sm:$0xff]
    %v4259 = vld [vmem:[#allocation14 + $0x7e0] sm:$0xff]
    %v4260 = vld [vmem:[#allocation14 + $0x7e8] sm:$0xff]
    %v4261 = vld [vmem:[#allocation14 + $0x7f0] sm:$0xff]
    %v4262 = vld [vmem:[#allocation14 + $0x7f8] sm:$0xff]
    %v4263 = vld [vmem:[#allocation14 + $0x800] sm:$0xff]
    %v4264 = vld [vmem:[#allocation14 + $0x808] sm:$0xff]
    %v4265 = vld [vmem:[#allocation14 + $0x810] sm:$0xff]
    %v4266 = vld [vmem:[#allocation14 + $0x818] sm:$0xff]
    %v4267 = vld [vmem:[#allocation14 + $0x820] sm:$0xff]
    %v4268 = vld [vmem:[#allocation14 + $0x828] sm:$0xff]
    %v4269 = vld [vmem:[#allocation14 + $0x830] sm:$0xff]
    %v4270 = vld [vmem:[#allocation14 + $0x838] sm:$0xff]
    %v4271 = vld [vmem:[#allocation14 + $0x840] sm:$0xff]
    %v4272 = vld [vmem:[#allocation14 + $0x848] sm:$0xff]
    %v4273 = vld [vmem:[#allocation14 + $0x850] sm:$0xff]
    %v4274 = vld [vmem:[#allocation14 + $0x858] sm:$0xff]
    %v4275 = vld [vmem:[#allocation14 + $0x860] sm:$0xff]
    %v4276 = vld [vmem:[#allocation14 + $0x868] sm:$0xff]
    %v4277 = vld [vmem:[#allocation14 + $0x870] sm:$0xff]
    %v4278 = vld [vmem:[#allocation14 + $0x878] sm:$0xff]
    %v4279 = vld [vmem:[#allocation14 + $0x880] sm:$0xff]
    %v4280 = vld [vmem:[#allocation14 + $0x888] sm:$0xff]
    %v4281 = vld [vmem:[#allocation14 + $0x890] sm:$0xff]
    %v4282 = vld [vmem:[#allocation14 + $0x898] sm:$0xff]
    %v4283 = vld [vmem:[#allocation14 + $0x8a0] sm:$0xff]
    %v4284 = vld [vmem:[#allocation14 + $0x8a8] sm:$0xff]
    %v4285 = vld [vmem:[#allocation14 + $0x8b0] sm:$0xff]
    %v4286 = vld [vmem:[#allocation14 + $0x8b8] sm:$0xff]
    %v4287 = vld [vmem:[#allocation14 + $0x8c0] sm:$0xff]
    %v4288 = vld [vmem:[#allocation14 + $0x8c8] sm:$0xff]
    %v4289 = vld [vmem:[#allocation14 + $0x8d0] sm:$0xff]
    %v4290 = vld [vmem:[#allocation14 + $0x8d8] sm:$0xff]
    %v4291 = vld [vmem:[#allocation14 + $0x8e0] sm:$0xff]
    %v4292 = vld [vmem:[#allocation14 + $0x8e8] sm:$0xff]
    %v4293 = vld [vmem:[#allocation14 + $0x8f0] sm:$0xff]
    %v4294 = vld [vmem:[#allocation14 + $0x8f8] sm:$0xff]
    %v4295 = vld [vmem:[#allocation14 + $0x900] sm:$0xff]
    %v4296 = vld [vmem:[#allocation14 + $0x908] sm:$0xff]
    %v4297 = vld [vmem:[#allocation14 + $0x910] sm:$0xff]
    %v4298 = vld [vmem:[#allocation14 + $0x918] sm:$0xff]
    %v4299 = vld [vmem:[#allocation14 + $0x920] sm:$0xff]
    %v4300 = vld [vmem:[#allocation14 + $0x928] sm:$0xff]
    %v4301 = vld [vmem:[#allocation14 + $0x930] sm:$0xff]
    %v4302 = vld [vmem:[#allocation14 + $0x938] sm:$0xff]
    %v4303 = vld [vmem:[#allocation14 + $0x940] sm:$0xff]
    %v4304 = vld [vmem:[#allocation14 + $0x948] sm:$0xff]
    %v4305 = vld [vmem:[#allocation14 + $0x950] sm:$0xff]
    %v4306 = vld [vmem:[#allocation14 + $0x958] sm:$0xff]
    %v4307 = vld [vmem:[#allocation14 + $0x960] sm:$0xff]
    %v4308 = vld [vmem:[#allocation14 + $0x968] sm:$0xff]
    %v4309 = vld [vmem:[#allocation14 + $0x970] sm:$0xff]
    %v4310 = vld [vmem:[#allocation14 + $0x978] sm:$0xff]
    %v4311 = vld [vmem:[#allocation14 + $0x980] sm:$0xff]
    %v4312 = vld [vmem:[#allocation14 + $0x988] sm:$0xff]
    %v4313 = vld [vmem:[#allocation14 + $0x990] sm:$0xff]
    %v4314 = vld [vmem:[#allocation14 + $0x998] sm:$0xff]
    %v4315 = vld [vmem:[#allocation14 + $0x9a0] sm:$0xff]
    %v4316 = vld [vmem:[#allocation14 + $0x9a8] sm:$0xff]
    %v4317 = vld [vmem:[#allocation14 + $0x9b0] sm:$0xff]
    %v4318 = vld [vmem:[#allocation14 + $0x9b8] sm:$0xff]
    %v4319 = vld [vmem:[#allocation14 + $0x9c0] sm:$0xff]
    %v4320 = vld [vmem:[#allocation14 + $0x9c8] sm:$0xff]
    %v4321 = vld [vmem:[#allocation14 + $0x9d0] sm:$0xff]
    %v4322 = vld [vmem:[#allocation14 + $0x9d8] sm:$0xff]
    %v4323 = vld [vmem:[#allocation14 + $0x9e0] sm:$0xff]
    %v4324 = vld [vmem:[#allocation14 + $0x9e8] sm:$0xff]
    %v4325 = vld [vmem:[#allocation14 + $0x9f0] sm:$0xff]
    %v4326 = vld [vmem:[#allocation14 + $0x9f8] sm:$0xff]
    %v4327 = vld [vmem:[#allocation14 + $0xa00] sm:$0xff]
    %v4328 = vld [vmem:[#allocation14 + $0xa08] sm:$0xff]
    %v4329 = vld [vmem:[#allocation14 + $0xa10] sm:$0xff]
    %v4330 = vld [vmem:[#allocation14 + $0xa18] sm:$0xff]
    %v4331 = vld [vmem:[#allocation14 + $0xa20] sm:$0xff]
    %v4332 = vld [vmem:[#allocation14 + $0xa28] sm:$0xff]
    %v4333 = vld [vmem:[#allocation14 + $0xa30] sm:$0xff]
    %v4334 = vld [vmem:[#allocation14 + $0xa38] sm:$0xff]
    %v4335 = vld [vmem:[#allocation14 + $0xa40] sm:$0xff]
    %v4336 = vld [vmem:[#allocation14 + $0xa48] sm:$0xff]
    %v4337 = vld [vmem:[#allocation14 + $0xa50] sm:$0xff]
    %v4338 = vld [vmem:[#allocation14 + $0xa58] sm:$0xff]
    %v4339 = vld [vmem:[#allocation14 + $0xa60] sm:$0xff]
    %v4340 = vld [vmem:[#allocation14 + $0xa68] sm:$0xff]
    %v4341 = vld [vmem:[#allocation14 + $0xa70] sm:$0xff]
    %v4342 = vld [vmem:[#allocation14 + $0xa78] sm:$0xff]
    %v4343 = vld [vmem:[#allocation14 + $0xa80] sm:$0xff]
    %v4344 = vld [vmem:[#allocation14 + $0xa88] sm:$0xff]
    %v4345 = vld [vmem:[#allocation14 + $0xa90] sm:$0xff]
    %v4346 = vld [vmem:[#allocation14 + $0xa98] sm:$0xff]
    %v4347 = vld [vmem:[#allocation14 + $0xaa0] sm:$0xff]
    %v4348 = vld [vmem:[#allocation14 + $0xaa8] sm:$0xff]
    %v4349 = vld [vmem:[#allocation14 + $0xab0] sm:$0xff]
    %v4350 = vld [vmem:[#allocation14 + $0xab8] sm:$0xff]
    %v4351 = vld [vmem:[#allocation14 + $0xac0] sm:$0xff]
    %v4352 = vld [vmem:[#allocation14 + $0xac8] sm:$0xff]
    %v4353 = vld [vmem:[#allocation14 + $0xad0] sm:$0xff]
    %v4354 = vld [vmem:[#allocation14 + $0xad8] sm:$0xff]
    %v4355 = vld [vmem:[#allocation14 + $0xae0] sm:$0xff]
    %v4356 = vld [vmem:[#allocation14 + $0xae8] sm:$0xff]
    %v4357 = vld [vmem:[#allocation14 + $0xaf0] sm:$0xff]
    %v4358 = vld [vmem:[#allocation14 + $0xaf8] sm:$0xff]
    %v4359 = vld [vmem:[#allocation14 + $0xb00] sm:$0xff]
    %v4360 = vld [vmem:[#allocation14 + $0xb08] sm:$0xff]
    %v4361 = vld [vmem:[#allocation14 + $0xb10] sm:$0xff]
    %v4362 = vld [vmem:[#allocation14 + $0xb18] sm:$0xff]
    %v4363 = vld [vmem:[#allocation14 + $0xb20] sm:$0xff]
    %v4364 = vld [vmem:[#allocation14 + $0xb28] sm:$0xff]
    %v4365 = vld [vmem:[#allocation14 + $0xb30] sm:$0xff]
    %v4366 = vld [vmem:[#allocation14 + $0xb38] sm:$0xff]
    %v4367 = vld [vmem:[#allocation14 + $0xb40] sm:$0xff]
    %v4368 = vld [vmem:[#allocation14 + $0xb48] sm:$0xff]
    %v4369 = vld [vmem:[#allocation14 + $0xb50] sm:$0xff]
    %v4370 = vld [vmem:[#allocation14 + $0xb58] sm:$0xff]
    %v4371 = vld [vmem:[#allocation14 + $0xb60] sm:$0xff]
    %v4372 = vld [vmem:[#allocation14 + $0xb68] sm:$0xff]
    %v4373 = vld [vmem:[#allocation14 + $0xb70] sm:$0xff]
    %v4374 = vld [vmem:[#allocation14 + $0xb78] sm:$0xff]
    %v4375 = vld [vmem:[#allocation14 + $0xb80] sm:$0xff]
    %v4376 = vld [vmem:[#allocation14 + $0xb88] sm:$0xff]
    %v4377 = vld [vmem:[#allocation14 + $0xb90] sm:$0xff]
    %v4378 = vld [vmem:[#allocation14 + $0xb98] sm:$0xff]
    %v4379 = vld [vmem:[#allocation14 + $0xba0] sm:$0xff]
    %v4380 = vld [vmem:[#allocation14 + $0xba8] sm:$0xff]
    %v4381 = vld [vmem:[#allocation14 + $0xbb0] sm:$0xff]
    %v4382 = vld [vmem:[#allocation14 + $0xbb8] sm:$0xff]
    %v4383 = vld [vmem:[#allocation14 + $0xbc0] sm:$0xff]
    %v4384 = vld [vmem:[#allocation14 + $0xbc8] sm:$0xff]
    %v4385 = vld [vmem:[#allocation14 + $0xbd0] sm:$0xff]
    %v4386 = vld [vmem:[#allocation14 + $0xbd8] sm:$0xff]
    %v4387 = vld [vmem:[#allocation14 + $0xbe0] sm:$0xff]
    %v4388 = vld [vmem:[#allocation14 + $0xbe8] sm:$0xff]
    %v4389 = vld [vmem:[#allocation14 + $0xbf0] sm:$0xff]
    %v4390 = vld [vmem:[#allocation14 + $0xbf8] sm:$0xff]
    %v4391 = vld [vmem:[#allocation14 + $0xc00] sm:$0xff]
    %v4392 = vld [vmem:[#allocation14 + $0xc08] sm:$0xff]
    %v4393 = vld [vmem:[#allocation14 + $0xc10] sm:$0xff]
    %v4394 = vld [vmem:[#allocation14 + $0xc18] sm:$0xff]
    %v4395 = vld [vmem:[#allocation14 + $0xc20] sm:$0xff]
    %v4396 = vld [vmem:[#allocation14 + $0xc28] sm:$0xff]
    %v4397 = vld [vmem:[#allocation14 + $0xc30] sm:$0xff]
    %v4398 = vld [vmem:[#allocation14 + $0xc38] sm:$0xff]
    %v4399 = vld [vmem:[#allocation14 + $0xc40] sm:$0xff]
    %v4400 = vld [vmem:[#allocation14 + $0xc48] sm:$0xff]
    %v4401 = vld [vmem:[#allocation14 + $0xc50] sm:$0xff]
    %v4402 = vld [vmem:[#allocation14 + $0xc58] sm:$0xff]
    %v4403 = vld [vmem:[#allocation14 + $0xc60] sm:$0xff]
    %v4404 = vld [vmem:[#allocation14 + $0xc68] sm:$0xff]
    %v4405 = vld [vmem:[#allocation14 + $0xc70] sm:$0xff]
    %v4406 = vld [vmem:[#allocation14 + $0xc78] sm:$0xff]
    %v4407 = vld [vmem:[#allocation14 + $0xc80] sm:$0xff]
    %v4408 = vld [vmem:[#allocation14 + $0xc88] sm:$0xff]
    %v4409 = vld [vmem:[#allocation14 + $0xc90] sm:$0xff]
    %v4410 = vld [vmem:[#allocation14 + $0xc98] sm:$0xff]
    %v4411 = vld [vmem:[#allocation14 + $0xca0] sm:$0xff]
    %v4412 = vld [vmem:[#allocation14 + $0xca8] sm:$0xff]
    %v4413 = vld [vmem:[#allocation14 + $0xcb0] sm:$0xff]
    %v4414 = vld [vmem:[#allocation14 + $0xcb8] sm:$0xff]
    %v4415 = vld [vmem:[#allocation14 + $0xcc0] sm:$0xff]
    %v4416 = vld [vmem:[#allocation14 + $0xcc8] sm:$0xff]
    %v4417 = vld [vmem:[#allocation14 + $0xcd0] sm:$0xff]
    %v4418 = vld [vmem:[#allocation14 + $0xcd8] sm:$0xff]
    %v4419 = vld [vmem:[#allocation14 + $0xce0] sm:$0xff]
    %v4420 = vld [vmem:[#allocation14 + $0xce8] sm:$0xff]
    %v4421 = vld [vmem:[#allocation14 + $0xcf0] sm:$0xff]
    %v4422 = vld [vmem:[#allocation14 + $0xcf8] sm:$0xff]
    %v4423 = vld [vmem:[#allocation14 + $0xd00] sm:$0xff]
    %v4424 = vld [vmem:[#allocation14 + $0xd08] sm:$0xff]
    %v4425 = vld [vmem:[#allocation14 + $0xd10] sm:$0xff]
    %v4426 = vld [vmem:[#allocation14 + $0xd18] sm:$0xff]
    %v4427 = vld [vmem:[#allocation14 + $0xd20] sm:$0xff]
    %v4428 = vld [vmem:[#allocation14 + $0xd28] sm:$0xff]
    %v4429 = vld [vmem:[#allocation14 + $0xd30] sm:$0xff]
    %v4430 = vld [vmem:[#allocation14 + $0xd38] sm:$0xff]
    %v4431 = vld [vmem:[#allocation14 + $0xd40] sm:$0xff]
    %v4432 = vld [vmem:[#allocation14 + $0xd48] sm:$0xff]
    %v4433 = vld [vmem:[#allocation14 + $0xd50] sm:$0xff]
    %v4434 = vld [vmem:[#allocation14 + $0xd58] sm:$0xff]
    %v4435 = vld [vmem:[#allocation14 + $0xd60] sm:$0xff]
    %v4436 = vld [vmem:[#allocation14 + $0xd68] sm:$0xff]
    %v4437 = vld [vmem:[#allocation14 + $0xd70] sm:$0xff]
    %v4438 = vld [vmem:[#allocation14 + $0xd78] sm:$0xff]
    %v4439 = vld [vmem:[#allocation14 + $0xd80] sm:$0xff]
    %v4440 = vld [vmem:[#allocation14 + $0xd88] sm:$0xff]
    %v4441 = vld [vmem:[#allocation14 + $0xd90] sm:$0xff]
    %v4442 = vld [vmem:[#allocation14 + $0xd98] sm:$0xff]
    %v4443 = vld [vmem:[#allocation14 + $0xda0] sm:$0xff]
    %v4444 = vld [vmem:[#allocation14 + $0xda8] sm:$0xff]
    %v4445 = vld [vmem:[#allocation14 + $0xdb0] sm:$0xff]
    %v4446 = vld [vmem:[#allocation14 + $0xdb8] sm:$0xff]
    %v4447 = vld [vmem:[#allocation14 + $0xdc0] sm:$0xff]
    %v4448 = vld [vmem:[#allocation14 + $0xdc8] sm:$0xff]
    %v4449 = vld [vmem:[#allocation14 + $0xdd0] sm:$0xff]
    %v4450 = vld [vmem:[#allocation14 + $0xdd8] sm:$0xff]
    %v4451 = vld [vmem:[#allocation14 + $0xde0] sm:$0xff]
    %v4452 = vld [vmem:[#allocation14 + $0xde8] sm:$0xff]
    %v4453 = vld [vmem:[#allocation14 + $0xdf0] sm:$0xff]
    %v4454 = vld [vmem:[#allocation14 + $0xdf8] sm:$0xff]
    %v4455 = vld [vmem:[#allocation14 + $0xe00] sm:$0xff]
    %v4456 = vld [vmem:[#allocation14 + $0xe08] sm:$0xff]
    %v4457 = vld [vmem:[#allocation14 + $0xe10] sm:$0xff]
    %v4458 = vld [vmem:[#allocation14 + $0xe18] sm:$0xff]
    %v4459 = vld [vmem:[#allocation14 + $0xe20] sm:$0xff]
    %v4460 = vld [vmem:[#allocation14 + $0xe28] sm:$0xff]
    %v4461 = vld [vmem:[#allocation14 + $0xe30] sm:$0xff]
    %v4462 = vld [vmem:[#allocation14 + $0xe38] sm:$0xff]
    %v4463 = vld [vmem:[#allocation14 + $0xe40] sm:$0xff]
    %v4464 = vld [vmem:[#allocation14 + $0xe48] sm:$0xff]
    %v4465 = vld [vmem:[#allocation14 + $0xe50] sm:$0xff]
    %v4466 = vld [vmem:[#allocation14 + $0xe58] sm:$0xff]
    %v4467 = vld [vmem:[#allocation14 + $0xe60] sm:$0xff]
    %v4468 = vld [vmem:[#allocation14 + $0xe68] sm:$0xff]
    %v4469 = vld [vmem:[#allocation14 + $0xe70] sm:$0xff]
    %v4470 = vld [vmem:[#allocation14 + $0xe78] sm:$0xff]
    %v4471 = vld [vmem:[#allocation14 + $0xe80] sm:$0xff]
    %v4472 = vld [vmem:[#allocation14 + $0xe88] sm:$0xff]
    %v4473 = vld [vmem:[#allocation14 + $0xe90] sm:$0xff]
    %v4474 = vld [vmem:[#allocation14 + $0xe98] sm:$0xff]
    %v4475 = vld [vmem:[#allocation14 + $0xea0] sm:$0xff]
    %v4476 = vld [vmem:[#allocation14 + $0xea8] sm:$0xff]
    %v4477 = vld [vmem:[#allocation14 + $0xeb0] sm:$0xff]
    %v4478 = vld [vmem:[#allocation14 + $0xeb8] sm:$0xff]
    %v4479 = vld [vmem:[#allocation14 + $0xec0] sm:$0xff]
    %v4480 = vld [vmem:[#allocation14 + $0xec8] sm:$0xff]
    %v4481 = vld [vmem:[#allocation14 + $0xed0] sm:$0xff]
    %v4482 = vld [vmem:[#allocation14 + $0xed8] sm:$0xff]
    %v4483 = vld [vmem:[#allocation14 + $0xee0] sm:$0xff]
    %v4484 = vld [vmem:[#allocation14 + $0xee8] sm:$0xff]
    %v4485 = vld [vmem:[#allocation14 + $0xef0] sm:$0xff]
    %v4486 = vld [vmem:[#allocation14 + $0xef8] sm:$0xff]
    %v4487 = vld [vmem:[#allocation14 + $0xf00] sm:$0xff]
    %v4488 = vld [vmem:[#allocation14 + $0xf08] sm:$0xff]
    %v4489 = vld [vmem:[#allocation14 + $0xf10] sm:$0xff]
    %v4490 = vld [vmem:[#allocation14 + $0xf18] sm:$0xff]
    %v4491 = vld [vmem:[#allocation14 + $0xf20] sm:$0xff]
    %v4492 = vld [vmem:[#allocation14 + $0xf28] sm:$0xff]
    %v4493 = vld [vmem:[#allocation14 + $0xf30] sm:$0xff]
    %v4494 = vld [vmem:[#allocation14 + $0xf38] sm:$0xff]
    %v4495 = vld [vmem:[#allocation14 + $0xf40] sm:$0xff]
    %v4496 = vld [vmem:[#allocation14 + $0xf48] sm:$0xff]
    %v4497 = vld [vmem:[#allocation14 + $0xf50] sm:$0xff]
    %v4498 = vld [vmem:[#allocation14 + $0xf58] sm:$0xff]
    %v4499 = vld [vmem:[#allocation14 + $0xf60] sm:$0xff]
    %v4500 = vld [vmem:[#allocation14 + $0xf68] sm:$0xff]
    %v4501 = vld [vmem:[#allocation14 + $0xf70] sm:$0xff]
    %v4502 = vld [vmem:[#allocation14 + $0xf78] sm:$0xff]
    %v4503 = vld [vmem:[#allocation14 + $0xf80] sm:$0xff]
    %v4504 = vld [vmem:[#allocation14 + $0xf88] sm:$0xff]
    %v4505 = vld [vmem:[#allocation14 + $0xf90] sm:$0xff]
    %v4506 = vld [vmem:[#allocation14 + $0xf98] sm:$0xff]
    %v4507 = vld [vmem:[#allocation14 + $0xfa0] sm:$0xff]
    %v4508 = vld [vmem:[#allocation14 + $0xfa8] sm:$0xff]
    %v4509 = vld [vmem:[#allocation14 + $0xfb0] sm:$0xff]
    %v4510 = vld [vmem:[#allocation14 + $0xfb8] sm:$0xff]
    %v4511 = vld [vmem:[#allocation14 + $0xfc0] sm:$0xff]
    %v4512 = vld [vmem:[#allocation14 + $0xfc8] sm:$0xff]
    %v4513 = vld [vmem:[#allocation14 + $0xfd0] sm:$0xff]
    %v4514 = vld [vmem:[#allocation14 + $0xfd8] sm:$0xff]
    %v4515 = vld [vmem:[#allocation14 + $0xfe0] sm:$0xff]
    %v4516 = vld [vmem:[#allocation14 + $0xfe8] sm:$0xff]
    %v4517 = vld [vmem:[#allocation14 + $0xff0] sm:$0xff]
    %v4518 = vld [vmem:[#allocation14 + $0xff8] sm:$0xff]
    %4519 = vmatpush.msra.mxu0 %v4067
    %4520 = vmatpush.msra.mxu0 %v4063
    %4521 = vmatpush.msra.mxu0 %v4059
    %4522 = vmatpush.msra.mxu0 %v4055
    %4523 = vmatpush.msra.mxu0 %v4051
    %4524 = vmatpush.msra.mxu0 %v4047
    %4525 = vmatpush.msra.mxu0 %v4043
    %4526 = vmatpush.msra.mxu0 %v4039
    %4527 = vmatpush.msra.mxu0 %v4035
    %4528 = vmatpush.msra.mxu0 %v4031
    %4529 = vmatpush.msra.mxu0 %v4027
    %4530 = vmatpush.msra.mxu0 %v4023
    %4531 = vmatpush.msra.mxu0 %v4019
    %4532 = vmatpush.msra.mxu0 %v4015
    %4533 = vmatpush.msra.mxu0 %v4011
    %4534 = vmatpush.msra.mxu0 %v4007
    %4535 = vmatmul.f32.gmra.mxu0 %v3999
    %v4536 = vpop.f32.mrf.mxu0
    %v4537 = vadd.f32 0.0, %v4536
    %4538 = vdwg.mxu0
    %4539 = vmatpush.msra.mxu0 %v4131
    %4540 = vmatpush.msra.mxu0 %v4127
    %4541 = vmatpush.msra.mxu0 %v4123
    %4542 = vmatpush.msra.mxu0 %v4119
    %4543 = vmatpush.msra.mxu0 %v4115
    %4544 = vmatpush.msra.mxu0 %v4111
    %4545 = vmatpush.msra.mxu0 %v4107
    %4546 = vmatpush.msra.mxu0 %v4103
    %4547 = vmatpush.msra.mxu0 %v4099
    %4548 = vmatpush.msra.mxu0 %v4095
    %4549 = vmatpush.msra.mxu0 %v4091
    %4550 = vmatpush.msra.mxu0 %v4087
    %4551 = vmatpush.msra.mxu0 %v4083
    %4552 = vmatpush.msra.mxu0 %v4079
    %4553 = vmatpush.msra.mxu0 %v4075
    %4554 = vmatpush.msra.mxu0 %v4071
    %4555 = vmatmul.f32.gmra.mxu0 %v4000
    %v4556 = vpop.f32.mrf.mxu0
    %v4557 = vadd.f32 %v4537, %v4556
    %4558 = vdwg.mxu0
    %4559 = vmatpush.msra.mxu0 %v4195
    %4560 = vmatpush.msra.mxu0 %v4191
    %4561 = vmatpush.msra.mxu0 %v4187
    %4562 = vmatpush.msra.mxu0 %v4183
    %4563 = vmatpush.msra.mxu0 %v4179
    %4564 = vmatpush.msra.mxu0 %v4175
    %4565 = vmatpush.msra.mxu0 %v4171
    %4566 = vmatpush.msra.mxu0 %v4167
    %4567 = vmatpush.msra.mxu0 %v4163
    %4568 = vmatpush.msra.mxu0 %v4159
    %4569 = vmatpush.msra.mxu0 %v4155
    %4570 = vmatpush.msra.mxu0 %v4151
    %4571 = vmatpush.msra.mxu0 %v4147
    %4572 = vmatpush.msra.mxu0 %v4143
    %4573 = vmatpush.msra.mxu0 %v4139
    %4574 = vmatpush.msra.mxu0 %v4135
    %4575 = vmatmul.f32.gmra.mxu0 %v4001
    %v4576 = vpop.f32.mrf.mxu0
    %v4577 = vadd.f32 %v4557, %v4576
    %4578 = vdwg.mxu0
    %4579 = vmatpush.msra.mxu0 %v4259
    %4580 = vmatpush.msra.mxu0 %v4255
    %4581 = vmatpush.msra.mxu0 %v4251
    %4582 = vmatpush.msra.mxu0 %v4247
    %4583 = vmatpush.msra.mxu0 %v4243
    %4584 = vmatpush.msra.mxu0 %v4239
    %4585 = vmatpush.msra.mxu0 %v4235
    %4586 = vmatpush.msra.mxu0 %v4231
    %4587 = vmatpush.msra.mxu0 %v4227
    %4588 = vmatpush.msra.mxu0 %v4223
    %4589 = vmatpush.msra.mxu0 %v4219
    %4590 = vmatpush.msra.mxu0 %v4215
    %4591 = vmatpush.msra.mxu0 %v4211
    %4592 = vmatpush.msra.mxu0 %v4207
    %4593 = vmatpush.msra.mxu0 %v4203
    %4594 = vmatpush.msra.mxu0 %v4199
    %4595 = vmatmul.f32.gmra.mxu0 %v4002
    %v4596 = vpop.f32.mrf.mxu0
    %v4597 = vadd.f32 %v4577, %v4596
    %4598 = vdwg.mxu0
    %4599 = vmatpush.msra.mxu0 %v4323
    %4600 = vmatpush.msra.mxu0 %v4319
    %4601 = vmatpush.msra.mxu0 %v4315
    %4602 = vmatpush.msra.mxu0 %v4311
    %4603 = vmatpush.msra.mxu0 %v4307
    %4604 = vmatpush.msra.mxu0 %v4303
    %4605 = vmatpush.msra.mxu0 %v4299
    %4606 = vmatpush.msra.mxu0 %v4295
    %4607 = vmatpush.msra.mxu0 %v4291
    %4608 = vmatpush.msra.mxu0 %v4287
    %4609 = vmatpush.msra.mxu0 %v4283
    %4610 = vmatpush.msra.mxu0 %v4279
    %4611 = vmatpush.msra.mxu0 %v4275
    %4612 = vmatpush.msra.mxu0 %v4271
    %4613 = vmatpush.msra.mxu0 %v4267
    %4614 = vmatpush.msra.mxu0 %v4263
    %4615 = vmatmul.f32.gmra.mxu0 %v4003
    %v4616 = vpop.f32.mrf.mxu0
    %v4617 = vadd.f32 %v4597, %v4616
    %4618 = vdwg.mxu0
    %4619 = vmatpush.msra.mxu0 %v4387
    %4620 = vmatpush.msra.mxu0 %v4383
    %4621 = vmatpush.msra.mxu0 %v4379
    %4622 = vmatpush.msra.mxu0 %v4375
    %4623 = vmatpush.msra.mxu0 %v4371
    %4624 = vmatpush.msra.mxu0 %v4367
    %4625 = vmatpush.msra.mxu0 %v4363
    %4626 = vmatpush.msra.mxu0 %v4359
    %4627 = vmatpush.msra.mxu0 %v4355
    %4628 = vmatpush.msra.mxu0 %v4351
    %4629 = vmatpush.msra.mxu0 %v4347
    %4630 = vmatpush.msra.mxu0 %v4343
    %4631 = vmatpush.msra.mxu0 %v4339
    %4632 = vmatpush.msra.mxu0 %v4335
    %4633 = vmatpush.msra.mxu0 %v4331
    %4634 = vmatpush.msra.mxu0 %v4327
    %4635 = vmatmul.f32.gmra.mxu0 %v4004
    %v4636 = vpop.f32.mrf.mxu0
    %v4637 = vadd.f32 %v4617, %v4636
    %4638 = vdwg.mxu0
    %4639 = vmatpush.msra.mxu0 %v4451
    %4640 = vmatpush.msra.mxu0 %v4447
    %4641 = vmatpush.msra.mxu0 %v4443
    %4642 = vmatpush.msra.mxu0 %v4439
    %4643 = vmatpush.msra.mxu0 %v4435
    %4644 = vmatpush.msra.mxu0 %v4431
    %4645 = vmatpush.msra.mxu0 %v4427
    %4646 = vmatpush.msra.mxu0 %v4423
    %4647 = vmatpush.msra.mxu0 %v4419
    %4648 = vmatpush.msra.mxu0 %v4415
    %4649 = vmatpush.msra.mxu0 %v4411
    %4650 = vmatpush.msra.mxu0 %v4407
    %4651 = vmatpush.msra.mxu0 %v4403
    %4652 = vmatpush.msra.mxu0 %v4399
    %4653 = vmatpush.msra.mxu0 %v4395
    %4654 = vmatpush.msra.mxu0 %v4391
    %4655 = vmatmul.f32.gmra.mxu0 %v4005
    %v4656 = vpop.f32.mrf.mxu0
    %v4657 = vadd.f32 %v4637, %v4656
    %4658 = vdwg.mxu0
    %4659 = vmatpush.msra.mxu0 %v4515
    %4660 = vmatpush.msra.mxu0 %v4511
    %4661 = vmatpush.msra.mxu0 %v4507
    %4662 = vmatpush.msra.mxu0 %v4503
    %4663 = vmatpush.msra.mxu0 %v4499
    %4664 = vmatpush.msra.mxu0 %v4495
    %4665 = vmatpush.msra.mxu0 %v4491
    %4666 = vmatpush.msra.mxu0 %v4487
    %4667 = vmatpush.msra.mxu0 %v4483
    %4668 = vmatpush.msra.mxu0 %v4479
    %4669 = vmatpush.msra.mxu0 %v4475
    %4670 = vmatpush.msra.mxu0 %v4471
    %4671 = vmatpush.msra.mxu0 %v4467
    %4672 = vmatpush.msra.mxu0 %v4463
    %4673 = vmatpush.msra.mxu0 %v4459
    %4674 = vmatpush.msra.mxu0 %v4455
    %4675 = vmatmul.f32.gmra.mxu0 %v4006
    %v4676 = vpop.f32.mrf.mxu0
    %v4677 = vadd.f32 %v4657, %v4676
    %4678 = vdwg.mxu0
    %4679 = vmatpush.msra.mxu0 %v4068
    %4680 = vmatpush.msra.mxu0 %v4064
    %4681 = vmatpush.msra.mxu0 %v4060
    %4682 = vmatpush.msra.mxu0 %v4056
    %4683 = vmatpush.msra.mxu0 %v4052
    %4684 = vmatpush.msra.mxu0 %v4048
    %4685 = vmatpush.msra.mxu0 %v4044
    %4686 = vmatpush.msra.mxu0 %v4040
    %4687 = vmatpush.msra.mxu0 %v4036
    %4688 = vmatpush.msra.mxu0 %v4032
    %4689 = vmatpush.msra.mxu0 %v4028
    %4690 = vmatpush.msra.mxu0 %v4024
    %4691 = vmatpush.msra.mxu0 %v4020
    %4692 = vmatpush.msra.mxu0 %v4016
    %4693 = vmatpush.msra.mxu0 %v4012
    %4694 = vmatpush.msra.mxu0 %v4008
    %4695 = vmatmul.f32.gmra.mxu0 %v3999
    %v4696 = vpop.f32.mrf.mxu0
    %v4697 = vadd.f32 0.0, %v4696
    %4698 = vdwg.mxu0
    %4699 = vmatpush.msra.mxu0 %v4132
    %4700 = vmatpush.msra.mxu0 %v4128
    %4701 = vmatpush.msra.mxu0 %v4124
    %4702 = vmatpush.msra.mxu0 %v4120
    %4703 = vmatpush.msra.mxu0 %v4116
    %4704 = vmatpush.msra.mxu0 %v4112
    %4705 = vmatpush.msra.mxu0 %v4108
    %4706 = vmatpush.msra.mxu0 %v4104
    %4707 = vmatpush.msra.mxu0 %v4100
    %4708 = vmatpush.msra.mxu0 %v4096
    %4709 = vmatpush.msra.mxu0 %v4092
    %4710 = vmatpush.msra.mxu0 %v4088
    %4711 = vmatpush.msra.mxu0 %v4084
    %4712 = vmatpush.msra.mxu0 %v4080
    %4713 = vmatpush.msra.mxu0 %v4076
    %4714 = vmatpush.msra.mxu0 %v4072
    %4715 = vmatmul.f32.gmra.mxu0 %v4000
    %v4716 = vpop.f32.mrf.mxu0
    %v4717 = vadd.f32 %v4697, %v4716
    %4718 = vdwg.mxu0
    %4719 = vmatpush.msra.mxu0 %v4196
    %4720 = vmatpush.msra.mxu0 %v4192
    %4721 = vmatpush.msra.mxu0 %v4188
    %4722 = vmatpush.msra.mxu0 %v4184
    %4723 = vmatpush.msra.mxu0 %v4180
    %4724 = vmatpush.msra.mxu0 %v4176
    %4725 = vmatpush.msra.mxu0 %v4172
    %4726 = vmatpush.msra.mxu0 %v4168
    %4727 = vmatpush.msra.mxu0 %v4164
    %4728 = vmatpush.msra.mxu0 %v4160
    %4729 = vmatpush.msra.mxu0 %v4156
    %4730 = vmatpush.msra.mxu0 %v4152
    %4731 = vmatpush.msra.mxu0 %v4148
    %4732 = vmatpush.msra.mxu0 %v4144
    %4733 = vmatpush.msra.mxu0 %v4140
    %4734 = vmatpush.msra.mxu0 %v4136
    %4735 = vmatmul.f32.gmra.mxu0 %v4001
    %v4736 = vpop.f32.mrf.mxu0
    %v4737 = vadd.f32 %v4717, %v4736
    %4738 = vdwg.mxu0
    %4739 = vmatpush.msra.mxu0 %v4260
    %4740 = vmatpush.msra.mxu0 %v4256
    %4741 = vmatpush.msra.mxu0 %v4252
    %4742 = vmatpush.msra.mxu0 %v4248
    %4743 = vmatpush.msra.mxu0 %v4244
    %4744 = vmatpush.msra.mxu0 %v4240
    %4745 = vmatpush.msra.mxu0 %v4236
    %4746 = vmatpush.msra.mxu0 %v4232
    %4747 = vmatpush.msra.mxu0 %v4228
    %4748 = vmatpush.msra.mxu0 %v4224
    %4749 = vmatpush.msra.mxu0 %v4220
    %4750 = vmatpush.msra.mxu0 %v4216
    %4751 = vmatpush.msra.mxu0 %v4212
    %4752 = vmatpush.msra.mxu0 %v4208
    %4753 = vmatpush.msra.mxu0 %v4204
    %4754 = vmatpush.msra.mxu0 %v4200
    %4755 = vmatmul.f32.gmra.mxu0 %v4002
    %v4756 = vpop.f32.mrf.mxu0
    %v4757 = vadd.f32 %v4737, %v4756
    %4758 = vdwg.mxu0
    %4759 = vmatpush.msra.mxu0 %v4324
    %4760 = vmatpush.msra.mxu0 %v4320
    %4761 = vmatpush.msra.mxu0 %v4316
    %4762 = vmatpush.msra.mxu0 %v4312
    %4763 = vmatpush.msra.mxu0 %v4308
    %4764 = vmatpush.msra.mxu0 %v4304
    %4765 = vmatpush.msra.mxu0 %v4300
    %4766 = vmatpush.msra.mxu0 %v4296
    %4767 = vmatpush.msra.mxu0 %v4292
    %4768 = vmatpush.msra.mxu0 %v4288
    %4769 = vmatpush.msra.mxu0 %v4284
    %4770 = vmatpush.msra.mxu0 %v4280
    %4771 = vmatpush.msra.mxu0 %v4276
    %4772 = vmatpush.msra.mxu0 %v4272
    %4773 = vmatpush.msra.mxu0 %v4268
    %4774 = vmatpush.msra.mxu0 %v4264
    %4775 = vmatmul.f32.gmra.mxu0 %v4003
    %v4776 = vpop.f32.mrf.mxu0
    %v4777 = vadd.f32 %v4757, %v4776
    %4778 = vdwg.mxu0
    %4779 = vmatpush.msra.mxu0 %v4388
    %4780 = vmatpush.msra.mxu0 %v4384
    %4781 = vmatpush.msra.mxu0 %v4380
    %4782 = vmatpush.msra.mxu0 %v4376
    %4783 = vmatpush.msra.mxu0 %v4372
    %4784 = vmatpush.msra.mxu0 %v4368
    %4785 = vmatpush.msra.mxu0 %v4364
    %4786 = vmatpush.msra.mxu0 %v4360
    %4787 = vmatpush.msra.mxu0 %v4356
    %4788 = vmatpush.msra.mxu0 %v4352
    %4789 = vmatpush.msra.mxu0 %v4348
    %4790 = vmatpush.msra.mxu0 %v4344
    %4791 = vmatpush.msra.mxu0 %v4340
    %4792 = vmatpush.msra.mxu0 %v4336
    %4793 = vmatpush.msra.mxu0 %v4332
    %4794 = vmatpush.msra.mxu0 %v4328
    %4795 = vmatmul.f32.gmra.mxu0 %v4004
    %v4796 = vpop.f32.mrf.mxu0
    %v4797 = vadd.f32 %v4777, %v4796
    %4798 = vdwg.mxu0
    %4799 = vmatpush.msra.mxu0 %v4452
    %4800 = vmatpush.msra.mxu0 %v4448
    %4801 = vmatpush.msra.mxu0 %v4444
    %4802 = vmatpush.msra.mxu0 %v4440
    %4803 = vmatpush.msra.mxu0 %v4436
    %4804 = vmatpush.msra.mxu0 %v4432
    %4805 = vmatpush.msra.mxu0 %v4428
    %4806 = vmatpush.msra.mxu0 %v4424
    %4807 = vmatpush.msra.mxu0 %v4420
    %4808 = vmatpush.msra.mxu0 %v4416
    %4809 = vmatpush.msra.mxu0 %v4412
    %4810 = vmatpush.msra.mxu0 %v4408
    %4811 = vmatpush.msra.mxu0 %v4404
    %4812 = vmatpush.msra.mxu0 %v4400
    %4813 = vmatpush.msra.mxu0 %v4396
    %4814 = vmatpush.msra.mxu0 %v4392
    %4815 = vmatmul.f32.gmra.mxu0 %v4005
    %v4816 = vpop.f32.mrf.mxu0
    %v4817 = vadd.f32 %v4797, %v4816
    %4818 = vdwg.mxu0
    %4819 = vmatpush.msra.mxu0 %v4516
    %4820 = vmatpush.msra.mxu0 %v4512
    %4821 = vmatpush.msra.mxu0 %v4508
    %4822 = vmatpush.msra.mxu0 %v4504
    %4823 = vmatpush.msra.mxu0 %v4500
    %4824 = vmatpush.msra.mxu0 %v4496
    %4825 = vmatpush.msra.mxu0 %v4492
    %4826 = vmatpush.msra.mxu0 %v4488
    %4827 = vmatpush.msra.mxu0 %v4484
    %4828 = vmatpush.msra.mxu0 %v4480
    %4829 = vmatpush.msra.mxu0 %v4476
    %4830 = vmatpush.msra.mxu0 %v4472
    %4831 = vmatpush.msra.mxu0 %v4468
    %4832 = vmatpush.msra.mxu0 %v4464
    %4833 = vmatpush.msra.mxu0 %v4460
    %4834 = vmatpush.msra.mxu0 %v4456
    %4835 = vmatmul.f32.gmra.mxu0 %v4006
    %v4836 = vpop.f32.mrf.mxu0
    %v4837 = vadd.f32 %v4817, %v4836
    %4838 = vdwg.mxu0
    %4839 = vmatpush.msra.mxu0 %v4069
    %4840 = vmatpush.msra.mxu0 %v4065
    %4841 = vmatpush.msra.mxu0 %v4061
    %4842 = vmatpush.msra.mxu0 %v4057
    %4843 = vmatpush.msra.mxu0 %v4053
    %4844 = vmatpush.msra.mxu0 %v4049
    %4845 = vmatpush.msra.mxu0 %v4045
    %4846 = vmatpush.msra.mxu0 %v4041
    %4847 = vmatpush.msra.mxu0 %v4037
    %4848 = vmatpush.msra.mxu0 %v4033
    %4849 = vmatpush.msra.mxu0 %v4029
    %4850 = vmatpush.msra.mxu0 %v4025
    %4851 = vmatpush.msra.mxu0 %v4021
    %4852 = vmatpush.msra.mxu0 %v4017
    %4853 = vmatpush.msra.mxu0 %v4013
    %4854 = vmatpush.msra.mxu0 %v4009
    %4855 = vmatmul.f32.gmra.mxu0 %v3999
    %v4856 = vpop.f32.mrf.mxu0
    %v4857 = vadd.f32 0.0, %v4856
    %4858 = vdwg.mxu0
    %4859 = vmatpush.msra.mxu0 %v4133
    %4860 = vmatpush.msra.mxu0 %v4129
    %4861 = vmatpush.msra.mxu0 %v4125
    %4862 = vmatpush.msra.mxu0 %v4121
    %4863 = vmatpush.msra.mxu0 %v4117
    %4864 = vmatpush.msra.mxu0 %v4113
    %4865 = vmatpush.msra.mxu0 %v4109
    %4866 = vmatpush.msra.mxu0 %v4105
    %4867 = vmatpush.msra.mxu0 %v4101
    %4868 = vmatpush.msra.mxu0 %v4097
    %4869 = vmatpush.msra.mxu0 %v4093
    %4870 = vmatpush.msra.mxu0 %v4089
    %4871 = vmatpush.msra.mxu0 %v4085
    %4872 = vmatpush.msra.mxu0 %v4081
    %4873 = vmatpush.msra.mxu0 %v4077
    %4874 = vmatpush.msra.mxu0 %v4073
    %4875 = vmatmul.f32.gmra.mxu0 %v4000
    %v4876 = vpop.f32.mrf.mxu0
    %v4877 = vadd.f32 %v4857, %v4876
    %4878 = vdwg.mxu0
    %4879 = vmatpush.msra.mxu0 %v4197
    %4880 = vmatpush.msra.mxu0 %v4193
    %4881 = vmatpush.msra.mxu0 %v4189
    %4882 = vmatpush.msra.mxu0 %v4185
    %4883 = vmatpush.msra.mxu0 %v4181
    %4884 = vmatpush.msra.mxu0 %v4177
    %4885 = vmatpush.msra.mxu0 %v4173
    %4886 = vmatpush.msra.mxu0 %v4169
    %4887 = vmatpush.msra.mxu0 %v4165
    %4888 = vmatpush.msra.mxu0 %v4161
    %4889 = vmatpush.msra.mxu0 %v4157
    %4890 = vmatpush.msra.mxu0 %v4153
    %4891 = vmatpush.msra.mxu0 %v4149
    %4892 = vmatpush.msra.mxu0 %v4145
    %4893 = vmatpush.msra.mxu0 %v4141
    %4894 = vmatpush.msra.mxu0 %v4137
    %4895 = vmatmul.f32.gmra.mxu0 %v4001
    %v4896 = vpop.f32.mrf.mxu0
    %v4897 = vadd.f32 %v4877, %v4896
    %4898 = vdwg.mxu0
    %4899 = vmatpush.msra.mxu0 %v4261
    %4900 = vmatpush.msra.mxu0 %v4257
    %4901 = vmatpush.msra.mxu0 %v4253
    %4902 = vmatpush.msra.mxu0 %v4249
    %4903 = vmatpush.msra.mxu0 %v4245
    %4904 = vmatpush.msra.mxu0 %v4241
    %4905 = vmatpush.msra.mxu0 %v4237
    %4906 = vmatpush.msra.mxu0 %v4233
    %4907 = vmatpush.msra.mxu0 %v4229
    %4908 = vmatpush.msra.mxu0 %v4225
    %4909 = vmatpush.msra.mxu0 %v4221
    %4910 = vmatpush.msra.mxu0 %v4217
    %4911 = vmatpush.msra.mxu0 %v4213
    %4912 = vmatpush.msra.mxu0 %v4209
    %4913 = vmatpush.msra.mxu0 %v4205
    %4914 = vmatpush.msra.mxu0 %v4201
    %4915 = vmatmul.f32.gmra.mxu0 %v4002
    %v4916 = vpop.f32.mrf.mxu0
    %v4917 = vadd.f32 %v4897, %v4916
    %4918 = vdwg.mxu0
    %4919 = vmatpush.msra.mxu0 %v4325
    %4920 = vmatpush.msra.mxu0 %v4321
    %4921 = vmatpush.msra.mxu0 %v4317
    %4922 = vmatpush.msra.mxu0 %v4313
    %4923 = vmatpush.msra.mxu0 %v4309
    %4924 = vmatpush.msra.mxu0 %v4305
    %4925 = vmatpush.msra.mxu0 %v4301
    %4926 = vmatpush.msra.mxu0 %v4297
    %4927 = vmatpush.msra.mxu0 %v4293
    %4928 = vmatpush.msra.mxu0 %v4289
    %4929 = vmatpush.msra.mxu0 %v4285
    %4930 = vmatpush.msra.mxu0 %v4281
    %4931 = vmatpush.msra.mxu0 %v4277
    %4932 = vmatpush.msra.mxu0 %v4273
    %4933 = vmatpush.msra.mxu0 %v4269
    %4934 = vmatpush.msra.mxu0 %v4265
    %4935 = vmatmul.f32.gmra.mxu0 %v4003
    %v4936 = vpop.f32.mrf.mxu0
    %v4937 = vadd.f32 %v4917, %v4936
    %4938 = vdwg.mxu0
    %4939 = vmatpush.msra.mxu0 %v4389
    %4940 = vmatpush.msra.mxu0 %v4385
    %4941 = vmatpush.msra.mxu0 %v4381
    %4942 = vmatpush.msra.mxu0 %v4377
    %4943 = vmatpush.msra.mxu0 %v4373
    %4944 = vmatpush.msra.mxu0 %v4369
    %4945 = vmatpush.msra.mxu0 %v4365
    %4946 = vmatpush.msra.mxu0 %v4361
    %4947 = vmatpush.msra.mxu0 %v4357
    %4948 = vmatpush.msra.mxu0 %v4353
    %4949 = vmatpush.msra.mxu0 %v4349
    %4950 = vmatpush.msra.mxu0 %v4345
    %4951 = vmatpush.msra.mxu0 %v4341
    %4952 = vmatpush.msra.mxu0 %v4337
    %4953 = vmatpush.msra.mxu0 %v4333
    %4954 = vmatpush.msra.mxu0 %v4329
    %4955 = vmatmul.f32.gmra.mxu0 %v4004
    %v4956 = vpop.f32.mrf.mxu0
    %v4957 = vadd.f32 %v4937, %v4956
    %4958 = vdwg.mxu0
    %4959 = vmatpush.msra.mxu0 %v4453
    %4960 = vmatpush.msra.mxu0 %v4449
    %4961 = vmatpush.msra.mxu0 %v4445
    %4962 = vmatpush.msra.mxu0 %v4441
    %4963 = vmatpush.msra.mxu0 %v4437
    %4964 = vmatpush.msra.mxu0 %v4433
    %4965 = vmatpush.msra.mxu0 %v4429
    %4966 = vmatpush.msra.mxu0 %v4425
    %4967 = vmatpush.msra.mxu0 %v4421
    %4968 = vmatpush.msra.mxu0 %v4417
    %4969 = vmatpush.msra.mxu0 %v4413
    %4970 = vmatpush.msra.mxu0 %v4409
    %4971 = vmatpush.msra.mxu0 %v4405
    %4972 = vmatpush.msra.mxu0 %v4401
    %4973 = vmatpush.msra.mxu0 %v4397
    %4974 = vmatpush.msra.mxu0 %v4393
    %4975 = vmatmul.f32.gmra.mxu0 %v4005
    %v4976 = vpop.f32.mrf.mxu0
    %v4977 = vadd.f32 %v4957, %v4976
    %4978 = vdwg.mxu0
    %4979 = vmatpush.msra.mxu0 %v4517
    %4980 = vmatpush.msra.mxu0 %v4513
    %4981 = vmatpush.msra.mxu0 %v4509
    %4982 = vmatpush.msra.mxu0 %v4505
    %4983 = vmatpush.msra.mxu0 %v4501
    %4984 = vmatpush.msra.mxu0 %v4497
    %4985 = vmatpush.msra.mxu0 %v4493
    %4986 = vmatpush.msra.mxu0 %v4489
    %4987 = vmatpush.msra.mxu0 %v4485
    %4988 = vmatpush.msra.mxu0 %v4481
    %4989 = vmatpush.msra.mxu0 %v4477
    %4990 = vmatpush.msra.mxu0 %v4473
    %4991 = vmatpush.msra.mxu0 %v4469
    %4992 = vmatpush.msra.mxu0 %v4465
    %4993 = vmatpush.msra.mxu0 %v4461
    %4994 = vmatpush.msra.mxu0 %v4457
    %4995 = vmatmul.f32.gmra.mxu0 %v4006
    %v4996 = vpop.f32.mrf.mxu0
    %v4997 = vadd.f32 %v4977, %v4996
    %4998 = vdwg.mxu0
    %4999 = vmatpush.msra.mxu0 %v4070
    %5000 = vmatpush.msra.mxu0 %v4066
    %5001 = vmatpush.msra.mxu0 %v4062
    %5002 = vmatpush.msra.mxu0 %v4058
    %5003 = vmatpush.msra.mxu0 %v4054
    %5004 = vmatpush.msra.mxu0 %v4050
    %5005 = vmatpush.msra.mxu0 %v4046
    %5006 = vmatpush.msra.mxu0 %v4042
    %5007 = vmatpush.msra.mxu0 %v4038
    %5008 = vmatpush.msra.mxu0 %v4034
    %5009 = vmatpush.msra.mxu0 %v4030
    %5010 = vmatpush.msra.mxu0 %v4026
    %5011 = vmatpush.msra.mxu0 %v4022
    %5012 = vmatpush.msra.mxu0 %v4018
    %5013 = vmatpush.msra.mxu0 %v4014
    %5014 = vmatpush.msra.mxu0 %v4010
    %5015 = vmatmul.f32.gmra.mxu0 %v3999
    %v5016 = vpop.f32.mrf.mxu0
    %v5017 = vadd.f32 0.0, %v5016
    %5018 = vdwg.mxu0
    %5019 = vmatpush.msra.mxu0 %v4134
    %5020 = vmatpush.msra.mxu0 %v4130
    %5021 = vmatpush.msra.mxu0 %v4126
    %5022 = vmatpush.msra.mxu0 %v4122
    %5023 = vmatpush.msra.mxu0 %v4118
    %5024 = vmatpush.msra.mxu0 %v4114
    %5025 = vmatpush.msra.mxu0 %v4110
    %5026 = vmatpush.msra.mxu0 %v4106
    %5027 = vmatpush.msra.mxu0 %v4102
    %5028 = vmatpush.msra.mxu0 %v4098
    %5029 = vmatpush.msra.mxu0 %v4094
    %5030 = vmatpush.msra.mxu0 %v4090
    %5031 = vmatpush.msra.mxu0 %v4086
    %5032 = vmatpush.msra.mxu0 %v4082
    %5033 = vmatpush.msra.mxu0 %v4078
    %5034 = vmatpush.msra.mxu0 %v4074
    %5035 = vmatmul.f32.gmra.mxu0 %v4000
    %v5036 = vpop.f32.mrf.mxu0
    %v5037 = vadd.f32 %v5017, %v5036
    %5038 = vdwg.mxu0
    %5039 = vmatpush.msra.mxu0 %v4198
    %5040 = vmatpush.msra.mxu0 %v4194
    %5041 = vmatpush.msra.mxu0 %v4190
    %5042 = vmatpush.msra.mxu0 %v4186
    %5043 = vmatpush.msra.mxu0 %v4182
    %5044 = vmatpush.msra.mxu0 %v4178
    %5045 = vmatpush.msra.mxu0 %v4174
    %5046 = vmatpush.msra.mxu0 %v4170
    %5047 = vmatpush.msra.mxu0 %v4166
    %5048 = vmatpush.msra.mxu0 %v4162
    %5049 = vmatpush.msra.mxu0 %v4158
    %5050 = vmatpush.msra.mxu0 %v4154
    %5051 = vmatpush.msra.mxu0 %v4150
    %5052 = vmatpush.msra.mxu0 %v4146
    %5053 = vmatpush.msra.mxu0 %v4142
    %5054 = vmatpush.msra.mxu0 %v4138
    %5055 = vmatmul.f32.gmra.mxu0 %v4001
    %v5056 = vpop.f32.mrf.mxu0
    %v5057 = vadd.f32 %v5037, %v5056
    %5058 = vdwg.mxu0
    %5059 = vmatpush.msra.mxu0 %v4262
    %5060 = vmatpush.msra.mxu0 %v4258
    %5061 = vmatpush.msra.mxu0 %v4254
    %5062 = vmatpush.msra.mxu0 %v4250
    %5063 = vmatpush.msra.mxu0 %v4246
    %5064 = vmatpush.msra.mxu0 %v4242
    %5065 = vmatpush.msra.mxu0 %v4238
    %5066 = vmatpush.msra.mxu0 %v4234
    %5067 = vmatpush.msra.mxu0 %v4230
    %5068 = vmatpush.msra.mxu0 %v4226
    %5069 = vmatpush.msra.mxu0 %v4222
    %5070 = vmatpush.msra.mxu0 %v4218
    %5071 = vmatpush.msra.mxu0 %v4214
    %5072 = vmatpush.msra.mxu0 %v4210
    %5073 = vmatpush.msra.mxu0 %v4206
    %5074 = vmatpush.msra.mxu0 %v4202
    %5075 = vmatmul.f32.gmra.mxu0 %v4002
    %v5076 = vpop.f32.mrf.mxu0
    %v5077 = vadd.f32 %v5057, %v5076
    %5078 = vdwg.mxu0
    %5079 = vmatpush.msra.mxu0 %v4326
    %5080 = vmatpush.msra.mxu0 %v4322
    %5081 = vmatpush.msra.mxu0 %v4318
    %5082 = vmatpush.msra.mxu0 %v4314
    %5083 = vmatpush.msra.mxu0 %v4310
    %5084 = vmatpush.msra.mxu0 %v4306
    %5085 = vmatpush.msra.mxu0 %v4302
    %5086 = vmatpush.msra.mxu0 %v4298
    %5087 = vmatpush.msra.mxu0 %v4294
    %5088 = vmatpush.msra.mxu0 %v4290
    %5089 = vmatpush.msra.mxu0 %v4286
    %5090 = vmatpush.msra.mxu0 %v4282
    %5091 = vmatpush.msra.mxu0 %v4278
    %5092 = vmatpush.msra.mxu0 %v4274
    %5093 = vmatpush.msra.mxu0 %v4270
    %5094 = vmatpush.msra.mxu0 %v4266
    %5095 = vmatmul.f32.gmra.mxu0 %v4003
    %v5096 = vpop.f32.mrf.mxu0
    %v5097 = vadd.f32 %v5077, %v5096
    %5098 = vdwg.mxu0
    %5099 = vmatpush.msra.mxu0 %v4390
    %5100 = vmatpush.msra.mxu0 %v4386
    %5101 = vmatpush.msra.mxu0 %v4382
    %5102 = vmatpush.msra.mxu0 %v4378
    %5103 = vmatpush.msra.mxu0 %v4374
    %5104 = vmatpush.msra.mxu0 %v4370
    %5105 = vmatpush.msra.mxu0 %v4366
    %5106 = vmatpush.msra.mxu0 %v4362
    %5107 = vmatpush.msra.mxu0 %v4358
    %5108 = vmatpush.msra.mxu0 %v4354
    %5109 = vmatpush.msra.mxu0 %v4350
    %5110 = vmatpush.msra.mxu0 %v4346
    %5111 = vmatpush.msra.mxu0 %v4342
    %5112 = vmatpush.msra.mxu0 %v4338
    %5113 = vmatpush.msra.mxu0 %v4334
    %5114 = vmatpush.msra.mxu0 %v4330
    %5115 = vmatmul.f32.gmra.mxu0 %v4004
    %v5116 = vpop.f32.mrf.mxu0
    %v5117 = vadd.f32 %v5097, %v5116
    %5118 = vdwg.mxu0
    %5119 = vmatpush.msra.mxu0 %v4454
    %5120 = vmatpush.msra.mxu0 %v4450
    %5121 = vmatpush.msra.mxu0 %v4446
    %5122 = vmatpush.msra.mxu0 %v4442
    %5123 = vmatpush.msra.mxu0 %v4438
    %5124 = vmatpush.msra.mxu0 %v4434
    %5125 = vmatpush.msra.mxu0 %v4430
    %5126 = vmatpush.msra.mxu0 %v4426
    %5127 = vmatpush.msra.mxu0 %v4422
    %5128 = vmatpush.msra.mxu0 %v4418
    %5129 = vmatpush.msra.mxu0 %v4414
    %5130 = vmatpush.msra.mxu0 %v4410
    %5131 = vmatpush.msra.mxu0 %v4406
    %5132 = vmatpush.msra.mxu0 %v4402
    %5133 = vmatpush.msra.mxu0 %v4398
    %5134 = vmatpush.msra.mxu0 %v4394
    %5135 = vmatmul.f32.gmra.mxu0 %v4005
    %v5136 = vpop.f32.mrf.mxu0
    %v5137 = vadd.f32 %v5117, %v5136
    %5138 = vdwg.mxu0
    %5139 = vmatpush.msra.mxu0 %v4518
    %5140 = vmatpush.msra.mxu0 %v4514
    %5141 = vmatpush.msra.mxu0 %v4510
    %5142 = vmatpush.msra.mxu0 %v4506
    %5143 = vmatpush.msra.mxu0 %v4502
    %5144 = vmatpush.msra.mxu0 %v4498
    %5145 = vmatpush.msra.mxu0 %v4494
    %5146 = vmatpush.msra.mxu0 %v4490
    %5147 = vmatpush.msra.mxu0 %v4486
    %5148 = vmatpush.msra.mxu0 %v4482
    %5149 = vmatpush.msra.mxu0 %v4478
    %5150 = vmatpush.msra.mxu0 %v4474
    %5151 = vmatpush.msra.mxu0 %v4470
    %5152 = vmatpush.msra.mxu0 %v4466
    %5153 = vmatpush.msra.mxu0 %v4462
    %5154 = vmatpush.msra.mxu0 %v4458
    %5155 = vmatmul.f32.gmra.mxu0 %v4006
    %v5156 = vpop.f32.mrf.mxu0
    %v5157 = vadd.f32 %v5137, %v5156
    %5158 = vdwg.mxu0
    %v5159 = vld [vmem:[#allocation16] sm:$0xff]
    %v5160 = vld [vmem:[#allocation16 + $0x8] sm:$0xff]
    %v5161 = vld [vmem:[#allocation16 + $0x10] sm:$0xff]
    %v5162 = vld [vmem:[#allocation16 + $0x18] sm:$0xff]
    %v5163 = vld [vmem:[#allocation16 + $0x20] sm:$0xff]
    %v5164 = vld [vmem:[#allocation16 + $0x28] sm:$0xff]
    %v5165 = vld [vmem:[#allocation16 + $0x30] sm:$0xff]
    %v5166 = vld [vmem:[#allocation16 + $0x38] sm:$0xff]
    %v5167 = vld [vmem:[#allocation16 + $0x40] sm:$0xff]
    %v5168 = vld [vmem:[#allocation16 + $0x48] sm:$0xff]
    %v5169 = vld [vmem:[#allocation16 + $0x50] sm:$0xff]
    %v5170 = vld [vmem:[#allocation16 + $0x58] sm:$0xff]
    %v5171 = vld [vmem:[#allocation16 + $0x60] sm:$0xff]
    %v5172 = vld [vmem:[#allocation16 + $0x68] sm:$0xff]
    %v5173 = vld [vmem:[#allocation16 + $0x70] sm:$0xff]
    %v5174 = vld [vmem:[#allocation16 + $0x78] sm:$0xff]
    %v5175 = vld [vmem:[#allocation16 + $0x80] sm:$0xff]
    %v5176 = vld [vmem:[#allocation16 + $0x88] sm:$0xff]
    %v5177 = vld [vmem:[#allocation16 + $0x90] sm:$0xff]
    %v5178 = vld [vmem:[#allocation16 + $0x98] sm:$0xff]
    %v5179 = vld [vmem:[#allocation16 + $0xa0] sm:$0xff]
    %v5180 = vld [vmem:[#allocation16 + $0xa8] sm:$0xff]
    %v5181 = vld [vmem:[#allocation16 + $0xb0] sm:$0xff]
    %v5182 = vld [vmem:[#allocation16 + $0xb8] sm:$0xff]
    %v5183 = vld [vmem:[#allocation16 + $0xc0] sm:$0xff]
    %v5184 = vld [vmem:[#allocation16 + $0xc8] sm:$0xff]
    %v5185 = vld [vmem:[#allocation16 + $0xd0] sm:$0xff]
    %v5186 = vld [vmem:[#allocation16 + $0xd8] sm:$0xff]
    %v5187 = vld [vmem:[#allocation16 + $0xe0] sm:$0xff]
    %v5188 = vld [vmem:[#allocation16 + $0xe8] sm:$0xff]
    %v5189 = vld [vmem:[#allocation16 + $0xf0] sm:$0xff]
    %v5190 = vld [vmem:[#allocation16 + $0xf8] sm:$0xff]
    %v5191 = vld [vmem:[#allocation16 + $0x100] sm:$0xff]
    %v5192 = vld [vmem:[#allocation16 + $0x108] sm:$0xff]
    %v5193 = vld [vmem:[#allocation16 + $0x110] sm:$0xff]
    %v5194 = vld [vmem:[#allocation16 + $0x118] sm:$0xff]
    %v5195 = vld [vmem:[#allocation16 + $0x120] sm:$0xff]
    %v5196 = vld [vmem:[#allocation16 + $0x128] sm:$0xff]
    %v5197 = vld [vmem:[#allocation16 + $0x130] sm:$0xff]
    %v5198 = vld [vmem:[#allocation16 + $0x138] sm:$0xff]
    %v5199 = vld [vmem:[#allocation16 + $0x140] sm:$0xff]
    %v5200 = vld [vmem:[#allocation16 + $0x148] sm:$0xff]
    %v5201 = vld [vmem:[#allocation16 + $0x150] sm:$0xff]
    %v5202 = vld [vmem:[#allocation16 + $0x158] sm:$0xff]
    %v5203 = vld [vmem:[#allocation16 + $0x160] sm:$0xff]
    %v5204 = vld [vmem:[#allocation16 + $0x168] sm:$0xff]
    %v5205 = vld [vmem:[#allocation16 + $0x170] sm:$0xff]
    %v5206 = vld [vmem:[#allocation16 + $0x178] sm:$0xff]
    %v5207 = vld [vmem:[#allocation16 + $0x180] sm:$0xff]
    %v5208 = vld [vmem:[#allocation16 + $0x188] sm:$0xff]
    %v5209 = vld [vmem:[#allocation16 + $0x190] sm:$0xff]
    %v5210 = vld [vmem:[#allocation16 + $0x198] sm:$0xff]
    %v5211 = vld [vmem:[#allocation16 + $0x1a0] sm:$0xff]
    %v5212 = vld [vmem:[#allocation16 + $0x1a8] sm:$0xff]
    %v5213 = vld [vmem:[#allocation16 + $0x1b0] sm:$0xff]
    %v5214 = vld [vmem:[#allocation16 + $0x1b8] sm:$0xff]
    %v5215 = vld [vmem:[#allocation16 + $0x1c0] sm:$0xff]
    %v5216 = vld [vmem:[#allocation16 + $0x1c8] sm:$0xff]
    %v5217 = vld [vmem:[#allocation16 + $0x1d0] sm:$0xff]
    %v5218 = vld [vmem:[#allocation16 + $0x1d8] sm:$0xff]
    %v5219 = vld [vmem:[#allocation16 + $0x1e0] sm:$0xff]
    %v5220 = vld [vmem:[#allocation16 + $0x1e8] sm:$0xff]
    %v5221 = vld [vmem:[#allocation16 + $0x1f0] sm:$0xff]
    %v5222 = vld [vmem:[#allocation16 + $0x1f8] sm:$0xff]
    %v5223 = vld [vmem:[#allocation16 + $0x200] sm:$0xff]
    %v5224 = vld [vmem:[#allocation16 + $0x208] sm:$0xff]
    %v5225 = vld [vmem:[#allocation16 + $0x210] sm:$0xff]
    %v5226 = vld [vmem:[#allocation16 + $0x218] sm:$0xff]
    %v5227 = vld [vmem:[#allocation16 + $0x220] sm:$0xff]
    %v5228 = vld [vmem:[#allocation16 + $0x228] sm:$0xff]
    %v5229 = vld [vmem:[#allocation16 + $0x230] sm:$0xff]
    %v5230 = vld [vmem:[#allocation16 + $0x238] sm:$0xff]
    %v5231 = vld [vmem:[#allocation16 + $0x240] sm:$0xff]
    %v5232 = vld [vmem:[#allocation16 + $0x248] sm:$0xff]
    %v5233 = vld [vmem:[#allocation16 + $0x250] sm:$0xff]
    %v5234 = vld [vmem:[#allocation16 + $0x258] sm:$0xff]
    %v5235 = vld [vmem:[#allocation16 + $0x260] sm:$0xff]
    %v5236 = vld [vmem:[#allocation16 + $0x268] sm:$0xff]
    %v5237 = vld [vmem:[#allocation16 + $0x270] sm:$0xff]
    %v5238 = vld [vmem:[#allocation16 + $0x278] sm:$0xff]
    %v5239 = vld [vmem:[#allocation16 + $0x280] sm:$0xff]
    %v5240 = vld [vmem:[#allocation16 + $0x288] sm:$0xff]
    %v5241 = vld [vmem:[#allocation16 + $0x290] sm:$0xff]
    %v5242 = vld [vmem:[#allocation16 + $0x298] sm:$0xff]
    %v5243 = vld [vmem:[#allocation16 + $0x2a0] sm:$0xff]
    %v5244 = vld [vmem:[#allocation16 + $0x2a8] sm:$0xff]
    %v5245 = vld [vmem:[#allocation16 + $0x2b0] sm:$0xff]
    %v5246 = vld [vmem:[#allocation16 + $0x2b8] sm:$0xff]
    %v5247 = vld [vmem:[#allocation16 + $0x2c0] sm:$0xff]
    %v5248 = vld [vmem:[#allocation16 + $0x2c8] sm:$0xff]
    %v5249 = vld [vmem:[#allocation16 + $0x2d0] sm:$0xff]
    %v5250 = vld [vmem:[#allocation16 + $0x2d8] sm:$0xff]
    %v5251 = vld [vmem:[#allocation16 + $0x2e0] sm:$0xff]
    %v5252 = vld [vmem:[#allocation16 + $0x2e8] sm:$0xff]
    %v5253 = vld [vmem:[#allocation16 + $0x2f0] sm:$0xff]
    %v5254 = vld [vmem:[#allocation16 + $0x2f8] sm:$0xff]
    %v5255 = vld [vmem:[#allocation16 + $0x300] sm:$0xff]
    %v5256 = vld [vmem:[#allocation16 + $0x308] sm:$0xff]
    %v5257 = vld [vmem:[#allocation16 + $0x310] sm:$0xff]
    %v5258 = vld [vmem:[#allocation16 + $0x318] sm:$0xff]
    %v5259 = vld [vmem:[#allocation16 + $0x320] sm:$0xff]
    %v5260 = vld [vmem:[#allocation16 + $0x328] sm:$0xff]
    %v5261 = vld [vmem:[#allocation16 + $0x330] sm:$0xff]
    %v5262 = vld [vmem:[#allocation16 + $0x338] sm:$0xff]
    %v5263 = vld [vmem:[#allocation16 + $0x340] sm:$0xff]
    %v5264 = vld [vmem:[#allocation16 + $0x348] sm:$0xff]
    %v5265 = vld [vmem:[#allocation16 + $0x350] sm:$0xff]
    %v5266 = vld [vmem:[#allocation16 + $0x358] sm:$0xff]
    %v5267 = vld [vmem:[#allocation16 + $0x360] sm:$0xff]
    %v5268 = vld [vmem:[#allocation16 + $0x368] sm:$0xff]
    %v5269 = vld [vmem:[#allocation16 + $0x370] sm:$0xff]
    %v5270 = vld [vmem:[#allocation16 + $0x378] sm:$0xff]
    %v5271 = vld [vmem:[#allocation16 + $0x380] sm:$0xff]
    %v5272 = vld [vmem:[#allocation16 + $0x388] sm:$0xff]
    %v5273 = vld [vmem:[#allocation16 + $0x390] sm:$0xff]
    %v5274 = vld [vmem:[#allocation16 + $0x398] sm:$0xff]
    %v5275 = vld [vmem:[#allocation16 + $0x3a0] sm:$0xff]
    %v5276 = vld [vmem:[#allocation16 + $0x3a8] sm:$0xff]
    %v5277 = vld [vmem:[#allocation16 + $0x3b0] sm:$0xff]
    %v5278 = vld [vmem:[#allocation16 + $0x3b8] sm:$0xff]
    %v5279 = vld [vmem:[#allocation16 + $0x3c0] sm:$0xff]
    %v5280 = vld [vmem:[#allocation16 + $0x3c8] sm:$0xff]
    %v5281 = vld [vmem:[#allocation16 + $0x3d0] sm:$0xff]
    %v5282 = vld [vmem:[#allocation16 + $0x3d8] sm:$0xff]
    %v5283 = vld [vmem:[#allocation16 + $0x3e0] sm:$0xff]
    %v5284 = vld [vmem:[#allocation16 + $0x3e8] sm:$0xff]
    %v5285 = vld [vmem:[#allocation16 + $0x3f0] sm:$0xff]
    %v5286 = vld [vmem:[#allocation16 + $0x3f8] sm:$0xff]
    %v5287 = vld [vmem:[#allocation16 + $0x400] sm:$0xff]
    %v5288 = vld [vmem:[#allocation16 + $0x408] sm:$0xff]
    %v5289 = vld [vmem:[#allocation16 + $0x410] sm:$0xff]
    %v5290 = vld [vmem:[#allocation16 + $0x418] sm:$0xff]
    %v5291 = vld [vmem:[#allocation16 + $0x420] sm:$0xff]
    %v5292 = vld [vmem:[#allocation16 + $0x428] sm:$0xff]
    %v5293 = vld [vmem:[#allocation16 + $0x430] sm:$0xff]
    %v5294 = vld [vmem:[#allocation16 + $0x438] sm:$0xff]
    %v5295 = vld [vmem:[#allocation16 + $0x440] sm:$0xff]
    %v5296 = vld [vmem:[#allocation16 + $0x448] sm:$0xff]
    %v5297 = vld [vmem:[#allocation16 + $0x450] sm:$0xff]
    %v5298 = vld [vmem:[#allocation16 + $0x458] sm:$0xff]
    %v5299 = vld [vmem:[#allocation16 + $0x460] sm:$0xff]
    %v5300 = vld [vmem:[#allocation16 + $0x468] sm:$0xff]
    %v5301 = vld [vmem:[#allocation16 + $0x470] sm:$0xff]
    %v5302 = vld [vmem:[#allocation16 + $0x478] sm:$0xff]
    %v5303 = vld [vmem:[#allocation16 + $0x480] sm:$0xff]
    %v5304 = vld [vmem:[#allocation16 + $0x488] sm:$0xff]
    %v5305 = vld [vmem:[#allocation16 + $0x490] sm:$0xff]
    %v5306 = vld [vmem:[#allocation16 + $0x498] sm:$0xff]
    %v5307 = vld [vmem:[#allocation16 + $0x4a0] sm:$0xff]
    %v5308 = vld [vmem:[#allocation16 + $0x4a8] sm:$0xff]
    %v5309 = vld [vmem:[#allocation16 + $0x4b0] sm:$0xff]
    %v5310 = vld [vmem:[#allocation16 + $0x4b8] sm:$0xff]
    %v5311 = vld [vmem:[#allocation16 + $0x4c0] sm:$0xff]
    %v5312 = vld [vmem:[#allocation16 + $0x4c8] sm:$0xff]
    %v5313 = vld [vmem:[#allocation16 + $0x4d0] sm:$0xff]
    %v5314 = vld [vmem:[#allocation16 + $0x4d8] sm:$0xff]
    %v5315 = vld [vmem:[#allocation16 + $0x4e0] sm:$0xff]
    %v5316 = vld [vmem:[#allocation16 + $0x4e8] sm:$0xff]
    %v5317 = vld [vmem:[#allocation16 + $0x4f0] sm:$0xff]
    %v5318 = vld [vmem:[#allocation16 + $0x4f8] sm:$0xff]
    %v5319 = vld [vmem:[#allocation16 + $0x500] sm:$0xff]
    %v5320 = vld [vmem:[#allocation16 + $0x508] sm:$0xff]
    %v5321 = vld [vmem:[#allocation16 + $0x510] sm:$0xff]
    %v5322 = vld [vmem:[#allocation16 + $0x518] sm:$0xff]
    %v5323 = vld [vmem:[#allocation16 + $0x520] sm:$0xff]
    %v5324 = vld [vmem:[#allocation16 + $0x528] sm:$0xff]
    %v5325 = vld [vmem:[#allocation16 + $0x530] sm:$0xff]
    %v5326 = vld [vmem:[#allocation16 + $0x538] sm:$0xff]
    %v5327 = vld [vmem:[#allocation16 + $0x540] sm:$0xff]
    %v5328 = vld [vmem:[#allocation16 + $0x548] sm:$0xff]
    %v5329 = vld [vmem:[#allocation16 + $0x550] sm:$0xff]
    %v5330 = vld [vmem:[#allocation16 + $0x558] sm:$0xff]
    %v5331 = vld [vmem:[#allocation16 + $0x560] sm:$0xff]
    %v5332 = vld [vmem:[#allocation16 + $0x568] sm:$0xff]
    %v5333 = vld [vmem:[#allocation16 + $0x570] sm:$0xff]
    %v5334 = vld [vmem:[#allocation16 + $0x578] sm:$0xff]
    %v5335 = vld [vmem:[#allocation16 + $0x580] sm:$0xff]
    %v5336 = vld [vmem:[#allocation16 + $0x588] sm:$0xff]
    %v5337 = vld [vmem:[#allocation16 + $0x590] sm:$0xff]
    %v5338 = vld [vmem:[#allocation16 + $0x598] sm:$0xff]
    %v5339 = vld [vmem:[#allocation16 + $0x5a0] sm:$0xff]
    %v5340 = vld [vmem:[#allocation16 + $0x5a8] sm:$0xff]
    %v5341 = vld [vmem:[#allocation16 + $0x5b0] sm:$0xff]
    %v5342 = vld [vmem:[#allocation16 + $0x5b8] sm:$0xff]
    %v5343 = vld [vmem:[#allocation16 + $0x5c0] sm:$0xff]
    %v5344 = vld [vmem:[#allocation16 + $0x5c8] sm:$0xff]
    %v5345 = vld [vmem:[#allocation16 + $0x5d0] sm:$0xff]
    %v5346 = vld [vmem:[#allocation16 + $0x5d8] sm:$0xff]
    %v5347 = vld [vmem:[#allocation16 + $0x5e0] sm:$0xff]
    %v5348 = vld [vmem:[#allocation16 + $0x5e8] sm:$0xff]
    %v5349 = vld [vmem:[#allocation16 + $0x5f0] sm:$0xff]
    %v5350 = vld [vmem:[#allocation16 + $0x5f8] sm:$0xff]
    %v5351 = vld [vmem:[#allocation16 + $0x600] sm:$0xff]
    %v5352 = vld [vmem:[#allocation16 + $0x608] sm:$0xff]
    %v5353 = vld [vmem:[#allocation16 + $0x610] sm:$0xff]
    %v5354 = vld [vmem:[#allocation16 + $0x618] sm:$0xff]
    %v5355 = vld [vmem:[#allocation16 + $0x620] sm:$0xff]
    %v5356 = vld [vmem:[#allocation16 + $0x628] sm:$0xff]
    %v5357 = vld [vmem:[#allocation16 + $0x630] sm:$0xff]
    %v5358 = vld [vmem:[#allocation16 + $0x638] sm:$0xff]
    %v5359 = vld [vmem:[#allocation16 + $0x640] sm:$0xff]
    %v5360 = vld [vmem:[#allocation16 + $0x648] sm:$0xff]
    %v5361 = vld [vmem:[#allocation16 + $0x650] sm:$0xff]
    %v5362 = vld [vmem:[#allocation16 + $0x658] sm:$0xff]
    %v5363 = vld [vmem:[#allocation16 + $0x660] sm:$0xff]
    %v5364 = vld [vmem:[#allocation16 + $0x668] sm:$0xff]
    %v5365 = vld [vmem:[#allocation16 + $0x670] sm:$0xff]
    %v5366 = vld [vmem:[#allocation16 + $0x678] sm:$0xff]
    %v5367 = vld [vmem:[#allocation16 + $0x680] sm:$0xff]
    %v5368 = vld [vmem:[#allocation16 + $0x688] sm:$0xff]
    %v5369 = vld [vmem:[#allocation16 + $0x690] sm:$0xff]
    %v5370 = vld [vmem:[#allocation16 + $0x698] sm:$0xff]
    %v5371 = vld [vmem:[#allocation16 + $0x6a0] sm:$0xff]
    %v5372 = vld [vmem:[#allocation16 + $0x6a8] sm:$0xff]
    %v5373 = vld [vmem:[#allocation16 + $0x6b0] sm:$0xff]
    %v5374 = vld [vmem:[#allocation16 + $0x6b8] sm:$0xff]
    %v5375 = vld [vmem:[#allocation16 + $0x6c0] sm:$0xff]
    %v5376 = vld [vmem:[#allocation16 + $0x6c8] sm:$0xff]
    %v5377 = vld [vmem:[#allocation16 + $0x6d0] sm:$0xff]
    %v5378 = vld [vmem:[#allocation16 + $0x6d8] sm:$0xff]
    %v5379 = vld [vmem:[#allocation16 + $0x6e0] sm:$0xff]
    %v5380 = vld [vmem:[#allocation16 + $0x6e8] sm:$0xff]
    %v5381 = vld [vmem:[#allocation16 + $0x6f0] sm:$0xff]
    %v5382 = vld [vmem:[#allocation16 + $0x6f8] sm:$0xff]
    %v5383 = vld [vmem:[#allocation16 + $0x700] sm:$0xff]
    %v5384 = vld [vmem:[#allocation16 + $0x708] sm:$0xff]
    %v5385 = vld [vmem:[#allocation16 + $0x710] sm:$0xff]
    %v5386 = vld [vmem:[#allocation16 + $0x718] sm:$0xff]
    %v5387 = vld [vmem:[#allocation16 + $0x720] sm:$0xff]
    %v5388 = vld [vmem:[#allocation16 + $0x728] sm:$0xff]
    %v5389 = vld [vmem:[#allocation16 + $0x730] sm:$0xff]
    %v5390 = vld [vmem:[#allocation16 + $0x738] sm:$0xff]
    %v5391 = vld [vmem:[#allocation16 + $0x740] sm:$0xff]
    %v5392 = vld [vmem:[#allocation16 + $0x748] sm:$0xff]
    %v5393 = vld [vmem:[#allocation16 + $0x750] sm:$0xff]
    %v5394 = vld [vmem:[#allocation16 + $0x758] sm:$0xff]
    %v5395 = vld [vmem:[#allocation16 + $0x760] sm:$0xff]
    %v5396 = vld [vmem:[#allocation16 + $0x768] sm:$0xff]
    %v5397 = vld [vmem:[#allocation16 + $0x770] sm:$0xff]
    %v5398 = vld [vmem:[#allocation16 + $0x778] sm:$0xff]
    %v5399 = vld [vmem:[#allocation16 + $0x780] sm:$0xff]
    %v5400 = vld [vmem:[#allocation16 + $0x788] sm:$0xff]
    %v5401 = vld [vmem:[#allocation16 + $0x790] sm:$0xff]
    %v5402 = vld [vmem:[#allocation16 + $0x798] sm:$0xff]
    %v5403 = vld [vmem:[#allocation16 + $0x7a0] sm:$0xff]
    %v5404 = vld [vmem:[#allocation16 + $0x7a8] sm:$0xff]
    %v5405 = vld [vmem:[#allocation16 + $0x7b0] sm:$0xff]
    %v5406 = vld [vmem:[#allocation16 + $0x7b8] sm:$0xff]
    %v5407 = vld [vmem:[#allocation16 + $0x7c0] sm:$0xff]
    %v5408 = vld [vmem:[#allocation16 + $0x7c8] sm:$0xff]
    %v5409 = vld [vmem:[#allocation16 + $0x7d0] sm:$0xff]
    %v5410 = vld [vmem:[#allocation16 + $0x7d8] sm:$0xff]
    %v5411 = vld [vmem:[#allocation16 + $0x7e0] sm:$0xff]
    %v5412 = vld [vmem:[#allocation16 + $0x7e8] sm:$0xff]
    %v5413 = vld [vmem:[#allocation16 + $0x7f0] sm:$0xff]
    %v5414 = vld [vmem:[#allocation16 + $0x7f8] sm:$0xff]
    %v5415 = vld [vmem:[#allocation16 + $0x800] sm:$0xff]
    %v5416 = vld [vmem:[#allocation16 + $0x808] sm:$0xff]
    %v5417 = vld [vmem:[#allocation16 + $0x810] sm:$0xff]
    %v5418 = vld [vmem:[#allocation16 + $0x818] sm:$0xff]
    %v5419 = vld [vmem:[#allocation16 + $0x820] sm:$0xff]
    %v5420 = vld [vmem:[#allocation16 + $0x828] sm:$0xff]
    %v5421 = vld [vmem:[#allocation16 + $0x830] sm:$0xff]
    %v5422 = vld [vmem:[#allocation16 + $0x838] sm:$0xff]
    %v5423 = vld [vmem:[#allocation16 + $0x840] sm:$0xff]
    %v5424 = vld [vmem:[#allocation16 + $0x848] sm:$0xff]
    %v5425 = vld [vmem:[#allocation16 + $0x850] sm:$0xff]
    %v5426 = vld [vmem:[#allocation16 + $0x858] sm:$0xff]
    %v5427 = vld [vmem:[#allocation16 + $0x860] sm:$0xff]
    %v5428 = vld [vmem:[#allocation16 + $0x868] sm:$0xff]
    %v5429 = vld [vmem:[#allocation16 + $0x870] sm:$0xff]
    %v5430 = vld [vmem:[#allocation16 + $0x878] sm:$0xff]
    %v5431 = vld [vmem:[#allocation16 + $0x880] sm:$0xff]
    %v5432 = vld [vmem:[#allocation16 + $0x888] sm:$0xff]
    %v5433 = vld [vmem:[#allocation16 + $0x890] sm:$0xff]
    %v5434 = vld [vmem:[#allocation16 + $0x898] sm:$0xff]
    %v5435 = vld [vmem:[#allocation16 + $0x8a0] sm:$0xff]
    %v5436 = vld [vmem:[#allocation16 + $0x8a8] sm:$0xff]
    %v5437 = vld [vmem:[#allocation16 + $0x8b0] sm:$0xff]
    %v5438 = vld [vmem:[#allocation16 + $0x8b8] sm:$0xff]
    %v5439 = vld [vmem:[#allocation16 + $0x8c0] sm:$0xff]
    %v5440 = vld [vmem:[#allocation16 + $0x8c8] sm:$0xff]
    %v5441 = vld [vmem:[#allocation16 + $0x8d0] sm:$0xff]
    %v5442 = vld [vmem:[#allocation16 + $0x8d8] sm:$0xff]
    %v5443 = vld [vmem:[#allocation16 + $0x8e0] sm:$0xff]
    %v5444 = vld [vmem:[#allocation16 + $0x8e8] sm:$0xff]
    %v5445 = vld [vmem:[#allocation16 + $0x8f0] sm:$0xff]
    %v5446 = vld [vmem:[#allocation16 + $0x8f8] sm:$0xff]
    %v5447 = vld [vmem:[#allocation16 + $0x900] sm:$0xff]
    %v5448 = vld [vmem:[#allocation16 + $0x908] sm:$0xff]
    %v5449 = vld [vmem:[#allocation16 + $0x910] sm:$0xff]
    %v5450 = vld [vmem:[#allocation16 + $0x918] sm:$0xff]
    %v5451 = vld [vmem:[#allocation16 + $0x920] sm:$0xff]
    %v5452 = vld [vmem:[#allocation16 + $0x928] sm:$0xff]
    %v5453 = vld [vmem:[#allocation16 + $0x930] sm:$0xff]
    %v5454 = vld [vmem:[#allocation16 + $0x938] sm:$0xff]
    %v5455 = vld [vmem:[#allocation16 + $0x940] sm:$0xff]
    %v5456 = vld [vmem:[#allocation16 + $0x948] sm:$0xff]
    %v5457 = vld [vmem:[#allocation16 + $0x950] sm:$0xff]
    %v5458 = vld [vmem:[#allocation16 + $0x958] sm:$0xff]
    %v5459 = vld [vmem:[#allocation16 + $0x960] sm:$0xff]
    %v5460 = vld [vmem:[#allocation16 + $0x968] sm:$0xff]
    %v5461 = vld [vmem:[#allocation16 + $0x970] sm:$0xff]
    %v5462 = vld [vmem:[#allocation16 + $0x978] sm:$0xff]
    %v5463 = vld [vmem:[#allocation16 + $0x980] sm:$0xff]
    %v5464 = vld [vmem:[#allocation16 + $0x988] sm:$0xff]
    %v5465 = vld [vmem:[#allocation16 + $0x990] sm:$0xff]
    %v5466 = vld [vmem:[#allocation16 + $0x998] sm:$0xff]
    %v5467 = vld [vmem:[#allocation16 + $0x9a0] sm:$0xff]
    %v5468 = vld [vmem:[#allocation16 + $0x9a8] sm:$0xff]
    %v5469 = vld [vmem:[#allocation16 + $0x9b0] sm:$0xff]
    %v5470 = vld [vmem:[#allocation16 + $0x9b8] sm:$0xff]
    %v5471 = vld [vmem:[#allocation16 + $0x9c0] sm:$0xff]
    %v5472 = vld [vmem:[#allocation16 + $0x9c8] sm:$0xff]
    %v5473 = vld [vmem:[#allocation16 + $0x9d0] sm:$0xff]
    %v5474 = vld [vmem:[#allocation16 + $0x9d8] sm:$0xff]
    %v5475 = vld [vmem:[#allocation16 + $0x9e0] sm:$0xff]
    %v5476 = vld [vmem:[#allocation16 + $0x9e8] sm:$0xff]
    %v5477 = vld [vmem:[#allocation16 + $0x9f0] sm:$0xff]
    %v5478 = vld [vmem:[#allocation16 + $0x9f8] sm:$0xff]
    %v5479 = vld [vmem:[#allocation16 + $0xa00] sm:$0xff]
    %v5480 = vld [vmem:[#allocation16 + $0xa08] sm:$0xff]
    %v5481 = vld [vmem:[#allocation16 + $0xa10] sm:$0xff]
    %v5482 = vld [vmem:[#allocation16 + $0xa18] sm:$0xff]
    %v5483 = vld [vmem:[#allocation16 + $0xa20] sm:$0xff]
    %v5484 = vld [vmem:[#allocation16 + $0xa28] sm:$0xff]
    %v5485 = vld [vmem:[#allocation16 + $0xa30] sm:$0xff]
    %v5486 = vld [vmem:[#allocation16 + $0xa38] sm:$0xff]
    %v5487 = vld [vmem:[#allocation16 + $0xa40] sm:$0xff]
    %v5488 = vld [vmem:[#allocation16 + $0xa48] sm:$0xff]
    %v5489 = vld [vmem:[#allocation16 + $0xa50] sm:$0xff]
    %v5490 = vld [vmem:[#allocation16 + $0xa58] sm:$0xff]
    %v5491 = vld [vmem:[#allocation16 + $0xa60] sm:$0xff]
    %v5492 = vld [vmem:[#allocation16 + $0xa68] sm:$0xff]
    %v5493 = vld [vmem:[#allocation16 + $0xa70] sm:$0xff]
    %v5494 = vld [vmem:[#allocation16 + $0xa78] sm:$0xff]
    %v5495 = vld [vmem:[#allocation16 + $0xa80] sm:$0xff]
    %v5496 = vld [vmem:[#allocation16 + $0xa88] sm:$0xff]
    %v5497 = vld [vmem:[#allocation16 + $0xa90] sm:$0xff]
    %v5498 = vld [vmem:[#allocation16 + $0xa98] sm:$0xff]
    %v5499 = vld [vmem:[#allocation16 + $0xaa0] sm:$0xff]
    %v5500 = vld [vmem:[#allocation16 + $0xaa8] sm:$0xff]
    %v5501 = vld [vmem:[#allocation16 + $0xab0] sm:$0xff]
    %v5502 = vld [vmem:[#allocation16 + $0xab8] sm:$0xff]
    %v5503 = vld [vmem:[#allocation16 + $0xac0] sm:$0xff]
    %v5504 = vld [vmem:[#allocation16 + $0xac8] sm:$0xff]
    %v5505 = vld [vmem:[#allocation16 + $0xad0] sm:$0xff]
    %v5506 = vld [vmem:[#allocation16 + $0xad8] sm:$0xff]
    %v5507 = vld [vmem:[#allocation16 + $0xae0] sm:$0xff]
    %v5508 = vld [vmem:[#allocation16 + $0xae8] sm:$0xff]
    %v5509 = vld [vmem:[#allocation16 + $0xaf0] sm:$0xff]
    %v5510 = vld [vmem:[#allocation16 + $0xaf8] sm:$0xff]
    %v5511 = vld [vmem:[#allocation16 + $0xb00] sm:$0xff]
    %v5512 = vld [vmem:[#allocation16 + $0xb08] sm:$0xff]
    %v5513 = vld [vmem:[#allocation16 + $0xb10] sm:$0xff]
    %v5514 = vld [vmem:[#allocation16 + $0xb18] sm:$0xff]
    %v5515 = vld [vmem:[#allocation16 + $0xb20] sm:$0xff]
    %v5516 = vld [vmem:[#allocation16 + $0xb28] sm:$0xff]
    %v5517 = vld [vmem:[#allocation16 + $0xb30] sm:$0xff]
    %v5518 = vld [vmem:[#allocation16 + $0xb38] sm:$0xff]
    %v5519 = vld [vmem:[#allocation16 + $0xb40] sm:$0xff]
    %v5520 = vld [vmem:[#allocation16 + $0xb48] sm:$0xff]
    %v5521 = vld [vmem:[#allocation16 + $0xb50] sm:$0xff]
    %v5522 = vld [vmem:[#allocation16 + $0xb58] sm:$0xff]
    %v5523 = vld [vmem:[#allocation16 + $0xb60] sm:$0xff]
    %v5524 = vld [vmem:[#allocation16 + $0xb68] sm:$0xff]
    %v5525 = vld [vmem:[#allocation16 + $0xb70] sm:$0xff]
    %v5526 = vld [vmem:[#allocation16 + $0xb78] sm:$0xff]
    %v5527 = vld [vmem:[#allocation16 + $0xb80] sm:$0xff]
    %v5528 = vld [vmem:[#allocation16 + $0xb88] sm:$0xff]
    %v5529 = vld [vmem:[#allocation16 + $0xb90] sm:$0xff]
    %v5530 = vld [vmem:[#allocation16 + $0xb98] sm:$0xff]
    %v5531 = vld [vmem:[#allocation16 + $0xba0] sm:$0xff]
    %v5532 = vld [vmem:[#allocation16 + $0xba8] sm:$0xff]
    %v5533 = vld [vmem:[#allocation16 + $0xbb0] sm:$0xff]
    %v5534 = vld [vmem:[#allocation16 + $0xbb8] sm:$0xff]
    %v5535 = vld [vmem:[#allocation16 + $0xbc0] sm:$0xff]
    %v5536 = vld [vmem:[#allocation16 + $0xbc8] sm:$0xff]
    %v5537 = vld [vmem:[#allocation16 + $0xbd0] sm:$0xff]
    %v5538 = vld [vmem:[#allocation16 + $0xbd8] sm:$0xff]
    %v5539 = vld [vmem:[#allocation16 + $0xbe0] sm:$0xff]
    %v5540 = vld [vmem:[#allocation16 + $0xbe8] sm:$0xff]
    %v5541 = vld [vmem:[#allocation16 + $0xbf0] sm:$0xff]
    %v5542 = vld [vmem:[#allocation16 + $0xbf8] sm:$0xff]
    %v5543 = vld [vmem:[#allocation16 + $0xc00] sm:$0xff]
    %v5544 = vld [vmem:[#allocation16 + $0xc08] sm:$0xff]
    %v5545 = vld [vmem:[#allocation16 + $0xc10] sm:$0xff]
    %v5546 = vld [vmem:[#allocation16 + $0xc18] sm:$0xff]
    %v5547 = vld [vmem:[#allocation16 + $0xc20] sm:$0xff]
    %v5548 = vld [vmem:[#allocation16 + $0xc28] sm:$0xff]
    %v5549 = vld [vmem:[#allocation16 + $0xc30] sm:$0xff]
    %v5550 = vld [vmem:[#allocation16 + $0xc38] sm:$0xff]
    %v5551 = vld [vmem:[#allocation16 + $0xc40] sm:$0xff]
    %v5552 = vld [vmem:[#allocation16 + $0xc48] sm:$0xff]
    %v5553 = vld [vmem:[#allocation16 + $0xc50] sm:$0xff]
    %v5554 = vld [vmem:[#allocation16 + $0xc58] sm:$0xff]
    %v5555 = vld [vmem:[#allocation16 + $0xc60] sm:$0xff]
    %v5556 = vld [vmem:[#allocation16 + $0xc68] sm:$0xff]
    %v5557 = vld [vmem:[#allocation16 + $0xc70] sm:$0xff]
    %v5558 = vld [vmem:[#allocation16 + $0xc78] sm:$0xff]
    %v5559 = vld [vmem:[#allocation16 + $0xc80] sm:$0xff]
    %v5560 = vld [vmem:[#allocation16 + $0xc88] sm:$0xff]
    %v5561 = vld [vmem:[#allocation16 + $0xc90] sm:$0xff]
    %v5562 = vld [vmem:[#allocation16 + $0xc98] sm:$0xff]
    %v5563 = vld [vmem:[#allocation16 + $0xca0] sm:$0xff]
    %v5564 = vld [vmem:[#allocation16 + $0xca8] sm:$0xff]
    %v5565 = vld [vmem:[#allocation16 + $0xcb0] sm:$0xff]
    %v5566 = vld [vmem:[#allocation16 + $0xcb8] sm:$0xff]
    %v5567 = vld [vmem:[#allocation16 + $0xcc0] sm:$0xff]
    %v5568 = vld [vmem:[#allocation16 + $0xcc8] sm:$0xff]
    %v5569 = vld [vmem:[#allocation16 + $0xcd0] sm:$0xff]
    %v5570 = vld [vmem:[#allocation16 + $0xcd8] sm:$0xff]
    %v5571 = vld [vmem:[#allocation16 + $0xce0] sm:$0xff]
    %v5572 = vld [vmem:[#allocation16 + $0xce8] sm:$0xff]
    %v5573 = vld [vmem:[#allocation16 + $0xcf0] sm:$0xff]
    %v5574 = vld [vmem:[#allocation16 + $0xcf8] sm:$0xff]
    %v5575 = vld [vmem:[#allocation16 + $0xd00] sm:$0xff]
    %v5576 = vld [vmem:[#allocation16 + $0xd08] sm:$0xff]
    %v5577 = vld [vmem:[#allocation16 + $0xd10] sm:$0xff]
    %v5578 = vld [vmem:[#allocation16 + $0xd18] sm:$0xff]
    %v5579 = vld [vmem:[#allocation16 + $0xd20] sm:$0xff]
    %v5580 = vld [vmem:[#allocation16 + $0xd28] sm:$0xff]
    %v5581 = vld [vmem:[#allocation16 + $0xd30] sm:$0xff]
    %v5582 = vld [vmem:[#allocation16 + $0xd38] sm:$0xff]
    %v5583 = vld [vmem:[#allocation16 + $0xd40] sm:$0xff]
    %v5584 = vld [vmem:[#allocation16 + $0xd48] sm:$0xff]
    %v5585 = vld [vmem:[#allocation16 + $0xd50] sm:$0xff]
    %v5586 = vld [vmem:[#allocation16 + $0xd58] sm:$0xff]
    %v5587 = vld [vmem:[#allocation16 + $0xd60] sm:$0xff]
    %v5588 = vld [vmem:[#allocation16 + $0xd68] sm:$0xff]
    %v5589 = vld [vmem:[#allocation16 + $0xd70] sm:$0xff]
    %v5590 = vld [vmem:[#allocation16 + $0xd78] sm:$0xff]
    %v5591 = vld [vmem:[#allocation16 + $0xd80] sm:$0xff]
    %v5592 = vld [vmem:[#allocation16 + $0xd88] sm:$0xff]
    %v5593 = vld [vmem:[#allocation16 + $0xd90] sm:$0xff]
    %v5594 = vld [vmem:[#allocation16 + $0xd98] sm:$0xff]
    %v5595 = vld [vmem:[#allocation16 + $0xda0] sm:$0xff]
    %v5596 = vld [vmem:[#allocation16 + $0xda8] sm:$0xff]
    %v5597 = vld [vmem:[#allocation16 + $0xdb0] sm:$0xff]
    %v5598 = vld [vmem:[#allocation16 + $0xdb8] sm:$0xff]
    %v5599 = vld [vmem:[#allocation16 + $0xdc0] sm:$0xff]
    %v5600 = vld [vmem:[#allocation16 + $0xdc8] sm:$0xff]
    %v5601 = vld [vmem:[#allocation16 + $0xdd0] sm:$0xff]
    %v5602 = vld [vmem:[#allocation16 + $0xdd8] sm:$0xff]
    %v5603 = vld [vmem:[#allocation16 + $0xde0] sm:$0xff]
    %v5604 = vld [vmem:[#allocation16 + $0xde8] sm:$0xff]
    %v5605 = vld [vmem:[#allocation16 + $0xdf0] sm:$0xff]
    %v5606 = vld [vmem:[#allocation16 + $0xdf8] sm:$0xff]
    %v5607 = vld [vmem:[#allocation16 + $0xe00] sm:$0xff]
    %v5608 = vld [vmem:[#allocation16 + $0xe08] sm:$0xff]
    %v5609 = vld [vmem:[#allocation16 + $0xe10] sm:$0xff]
    %v5610 = vld [vmem:[#allocation16 + $0xe18] sm:$0xff]
    %v5611 = vld [vmem:[#allocation16 + $0xe20] sm:$0xff]
    %v5612 = vld [vmem:[#allocation16 + $0xe28] sm:$0xff]
    %v5613 = vld [vmem:[#allocation16 + $0xe30] sm:$0xff]
    %v5614 = vld [vmem:[#allocation16 + $0xe38] sm:$0xff]
    %v5615 = vld [vmem:[#allocation16 + $0xe40] sm:$0xff]
    %v5616 = vld [vmem:[#allocation16 + $0xe48] sm:$0xff]
    %v5617 = vld [vmem:[#allocation16 + $0xe50] sm:$0xff]
    %v5618 = vld [vmem:[#allocation16 + $0xe58] sm:$0xff]
    %v5619 = vld [vmem:[#allocation16 + $0xe60] sm:$0xff]
    %v5620 = vld [vmem:[#allocation16 + $0xe68] sm:$0xff]
    %v5621 = vld [vmem:[#allocation16 + $0xe70] sm:$0xff]
    %v5622 = vld [vmem:[#allocation16 + $0xe78] sm:$0xff]
    %v5623 = vld [vmem:[#allocation16 + $0xe80] sm:$0xff]
    %v5624 = vld [vmem:[#allocation16 + $0xe88] sm:$0xff]
    %v5625 = vld [vmem:[#allocation16 + $0xe90] sm:$0xff]
    %v5626 = vld [vmem:[#allocation16 + $0xe98] sm:$0xff]
    %v5627 = vld [vmem:[#allocation16 + $0xea0] sm:$0xff]
    %v5628 = vld [vmem:[#allocation16 + $0xea8] sm:$0xff]
    %v5629 = vld [vmem:[#allocation16 + $0xeb0] sm:$0xff]
    %v5630 = vld [vmem:[#allocation16 + $0xeb8] sm:$0xff]
    %v5631 = vld [vmem:[#allocation16 + $0xec0] sm:$0xff]
    %v5632 = vld [vmem:[#allocation16 + $0xec8] sm:$0xff]
    %v5633 = vld [vmem:[#allocation16 + $0xed0] sm:$0xff]
    %v5634 = vld [vmem:[#allocation16 + $0xed8] sm:$0xff]
    %v5635 = vld [vmem:[#allocation16 + $0xee0] sm:$0xff]
    %v5636 = vld [vmem:[#allocation16 + $0xee8] sm:$0xff]
    %v5637 = vld [vmem:[#allocation16 + $0xef0] sm:$0xff]
    %v5638 = vld [vmem:[#allocation16 + $0xef8] sm:$0xff]
    %v5639 = vld [vmem:[#allocation16 + $0xf00] sm:$0xff]
    %v5640 = vld [vmem:[#allocation16 + $0xf08] sm:$0xff]
    %v5641 = vld [vmem:[#allocation16 + $0xf10] sm:$0xff]
    %v5642 = vld [vmem:[#allocation16 + $0xf18] sm:$0xff]
    %v5643 = vld [vmem:[#allocation16 + $0xf20] sm:$0xff]
    %v5644 = vld [vmem:[#allocation16 + $0xf28] sm:$0xff]
    %v5645 = vld [vmem:[#allocation16 + $0xf30] sm:$0xff]
    %v5646 = vld [vmem:[#allocation16 + $0xf38] sm:$0xff]
    %v5647 = vld [vmem:[#allocation16 + $0xf40] sm:$0xff]
    %v5648 = vld [vmem:[#allocation16 + $0xf48] sm:$0xff]
    %v5649 = vld [vmem:[#allocation16 + $0xf50] sm:$0xff]
    %v5650 = vld [vmem:[#allocation16 + $0xf58] sm:$0xff]
    %v5651 = vld [vmem:[#allocation16 + $0xf60] sm:$0xff]
    %v5652 = vld [vmem:[#allocation16 + $0xf68] sm:$0xff]
    %v5653 = vld [vmem:[#allocation16 + $0xf70] sm:$0xff]
    %v5654 = vld [vmem:[#allocation16 + $0xf78] sm:$0xff]
    %v5655 = vld [vmem:[#allocation16 + $0xf80] sm:$0xff]
    %v5656 = vld [vmem:[#allocation16 + $0xf88] sm:$0xff]
    %v5657 = vld [vmem:[#allocation16 + $0xf90] sm:$0xff]
    %v5658 = vld [vmem:[#allocation16 + $0xf98] sm:$0xff]
    %v5659 = vld [vmem:[#allocation16 + $0xfa0] sm:$0xff]
    %v5660 = vld [vmem:[#allocation16 + $0xfa8] sm:$0xff]
    %v5661 = vld [vmem:[#allocation16 + $0xfb0] sm:$0xff]
    %v5662 = vld [vmem:[#allocation16 + $0xfb8] sm:$0xff]
    %v5663 = vld [vmem:[#allocation16 + $0xfc0] sm:$0xff]
    %v5664 = vld [vmem:[#allocation16 + $0xfc8] sm:$0xff]
    %v5665 = vld [vmem:[#allocation16 + $0xfd0] sm:$0xff]
    %v5666 = vld [vmem:[#allocation16 + $0xfd8] sm:$0xff]
    %v5667 = vld [vmem:[#allocation16 + $0xfe0] sm:$0xff]
    %v5668 = vld [vmem:[#allocation16 + $0xfe8] sm:$0xff]
    %v5669 = vld [vmem:[#allocation16 + $0xff0] sm:$0xff]
    %v5670 = vld [vmem:[#allocation16 + $0xff8] sm:$0xff]
    %5671 = vmatpush.msra.mxu0 %v5219
    %5672 = vmatpush.msra.mxu0 %v5215
    %5673 = vmatpush.msra.mxu0 %v5211
    %5674 = vmatpush.msra.mxu0 %v5207
    %5675 = vmatpush.msra.mxu0 %v5203
    %5676 = vmatpush.msra.mxu0 %v5199
    %5677 = vmatpush.msra.mxu0 %v5195
    %5678 = vmatpush.msra.mxu0 %v5191
    %5679 = vmatpush.msra.mxu0 %v5187
    %5680 = vmatpush.msra.mxu0 %v5183
    %5681 = vmatpush.msra.mxu0 %v5179
    %5682 = vmatpush.msra.mxu0 %v5175
    %5683 = vmatpush.msra.mxu0 %v5171
    %5684 = vmatpush.msra.mxu0 %v5167
    %5685 = vmatpush.msra.mxu0 %v5163
    %5686 = vmatpush.msra.mxu0 %v5159
    %5687 = vmatmul.f32.gmra.mxu0 %v3999
    %v5688 = vpop.f32.mrf.mxu0
    %v5689 = vadd.f32 0.0, %v5688
    %5690 = vdwg.mxu0
    %5691 = vmatpush.msra.mxu0 %v5283
    %5692 = vmatpush.msra.mxu0 %v5279
    %5693 = vmatpush.msra.mxu0 %v5275
    %5694 = vmatpush.msra.mxu0 %v5271
    %5695 = vmatpush.msra.mxu0 %v5267
    %5696 = vmatpush.msra.mxu0 %v5263
    %5697 = vmatpush.msra.mxu0 %v5259
    %5698 = vmatpush.msra.mxu0 %v5255
    %5699 = vmatpush.msra.mxu0 %v5251
    %5700 = vmatpush.msra.mxu0 %v5247
    %5701 = vmatpush.msra.mxu0 %v5243
    %5702 = vmatpush.msra.mxu0 %v5239
    %5703 = vmatpush.msra.mxu0 %v5235
    %5704 = vmatpush.msra.mxu0 %v5231
    %5705 = vmatpush.msra.mxu0 %v5227
    %5706 = vmatpush.msra.mxu0 %v5223
    %5707 = vmatmul.f32.gmra.mxu0 %v4000
    %v5708 = vpop.f32.mrf.mxu0
    %v5709 = vadd.f32 %v5689, %v5708
    %5710 = vdwg.mxu0
    %5711 = vmatpush.msra.mxu0 %v5347
    %5712 = vmatpush.msra.mxu0 %v5343
    %5713 = vmatpush.msra.mxu0 %v5339
    %5714 = vmatpush.msra.mxu0 %v5335
    %5715 = vmatpush.msra.mxu0 %v5331
    %5716 = vmatpush.msra.mxu0 %v5327
    %5717 = vmatpush.msra.mxu0 %v5323
    %5718 = vmatpush.msra.mxu0 %v5319
    %5719 = vmatpush.msra.mxu0 %v5315
    %5720 = vmatpush.msra.mxu0 %v5311
    %5721 = vmatpush.msra.mxu0 %v5307
    %5722 = vmatpush.msra.mxu0 %v5303
    %5723 = vmatpush.msra.mxu0 %v5299
    %5724 = vmatpush.msra.mxu0 %v5295
    %5725 = vmatpush.msra.mxu0 %v5291
    %5726 = vmatpush.msra.mxu0 %v5287
    %5727 = vmatmul.f32.gmra.mxu0 %v4001
    %v5728 = vpop.f32.mrf.mxu0
    %v5729 = vadd.f32 %v5709, %v5728
    %5730 = vdwg.mxu0
    %5731 = vmatpush.msra.mxu0 %v5411
    %5732 = vmatpush.msra.mxu0 %v5407
    %5733 = vmatpush.msra.mxu0 %v5403
    %5734 = vmatpush.msra.mxu0 %v5399
    %5735 = vmatpush.msra.mxu0 %v5395
    %5736 = vmatpush.msra.mxu0 %v5391
    %5737 = vmatpush.msra.mxu0 %v5387
    %5738 = vmatpush.msra.mxu0 %v5383
    %5739 = vmatpush.msra.mxu0 %v5379
    %5740 = vmatpush.msra.mxu0 %v5375
    %5741 = vmatpush.msra.mxu0 %v5371
    %5742 = vmatpush.msra.mxu0 %v5367
    %5743 = vmatpush.msra.mxu0 %v5363
    %5744 = vmatpush.msra.mxu0 %v5359
    %5745 = vmatpush.msra.mxu0 %v5355
    %5746 = vmatpush.msra.mxu0 %v5351
    %5747 = vmatmul.f32.gmra.mxu0 %v4002
    %v5748 = vpop.f32.mrf.mxu0
    %v5749 = vadd.f32 %v5729, %v5748
    %5750 = vdwg.mxu0
    %5751 = vmatpush.msra.mxu0 %v5475
    %5752 = vmatpush.msra.mxu0 %v5471
    %5753 = vmatpush.msra.mxu0 %v5467
    %5754 = vmatpush.msra.mxu0 %v5463
    %5755 = vmatpush.msra.mxu0 %v5459
    %5756 = vmatpush.msra.mxu0 %v5455
    %5757 = vmatpush.msra.mxu0 %v5451
    %5758 = vmatpush.msra.mxu0 %v5447
    %5759 = vmatpush.msra.mxu0 %v5443
    %5760 = vmatpush.msra.mxu0 %v5439
    %5761 = vmatpush.msra.mxu0 %v5435
    %5762 = vmatpush.msra.mxu0 %v5431
    %5763 = vmatpush.msra.mxu0 %v5427
    %5764 = vmatpush.msra.mxu0 %v5423
    %5765 = vmatpush.msra.mxu0 %v5419
    %5766 = vmatpush.msra.mxu0 %v5415
    %5767 = vmatmul.f32.gmra.mxu0 %v4003
    %v5768 = vpop.f32.mrf.mxu0
    %v5769 = vadd.f32 %v5749, %v5768
    %5770 = vdwg.mxu0
    %5771 = vmatpush.msra.mxu0 %v5539
    %5772 = vmatpush.msra.mxu0 %v5535
    %5773 = vmatpush.msra.mxu0 %v5531
    %5774 = vmatpush.msra.mxu0 %v5527
    %5775 = vmatpush.msra.mxu0 %v5523
    %5776 = vmatpush.msra.mxu0 %v5519
    %5777 = vmatpush.msra.mxu0 %v5515
    %5778 = vmatpush.msra.mxu0 %v5511
    %5779 = vmatpush.msra.mxu0 %v5507
    %5780 = vmatpush.msra.mxu0 %v5503
    %5781 = vmatpush.msra.mxu0 %v5499
    %5782 = vmatpush.msra.mxu0 %v5495
    %5783 = vmatpush.msra.mxu0 %v5491
    %5784 = vmatpush.msra.mxu0 %v5487
    %5785 = vmatpush.msra.mxu0 %v5483
    %5786 = vmatpush.msra.mxu0 %v5479
    %5787 = vmatmul.f32.gmra.mxu0 %v4004
    %v5788 = vpop.f32.mrf.mxu0
    %v5789 = vadd.f32 %v5769, %v5788
    %5790 = vdwg.mxu0
    %5791 = vmatpush.msra.mxu0 %v5603
    %5792 = vmatpush.msra.mxu0 %v5599
    %5793 = vmatpush.msra.mxu0 %v5595
    %5794 = vmatpush.msra.mxu0 %v5591
    %5795 = vmatpush.msra.mxu0 %v5587
    %5796 = vmatpush.msra.mxu0 %v5583
    %5797 = vmatpush.msra.mxu0 %v5579
    %5798 = vmatpush.msra.mxu0 %v5575
    %5799 = vmatpush.msra.mxu0 %v5571
    %5800 = vmatpush.msra.mxu0 %v5567
    %5801 = vmatpush.msra.mxu0 %v5563
    %5802 = vmatpush.msra.mxu0 %v5559
    %5803 = vmatpush.msra.mxu0 %v5555
    %5804 = vmatpush.msra.mxu0 %v5551
    %5805 = vmatpush.msra.mxu0 %v5547
    %5806 = vmatpush.msra.mxu0 %v5543
    %5807 = vmatmul.f32.gmra.mxu0 %v4005
    %v5808 = vpop.f32.mrf.mxu0
    %v5809 = vadd.f32 %v5789, %v5808
    %5810 = vdwg.mxu0
    %5811 = vmatpush.msra.mxu0 %v5667
    %5812 = vmatpush.msra.mxu0 %v5663
    %5813 = vmatpush.msra.mxu0 %v5659
    %5814 = vmatpush.msra.mxu0 %v5655
    %5815 = vmatpush.msra.mxu0 %v5651
    %5816 = vmatpush.msra.mxu0 %v5647
    %5817 = vmatpush.msra.mxu0 %v5643
    %5818 = vmatpush.msra.mxu0 %v5639
    %5819 = vmatpush.msra.mxu0 %v5635
    %5820 = vmatpush.msra.mxu0 %v5631
    %5821 = vmatpush.msra.mxu0 %v5627
    %5822 = vmatpush.msra.mxu0 %v5623
    %5823 = vmatpush.msra.mxu0 %v5619
    %5824 = vmatpush.msra.mxu0 %v5615
    %5825 = vmatpush.msra.mxu0 %v5611
    %5826 = vmatpush.msra.mxu0 %v5607
    %5827 = vmatmul.f32.gmra.mxu0 %v4006
    %v5828 = vpop.f32.mrf.mxu0
    %v5829 = vadd.f32 %v5809, %v5828
    %5830 = vdwg.mxu0
    %5831 = vmatpush.msra.mxu0 %v5220
    %5832 = vmatpush.msra.mxu0 %v5216
    %5833 = vmatpush.msra.mxu0 %v5212
    %5834 = vmatpush.msra.mxu0 %v5208
    %5835 = vmatpush.msra.mxu0 %v5204
    %5836 = vmatpush.msra.mxu0 %v5200
    %5837 = vmatpush.msra.mxu0 %v5196
    %5838 = vmatpush.msra.mxu0 %v5192
    %5839 = vmatpush.msra.mxu0 %v5188
    %5840 = vmatpush.msra.mxu0 %v5184
    %5841 = vmatpush.msra.mxu0 %v5180
    %5842 = vmatpush.msra.mxu0 %v5176
    %5843 = vmatpush.msra.mxu0 %v5172
    %5844 = vmatpush.msra.mxu0 %v5168
    %5845 = vmatpush.msra.mxu0 %v5164
    %5846 = vmatpush.msra.mxu0 %v5160
    %5847 = vmatmul.f32.gmra.mxu0 %v3999
    %v5848 = vpop.f32.mrf.mxu0
    %v5849 = vadd.f32 0.0, %v5848
    %5850 = vdwg.mxu0
    %5851 = vmatpush.msra.mxu0 %v5284
    %5852 = vmatpush.msra.mxu0 %v5280
    %5853 = vmatpush.msra.mxu0 %v5276
    %5854 = vmatpush.msra.mxu0 %v5272
    %5855 = vmatpush.msra.mxu0 %v5268
    %5856 = vmatpush.msra.mxu0 %v5264
    %5857 = vmatpush.msra.mxu0 %v5260
    %5858 = vmatpush.msra.mxu0 %v5256
    %5859 = vmatpush.msra.mxu0 %v5252
    %5860 = vmatpush.msra.mxu0 %v5248
    %5861 = vmatpush.msra.mxu0 %v5244
    %5862 = vmatpush.msra.mxu0 %v5240
    %5863 = vmatpush.msra.mxu0 %v5236
    %5864 = vmatpush.msra.mxu0 %v5232
    %5865 = vmatpush.msra.mxu0 %v5228
    %5866 = vmatpush.msra.mxu0 %v5224
    %5867 = vmatmul.f32.gmra.mxu0 %v4000
    %v5868 = vpop.f32.mrf.mxu0
    %v5869 = vadd.f32 %v5849, %v5868
    %5870 = vdwg.mxu0
    %5871 = vmatpush.msra.mxu0 %v5348
    %5872 = vmatpush.msra.mxu0 %v5344
    %5873 = vmatpush.msra.mxu0 %v5340
    %5874 = vmatpush.msra.mxu0 %v5336
    %5875 = vmatpush.msra.mxu0 %v5332
    %5876 = vmatpush.msra.mxu0 %v5328
    %5877 = vmatpush.msra.mxu0 %v5324
    %5878 = vmatpush.msra.mxu0 %v5320
    %5879 = vmatpush.msra.mxu0 %v5316
    %5880 = vmatpush.msra.mxu0 %v5312
    %5881 = vmatpush.msra.mxu0 %v5308
    %5882 = vmatpush.msra.mxu0 %v5304
    %5883 = vmatpush.msra.mxu0 %v5300
    %5884 = vmatpush.msra.mxu0 %v5296
    %5885 = vmatpush.msra.mxu0 %v5292
    %5886 = vmatpush.msra.mxu0 %v5288
    %5887 = vmatmul.f32.gmra.mxu0 %v4001
    %v5888 = vpop.f32.mrf.mxu0
    %v5889 = vadd.f32 %v5869, %v5888
    %5890 = vdwg.mxu0
    %5891 = vmatpush.msra.mxu0 %v5412
    %5892 = vmatpush.msra.mxu0 %v5408
    %5893 = vmatpush.msra.mxu0 %v5404
    %5894 = vmatpush.msra.mxu0 %v5400
    %5895 = vmatpush.msra.mxu0 %v5396
    %5896 = vmatpush.msra.mxu0 %v5392
    %5897 = vmatpush.msra.mxu0 %v5388
    %5898 = vmatpush.msra.mxu0 %v5384
    %5899 = vmatpush.msra.mxu0 %v5380
    %5900 = vmatpush.msra.mxu0 %v5376
    %5901 = vmatpush.msra.mxu0 %v5372
    %5902 = vmatpush.msra.mxu0 %v5368
    %5903 = vmatpush.msra.mxu0 %v5364
    %5904 = vmatpush.msra.mxu0 %v5360
    %5905 = vmatpush.msra.mxu0 %v5356
    %5906 = vmatpush.msra.mxu0 %v5352
    %5907 = vmatmul.f32.gmra.mxu0 %v4002
    %v5908 = vpop.f32.mrf.mxu0
    %v5909 = vadd.f32 %v5889, %v5908
    %5910 = vdwg.mxu0
    %5911 = vmatpush.msra.mxu0 %v5476
    %5912 = vmatpush.msra.mxu0 %v5472
    %5913 = vmatpush.msra.mxu0 %v5468
    %5914 = vmatpush.msra.mxu0 %v5464
    %5915 = vmatpush.msra.mxu0 %v5460
    %5916 = vmatpush.msra.mxu0 %v5456
    %5917 = vmatpush.msra.mxu0 %v5452
    %5918 = vmatpush.msra.mxu0 %v5448
    %5919 = vmatpush.msra.mxu0 %v5444
    %5920 = vmatpush.msra.mxu0 %v5440
    %5921 = vmatpush.msra.mxu0 %v5436
    %5922 = vmatpush.msra.mxu0 %v5432
    %5923 = vmatpush.msra.mxu0 %v5428
    %5924 = vmatpush.msra.mxu0 %v5424
    %5925 = vmatpush.msra.mxu0 %v5420
    %5926 = vmatpush.msra.mxu0 %v5416
    %5927 = vmatmul.f32.gmra.mxu0 %v4003
    %v5928 = vpop.f32.mrf.mxu0
    %v5929 = vadd.f32 %v5909, %v5928
    %5930 = vdwg.mxu0
    %5931 = vmatpush.msra.mxu0 %v5540
    %5932 = vmatpush.msra.mxu0 %v5536
    %5933 = vmatpush.msra.mxu0 %v5532
    %5934 = vmatpush.msra.mxu0 %v5528
    %5935 = vmatpush.msra.mxu0 %v5524
    %5936 = vmatpush.msra.mxu0 %v5520
    %5937 = vmatpush.msra.mxu0 %v5516
    %5938 = vmatpush.msra.mxu0 %v5512
    %5939 = vmatpush.msra.mxu0 %v5508
    %5940 = vmatpush.msra.mxu0 %v5504
    %5941 = vmatpush.msra.mxu0 %v5500
    %5942 = vmatpush.msra.mxu0 %v5496
    %5943 = vmatpush.msra.mxu0 %v5492
    %5944 = vmatpush.msra.mxu0 %v5488
    %5945 = vmatpush.msra.mxu0 %v5484
    %5946 = vmatpush.msra.mxu0 %v5480
    %5947 = vmatmul.f32.gmra.mxu0 %v4004
    %v5948 = vpop.f32.mrf.mxu0
    %v5949 = vadd.f32 %v5929, %v5948
    %5950 = vdwg.mxu0
    %5951 = vmatpush.msra.mxu0 %v5604
    %5952 = vmatpush.msra.mxu0 %v5600
    %5953 = vmatpush.msra.mxu0 %v5596
    %5954 = vmatpush.msra.mxu0 %v5592
    %5955 = vmatpush.msra.mxu0 %v5588
    %5956 = vmatpush.msra.mxu0 %v5584
    %5957 = vmatpush.msra.mxu0 %v5580
    %5958 = vmatpush.msra.mxu0 %v5576
    %5959 = vmatpush.msra.mxu0 %v5572
    %5960 = vmatpush.msra.mxu0 %v5568
    %5961 = vmatpush.msra.mxu0 %v5564
    %5962 = vmatpush.msra.mxu0 %v5560
    %5963 = vmatpush.msra.mxu0 %v5556
    %5964 = vmatpush.msra.mxu0 %v5552
    %5965 = vmatpush.msra.mxu0 %v5548
    %5966 = vmatpush.msra.mxu0 %v5544
    %5967 = vmatmul.f32.gmra.mxu0 %v4005
    %v5968 = vpop.f32.mrf.mxu0
    %v5969 = vadd.f32 %v5949, %v5968
    %5970 = vdwg.mxu0
    %5971 = vmatpush.msra.mxu0 %v5668
    %5972 = vmatpush.msra.mxu0 %v5664
    %5973 = vmatpush.msra.mxu0 %v5660
    %5974 = vmatpush.msra.mxu0 %v5656
    %5975 = vmatpush.msra.mxu0 %v5652
    %5976 = vmatpush.msra.mxu0 %v5648
    %5977 = vmatpush.msra.mxu0 %v5644
    %5978 = vmatpush.msra.mxu0 %v5640
    %5979 = vmatpush.msra.mxu0 %v5636
    %5980 = vmatpush.msra.mxu0 %v5632
    %5981 = vmatpush.msra.mxu0 %v5628
    %5982 = vmatpush.msra.mxu0 %v5624
    %5983 = vmatpush.msra.mxu0 %v5620
    %5984 = vmatpush.msra.mxu0 %v5616
    %5985 = vmatpush.msra.mxu0 %v5612
    %5986 = vmatpush.msra.mxu0 %v5608
    %5987 = vmatmul.f32.gmra.mxu0 %v4006
    %v5988 = vpop.f32.mrf.mxu0
    %v5989 = vadd.f32 %v5969, %v5988
    %5990 = vdwg.mxu0
    %5991 = vmatpush.msra.mxu0 %v5221
    %5992 = vmatpush.msra.mxu0 %v5217
    %5993 = vmatpush.msra.mxu0 %v5213
    %5994 = vmatpush.msra.mxu0 %v5209
    %5995 = vmatpush.msra.mxu0 %v5205
    %5996 = vmatpush.msra.mxu0 %v5201
    %5997 = vmatpush.msra.mxu0 %v5197
    %5998 = vmatpush.msra.mxu0 %v5193
    %5999 = vmatpush.msra.mxu0 %v5189
    %6000 = vmatpush.msra.mxu0 %v5185
    %6001 = vmatpush.msra.mxu0 %v5181
    %6002 = vmatpush.msra.mxu0 %v5177
    %6003 = vmatpush.msra.mxu0 %v5173
    %6004 = vmatpush.msra.mxu0 %v5169
    %6005 = vmatpush.msra.mxu0 %v5165
    %6006 = vmatpush.msra.mxu0 %v5161
    %6007 = vmatmul.f32.gmra.mxu0 %v3999
    %v6008 = vpop.f32.mrf.mxu0
    %v6009 = vadd.f32 0.0, %v6008
    %6010 = vdwg.mxu0
    %6011 = vmatpush.msra.mxu0 %v5285
    %6012 = vmatpush.msra.mxu0 %v5281
    %6013 = vmatpush.msra.mxu0 %v5277
    %6014 = vmatpush.msra.mxu0 %v5273
    %6015 = vmatpush.msra.mxu0 %v5269
    %6016 = vmatpush.msra.mxu0 %v5265
    %6017 = vmatpush.msra.mxu0 %v5261
    %6018 = vmatpush.msra.mxu0 %v5257
    %6019 = vmatpush.msra.mxu0 %v5253
    %6020 = vmatpush.msra.mxu0 %v5249
    %6021 = vmatpush.msra.mxu0 %v5245
    %6022 = vmatpush.msra.mxu0 %v5241
    %6023 = vmatpush.msra.mxu0 %v5237
    %6024 = vmatpush.msra.mxu0 %v5233
    %6025 = vmatpush.msra.mxu0 %v5229
    %6026 = vmatpush.msra.mxu0 %v5225
    %6027 = vmatmul.f32.gmra.mxu0 %v4000
    %v6028 = vpop.f32.mrf.mxu0
    %v6029 = vadd.f32 %v6009, %v6028
    %6030 = vdwg.mxu0
    %6031 = vmatpush.msra.mxu0 %v5349
    %6032 = vmatpush.msra.mxu0 %v5345
    %6033 = vmatpush.msra.mxu0 %v5341
    %6034 = vmatpush.msra.mxu0 %v5337
    %6035 = vmatpush.msra.mxu0 %v5333
    %6036 = vmatpush.msra.mxu0 %v5329
    %6037 = vmatpush.msra.mxu0 %v5325
    %6038 = vmatpush.msra.mxu0 %v5321
    %6039 = vmatpush.msra.mxu0 %v5317
    %6040 = vmatpush.msra.mxu0 %v5313
    %6041 = vmatpush.msra.mxu0 %v5309
    %6042 = vmatpush.msra.mxu0 %v5305
    %6043 = vmatpush.msra.mxu0 %v5301
    %6044 = vmatpush.msra.mxu0 %v5297
    %6045 = vmatpush.msra.mxu0 %v5293
    %6046 = vmatpush.msra.mxu0 %v5289
    %6047 = vmatmul.f32.gmra.mxu0 %v4001
    %v6048 = vpop.f32.mrf.mxu0
    %v6049 = vadd.f32 %v6029, %v6048
    %6050 = vdwg.mxu0
    %6051 = vmatpush.msra.mxu0 %v5413
    %6052 = vmatpush.msra.mxu0 %v5409
    %6053 = vmatpush.msra.mxu0 %v5405
    %6054 = vmatpush.msra.mxu0 %v5401
    %6055 = vmatpush.msra.mxu0 %v5397
    %6056 = vmatpush.msra.mxu0 %v5393
    %6057 = vmatpush.msra.mxu0 %v5389
    %6058 = vmatpush.msra.mxu0 %v5385
    %6059 = vmatpush.msra.mxu0 %v5381
    %6060 = vmatpush.msra.mxu0 %v5377
    %6061 = vmatpush.msra.mxu0 %v5373
    %6062 = vmatpush.msra.mxu0 %v5369
    %6063 = vmatpush.msra.mxu0 %v5365
    %6064 = vmatpush.msra.mxu0 %v5361
    %6065 = vmatpush.msra.mxu0 %v5357
    %6066 = vmatpush.msra.mxu0 %v5353
    %6067 = vmatmul.f32.gmra.mxu0 %v4002
    %v6068 = vpop.f32.mrf.mxu0
    %v6069 = vadd.f32 %v6049, %v6068
    %6070 = vdwg.mxu0
    %6071 = vmatpush.msra.mxu0 %v5477
    %6072 = vmatpush.msra.mxu0 %v5473
    %6073 = vmatpush.msra.mxu0 %v5469
    %6074 = vmatpush.msra.mxu0 %v5465
    %6075 = vmatpush.msra.mxu0 %v5461
    %6076 = vmatpush.msra.mxu0 %v5457
    %6077 = vmatpush.msra.mxu0 %v5453
    %6078 = vmatpush.msra.mxu0 %v5449
    %6079 = vmatpush.msra.mxu0 %v5445
    %6080 = vmatpush.msra.mxu0 %v5441
    %6081 = vmatpush.msra.mxu0 %v5437
    %6082 = vmatpush.msra.mxu0 %v5433
    %6083 = vmatpush.msra.mxu0 %v5429
    %6084 = vmatpush.msra.mxu0 %v5425
    %6085 = vmatpush.msra.mxu0 %v5421
    %6086 = vmatpush.msra.mxu0 %v5417
    %6087 = vmatmul.f32.gmra.mxu0 %v4003
    %v6088 = vpop.f32.mrf.mxu0
    %v6089 = vadd.f32 %v6069, %v6088
    %6090 = vdwg.mxu0
    %6091 = vmatpush.msra.mxu0 %v5541
    %6092 = vmatpush.msra.mxu0 %v5537
    %6093 = vmatpush.msra.mxu0 %v5533
    %6094 = vmatpush.msra.mxu0 %v5529
    %6095 = vmatpush.msra.mxu0 %v5525
    %6096 = vmatpush.msra.mxu0 %v5521
    %6097 = vmatpush.msra.mxu0 %v5517
    %6098 = vmatpush.msra.mxu0 %v5513
    %6099 = vmatpush.msra.mxu0 %v5509
    %6100 = vmatpush.msra.mxu0 %v5505
    %6101 = vmatpush.msra.mxu0 %v5501
    %6102 = vmatpush.msra.mxu0 %v5497
    %6103 = vmatpush.msra.mxu0 %v5493
    %6104 = vmatpush.msra.mxu0 %v5489
    %6105 = vmatpush.msra.mxu0 %v5485
    %6106 = vmatpush.msra.mxu0 %v5481
    %6107 = vmatmul.f32.gmra.mxu0 %v4004
    %v6108 = vpop.f32.mrf.mxu0
    %v6109 = vadd.f32 %v6089, %v6108
    %6110 = vdwg.mxu0
    %6111 = vmatpush.msra.mxu0 %v5605
    %6112 = vmatpush.msra.mxu0 %v5601
    %6113 = vmatpush.msra.mxu0 %v5597
    %6114 = vmatpush.msra.mxu0 %v5593
    %6115 = vmatpush.msra.mxu0 %v5589
    %6116 = vmatpush.msra.mxu0 %v5585
    %6117 = vmatpush.msra.mxu0 %v5581
    %6118 = vmatpush.msra.mxu0 %v5577
    %6119 = vmatpush.msra.mxu0 %v5573
    %6120 = vmatpush.msra.mxu0 %v5569
    %6121 = vmatpush.msra.mxu0 %v5565
    %6122 = vmatpush.msra.mxu0 %v5561
    %6123 = vmatpush.msra.mxu0 %v5557
    %6124 = vmatpush.msra.mxu0 %v5553
    %6125 = vmatpush.msra.mxu0 %v5549
    %6126 = vmatpush.msra.mxu0 %v5545
    %6127 = vmatmul.f32.gmra.mxu0 %v4005
    %v6128 = vpop.f32.mrf.mxu0
    %v6129 = vadd.f32 %v6109, %v6128
    %6130 = vdwg.mxu0
    %6131 = vmatpush.msra.mxu0 %v5669
    %6132 = vmatpush.msra.mxu0 %v5665
    %6133 = vmatpush.msra.mxu0 %v5661
    %6134 = vmatpush.msra.mxu0 %v5657
    %6135 = vmatpush.msra.mxu0 %v5653
    %6136 = vmatpush.msra.mxu0 %v5649
    %6137 = vmatpush.msra.mxu0 %v5645
    %6138 = vmatpush.msra.mxu0 %v5641
    %6139 = vmatpush.msra.mxu0 %v5637
    %6140 = vmatpush.msra.mxu0 %v5633
    %6141 = vmatpush.msra.mxu0 %v5629
    %6142 = vmatpush.msra.mxu0 %v5625
    %6143 = vmatpush.msra.mxu0 %v5621
    %6144 = vmatpush.msra.mxu0 %v5617
    %6145 = vmatpush.msra.mxu0 %v5613
    %6146 = vmatpush.msra.mxu0 %v5609
    %6147 = vmatmul.f32.gmra.mxu0 %v4006
    %v6148 = vpop.f32.mrf.mxu0
    %v6149 = vadd.f32 %v6129, %v6148
    %6150 = vdwg.mxu0
    %6151 = vmatpush.msra.mxu0 %v5222
    %6152 = vmatpush.msra.mxu0 %v5218
    %6153 = vmatpush.msra.mxu0 %v5214
    %6154 = vmatpush.msra.mxu0 %v5210
    %6155 = vmatpush.msra.mxu0 %v5206
    %6156 = vmatpush.msra.mxu0 %v5202
    %6157 = vmatpush.msra.mxu0 %v5198
    %6158 = vmatpush.msra.mxu0 %v5194
    %6159 = vmatpush.msra.mxu0 %v5190
    %6160 = vmatpush.msra.mxu0 %v5186
    %6161 = vmatpush.msra.mxu0 %v5182
    %6162 = vmatpush.msra.mxu0 %v5178
    %6163 = vmatpush.msra.mxu0 %v5174
    %6164 = vmatpush.msra.mxu0 %v5170
    %6165 = vmatpush.msra.mxu0 %v5166
    %6166 = vmatpush.msra.mxu0 %v5162
    %6167 = vmatmul.f32.gmra.mxu0 %v3999
    %v6168 = vpop.f32.mrf.mxu0
    %v6169 = vadd.f32 0.0, %v6168
    %6170 = vdwg.mxu0
    %6171 = vmatpush.msra.mxu0 %v5286
    %6172 = vmatpush.msra.mxu0 %v5282
    %6173 = vmatpush.msra.mxu0 %v5278
    %6174 = vmatpush.msra.mxu0 %v5274
    %6175 = vmatpush.msra.mxu0 %v5270
    %6176 = vmatpush.msra.mxu0 %v5266
    %6177 = vmatpush.msra.mxu0 %v5262
    %6178 = vmatpush.msra.mxu0 %v5258
    %6179 = vmatpush.msra.mxu0 %v5254
    %6180 = vmatpush.msra.mxu0 %v5250
    %6181 = vmatpush.msra.mxu0 %v5246
    %6182 = vmatpush.msra.mxu0 %v5242
    %6183 = vmatpush.msra.mxu0 %v5238
    %6184 = vmatpush.msra.mxu0 %v5234
    %6185 = vmatpush.msra.mxu0 %v5230
    %6186 = vmatpush.msra.mxu0 %v5226
    %6187 = vmatmul.f32.gmra.mxu0 %v4000
    %v6188 = vpop.f32.mrf.mxu0
    %v6189 = vadd.f32 %v6169, %v6188
    %6190 = vdwg.mxu0
    %6191 = vmatpush.msra.mxu0 %v5350
    %6192 = vmatpush.msra.mxu0 %v5346
    %6193 = vmatpush.msra.mxu0 %v5342
    %6194 = vmatpush.msra.mxu0 %v5338
    %6195 = vmatpush.msra.mxu0 %v5334
    %6196 = vmatpush.msra.mxu0 %v5330
    %6197 = vmatpush.msra.mxu0 %v5326
    %6198 = vmatpush.msra.mxu0 %v5322
    %6199 = vmatpush.msra.mxu0 %v5318
    %6200 = vmatpush.msra.mxu0 %v5314
    %6201 = vmatpush.msra.mxu0 %v5310
    %6202 = vmatpush.msra.mxu0 %v5306
    %6203 = vmatpush.msra.mxu0 %v5302
    %6204 = vmatpush.msra.mxu0 %v5298
    %6205 = vmatpush.msra.mxu0 %v5294
    %6206 = vmatpush.msra.mxu0 %v5290
    %6207 = vmatmul.f32.gmra.mxu0 %v4001
    %v6208 = vpop.f32.mrf.mxu0
    %v6209 = vadd.f32 %v6189, %v6208
    %6210 = vdwg.mxu0
    %6211 = vmatpush.msra.mxu0 %v5414
    %6212 = vmatpush.msra.mxu0 %v5410
    %6213 = vmatpush.msra.mxu0 %v5406
    %6214 = vmatpush.msra.mxu0 %v5402
    %6215 = vmatpush.msra.mxu0 %v5398
    %6216 = vmatpush.msra.mxu0 %v5394
    %6217 = vmatpush.msra.mxu0 %v5390
    %6218 = vmatpush.msra.mxu0 %v5386
    %6219 = vmatpush.msra.mxu0 %v5382
    %6220 = vmatpush.msra.mxu0 %v5378
    %6221 = vmatpush.msra.mxu0 %v5374
    %6222 = vmatpush.msra.mxu0 %v5370
    %6223 = vmatpush.msra.mxu0 %v5366
    %6224 = vmatpush.msra.mxu0 %v5362
    %6225 = vmatpush.msra.mxu0 %v5358
    %6226 = vmatpush.msra.mxu0 %v5354
    %6227 = vmatmul.f32.gmra.mxu0 %v4002
    %v6228 = vpop.f32.mrf.mxu0
    %v6229 = vadd.f32 %v6209, %v6228
    %6230 = vdwg.mxu0
    %6231 = vmatpush.msra.mxu0 %v5478
    %6232 = vmatpush.msra.mxu0 %v5474
    %6233 = vmatpush.msra.mxu0 %v5470
    %6234 = vmatpush.msra.mxu0 %v5466
    %6235 = vmatpush.msra.mxu0 %v5462
    %6236 = vmatpush.msra.mxu0 %v5458
    %6237 = vmatpush.msra.mxu0 %v5454
    %6238 = vmatpush.msra.mxu0 %v5450
    %6239 = vmatpush.msra.mxu0 %v5446
    %6240 = vmatpush.msra.mxu0 %v5442
    %6241 = vmatpush.msra.mxu0 %v5438
    %6242 = vmatpush.msra.mxu0 %v5434
    %6243 = vmatpush.msra.mxu0 %v5430
    %6244 = vmatpush.msra.mxu0 %v5426
    %6245 = vmatpush.msra.mxu0 %v5422
    %6246 = vmatpush.msra.mxu0 %v5418
    %6247 = vmatmul.f32.gmra.mxu0 %v4003
    %v6248 = vpop.f32.mrf.mxu0
    %v6249 = vadd.f32 %v6229, %v6248
    %6250 = vdwg.mxu0
    %6251 = vmatpush.msra.mxu0 %v5542
    %6252 = vmatpush.msra.mxu0 %v5538
    %6253 = vmatpush.msra.mxu0 %v5534
    %6254 = vmatpush.msra.mxu0 %v5530
    %6255 = vmatpush.msra.mxu0 %v5526
    %6256 = vmatpush.msra.mxu0 %v5522
    %6257 = vmatpush.msra.mxu0 %v5518
    %6258 = vmatpush.msra.mxu0 %v5514
    %6259 = vmatpush.msra.mxu0 %v5510
    %6260 = vmatpush.msra.mxu0 %v5506
    %6261 = vmatpush.msra.mxu0 %v5502
    %6262 = vmatpush.msra.mxu0 %v5498
    %6263 = vmatpush.msra.mxu0 %v5494
    %6264 = vmatpush.msra.mxu0 %v5490
    %6265 = vmatpush.msra.mxu0 %v5486
    %6266 = vmatpush.msra.mxu0 %v5482
    %6267 = vmatmul.f32.gmra.mxu0 %v4004
    %v6268 = vpop.f32.mrf.mxu0
    %v6269 = vadd.f32 %v6249, %v6268
    %6270 = vdwg.mxu0
    %6271 = vmatpush.msra.mxu0 %v5606
    %6272 = vmatpush.msra.mxu0 %v5602
    %6273 = vmatpush.msra.mxu0 %v5598
    %6274 = vmatpush.msra.mxu0 %v5594
    %6275 = vmatpush.msra.mxu0 %v5590
    %6276 = vmatpush.msra.mxu0 %v5586
    %6277 = vmatpush.msra.mxu0 %v5582
    %6278 = vmatpush.msra.mxu0 %v5578
    %6279 = vmatpush.msra.mxu0 %v5574
    %6280 = vmatpush.msra.mxu0 %v5570
    %6281 = vmatpush.msra.mxu0 %v5566
    %6282 = vmatpush.msra.mxu0 %v5562
    %6283 = vmatpush.msra.mxu0 %v5558
    %6284 = vmatpush.msra.mxu0 %v5554
    %6285 = vmatpush.msra.mxu0 %v5550
    %6286 = vmatpush.msra.mxu0 %v5546
    %6287 = vmatmul.f32.gmra.mxu0 %v4005
    %v6288 = vpop.f32.mrf.mxu0
    %v6289 = vadd.f32 %v6269, %v6288
    %6290 = vdwg.mxu0
    %6291 = vmatpush.msra.mxu0 %v5670
    %6292 = vmatpush.msra.mxu0 %v5666
    %6293 = vmatpush.msra.mxu0 %v5662
    %6294 = vmatpush.msra.mxu0 %v5658
    %6295 = vmatpush.msra.mxu0 %v5654
    %6296 = vmatpush.msra.mxu0 %v5650
    %6297 = vmatpush.msra.mxu0 %v5646
    %6298 = vmatpush.msra.mxu0 %v5642
    %6299 = vmatpush.msra.mxu0 %v5638
    %6300 = vmatpush.msra.mxu0 %v5634
    %6301 = vmatpush.msra.mxu0 %v5630
    %6302 = vmatpush.msra.mxu0 %v5626
    %6303 = vmatpush.msra.mxu0 %v5622
    %6304 = vmatpush.msra.mxu0 %v5618
    %6305 = vmatpush.msra.mxu0 %v5614
    %6306 = vmatpush.msra.mxu0 %v5610
    %6307 = vmatmul.f32.gmra.mxu0 %v4006
    %v6308 = vpop.f32.mrf.mxu0
    %v6309 = vadd.f32 %v6289, %v6308
    %6310 = vdwg.mxu0
    %v6311 = vmax.f32 %v4677, %v5829
    %v6312 = vmax.f32 %v4837, %v5989
    %v6313 = vmax.f32 %v4997, %v6149
    %v6314 = vmax.f32 %v5157, %v6309
    %v6315 = vld [vmem:[%s9] sm:$0xff]
    %v6316 = vld [vmem:[%s9 + $0x8] sm:$0xff]
    %v6317 = vld [vmem:[%s9 + $0x10] sm:$0xff]
    %v6318 = vld [vmem:[%s9 + $0x18] sm:$0xff]
    %v6319 = vld [vmem:[%s9 + $0x20] sm:$0xff]
    %v6320 = vld [vmem:[%s9 + $0x28] sm:$0xff]
    %v6321 = vld [vmem:[%s9 + $0x30] sm:$0xff]
    %v6322 = vld [vmem:[%s9 + $0x38] sm:$0xff]
    %v6323 = vld [vmem:[%s9 + $0x40] sm:$0xff]
    %v6324 = vld [vmem:[%s9 + $0x48] sm:$0xff]
    %v6325 = vld [vmem:[%s9 + $0x50] sm:$0xff]
    %v6326 = vld [vmem:[%s9 + $0x58] sm:$0xff]
    %v6327 = vld [vmem:[%s9 + $0x60] sm:$0xff]
    %v6328 = vld [vmem:[%s9 + $0x68] sm:$0xff]
    %v6329 = vld [vmem:[%s9 + $0x70] sm:$0xff]
    %v6330 = vld [vmem:[%s9 + $0x78] sm:$0xff]
    %v6331 = vld [vmem:[%s9 + $0x80] sm:$0xff]
    %v6332 = vld [vmem:[%s9 + $0x88] sm:$0xff]
    %v6333 = vld [vmem:[%s9 + $0x90] sm:$0xff]
    %v6334 = vld [vmem:[%s9 + $0x98] sm:$0xff]
    %v6335 = vld [vmem:[%s9 + $0xa0] sm:$0xff]
    %v6336 = vld [vmem:[%s9 + $0xa8] sm:$0xff]
    %v6337 = vld [vmem:[%s9 + $0xb0] sm:$0xff]
    %v6338 = vld [vmem:[%s9 + $0xb8] sm:$0xff]
    %v6339 = vld [vmem:[%s9 + $0xc0] sm:$0xff]
    %v6340 = vld [vmem:[%s9 + $0xc8] sm:$0xff]
    %v6341 = vld [vmem:[%s9 + $0xd0] sm:$0xff]
    %v6342 = vld [vmem:[%s9 + $0xd8] sm:$0xff]
    %v6343 = vld [vmem:[%s9 + $0xe0] sm:$0xff]
    %v6344 = vld [vmem:[%s9 + $0xe8] sm:$0xff]
    %v6345 = vld [vmem:[%s9 + $0xf0] sm:$0xff]
    %v6346 = vld [vmem:[%s9 + $0xf8] sm:$0xff]
    %v6347 = vld [vmem:[%s9 + $0x100] sm:$0xff]
    %v6348 = vld [vmem:[%s9 + $0x108] sm:$0xff]
    %v6349 = vld [vmem:[%s9 + $0x110] sm:$0xff]
    %v6350 = vld [vmem:[%s9 + $0x118] sm:$0xff]
    %v6351 = vld [vmem:[%s9 + $0x120] sm:$0xff]
    %v6352 = vld [vmem:[%s9 + $0x128] sm:$0xff]
    %v6353 = vld [vmem:[%s9 + $0x130] sm:$0xff]
    %v6354 = vld [vmem:[%s9 + $0x138] sm:$0xff]
    %v6355 = vld [vmem:[%s9 + $0x140] sm:$0xff]
    %v6356 = vld [vmem:[%s9 + $0x148] sm:$0xff]
    %v6357 = vld [vmem:[%s9 + $0x150] sm:$0xff]
    %v6358 = vld [vmem:[%s9 + $0x158] sm:$0xff]
    %v6359 = vld [vmem:[%s9 + $0x160] sm:$0xff]
    %v6360 = vld [vmem:[%s9 + $0x168] sm:$0xff]
    %v6361 = vld [vmem:[%s9 + $0x170] sm:$0xff]
    %v6362 = vld [vmem:[%s9 + $0x178] sm:$0xff]
    %v6363 = vld [vmem:[%s9 + $0x180] sm:$0xff]
    %v6364 = vld [vmem:[%s9 + $0x188] sm:$0xff]
    %v6365 = vld [vmem:[%s9 + $0x190] sm:$0xff]
    %v6366 = vld [vmem:[%s9 + $0x198] sm:$0xff]
    %v6367 = vld [vmem:[%s9 + $0x1a0] sm:$0xff]
    %v6368 = vld [vmem:[%s9 + $0x1a8] sm:$0xff]
    %v6369 = vld [vmem:[%s9 + $0x1b0] sm:$0xff]
    %v6370 = vld [vmem:[%s9 + $0x1b8] sm:$0xff]
    %v6371 = vld [vmem:[%s9 + $0x1c0] sm:$0xff]
    %v6372 = vld [vmem:[%s9 + $0x1c8] sm:$0xff]
    %v6373 = vld [vmem:[%s9 + $0x1d0] sm:$0xff]
    %v6374 = vld [vmem:[%s9 + $0x1d8] sm:$0xff]
    %v6375 = vld [vmem:[%s9 + $0x1e0] sm:$0xff]
    %v6376 = vld [vmem:[%s9 + $0x1e8] sm:$0xff]
    %v6377 = vld [vmem:[%s9 + $0x1f0] sm:$0xff]
    %v6378 = vld [vmem:[%s9 + $0x1f8] sm:$0xff]
    %v6379 = vld [vmem:[#allocation17] sm:$0x1]
    %v6381 = vperm.slane %v6379, 0
    %6383 = vmatpush.msra.mxu0 %v6330
    %6384 = vmatpush.msra.mxu0 %v6329
    %6385 = vmatpush.msra.mxu0 %v6328
    %6386 = vmatpush.msra.mxu0 %v6327
    %6387 = vmatpush.msra.mxu0 %v6326
    %6388 = vmatpush.msra.mxu0 %v6325
    %6389 = vmatpush.msra.mxu0 %v6324
    %6390 = vmatpush.msra.mxu0 %v6323
    %6391 = vmatpush.msra.mxu0 %v6322
    %6392 = vmatpush.msra.mxu0 %v6321
    %6393 = vmatpush.msra.mxu0 %v6320
    %6394 = vmatpush.msra.mxu0 %v6319
    %6395 = vmatpush.msra.mxu0 %v6318
    %6396 = vmatpush.msra.mxu0 %v6317
    %6397 = vmatpush.msra.mxu0 %v6316
    %6398 = vmatpush.msra.mxu0 %v6315
    %6399 = vmatmul.f32.gmra.mxu0 %v6311
    %v6400 = vpop.f32.mrf.mxu0
    %v6401 = vadd.f32 %v6381, %v6400
    %6402 = vdwg.mxu0
    %6403 = vmatpush.msra.mxu0 %v6346
    %6404 = vmatpush.msra.mxu0 %v6345
    %6405 = vmatpush.msra.mxu0 %v6344
    %6406 = vmatpush.msra.mxu0 %v6343
    %6407 = vmatpush.msra.mxu0 %v6342
    %6408 = vmatpush.msra.mxu0 %v6341
    %6409 = vmatpush.msra.mxu0 %v6340
    %6410 = vmatpush.msra.mxu0 %v6339
    %6411 = vmatpush.msra.mxu0 %v6338
    %6412 = vmatpush.msra.mxu0 %v6337
    %6413 = vmatpush.msra.mxu0 %v6336
    %6414 = vmatpush.msra.mxu0 %v6335
    %6415 = vmatpush.msra.mxu0 %v6334
    %6416 = vmatpush.msra.mxu0 %v6333
    %6417 = vmatpush.msra.mxu0 %v6332
    %6418 = vmatpush.msra.mxu0 %v6331
    %6419 = vmatmul.f32.gmra.mxu0 %v6312
    %v6420 = vpop.f32.mrf.mxu0
    %v6421 = vadd.f32 %v6401, %v6420
    %6422 = vdwg.mxu0
    %6423 = vmatpush.msra.mxu0 %v6362
    %6424 = vmatpush.msra.mxu0 %v6361
    %6425 = vmatpush.msra.mxu0 %v6360
    %6426 = vmatpush.msra.mxu0 %v6359
    %6427 = vmatpush.msra.mxu0 %v6358
    %6428 = vmatpush.msra.mxu0 %v6357
    %6429 = vmatpush.msra.mxu0 %v6356
    %6430 = vmatpush.msra.mxu0 %v6355
    %6431 = vmatpush.msra.mxu0 %v6354
    %6432 = vmatpush.msra.mxu0 %v6353
    %6433 = vmatpush.msra.mxu0 %v6352
    %6434 = vmatpush.msra.mxu0 %v6351
    %6435 = vmatpush.msra.mxu0 %v6350
    %6436 = vmatpush.msra.mxu0 %v6349
    %6437 = vmatpush.msra.mxu0 %v6348
    %6438 = vmatpush.msra.mxu0 %v6347
    %6439 = vmatmul.f32.gmra.mxu0 %v6313
    %v6440 = vpop.f32.mrf.mxu0
    %v6441 = vadd.f32 %v6421, %v6440
    %6442 = vdwg.mxu0
    %6443 = vmatpush.msra.mxu0 %v6378
    %6444 = vmatpush.msra.mxu0 %v6377
    %6445 = vmatpush.msra.mxu0 %v6376
    %6446 = vmatpush.msra.mxu0 %v6375
    %6447 = vmatpush.msra.mxu0 %v6374
    %6448 = vmatpush.msra.mxu0 %v6373
    %6449 = vmatpush.msra.mxu0 %v6372
    %6450 = vmatpush.msra.mxu0 %v6371
    %6451 = vmatpush.msra.mxu0 %v6370
    %6452 = vmatpush.msra.mxu0 %v6369
    %6453 = vmatpush.msra.mxu0 %v6368
    %6454 = vmatpush.msra.mxu0 %v6367
    %6455 = vmatpush.msra.mxu0 %v6366
    %6456 = vmatpush.msra.mxu0 %v6365
    %6457 = vmatpush.msra.mxu0 %v6364
    %6458 = vmatpush.msra.mxu0 %v6363
    %6459 = vmatmul.f32.gmra.mxu0 %v6314
    %v6460 = vpop.f32.mrf.mxu0
    %v6461 = vadd.f32 %v6441, %v6460
    %6462 = vdwg.mxu0
    %v6463 = vmax.f32 %v6461, 0.0
    %v6464 = vld [vmem:[%s11] sm:$0xff]
    %v6465 = vld [vmem:[%s11 + $0x8] sm:$0xff]
    %v6466 = vld [vmem:[%s11 + $0x10] sm:$0xff]
    %v6467 = vld [vmem:[%s11 + $0x18] sm:$0xff]
    %v6468 = vld [vmem:[#allocation19] sm:$0x1]
    %v6470 = vperm.slane %v6468, 0
    %vm6472 = vcmask 261120
    %v6474 = vsel %vm6472, %v6463, 0
    %6476 = vmatpush.msra.mxu0 0.0
    %6477 = vmatpush.msra.mxu0 0.0
    %6478 = vmatpush.msra.mxu0 0.0
    %6479 = vmatpush.msra.mxu0 0.0
    %6480 = vmatpush.msra.mxu0 0.0
    %6481 = vmatpush.msra.mxu0 0.0
    %6482 = vmatpush.msra.mxu0 0.0
    %6483 = vmatpush.msra.mxu0 0.0
    %6484 = vmatpush.msra.mxu0 0.0
    %6485 = vmatpush.msra.mxu0 0.0
    %6486 = vmatpush.msra.mxu0 0.0
    %6487 = vmatpush.msra.mxu0 0.0
    %6488 = vmatpush.msra.mxu0 %v6467
    %6489 = vmatpush.msra.mxu0 %v6466
    %6490 = vmatpush.msra.mxu0 %v6465
    %6491 = vmatpush.msra.mxu0 %v6464
    %6492 = vmatmul.f32.gmra.mxu0 %v6474
    %v6493 = vpop.f32.mrf.mxu0
    %v6494 = vadd.f32 %v6470, %v6493
    %6495 = vdwg.mxu0
    %vm6496 = vcmask 74752
    %6497 = vst.msk [vmem:[#allocation20] sm:$0x3] %vm6496, %v6494
    // Predicated region
    $region98: #{tpu_custom_call.1} parent=1 // pred_check
      _
    $region99: #{tpu_custom_call.1} parent=1 // pred_check_branch
      %6499 = sbr.rel (0) target = $region101
    $region100: #{tpu_custom_call.1} parent=1 // pred_region
      %6501 = vsyncadd [#allocation4], 0
      %s6503 = sshll.u32 [#allocation20], 4
      %s6504 = int_to_ptr.vmem [resolvable:$true] %s6503
      %s6505 = sshll.u32 %s13, 4
      %s6506 = int_to_ptr.hbm [resolvable:$true] %s6505
      %6508 = dma.vmem_to_hbm [thread:$0]  %s6504, 32, %s6506, [#allocation4]
    $region101: #{tpu_custom_call.1} parent=1 // pred_fallthru
      _
    // Predicated region
    $region102: #{tpu_custom_call.1} parent=1 // pred_check
      _
    $region103: #{tpu_custom_call.1} parent=1 // pred_check_branch
      %6510 = sbr.rel (0) target = $region105
    $region104: #{tpu_custom_call.1} parent=1 // pred_region
      %6512 = dma.done [#allocation4], 32
    $region105: #{tpu_custom_call.1} parent=1 // pred_fallthru
      _
    %6513 = vsyncpa [#allocation3], 1
    %6514 = vsyncpa [#allocation6], 1
    %6515 = vsyncpa [#allocation9], 1
    %6516 = vsyncpa [#allocation12], 1
    %6517 = vsyncpa [#allocation15], 1
    %6518 = vsyncpa [#allocation18], 1
    %6519 = vsyncpa [#allocation4], 1

</llo_original>
